<compile_context>
chip_gen: v5e
topology: v5e:2x2
jax: 0.10.0
libtpu: 0.0.40
codegen_flags: <defaults>
</compile_context>

<pallas_src>
import functools

import jax
import jax.numpy as jnp
from jax import lax
from jax.experimental import pallas as pl
from jax.experimental.pallas import tpu as pltpu


def mainmodel_kernel(att_w_ref, x_ref, cls_w_ref, logits_ref, pooled_ref):
    # att_w_ref : SMEM (2,) f32            attention 1x1 conv weights [w_mean, w_max]
    # x_ref     : VMEM (Bt, C, HW)         backbone features (bf16 or f32), NCHW flattened
    # cls_w_ref : VMEM (ncls, C) f32       classifier weight, PyTorch Linear layout
    # logits_ref: VMEM (Bt, 1, ncls) f32
    # pooled_ref: VMEM (Bt, 1, C)    f32
    xf = x_ref[...].astype(jnp.float32)                        # all math in f32 (v5e-safe)

    # Channel statistics: reduction over C (sublane axis).
    mean_c = jnp.mean(xf, axis=1, keepdims=True)               # (Bt, 1, HW)
    max_c = jnp.max(xf, axis=1, keepdims=True)                 # (Bt, 1, HW)

    # attention = sigmoid(Conv2d(2, 1, kernel_size=1, bias=False))
    att = jax.nn.sigmoid(att_w_ref[0] * mean_c + att_w_ref[1] * max_c)

    # att_type='two': 0.65*f + 0.35*(att*f), then ReLU (resnet50 branch).
    feat = jnp.maximum(xf * (0.65 + 0.35 * att), 0.0)          # (Bt, C, HW)

    # adaptive_avg_pool2d(., (1,1)) followed by AdaptiveAvgPool2d(1) == global spatial mean.
    pooled = jnp.mean(feat, axis=2)                            # (Bt, C)
    pooled_ref[...] = pooled[:, None, :]

    # classifier: Linear(2048, ncls, bias=False)  ==  pooled @ W.T  (contract last axes).
    logits = lax.dot_general(pooled, cls_w_ref[...],
                             dimension_numbers=(((1,), (1,)), ((), ())),
                             preferred_element_type=jnp.float32)
    logits_ref[...] = logits[:, None, :]


def _pick_batch_tile(B, C, HW, itemsize, vmem_budget_bytes=2 << 20):
    """Largest divisor of B whose double-buffered feature block fits the budget
    while keeping >= 2 grid steps (so both v7x TensorCores get work)."""
    bt = 1
    for d in range(1, B + 1):
        if B % d != 0:
            continue
        if B > 1 and (B // d) < 2:        # keep >= 2 parallel grid steps
            continue
        if 2 * d * C * HW * itemsize > vmem_budget_bytes:
            continue
        bt = d
    return bt


@functools.partial(jax.jit, static_argnames=("batch_tile",))
def mainmodel_forward(x_feat, att_w, cls_w, *, batch_tile=None):
    """x_feat: (B, C, H, W) NCHW backbone features (bf16 preferred, f32 accepted).
       att_w : (2,) f32 attention conv weights (Conv2d(2,1,1,bias=False) squeezed).
       cls_w : (ncls, C) f32 classifier weight (PyTorch Linear layout).
       Returns [logits (B, ncls), pooled_features (B, C)] like the torch `out` list."""
    B, C, H, W = x_feat.shape
    HW = H * W
    ncls = cls_w.shape[0]

    # Free reshape: collapses contiguous trailing dims, no transpose / HBM round-trip.
    x_r = x_feat.reshape(B, C, HW)

    bt = batch_tile if batch_tile is not None else _pick_batch_tile(
        B, C, HW, x_feat.dtype.itemsize)

    logits, pooled = pl.pallas_call(
        mainmodel_kernel,
        out_shape=(
            jax.ShapeDtypeStruct((B, 1, ncls), jnp.float32),
            jax.ShapeDtypeStruct((B, 1, C), jnp.float32),
        ),
        grid=(B // bt,),
        in_specs=[
            pl.BlockSpec(memory_space=pltpu.MemorySpace.SMEM),   # att_w scalars
            pl.BlockSpec((bt, C, HW), lambda b: (b, 0, 0)),      # features, NCHW layout
            pl.BlockSpec((ncls, C), lambda b: (0, 0)),           # classifier W (lane-dense on C)
        ],
        out_specs=(
            pl.BlockSpec((bt, 1, ncls), lambda b: (b, 0, 0)),
            pl.BlockSpec((bt, 1, C), lambda b: (b, 0, 0)),
        ),
        compiler_params=pltpu.CompilerParams(
            dimension_semantics=("parallel",)),
    )(att_w, x_r, cls_w)

    return [logits.reshape(B, ncls), pooled.reshape(B, C)]


def ref_forward(x_feat_f32, att_w, cls_w):
    # Pure-JAX reference mirroring the PyTorch forward (f32 throughout).
    mean_c = jnp.mean(x_feat_f32, axis=1, keepdims=True)
    max_c = jnp.max(x_feat_f32, axis=1, keepdims=True)
    att = jax.nn.sigmoid(att_w[0] * mean_c + att_w[1] * max_c)
    feat = jnp.maximum(0.65 * x_feat_f32 + 0.35 * att * x_feat_f32, 0.0)
    pooled = jnp.mean(feat, axis=(2, 3))
    logits = pooled @ cls_w.T
    return [logits, pooled]


if __name__ == "__main__":
    B, C, H, W = 2, 2048, 8, 8     # resnet50 trunk output: 2048 channels, 8x8 feature map
    NCLS = 8

    key = jax.random.PRNGKey(0)
    k_x, k_att, k_cls = jax.random.split(key, 3)
    # Features are shipped to the kernel as bf16 (halves HBM traffic); in a real
    # pipeline the backbone would emit bf16 directly.
    x_feat = jax.random.normal(k_x, (B, C, H, W), dtype=jnp.float32).astype(jnp.bfloat16)
    att_w = jax.random.normal(k_att, (2,), dtype=jnp.float32) * 0.5        # Conv2d(2,1,1,bias=False)
    cls_w = jax.random.normal(k_cls, (NCLS, C), dtype=jnp.float32) * 0.02  # Linear(2048, ncls, bias=False)

    out = mainmodel_forward(x_feat, att_w, cls_w)
    out = jax.block_until_ready(out)

    # Reference on the same (bf16-quantized) features, upcast to f32 — the kernel
    # does all its math in f32 after the load, so results should match tightly.
    ref = ref_forward(x_feat.astype(jnp.float32), att_w, cls_w)
    for o, r in zip(out, ref):
        assert o.shape == r.shape, (o.shape, r.shape)
        assert jnp.allclose(o, r, atol=1e-3, rtol=1e-3), float(jnp.max(jnp.abs(o - r)))

    print("KERNEL_OK")
</pallas_src>

<mosaic_0001>
module attributes {stable_mosaic.version = 11 : i64} {
  func.func @mainmodel_kernel(%arg0: i32, %arg1: memref<2xf32, #tpu.memory_space<smem>>, %arg2: memref<1x2048x64xbf16, #tpu.memory_space<vmem>>, %arg3: memref<8x2048xf32, #tpu.memory_space<vmem>>, %arg4: memref<1x1x8xf32, #tpu.memory_space<vmem>>, %arg5: memref<1x1x2048xf32, #tpu.memory_space<vmem>>) attributes {dimension_semantics = [#tpu.dimension_semantics<parallel>], iteration_bounds = array<i64: 2>, scalar_prefetch = 0 : i64, scratch_operands = 0 : i64, tpu.core_type = #tpu.core_type<tc>, window_params = [{transform_indices = @transform_0, window_bounds = array<i64: 2>}, {transform_indices = @transform_1, window_bounds = array<i64: 1, 2048, 64>}, {pipeline_mode = #tpu.pipeline_mode<synchronous>, transform_indices = @transform_2, window_bounds = array<i64: 8, 2048>}, {transform_indices = @transform_3, window_bounds = array<i64: 1, 1, 8>}, {transform_indices = @transform_4, window_bounds = array<i64: 1, 1, 2048>}]} {
    %c0 = arith.constant 0 : index
    %c0_0 = arith.constant 0 : index
    %c0_1 = arith.constant 0 : index
    %0 = vector.load %arg2[%c0, %c0_0, %c0_1] : memref<1x2048x64xbf16, #tpu.memory_space<vmem>>, vector<1x2048x64xbf16>
    %1 = arith.extf %0 : vector<1x2048x64xbf16> to vector<1x2048x64xf32>
    %cst = arith.constant dense<0.000000e+00> : vector<1x64xf32>
    %2 = vector.multi_reduction <add>, %1, %cst [1] : vector<1x2048x64xf32> to vector<1x64xf32>
    %3 = vector.shape_cast %2 : vector<1x64xf32> to vector<1x1x64xf32>
    %cst_2 = arith.constant 2.048000e+03 : f32
    %4 = vector.broadcast %cst_2 : f32 to vector<1x1x64xf32>
    %5 = arith.divf %3, %4 : vector<1x1x64xf32>
    %cst_3 = arith.constant dense<0xFF800000> : vector<1x64xf32>
    %6 = vector.multi_reduction <maximumf>, %1, %cst_3 [1] : vector<1x2048x64xf32> to vector<1x64xf32>
    %7 = vector.shape_cast %6 : vector<1x64xf32> to vector<1x1x64xf32>
    %c0_4 = arith.constant 0 : index
    %8 = memref.load %arg1[%c0_4] : memref<2xf32, #tpu.memory_space<smem>>
    %9 = vector.broadcast %8 : f32 to vector<1x1x64xf32>
    %10 = arith.mulf %9, %5 : vector<1x1x64xf32>
    %c1 = arith.constant 1 : index
    %11 = memref.load %arg1[%c1] : memref<2xf32, #tpu.memory_space<smem>>
    %12 = vector.broadcast %11 : f32 to vector<1x1x64xf32>
    %13 = arith.mulf %12, %7 : vector<1x1x64xf32>
    %14 = arith.addf %10, %13 : vector<1x1x64xf32>
    %15 = arith.negf %14 : vector<1x1x64xf32>
    %16 = math.exp %15 : vector<1x1x64xf32>
    %cst_5 = arith.constant 1.000000e+00 : f32
    %17 = vector.broadcast %cst_5 : f32 to vector<1x1x64xf32>
    %18 = arith.addf %17, %16 : vector<1x1x64xf32>
    %19 = arith.divf %17, %18 : vector<1x1x64xf32>
    %cst_6 = arith.constant 3.500000e-01 : f32
    %20 = vector.broadcast %cst_6 : f32 to vector<1x1x64xf32>
    %21 = arith.mulf %20, %19 : vector<1x1x64xf32>
    %cst_7 = arith.constant 6.500000e-01 : f32
    %22 = vector.broadcast %cst_7 : f32 to vector<1x1x64xf32>
    %23 = arith.addf %22, %21 : vector<1x1x64xf32>
    %24 = vector.broadcast %23 : vector<1x1x64xf32> to vector<1x2048x64xf32>
    %25 = arith.mulf %1, %24 : vector<1x2048x64xf32>
    %cst_8 = arith.constant 0.000000e+00 : f32
    %26 = vector.broadcast %cst_8 : f32 to vector<1x2048x64xf32>
    %27 = arith.maximumf %25, %26 : vector<1x2048x64xf32>
    %cst_9 = arith.constant dense<0.000000e+00> : vector<1x2048xf32>
    %28 = vector.multi_reduction <add>, %27, %cst_9 [2] : vector<1x2048x64xf32> to vector<1x2048xf32>
    %cst_10 = arith.constant 6.400000e+01 : f32
    %29 = vector.broadcast %cst_10 : f32 to vector<1x2048xf32>
    %30 = arith.divf %28, %29 : vector<1x2048xf32>
    %31 = vector.shape_cast %30 : vector<1x2048xf32> to vector<1x1x2048xf32>
    %c0_11 = arith.constant 0 : index
    %c0_12 = arith.constant 0 : index
    %c0_13 = arith.constant 0 : index
    %32 = vector.load %arg5[%c0_11, %c0_12, %c0_13] : memref<1x1x2048xf32, #tpu.memory_space<vmem>>, vector<1x1x2048xf32>
    tpu.vector_store %arg5[%c0_11, %c0_12, %c0_13], %31 {strides = array<i32>} : memref<1x1x2048xf32, #tpu.memory_space<vmem>>, vector<1x1x2048xf32>,
    %c0_14 = arith.constant 0 : index
    %c0_15 = arith.constant 0 : index
    %33 = vector.load %arg3[%c0_14, %c0_15] : memref<8x2048xf32, #tpu.memory_space<vmem>>, vector<8x2048xf32>
    %cst_16 = arith.constant dense<0.000000e+00> : vector<1x8xf32>
    %34 = tpu.matmul %30, %33, %cst_16 {dimension_numbers = #tpu.dot_dimension_numbers<[1], [1], [0], [0], [0, 0, 1, 0], [], []>} : vector<1x2048xf32>, vector<8x2048xf32>, vector<1x8xf32> -> vector<1x8xf32>
    %35 = vector.shape_cast %34 : vector<1x8xf32> to vector<1x1x8xf32>
    %c0_17 = arith.constant 0 : index
    %c0_18 = arith.constant 0 : index
    %c0_19 = arith.constant 0 : index
    %36 = vector.load %arg4[%c0_17, %c0_18, %c0_19] : memref<1x1x8xf32, #tpu.memory_space<vmem>>, vector<1x1x8xf32>
    tpu.vector_store %arg4[%c0_17, %c0_18, %c0_19], %35 {strides = array<i32>} : memref<1x1x8xf32, #tpu.memory_space<vmem>>, vector<1x1x8xf32>,
    return
  }
  func.func @transform_0(%arg0: i32) -> i32 {
    %c0_i32 = arith.constant 0 : i32
    %c0_i32_0 = arith.constant 0 : i32
    return %c0_i32 : i32
  }
  func.func @transform_1(%arg0: i32) -> (i32, i32, i32) {
    %c0_i32 = arith.constant 0 : i32
    %c0_i32_0 = arith.constant 0 : i32
    %c0_i32_1 = arith.constant 0 : i32
    return %arg0, %c0_i32, %c0_i32_0 : i32, i32, i32
  }
  func.func @transform_2(%arg0: i32) -> (i32, i32) {
    %c0_i32 = arith.constant 0 : i32
    %c0_i32_0 = arith.constant 0 : i32
    %c0_i32_1 = arith.constant 0 : i32
    return %c0_i32, %c0_i32_0 : i32, i32
  }
  func.func @transform_3(%arg0: i32) -> (i32, i32, i32) {
    %c0_i32 = arith.constant 0 : i32
    %c0_i32_0 = arith.constant 0 : i32
    %c0_i32_1 = arith.constant 0 : i32
    return %arg0, %c0_i32, %c0_i32_0 : i32, i32, i32
  }
  func.func @transform_4(%arg0: i32) -> (i32, i32, i32) {
    %c0_i32 = arith.constant 0 : i32
    %c0_i32_0 = arith.constant 0 : i32
    %c0_i32_1 = arith.constant 0 : i32
    return %arg0, %c0_i32, %c0_i32_0 : i32, i32, i32
  }
}

</mosaic_0001>

<llo_original>
// kernel: mainmodel_forward.1
$region0: #{mainmodel_forward.1}
  #allocation0 [shape = 'u32[]', space=smem, size = 0x4, offset = 0x4, fixed_abs, tag = 'smem constant byte address 0x4 - core index']
  #allocation1 [shape = 'u32[72,128]{1,0:T(1,128)}', space=vmem, size = 0x9000, scoped, tag = 'internal scratch']
  %s0 = inlined_call_operand.vmem [shape: f32[2], index: 0, kind: input, shape index: {}]
  %s1 = inlined_call_operand.vmem [shape: bf16[2,2048,64], index: 1, kind: input, shape index: {}]
  %s2 = inlined_call_operand.vmem [shape: f32[8,2048], index: 2, kind: input, shape index: {}]
  %s3 = inlined_call_operand.hbm [shape: f32[2,1,8], index: 3, kind: output, shape index: {0}]
  %s4 = inlined_call_operand.vmem [shape: f32[2,1,2048], index: 4, kind: output, shape index: {1}]
  %5 = xla_tuple %s3, %s4
  %s6 = sld [smem:[#allocation0]]
  $region57: #{mainmodel_forward.1} parent=0
    _
  %s8 = ssub.s32 1, %s6
  %s9 = scalar_select 0, %s8, %s6
  $region1: #{mainmodel_forward.1} parent=0
    #allocation2 [shape = 'u8[512]{0}', space=smem, size = 0x200, scoped, tag = 'input window, operand 0, single buffered']
    #allocation3 [shape = 's32[2]{0}', space=sflag, size = 0x8, scoped, tag = 'scoped memory for mainmodel_forward.1']
    #allocation4 [shape = 's32[2]{0}', space=sflag, size = 0x8, scoped, tag = 'scoped memory for mainmodel_forward.1']
    #allocation5 [shape = 'u8[1024]{0}', space=vmem, size = 0x400, scoped, tag = 'output window, operand 0']
    %10 = vsyncpa [#allocation4], 0
    %11 = vsyncpa [#allocation3], 0
    %s12 = scalar_lea.sflag [#allocation3], 1
    %13 = vsyncpa %s12, 0
    loop: start=0, step=1, limit=4
    $region2: #{mainmodel_forward.1} parent=1 // loop_pre_header
      _
    $region3: #{mainmodel_forward.1} parent=1 // loop_header
      %s15 = sphi 0, %s19
      %p16 = scmp.ge.s32.totalorder %s15, 4
      %s23 = sphi 0, %s23
      %s25 = sphi 0, %s23
      %s26 = sphi 0, %s25
      %s40 = sphi 0, %s26
      %s46 = sphi 0, %s48
      %s49 = sphi 0, %s46
      %s50 = sphi 0, %s49
      %s66 = sphi 0, %s50
      %s70 = sphi 0, %s70
      %s72 = sphi 0, %s70
      %s73 = sphi 0, %s72
      %s87 = sphi 0, %s73
      %s93 = sphi 0, %s95
      %s96 = sphi 0, %s93
      %s97 = sphi 0, %s96
      %s113 = sphi 0, %s97
      %s119 = sphi 0, %s121
      %s122 = sphi 0, %s119
      %s123 = sphi 0, %s122
      %s139 = sphi 0, %s123
    $region4: #{mainmodel_forward.1} parent=1 // loop_header_branch
      %18 = sbr.rel (%p16) target = $region8
    $region5: #{mainmodel_forward.1} parent=1 // loop_body
      %s20 = ssub.s32 %s15, 1
      %s21 = ssub.s32 %s15, 2
      %s22 = sadd.s32 %s15, 1
      %s24 = sadd.s32 %s23, 1
      %p27 = scmp.eq.s32.totalorder %s15, 1
      %p28 = scmp.ne.s32.totalorder %s23, %s25
      %p29 = scmp.eq.s32.totalorder %s15, 0
      %p30 = por %p28, %p29
      %p31 = scmp.ne.s32.totalorder %s23, %s25
      %p32 = scmp.eq.s32.totalorder %s20, 1
      %p33 = por %p31, %p32
      %p34 = scmp.ne.s32.totalorder %s25, %s26
      %p35 = scmp.eq.s32.totalorder %s20, 0
      %p36 = por %p34, %p35
      %p37 = scmp.ne.s32.totalorder %s25, %s26
      %p38 = scmp.eq.s32.totalorder %s21, 1
      %p39 = por %p37, %p38
      %p41 = scmp.ne.s32.totalorder %s26, %s40
      %p42 = scmp.eq.s32.totalorder %s21, 0
      %p43 = por %p41, %p42
      %s44 = ssub.s32 %s15, %s22
      %p45 = scmp.eq.s32.totalorder %s44, 0
      %s47 = sadd.s32 %s46, 1
      %s48 = scalar_select %p45, %s46, %s47
      %p51 = pneg %p45
      %p52 = scmp.eq.s32.totalorder %s15, 1
      %p53 = por %p51, %p52
      %p54 = scmp.ne.s32.totalorder %s46, %s49
      %p55 = scmp.eq.s32.totalorder %s15, 0
      %p56 = por %p54, %p55
      %p57 = scmp.ne.s32.totalorder %s46, %s49
      %p58 = scmp.eq.s32.totalorder %s20, 1
      %p59 = por %p57, %p58
      %p60 = scmp.ne.s32.totalorder %s49, %s50
      %p61 = scmp.eq.s32.totalorder %s20, 0
      %p62 = por %p60, %p61
      %p63 = scmp.ne.s32.totalorder %s49, %s50
      %p64 = scmp.eq.s32.totalorder %s21, 1
      %p65 = por %p63, %p64
      %p67 = scmp.ne.s32.totalorder %s50, %s66
      %p68 = scmp.eq.s32.totalorder %s21, 0
      %p69 = por %p67, %p68
      %s71 = sadd.s32 %s70, 1
      %p74 = scmp.eq.s32.totalorder %s15, 1
      %p75 = scmp.ne.s32.totalorder %s70, %s72
      %p76 = scmp.eq.s32.totalorder %s15, 0
      %p77 = por %p75, %p76
      %p78 = scmp.ne.s32.totalorder %s70, %s72
      %p79 = scmp.eq.s32.totalorder %s20, 1
      %p80 = por %p78, %p79
      %p81 = scmp.ne.s32.totalorder %s72, %s73
      %p82 = scmp.eq.s32.totalorder %s20, 0
      %p83 = por %p81, %p82
      %p84 = scmp.ne.s32.totalorder %s72, %s73
      %p85 = scmp.eq.s32.totalorder %s21, 1
      %p86 = por %p84, %p85
      %p88 = scmp.ne.s32.totalorder %s73, %s87
      %p89 = scmp.eq.s32.totalorder %s21, 0
      %p90 = por %p88, %p89
      %s91 = ssub.s32 %s15, %s22
      %p92 = scmp.eq.s32.totalorder %s91, 0
      %s94 = sadd.s32 %s93, 1
      %s95 = scalar_select %p92, %s93, %s94
      %p98 = pneg %p92
      %p99 = scmp.eq.s32.totalorder %s15, 1
      %p100 = por %p98, %p99
      %p101 = scmp.ne.s32.totalorder %s93, %s96
      %p102 = scmp.eq.s32.totalorder %s15, 0
      %p103 = por %p101, %p102
      %p104 = scmp.ne.s32.totalorder %s93, %s96
      %p105 = scmp.eq.s32.totalorder %s20, 1
      %p106 = por %p104, %p105
      %p107 = scmp.ne.s32.totalorder %s96, %s97
      %p108 = scmp.eq.s32.totalorder %s20, 0
      %p109 = por %p107, %p108
      %p110 = scmp.ne.s32.totalorder %s96, %s97
      %p111 = scmp.eq.s32.totalorder %s21, 1
      %p112 = por %p110, %p111
      %p114 = scmp.ne.s32.totalorder %s97, %s113
      %p115 = scmp.eq.s32.totalorder %s21, 0
      %p116 = por %p114, %p115
      %s117 = ssub.s32 %s15, %s22
      %p118 = scmp.eq.s32.totalorder %s117, 0
      %s120 = sadd.s32 %s119, 1
      %s121 = scalar_select %p118, %s119, %s120
      %p124 = pneg %p118
      %p125 = scmp.eq.s32.totalorder %s15, 1
      %p126 = por %p124, %p125
      %p127 = scmp.ne.s32.totalorder %s119, %s122
      %p128 = scmp.eq.s32.totalorder %s15, 0
      %p129 = por %p127, %p128
      %p130 = scmp.ne.s32.totalorder %s119, %s122
      %p131 = scmp.eq.s32.totalorder %s20, 1
      %p132 = por %p130, %p131
      %p133 = scmp.ne.s32.totalorder %s122, %s123
      %p134 = scmp.eq.s32.totalorder %s20, 0
      %p135 = por %p133, %p134
      %p136 = scmp.ne.s32.totalorder %s122, %s123
      %p137 = scmp.eq.s32.totalorder %s21, 1
      %p138 = por %p136, %p137
      %p140 = scmp.ne.s32.totalorder %s123, %s139
      %p141 = scmp.eq.s32.totalorder %s21, 0
      %p142 = por %p140, %p141
      %p143 = scmp.le.s32.totalorder 1, %s15
      %p144 = scmp.lt.s32.totalorder %s15, 3
      %p145 = pnand %p143, %p144
      %p146 = pneg %p145
      // Predicated region
      $region9: #{mainmodel_forward.1} parent=5 // pred_check
        _
      $region10: #{mainmodel_forward.1} parent=5 // pred_check_branch
        %148 = sbr.rel (%p145) target = $region12
      $region11: #{mainmodel_forward.1} parent=5 // pred_region
        %s149 = ssub.s32 %s15, 1
        // Predicated region
        $region13: #{mainmodel_forward.1} parent=11 // pred_check
          %p150 = pneg %p36
        $region14: #{mainmodel_forward.1} parent=11 // pred_check_branch
          %152 = sbr.rel (%p150) target = $region16
        $region15: #{mainmodel_forward.1} parent=11 // pred_region
          %154 = vsyncadd [#allocation4], 0
          %s156 = sshll.u32 %s0, 4
          %s157 = int_to_ptr.vmem [resolvable:$true] %s156
          %159 = dma.vmem_to_smem %s157, 16, [#allocation2], [#allocation4]
        $region16: #{mainmodel_forward.1} parent=11 // pred_fallthru
          _
        // Predicated region
        $region17: #{mainmodel_forward.1} parent=11 // pred_check
          %p160 = pneg %p83
        $region18: #{mainmodel_forward.1} parent=11 // pred_check_branch
          %162 = sbr.rel (%p160) target = $region20
        $region19: #{mainmodel_forward.1} parent=11 // pred_region
          _
        $region20: #{mainmodel_forward.1} parent=11 // pred_fallthru
          _
      $region12: #{mainmodel_forward.1} parent=5 // pred_fallthru
        _
      %p163 = scmp.lt.s32.totalorder %s15, 2
      // Predicated region
      $region21: #{mainmodel_forward.1} parent=5 // pred_check
        %p164 = pneg %p163
      $region22: #{mainmodel_forward.1} parent=5 // pred_check_branch
        %166 = sbr.rel (%p164) target = $region24
      $region23: #{mainmodel_forward.1} parent=5 // pred_region
        // Predicated region
        $region25: #{mainmodel_forward.1} parent=23 // pred_check
          %p167 = pneg %p56
        $region26: #{mainmodel_forward.1} parent=23 // pred_check_branch
          %169 = sbr.rel (%p167) target = $region28
        $region27: #{mainmodel_forward.1} parent=23 // pred_region
          %p170 = scmp.lt.s32.totalorder %s15, 1
          %s171 = scalar_select %p170, %s15, 1
          %s172 = smul.addr %s171, 256
          %s173 = smul.addr %s172, 4
          %s174 = scalar_lea.vmem %s1, %s173
        $region28: #{mainmodel_forward.1} parent=23 // pred_fallthru
          _
      $region24: #{mainmodel_forward.1} parent=5 // pred_fallthru
        _
      %p175 = scmp.le.s32.totalorder 1, %s15
      %p176 = scmp.lt.s32.totalorder %s15, 3
      %p177 = pnand %p175, %p176
      %p178 = pneg %p177
      // Predicated region
      $region29: #{mainmodel_forward.1} parent=5 // pred_check
        _
      $region30: #{mainmodel_forward.1} parent=5 // pred_check_branch
        %180 = sbr.rel (%p177) target = $region32
      $region31: #{mainmodel_forward.1} parent=5 // pred_region
        %s181 = ssub.s32 %s15, 1
        // Predicated region
        $region33: #{mainmodel_forward.1} parent=31 // pred_check
          %p182 = pneg %p36
        $region34: #{mainmodel_forward.1} parent=31 // pred_check_branch
          %184 = sbr.rel (%p182) target = $region36
        $region35: #{mainmodel_forward.1} parent=31 // pred_region
          %186 = dma.done [#allocation4], 16
        $region36: #{mainmodel_forward.1} parent=31 // pred_fallthru
          _
        %187 = sfence
        %p188 = pneg %p36
        %p189 = pneg %p33
        %p190 = scmp.lt.s32.totalorder %s20, 1
        %s191 = scalar_select %p190, %s20, 1
        %s192 = smul.addr %s191, 256
        %s193 = smul.addr %s192, 4
        %s194 = scalar_lea.vmem %s1, %s193
        %p195 = pneg %p62
        %p196 = pneg %p59
        %p197 = pneg %p83
        %p198 = pneg %p80
        %p199 = pneg %p109
        %p200 = pneg %p106
        %s201 = sand.u32 %s96, 1
        %s202 = scalar_lea.sflag [#allocation3], %s201
        %s203 = sand.u32 %s96, 1
        %s204 = scalar_lea.vmem [#allocation5], %s203
        %p205 = pneg %p135
        %p206 = pneg %p132
        %p207 = scmp.lt.s32.totalorder %s20, 1
        %s208 = scalar_select %p207, %s20, 1
        %s209 = smul.addr %s208, 16
        %s210 = scalar_lea.vmem %s4, %s209
        %p211 = scmp.lt.s32.totalorder %s20, 1
        %s212 = scalar_select %p211, %s20, 1
        %s213 = smul.addr %s212, 256
        %s214 = smul.addr %s213, 4
        %s215 = scalar_lea.vmem %s1, %s214
        %p216 = scmp.lt.s32.totalorder %s20, 1
        %s217 = scalar_select %p216, %s20, 1
        %s218 = smul.addr %s217, 16
        %s219 = scalar_lea.vmem %s4, %s218
        %v220 = vld [vmem:[%s215] sm:$0xf]
        %v221 = vld [vmem:[%s215 + $0x4] sm:$0xf]
        %v222 = vld [vmem:[%s215 + $0x8] sm:$0xf]
        %v223 = vld [vmem:[%s215 + $0xc] sm:$0xf]
        %v224 = vld [vmem:[%s215 + $0x10] sm:$0xf]
        %v225 = vld [vmem:[%s215 + $0x14] sm:$0xf]
        %v226 = vld [vmem:[%s215 + $0x18] sm:$0xf]
        %v227 = vld [vmem:[%s215 + $0x1c] sm:$0xf]
        %v228 = vld [vmem:[%s215 + $0x20] sm:$0xf]
        %v229 = vld [vmem:[%s215 + $0x24] sm:$0xf]
        %v230 = vld [vmem:[%s215 + $0x28] sm:$0xf]
        %v231 = vld [vmem:[%s215 + $0x2c] sm:$0xf]
        %v232 = vld [vmem:[%s215 + $0x30] sm:$0xf]
        %v233 = vld [vmem:[%s215 + $0x34] sm:$0xf]
        %v234 = vld [vmem:[%s215 + $0x38] sm:$0xf]
        %v235 = vld [vmem:[%s215 + $0x3c] sm:$0xf]
        %v236 = vld [vmem:[%s215 + $0x40] sm:$0xf]
        %v237 = vld [vmem:[%s215 + $0x44] sm:$0xf]
        %v238 = vld [vmem:[%s215 + $0x48] sm:$0xf]
        %v239 = vld [vmem:[%s215 + $0x4c] sm:$0xf]
        %v240 = vld [vmem:[%s215 + $0x50] sm:$0xf]
        %v241 = vld [vmem:[%s215 + $0x54] sm:$0xf]
        %v242 = vld [vmem:[%s215 + $0x58] sm:$0xf]
        %v243 = vld [vmem:[%s215 + $0x5c] sm:$0xf]
        %v244 = vld [vmem:[%s215 + $0x60] sm:$0xf]
        %v245 = vld [vmem:[%s215 + $0x64] sm:$0xf]
        %v246 = vld [vmem:[%s215 + $0x68] sm:$0xf]
        %v247 = vld [vmem:[%s215 + $0x6c] sm:$0xf]
        %v248 = vld [vmem:[%s215 + $0x70] sm:$0xf]
        %v249 = vld [vmem:[%s215 + $0x74] sm:$0xf]
        %v250 = vld [vmem:[%s215 + $0x78] sm:$0xf]
        %v251 = vld [vmem:[%s215 + $0x7c] sm:$0xf]
        %v252 = vld [vmem:[%s215 + $0x80] sm:$0xf]
        %v253 = vld [vmem:[%s215 + $0x84] sm:$0xf]
        %v254 = vld [vmem:[%s215 + $0x88] sm:$0xf]
        %v255 = vld [vmem:[%s215 + $0x8c] sm:$0xf]
        %v256 = vld [vmem:[%s215 + $0x90] sm:$0xf]
        %v257 = vld [vmem:[%s215 + $0x94] sm:$0xf]
        %v258 = vld [vmem:[%s215 + $0x98] sm:$0xf]
        %v259 = vld [vmem:[%s215 + $0x9c] sm:$0xf]
        %v260 = vld [vmem:[%s215 + $0xa0] sm:$0xf]
        %v261 = vld [vmem:[%s215 + $0xa4] sm:$0xf]
        %v262 = vld [vmem:[%s215 + $0xa8] sm:$0xf]
        %v263 = vld [vmem:[%s215 + $0xac] sm:$0xf]
        %v264 = vld [vmem:[%s215 + $0xb0] sm:$0xf]
        %v265 = vld [vmem:[%s215 + $0xb4] sm:$0xf]
        %v266 = vld [vmem:[%s215 + $0xb8] sm:$0xf]
        %v267 = vld [vmem:[%s215 + $0xbc] sm:$0xf]
        %v268 = vld [vmem:[%s215 + $0xc0] sm:$0xf]
        %v269 = vld [vmem:[%s215 + $0xc4] sm:$0xf]
        %v270 = vld [vmem:[%s215 + $0xc8] sm:$0xf]
        %v271 = vld [vmem:[%s215 + $0xcc] sm:$0xf]
        %v272 = vld [vmem:[%s215 + $0xd0] sm:$0xf]
        %v273 = vld [vmem:[%s215 + $0xd4] sm:$0xf]
        %v274 = vld [vmem:[%s215 + $0xd8] sm:$0xf]
        %v275 = vld [vmem:[%s215 + $0xdc] sm:$0xf]
        %v276 = vld [vmem:[%s215 + $0xe0] sm:$0xf]
        %v277 = vld [vmem:[%s215 + $0xe4] sm:$0xf]
        %v278 = vld [vmem:[%s215 + $0xe8] sm:$0xf]
        %v279 = vld [vmem:[%s215 + $0xec] sm:$0xf]
        %v280 = vld [vmem:[%s215 + $0xf0] sm:$0xf]
        %v281 = vld [vmem:[%s215 + $0xf4] sm:$0xf]
        %v282 = vld [vmem:[%s215 + $0xf8] sm:$0xf]
        %v283 = vld [vmem:[%s215 + $0xfc] sm:$0xf]
        %v284 = vld [vmem:[%s215 + $0x100] sm:$0xf]
        %v285 = vld [vmem:[%s215 + $0x104] sm:$0xf]
        %v286 = vld [vmem:[%s215 + $0x108] sm:$0xf]
        %v287 = vld [vmem:[%s215 + $0x10c] sm:$0xf]
        %v288 = vld [vmem:[%s215 + $0x110] sm:$0xf]
        %v289 = vld [vmem:[%s215 + $0x114] sm:$0xf]
        %v290 = vld [vmem:[%s215 + $0x118] sm:$0xf]
        %v291 = vld [vmem:[%s215 + $0x11c] sm:$0xf]
        %v292 = vld [vmem:[%s215 + $0x120] sm:$0xf]
        %v293 = vld [vmem:[%s215 + $0x124] sm:$0xf]
        %v294 = vld [vmem:[%s215 + $0x128] sm:$0xf]
        %v295 = vld [vmem:[%s215 + $0x12c] sm:$0xf]
        %v296 = vld [vmem:[%s215 + $0x130] sm:$0xf]
        %v297 = vld [vmem:[%s215 + $0x134] sm:$0xf]
        %v298 = vld [vmem:[%s215 + $0x138] sm:$0xf]
        %v299 = vld [vmem:[%s215 + $0x13c] sm:$0xf]
        %v300 = vld [vmem:[%s215 + $0x140] sm:$0xf]
        %v301 = vld [vmem:[%s215 + $0x144] sm:$0xf]
        %v302 = vld [vmem:[%s215 + $0x148] sm:$0xf]
        %v303 = vld [vmem:[%s215 + $0x14c] sm:$0xf]
        %v304 = vld [vmem:[%s215 + $0x150] sm:$0xf]
        %v305 = vld [vmem:[%s215 + $0x154] sm:$0xf]
        %v306 = vld [vmem:[%s215 + $0x158] sm:$0xf]
        %v307 = vld [vmem:[%s215 + $0x15c] sm:$0xf]
        %v308 = vld [vmem:[%s215 + $0x160] sm:$0xf]
        %v309 = vld [vmem:[%s215 + $0x164] sm:$0xf]
        %v310 = vld [vmem:[%s215 + $0x168] sm:$0xf]
        %v311 = vld [vmem:[%s215 + $0x16c] sm:$0xf]
        %v312 = vld [vmem:[%s215 + $0x170] sm:$0xf]
        %v313 = vld [vmem:[%s215 + $0x174] sm:$0xf]
        %v314 = vld [vmem:[%s215 + $0x178] sm:$0xf]
        %v315 = vld [vmem:[%s215 + $0x17c] sm:$0xf]
        %v316 = vld [vmem:[%s215 + $0x180] sm:$0xf]
        %v317 = vld [vmem:[%s215 + $0x184] sm:$0xf]
        %v318 = vld [vmem:[%s215 + $0x188] sm:$0xf]
        %v319 = vld [vmem:[%s215 + $0x18c] sm:$0xf]
        %v320 = vld [vmem:[%s215 + $0x190] sm:$0xf]
        %v321 = vld [vmem:[%s215 + $0x194] sm:$0xf]
        %v322 = vld [vmem:[%s215 + $0x198] sm:$0xf]
        %v323 = vld [vmem:[%s215 + $0x19c] sm:$0xf]
        %v324 = vld [vmem:[%s215 + $0x1a0] sm:$0xf]
        %v325 = vld [vmem:[%s215 + $0x1a4] sm:$0xf]
        %v326 = vld [vmem:[%s215 + $0x1a8] sm:$0xf]
        %v327 = vld [vmem:[%s215 + $0x1ac] sm:$0xf]
        %v328 = vld [vmem:[%s215 + $0x1b0] sm:$0xf]
        %v329 = vld [vmem:[%s215 + $0x1b4] sm:$0xf]
        %v330 = vld [vmem:[%s215 + $0x1b8] sm:$0xf]
        %v331 = vld [vmem:[%s215 + $0x1bc] sm:$0xf]
        %v332 = vld [vmem:[%s215 + $0x1c0] sm:$0xf]
        %v333 = vld [vmem:[%s215 + $0x1c4] sm:$0xf]
        %v334 = vld [vmem:[%s215 + $0x1c8] sm:$0xf]
        %v335 = vld [vmem:[%s215 + $0x1cc] sm:$0xf]
        %v336 = vld [vmem:[%s215 + $0x1d0] sm:$0xf]
        %v337 = vld [vmem:[%s215 + $0x1d4] sm:$0xf]
        %v338 = vld [vmem:[%s215 + $0x1d8] sm:$0xf]
        %v339 = vld [vmem:[%s215 + $0x1dc] sm:$0xf]
        %v340 = vld [vmem:[%s215 + $0x1e0] sm:$0xf]
        %v341 = vld [vmem:[%s215 + $0x1e4] sm:$0xf]
        %v342 = vld [vmem:[%s215 + $0x1e8] sm:$0xf]
        %v343 = vld [vmem:[%s215 + $0x1ec] sm:$0xf]
        %v344 = vld [vmem:[%s215 + $0x1f0] sm:$0xf]
        %v345 = vld [vmem:[%s215 + $0x1f4] sm:$0xf]
        %v346 = vld [vmem:[%s215 + $0x1f8] sm:$0xf]
        %v347 = vld [vmem:[%s215 + $0x1fc] sm:$0xf]
        %v348 = vld [vmem:[%s215 + $0x200] sm:$0xf]
        %v349 = vld [vmem:[%s215 + $0x204] sm:$0xf]
        %v350 = vld [vmem:[%s215 + $0x208] sm:$0xf]
        %v351 = vld [vmem:[%s215 + $0x20c] sm:$0xf]
        %v352 = vld [vmem:[%s215 + $0x210] sm:$0xf]
        %v353 = vld [vmem:[%s215 + $0x214] sm:$0xf]
        %v354 = vld [vmem:[%s215 + $0x218] sm:$0xf]
        %v355 = vld [vmem:[%s215 + $0x21c] sm:$0xf]
        %v356 = vld [vmem:[%s215 + $0x220] sm:$0xf]
        %v357 = vld [vmem:[%s215 + $0x224] sm:$0xf]
        %v358 = vld [vmem:[%s215 + $0x228] sm:$0xf]
        %v359 = vld [vmem:[%s215 + $0x22c] sm:$0xf]
        %v360 = vld [vmem:[%s215 + $0x230] sm:$0xf]
        %v361 = vld [vmem:[%s215 + $0x234] sm:$0xf]
        %v362 = vld [vmem:[%s215 + $0x238] sm:$0xf]
        %v363 = vld [vmem:[%s215 + $0x23c] sm:$0xf]
        %v364 = vld [vmem:[%s215 + $0x240] sm:$0xf]
        %v365 = vld [vmem:[%s215 + $0x244] sm:$0xf]
        %v366 = vld [vmem:[%s215 + $0x248] sm:$0xf]
        %v367 = vld [vmem:[%s215 + $0x24c] sm:$0xf]
        %v368 = vld [vmem:[%s215 + $0x250] sm:$0xf]
        %v369 = vld [vmem:[%s215 + $0x254] sm:$0xf]
        %v370 = vld [vmem:[%s215 + $0x258] sm:$0xf]
        %v371 = vld [vmem:[%s215 + $0x25c] sm:$0xf]
        %v372 = vld [vmem:[%s215 + $0x260] sm:$0xf]
        %v373 = vld [vmem:[%s215 + $0x264] sm:$0xf]
        %v374 = vld [vmem:[%s215 + $0x268] sm:$0xf]
        %v375 = vld [vmem:[%s215 + $0x26c] sm:$0xf]
        %v376 = vld [vmem:[%s215 + $0x270] sm:$0xf]
        %v377 = vld [vmem:[%s215 + $0x274] sm:$0xf]
        %v378 = vld [vmem:[%s215 + $0x278] sm:$0xf]
        %v379 = vld [vmem:[%s215 + $0x27c] sm:$0xf]
        %v380 = vld [vmem:[%s215 + $0x280] sm:$0xf]
        %v381 = vld [vmem:[%s215 + $0x284] sm:$0xf]
        %v382 = vld [vmem:[%s215 + $0x288] sm:$0xf]
        %v383 = vld [vmem:[%s215 + $0x28c] sm:$0xf]
        %v384 = vld [vmem:[%s215 + $0x290] sm:$0xf]
        %v385 = vld [vmem:[%s215 + $0x294] sm:$0xf]
        %v386 = vld [vmem:[%s215 + $0x298] sm:$0xf]
        %v387 = vld [vmem:[%s215 + $0x29c] sm:$0xf]
        %v388 = vld [vmem:[%s215 + $0x2a0] sm:$0xf]
        %v389 = vld [vmem:[%s215 + $0x2a4] sm:$0xf]
        %v390 = vld [vmem:[%s215 + $0x2a8] sm:$0xf]
        %v391 = vld [vmem:[%s215 + $0x2ac] sm:$0xf]
        %v392 = vld [vmem:[%s215 + $0x2b0] sm:$0xf]
        %v393 = vld [vmem:[%s215 + $0x2b4] sm:$0xf]
        %v394 = vld [vmem:[%s215 + $0x2b8] sm:$0xf]
        %v395 = vld [vmem:[%s215 + $0x2bc] sm:$0xf]
        %v396 = vld [vmem:[%s215 + $0x2c0] sm:$0xf]
        %v397 = vld [vmem:[%s215 + $0x2c4] sm:$0xf]
        %v398 = vld [vmem:[%s215 + $0x2c8] sm:$0xf]
        %v399 = vld [vmem:[%s215 + $0x2cc] sm:$0xf]
        %v400 = vld [vmem:[%s215 + $0x2d0] sm:$0xf]
        %v401 = vld [vmem:[%s215 + $0x2d4] sm:$0xf]
        %v402 = vld [vmem:[%s215 + $0x2d8] sm:$0xf]
        %v403 = vld [vmem:[%s215 + $0x2dc] sm:$0xf]
        %v404 = vld [vmem:[%s215 + $0x2e0] sm:$0xf]
        %v405 = vld [vmem:[%s215 + $0x2e4] sm:$0xf]
        %v406 = vld [vmem:[%s215 + $0x2e8] sm:$0xf]
        %v407 = vld [vmem:[%s215 + $0x2ec] sm:$0xf]
        %v408 = vld [vmem:[%s215 + $0x2f0] sm:$0xf]
        %v409 = vld [vmem:[%s215 + $0x2f4] sm:$0xf]
        %v410 = vld [vmem:[%s215 + $0x2f8] sm:$0xf]
        %v411 = vld [vmem:[%s215 + $0x2fc] sm:$0xf]
        %v412 = vld [vmem:[%s215 + $0x300] sm:$0xf]
        %v413 = vld [vmem:[%s215 + $0x304] sm:$0xf]
        %v414 = vld [vmem:[%s215 + $0x308] sm:$0xf]
        %v415 = vld [vmem:[%s215 + $0x30c] sm:$0xf]
        %v416 = vld [vmem:[%s215 + $0x310] sm:$0xf]
        %v417 = vld [vmem:[%s215 + $0x314] sm:$0xf]
        %v418 = vld [vmem:[%s215 + $0x318] sm:$0xf]
        %v419 = vld [vmem:[%s215 + $0x31c] sm:$0xf]
        %v420 = vld [vmem:[%s215 + $0x320] sm:$0xf]
        %v421 = vld [vmem:[%s215 + $0x324] sm:$0xf]
        %v422 = vld [vmem:[%s215 + $0x328] sm:$0xf]
        %v423 = vld [vmem:[%s215 + $0x32c] sm:$0xf]
        %v424 = vld [vmem:[%s215 + $0x330] sm:$0xf]
        %v425 = vld [vmem:[%s215 + $0x334] sm:$0xf]
        %v426 = vld [vmem:[%s215 + $0x338] sm:$0xf]
        %v427 = vld [vmem:[%s215 + $0x33c] sm:$0xf]
        %v428 = vld [vmem:[%s215 + $0x340] sm:$0xf]
        %v429 = vld [vmem:[%s215 + $0x344] sm:$0xf]
        %v430 = vld [vmem:[%s215 + $0x348] sm:$0xf]
        %v431 = vld [vmem:[%s215 + $0x34c] sm:$0xf]
        %v432 = vld [vmem:[%s215 + $0x350] sm:$0xf]
        %v433 = vld [vmem:[%s215 + $0x354] sm:$0xf]
        %v434 = vld [vmem:[%s215 + $0x358] sm:$0xf]
        %v435 = vld [vmem:[%s215 + $0x35c] sm:$0xf]
        %v436 = vld [vmem:[%s215 + $0x360] sm:$0xf]
        %v437 = vld [vmem:[%s215 + $0x364] sm:$0xf]
        %v438 = vld [vmem:[%s215 + $0x368] sm:$0xf]
        %v439 = vld [vmem:[%s215 + $0x36c] sm:$0xf]
        %v440 = vld [vmem:[%s215 + $0x370] sm:$0xf]
        %v441 = vld [vmem:[%s215 + $0x374] sm:$0xf]
        %v442 = vld [vmem:[%s215 + $0x378] sm:$0xf]
        %v443 = vld [vmem:[%s215 + $0x37c] sm:$0xf]
        %v444 = vld [vmem:[%s215 + $0x380] sm:$0xf]
        %v445 = vld [vmem:[%s215 + $0x384] sm:$0xf]
        %v446 = vld [vmem:[%s215 + $0x388] sm:$0xf]
        %v447 = vld [vmem:[%s215 + $0x38c] sm:$0xf]
        %v448 = vld [vmem:[%s215 + $0x390] sm:$0xf]
        %v449 = vld [vmem:[%s215 + $0x394] sm:$0xf]
        %v450 = vld [vmem:[%s215 + $0x398] sm:$0xf]
        %v451 = vld [vmem:[%s215 + $0x39c] sm:$0xf]
        %v452 = vld [vmem:[%s215 + $0x3a0] sm:$0xf]
        %v453 = vld [vmem:[%s215 + $0x3a4] sm:$0xf]
        %v454 = vld [vmem:[%s215 + $0x3a8] sm:$0xf]
        %v455 = vld [vmem:[%s215 + $0x3ac] sm:$0xf]
        %v456 = vld [vmem:[%s215 + $0x3b0] sm:$0xf]
        %v457 = vld [vmem:[%s215 + $0x3b4] sm:$0xf]
        %v458 = vld [vmem:[%s215 + $0x3b8] sm:$0xf]
        %v459 = vld [vmem:[%s215 + $0x3bc] sm:$0xf]
        %v460 = vld [vmem:[%s215 + $0x3c0] sm:$0xf]
        %v461 = vld [vmem:[%s215 + $0x3c4] sm:$0xf]
        %v462 = vld [vmem:[%s215 + $0x3c8] sm:$0xf]
        %v463 = vld [vmem:[%s215 + $0x3cc] sm:$0xf]
        %v464 = vld [vmem:[%s215 + $0x3d0] sm:$0xf]
        %v465 = vld [vmem:[%s215 + $0x3d4] sm:$0xf]
        %v466 = vld [vmem:[%s215 + $0x3d8] sm:$0xf]
        %v467 = vld [vmem:[%s215 + $0x3dc] sm:$0xf]
        %v468 = vld [vmem:[%s215 + $0x3e0] sm:$0xf]
        %v469 = vld [vmem:[%s215 + $0x3e4] sm:$0xf]
        %v470 = vld [vmem:[%s215 + $0x3e8] sm:$0xf]
        %v471 = vld [vmem:[%s215 + $0x3ec] sm:$0xf]
        %v472 = vld [vmem:[%s215 + $0x3f0] sm:$0xf]
        %v473 = vld [vmem:[%s215 + $0x3f4] sm:$0xf]
        %v474 = vld [vmem:[%s215 + $0x3f8] sm:$0xf]
        %v475 = vld [vmem:[%s215 + $0x3fc] sm:$0xf]
        %v476 = vunpack.c.l.bf16 %v220
        %v477 = vunpack.c.l.bf16 %v221
        %v478 = vunpack.c.l.bf16 %v222
        %v479 = vunpack.c.l.bf16 %v223
        %v480 = vunpack.c.l.bf16 %v224
        %v481 = vunpack.c.l.bf16 %v225
        %v482 = vunpack.c.l.bf16 %v226
        %v483 = vunpack.c.l.bf16 %v227
        %v484 = vunpack.c.l.bf16 %v228
        %v485 = vunpack.c.l.bf16 %v229
        %v486 = vunpack.c.l.bf16 %v230
        %v487 = vunpack.c.l.bf16 %v231
        %v488 = vunpack.c.l.bf16 %v232
        %v489 = vunpack.c.l.bf16 %v233
        %v490 = vunpack.c.l.bf16 %v234
        %v491 = vunpack.c.l.bf16 %v235
        %v492 = vunpack.c.l.bf16 %v236
        %v493 = vunpack.c.l.bf16 %v237
        %v494 = vunpack.c.l.bf16 %v238
        %v495 = vunpack.c.l.bf16 %v239
        %v496 = vunpack.c.l.bf16 %v240
        %v497 = vunpack.c.l.bf16 %v241
        %v498 = vunpack.c.l.bf16 %v242
        %v499 = vunpack.c.l.bf16 %v243
        %v500 = vunpack.c.l.bf16 %v244
        %v501 = vunpack.c.l.bf16 %v245
        %v502 = vunpack.c.l.bf16 %v246
        %v503 = vunpack.c.l.bf16 %v247
        %v504 = vunpack.c.l.bf16 %v248
        %v505 = vunpack.c.l.bf16 %v249
        %v506 = vunpack.c.l.bf16 %v250
        %v507 = vunpack.c.l.bf16 %v251
        %v508 = vunpack.c.l.bf16 %v252
        %v509 = vunpack.c.l.bf16 %v253
        %v510 = vunpack.c.l.bf16 %v254
        %v511 = vunpack.c.l.bf16 %v255
        %v512 = vunpack.c.l.bf16 %v256
        %v513 = vunpack.c.l.bf16 %v257
        %v514 = vunpack.c.l.bf16 %v258
        %v515 = vunpack.c.l.bf16 %v259
        %v516 = vunpack.c.l.bf16 %v260
        %v517 = vunpack.c.l.bf16 %v261
        %v518 = vunpack.c.l.bf16 %v262
        %v519 = vunpack.c.l.bf16 %v263
        %v520 = vunpack.c.l.bf16 %v264
        %v521 = vunpack.c.l.bf16 %v265
        %v522 = vunpack.c.l.bf16 %v266
        %v523 = vunpack.c.l.bf16 %v267
        %v524 = vunpack.c.l.bf16 %v268
        %v525 = vunpack.c.l.bf16 %v269
        %v526 = vunpack.c.l.bf16 %v270
        %v527 = vunpack.c.l.bf16 %v271
        %v528 = vunpack.c.l.bf16 %v272
        %v529 = vunpack.c.l.bf16 %v273
        %v530 = vunpack.c.l.bf16 %v274
        %v531 = vunpack.c.l.bf16 %v275
        %v532 = vunpack.c.l.bf16 %v276
        %v533 = vunpack.c.l.bf16 %v277
        %v534 = vunpack.c.l.bf16 %v278
        %v535 = vunpack.c.l.bf16 %v279
        %v536 = vunpack.c.l.bf16 %v280
        %v537 = vunpack.c.l.bf16 %v281
        %v538 = vunpack.c.l.bf16 %v282
        %v539 = vunpack.c.l.bf16 %v283
        %v540 = vunpack.c.l.bf16 %v284
        %v541 = vunpack.c.l.bf16 %v285
        %v542 = vunpack.c.l.bf16 %v286
        %v543 = vunpack.c.l.bf16 %v287
        %v544 = vunpack.c.l.bf16 %v288
        %v545 = vunpack.c.l.bf16 %v289
        %v546 = vunpack.c.l.bf16 %v290
        %v547 = vunpack.c.l.bf16 %v291
        %v548 = vunpack.c.l.bf16 %v292
        %v549 = vunpack.c.l.bf16 %v293
        %v550 = vunpack.c.l.bf16 %v294
        %v551 = vunpack.c.l.bf16 %v295
        %v552 = vunpack.c.l.bf16 %v296
        %v553 = vunpack.c.l.bf16 %v297
        %v554 = vunpack.c.l.bf16 %v298
        %v555 = vunpack.c.l.bf16 %v299
        %v556 = vunpack.c.l.bf16 %v300
        %v557 = vunpack.c.l.bf16 %v301
        %v558 = vunpack.c.l.bf16 %v302
        %v559 = vunpack.c.l.bf16 %v303
        %v560 = vunpack.c.l.bf16 %v304
        %v561 = vunpack.c.l.bf16 %v305
        %v562 = vunpack.c.l.bf16 %v306
        %v563 = vunpack.c.l.bf16 %v307
        %v564 = vunpack.c.l.bf16 %v308
        %v565 = vunpack.c.l.bf16 %v309
        %v566 = vunpack.c.l.bf16 %v310
        %v567 = vunpack.c.l.bf16 %v311
        %v568 = vunpack.c.l.bf16 %v312
        %v569 = vunpack.c.l.bf16 %v313
        %v570 = vunpack.c.l.bf16 %v314
        %v571 = vunpack.c.l.bf16 %v315
        %v572 = vunpack.c.l.bf16 %v316
        %v573 = vunpack.c.l.bf16 %v317
        %v574 = vunpack.c.l.bf16 %v318
        %v575 = vunpack.c.l.bf16 %v319
        %v576 = vunpack.c.l.bf16 %v320
        %v577 = vunpack.c.l.bf16 %v321
        %v578 = vunpack.c.l.bf16 %v322
        %v579 = vunpack.c.l.bf16 %v323
        %v580 = vunpack.c.l.bf16 %v324
        %v581 = vunpack.c.l.bf16 %v325
        %v582 = vunpack.c.l.bf16 %v326
        %v583 = vunpack.c.l.bf16 %v327
        %v584 = vunpack.c.l.bf16 %v328
        %v585 = vunpack.c.l.bf16 %v329
        %v586 = vunpack.c.l.bf16 %v330
        %v587 = vunpack.c.l.bf16 %v331
        %v588 = vunpack.c.l.bf16 %v332
        %v589 = vunpack.c.l.bf16 %v333
        %v590 = vunpack.c.l.bf16 %v334
        %v591 = vunpack.c.l.bf16 %v335
        %v592 = vunpack.c.l.bf16 %v336
        %v593 = vunpack.c.l.bf16 %v337
        %v594 = vunpack.c.l.bf16 %v338
        %v595 = vunpack.c.l.bf16 %v339
        %v596 = vunpack.c.l.bf16 %v340
        %v597 = vunpack.c.l.bf16 %v341
        %v598 = vunpack.c.l.bf16 %v342
        %v599 = vunpack.c.l.bf16 %v343
        %v600 = vunpack.c.l.bf16 %v344
        %v601 = vunpack.c.l.bf16 %v345
        %v602 = vunpack.c.l.bf16 %v346
        %v603 = vunpack.c.l.bf16 %v347
        %v604 = vunpack.c.l.bf16 %v348
        %v605 = vunpack.c.l.bf16 %v349
        %v606 = vunpack.c.l.bf16 %v350
        %v607 = vunpack.c.l.bf16 %v351
        %v608 = vunpack.c.l.bf16 %v352
        %v609 = vunpack.c.l.bf16 %v353
        %v610 = vunpack.c.l.bf16 %v354
        %v611 = vunpack.c.l.bf16 %v355
        %v612 = vunpack.c.l.bf16 %v356
        %v613 = vunpack.c.l.bf16 %v357
        %v614 = vunpack.c.l.bf16 %v358
        %v615 = vunpack.c.l.bf16 %v359
        %v616 = vunpack.c.l.bf16 %v360
        %v617 = vunpack.c.l.bf16 %v361
        %v618 = vunpack.c.l.bf16 %v362
        %v619 = vunpack.c.l.bf16 %v363
        %v620 = vunpack.c.l.bf16 %v364
        %v621 = vunpack.c.l.bf16 %v365
        %v622 = vunpack.c.l.bf16 %v366
        %v623 = vunpack.c.l.bf16 %v367
        %v624 = vunpack.c.l.bf16 %v368
        %v625 = vunpack.c.l.bf16 %v369
        %v626 = vunpack.c.l.bf16 %v370
        %v627 = vunpack.c.l.bf16 %v371
        %v628 = vunpack.c.l.bf16 %v372
        %v629 = vunpack.c.l.bf16 %v373
        %v630 = vunpack.c.l.bf16 %v374
        %v631 = vunpack.c.l.bf16 %v375
        %v632 = vunpack.c.l.bf16 %v376
        %v633 = vunpack.c.l.bf16 %v377
        %v634 = vunpack.c.l.bf16 %v378
        %v635 = vunpack.c.l.bf16 %v379
        %v636 = vunpack.c.l.bf16 %v380
        %v637 = vunpack.c.l.bf16 %v381
        %v638 = vunpack.c.l.bf16 %v382
        %v639 = vunpack.c.l.bf16 %v383
        %v640 = vunpack.c.l.bf16 %v384
        %v641 = vunpack.c.l.bf16 %v385
        %v642 = vunpack.c.l.bf16 %v386
        %v643 = vunpack.c.l.bf16 %v387
        %v644 = vunpack.c.l.bf16 %v388
        %v645 = vunpack.c.l.bf16 %v389
        %v646 = vunpack.c.l.bf16 %v390
        %v647 = vunpack.c.l.bf16 %v391
        %v648 = vunpack.c.l.bf16 %v392
        %v649 = vunpack.c.l.bf16 %v393
        %v650 = vunpack.c.l.bf16 %v394
        %v651 = vunpack.c.l.bf16 %v395
        %v652 = vunpack.c.l.bf16 %v396
        %v653 = vunpack.c.l.bf16 %v397
        %v654 = vunpack.c.l.bf16 %v398
        %v655 = vunpack.c.l.bf16 %v399
        %v656 = vunpack.c.l.bf16 %v400
        %v657 = vunpack.c.l.bf16 %v401
        %v658 = vunpack.c.l.bf16 %v402
        %v659 = vunpack.c.l.bf16 %v403
        %v660 = vunpack.c.l.bf16 %v404
        %v661 = vunpack.c.l.bf16 %v405
        %v662 = vunpack.c.l.bf16 %v406
        %v663 = vunpack.c.l.bf16 %v407
        %v664 = vunpack.c.l.bf16 %v408
        %v665 = vunpack.c.l.bf16 %v409
        %v666 = vunpack.c.l.bf16 %v410
        %v667 = vunpack.c.l.bf16 %v411
        %v668 = vunpack.c.l.bf16 %v412
        %v669 = vunpack.c.l.bf16 %v413
        %v670 = vunpack.c.l.bf16 %v414
        %v671 = vunpack.c.l.bf16 %v415
        %v672 = vunpack.c.l.bf16 %v416
        %v673 = vunpack.c.l.bf16 %v417
        %v674 = vunpack.c.l.bf16 %v418
        %v675 = vunpack.c.l.bf16 %v419
        %v676 = vunpack.c.l.bf16 %v420
        %v677 = vunpack.c.l.bf16 %v421
        %v678 = vunpack.c.l.bf16 %v422
        %v679 = vunpack.c.l.bf16 %v423
        %v680 = vunpack.c.l.bf16 %v424
        %v681 = vunpack.c.l.bf16 %v425
        %v682 = vunpack.c.l.bf16 %v426
        %v683 = vunpack.c.l.bf16 %v427
        %v684 = vunpack.c.l.bf16 %v428
        %v685 = vunpack.c.l.bf16 %v429
        %v686 = vunpack.c.l.bf16 %v430
        %v687 = vunpack.c.l.bf16 %v431
        %v688 = vunpack.c.l.bf16 %v432
        %v689 = vunpack.c.l.bf16 %v433
        %v690 = vunpack.c.l.bf16 %v434
        %v691 = vunpack.c.l.bf16 %v435
        %v692 = vunpack.c.l.bf16 %v436
        %v693 = vunpack.c.l.bf16 %v437
        %v694 = vunpack.c.l.bf16 %v438
        %v695 = vunpack.c.l.bf16 %v439
        %v696 = vunpack.c.l.bf16 %v440
        %v697 = vunpack.c.l.bf16 %v441
        %v698 = vunpack.c.l.bf16 %v442
        %v699 = vunpack.c.l.bf16 %v443
        %v700 = vunpack.c.l.bf16 %v444
        %v701 = vunpack.c.l.bf16 %v445
        %v702 = vunpack.c.l.bf16 %v446
        %v703 = vunpack.c.l.bf16 %v447
        %v704 = vunpack.c.l.bf16 %v448
        %v705 = vunpack.c.l.bf16 %v449
        %v706 = vunpack.c.l.bf16 %v450
        %v707 = vunpack.c.l.bf16 %v451
        %v708 = vunpack.c.l.bf16 %v452
        %v709 = vunpack.c.l.bf16 %v453
        %v710 = vunpack.c.l.bf16 %v454
        %v711 = vunpack.c.l.bf16 %v455
        %v712 = vunpack.c.l.bf16 %v456
        %v713 = vunpack.c.l.bf16 %v457
        %v714 = vunpack.c.l.bf16 %v458
        %v715 = vunpack.c.l.bf16 %v459
        %v716 = vunpack.c.l.bf16 %v460
        %v717 = vunpack.c.l.bf16 %v461
        %v718 = vunpack.c.l.bf16 %v462
        %v719 = vunpack.c.l.bf16 %v463
        %v720 = vunpack.c.l.bf16 %v464
        %v721 = vunpack.c.l.bf16 %v465
        %v722 = vunpack.c.l.bf16 %v466
        %v723 = vunpack.c.l.bf16 %v467
        %v724 = vunpack.c.l.bf16 %v468
        %v725 = vunpack.c.l.bf16 %v469
        %v726 = vunpack.c.l.bf16 %v470
        %v727 = vunpack.c.l.bf16 %v471
        %v728 = vunpack.c.l.bf16 %v472
        %v729 = vunpack.c.l.bf16 %v473
        %v730 = vunpack.c.l.bf16 %v474
        %v731 = vunpack.c.l.bf16 %v475
        %vm732 = vcmask 523264
        %v733 = vsel %vm732, %v476, 0.0
        %v734 = vsel %vm732, %v477, 0.0
        %v735 = vadd.f32 %v733, %v734
        %v736 = vsel %vm732, %v478, 0.0
        %v737 = vadd.f32 %v735, %v736
        %v738 = vsel %vm732, %v479, 0.0
        %v739 = vadd.f32 %v737, %v738
        %v740 = vsel %vm732, %v480, 0.0
        %v741 = vadd.f32 %v739, %v740
        %v742 = vsel %vm732, %v481, 0.0
        %v743 = vadd.f32 %v741, %v742
        %v744 = vsel %vm732, %v482, 0.0
        %v745 = vadd.f32 %v743, %v744
        %v746 = vsel %vm732, %v483, 0.0
        %v747 = vadd.f32 %v745, %v746
        %v748 = vsel %vm732, %v484, 0.0
        %v749 = vadd.f32 %v747, %v748
        %v750 = vsel %vm732, %v485, 0.0
        %v751 = vadd.f32 %v749, %v750
        %v752 = vsel %vm732, %v486, 0.0
        %v753 = vadd.f32 %v751, %v752
        %v754 = vsel %vm732, %v487, 0.0
        %v755 = vadd.f32 %v753, %v754
        %v756 = vsel %vm732, %v488, 0.0
        %v757 = vadd.f32 %v755, %v756
        %v758 = vsel %vm732, %v489, 0.0
        %v759 = vadd.f32 %v757, %v758
        %v760 = vsel %vm732, %v490, 0.0
        %v761 = vadd.f32 %v759, %v760
        %v762 = vsel %vm732, %v491, 0.0
        %v763 = vadd.f32 %v761, %v762
        %v764 = vsel %vm732, %v492, 0.0
        %v765 = vadd.f32 %v763, %v764
        %v766 = vsel %vm732, %v493, 0.0
        %v767 = vadd.f32 %v765, %v766
        %v768 = vsel %vm732, %v494, 0.0
        %v769 = vadd.f32 %v767, %v768
        %v770 = vsel %vm732, %v495, 0.0
        %v771 = vadd.f32 %v769, %v770
        %v772 = vsel %vm732, %v496, 0.0
        %v773 = vadd.f32 %v771, %v772
        %v774 = vsel %vm732, %v497, 0.0
        %v775 = vadd.f32 %v773, %v774
        %v776 = vsel %vm732, %v498, 0.0
        %v777 = vadd.f32 %v775, %v776
        %v778 = vsel %vm732, %v499, 0.0
        %v779 = vadd.f32 %v777, %v778
        %v780 = vsel %vm732, %v500, 0.0
        %v781 = vadd.f32 %v779, %v780
        %v782 = vsel %vm732, %v501, 0.0
        %v783 = vadd.f32 %v781, %v782
        %v784 = vsel %vm732, %v502, 0.0
        %v785 = vadd.f32 %v783, %v784
        %v786 = vsel %vm732, %v503, 0.0
        %v787 = vadd.f32 %v785, %v786
        %v788 = vsel %vm732, %v504, 0.0
        %v789 = vadd.f32 %v787, %v788
        %v790 = vsel %vm732, %v505, 0.0
        %v791 = vadd.f32 %v789, %v790
        %v792 = vsel %vm732, %v506, 0.0
        %v793 = vadd.f32 %v791, %v792
        %v794 = vsel %vm732, %v507, 0.0
        %v795 = vadd.f32 %v793, %v794
        %v796 = vsel %vm732, %v508, 0.0
        %v797 = vadd.f32 %v795, %v796
        %v798 = vsel %vm732, %v509, 0.0
        %v799 = vadd.f32 %v797, %v798
        %v800 = vsel %vm732, %v510, 0.0
        %v801 = vadd.f32 %v799, %v800
        %v802 = vsel %vm732, %v511, 0.0
        %v803 = vadd.f32 %v801, %v802
        %v804 = vsel %vm732, %v512, 0.0
        %v805 = vadd.f32 %v803, %v804
        %v806 = vsel %vm732, %v513, 0.0
        %v807 = vadd.f32 %v805, %v806
        %v808 = vsel %vm732, %v514, 0.0
        %v809 = vadd.f32 %v807, %v808
        %v810 = vsel %vm732, %v515, 0.0
        %v811 = vadd.f32 %v809, %v810
        %v812 = vsel %vm732, %v516, 0.0
        %v813 = vadd.f32 %v811, %v812
        %v814 = vsel %vm732, %v517, 0.0
        %v815 = vadd.f32 %v813, %v814
        %v816 = vsel %vm732, %v518, 0.0
        %v817 = vadd.f32 %v815, %v816
        %v818 = vsel %vm732, %v519, 0.0
        %v819 = vadd.f32 %v817, %v818
        %v820 = vsel %vm732, %v520, 0.0
        %v821 = vadd.f32 %v819, %v820
        %v822 = vsel %vm732, %v521, 0.0
        %v823 = vadd.f32 %v821, %v822
        %v824 = vsel %vm732, %v522, 0.0
        %v825 = vadd.f32 %v823, %v824
        %v826 = vsel %vm732, %v523, 0.0
        %v827 = vadd.f32 %v825, %v826
        %v828 = vsel %vm732, %v524, 0.0
        %v829 = vadd.f32 %v827, %v828
        %v830 = vsel %vm732, %v525, 0.0
        %v831 = vadd.f32 %v829, %v830
        %v832 = vsel %vm732, %v526, 0.0
        %v833 = vadd.f32 %v831, %v832
        %v834 = vsel %vm732, %v527, 0.0
        %v835 = vadd.f32 %v833, %v834
        %v836 = vsel %vm732, %v528, 0.0
        %v837 = vadd.f32 %v835, %v836
        %v838 = vsel %vm732, %v529, 0.0
        %v839 = vadd.f32 %v837, %v838
        %v840 = vsel %vm732, %v530, 0.0
        %v841 = vadd.f32 %v839, %v840
        %v842 = vsel %vm732, %v531, 0.0
        %v843 = vadd.f32 %v841, %v842
        %v844 = vsel %vm732, %v532, 0.0
        %v845 = vadd.f32 %v843, %v844
        %v846 = vsel %vm732, %v533, 0.0
        %v847 = vadd.f32 %v845, %v846
        %v848 = vsel %vm732, %v534, 0.0
        %v849 = vadd.f32 %v847, %v848
        %v850 = vsel %vm732, %v535, 0.0
        %v851 = vadd.f32 %v849, %v850
        %v852 = vsel %vm732, %v536, 0.0
        %v853 = vadd.f32 %v851, %v852
        %v854 = vsel %vm732, %v537, 0.0
        %v855 = vadd.f32 %v853, %v854
        %v856 = vsel %vm732, %v538, 0.0
        %v857 = vadd.f32 %v855, %v856
        %v858 = vsel %vm732, %v539, 0.0
        %v859 = vadd.f32 %v857, %v858
        %v860 = vsel %vm732, %v540, 0.0
        %v861 = vadd.f32 %v859, %v860
        %v862 = vsel %vm732, %v541, 0.0
        %v863 = vadd.f32 %v861, %v862
        %v864 = vsel %vm732, %v542, 0.0
        %v865 = vadd.f32 %v863, %v864
        %v866 = vsel %vm732, %v543, 0.0
        %v867 = vadd.f32 %v865, %v866
        %v868 = vsel %vm732, %v544, 0.0
        %v869 = vadd.f32 %v867, %v868
        %v870 = vsel %vm732, %v545, 0.0
        %v871 = vadd.f32 %v869, %v870
        %v872 = vsel %vm732, %v546, 0.0
        %v873 = vadd.f32 %v871, %v872
        %v874 = vsel %vm732, %v547, 0.0
        %v875 = vadd.f32 %v873, %v874
        %v876 = vsel %vm732, %v548, 0.0
        %v877 = vadd.f32 %v875, %v876
        %v878 = vsel %vm732, %v549, 0.0
        %v879 = vadd.f32 %v877, %v878
        %v880 = vsel %vm732, %v550, 0.0
        %v881 = vadd.f32 %v879, %v880
        %v882 = vsel %vm732, %v551, 0.0
        %v883 = vadd.f32 %v881, %v882
        %v884 = vsel %vm732, %v552, 0.0
        %v885 = vadd.f32 %v883, %v884
        %v886 = vsel %vm732, %v553, 0.0
        %v887 = vadd.f32 %v885, %v886
        %v888 = vsel %vm732, %v554, 0.0
        %v889 = vadd.f32 %v887, %v888
        %v890 = vsel %vm732, %v555, 0.0
        %v891 = vadd.f32 %v889, %v890
        %v892 = vsel %vm732, %v556, 0.0
        %v893 = vadd.f32 %v891, %v892
        %v894 = vsel %vm732, %v557, 0.0
        %v895 = vadd.f32 %v893, %v894
        %v896 = vsel %vm732, %v558, 0.0
        %v897 = vadd.f32 %v895, %v896
        %v898 = vsel %vm732, %v559, 0.0
        %v899 = vadd.f32 %v897, %v898
        %v900 = vsel %vm732, %v560, 0.0
        %v901 = vadd.f32 %v899, %v900
        %v902 = vsel %vm732, %v561, 0.0
        %v903 = vadd.f32 %v901, %v902
        %v904 = vsel %vm732, %v562, 0.0
        %v905 = vadd.f32 %v903, %v904
        %v906 = vsel %vm732, %v563, 0.0
        %v907 = vadd.f32 %v905, %v906
        %v908 = vsel %vm732, %v564, 0.0
        %v909 = vadd.f32 %v907, %v908
        %v910 = vsel %vm732, %v565, 0.0
        %v911 = vadd.f32 %v909, %v910
        %v912 = vsel %vm732, %v566, 0.0
        %v913 = vadd.f32 %v911, %v912
        %v914 = vsel %vm732, %v567, 0.0
        %v915 = vadd.f32 %v913, %v914
        %v916 = vsel %vm732, %v568, 0.0
        %v917 = vadd.f32 %v915, %v916
        %v918 = vsel %vm732, %v569, 0.0
        %v919 = vadd.f32 %v917, %v918
        %v920 = vsel %vm732, %v570, 0.0
        %v921 = vadd.f32 %v919, %v920
        %v922 = vsel %vm732, %v571, 0.0
        %v923 = vadd.f32 %v921, %v922
        %v924 = vsel %vm732, %v572, 0.0
        %v925 = vadd.f32 %v923, %v924
        %v926 = vsel %vm732, %v573, 0.0
        %v927 = vadd.f32 %v925, %v926
        %v928 = vsel %vm732, %v574, 0.0
        %v929 = vadd.f32 %v927, %v928
        %v930 = vsel %vm732, %v575, 0.0
        %v931 = vadd.f32 %v929, %v930
        %v932 = vsel %vm732, %v576, 0.0
        %v933 = vadd.f32 %v931, %v932
        %v934 = vsel %vm732, %v577, 0.0
        %v935 = vadd.f32 %v933, %v934
        %v936 = vsel %vm732, %v578, 0.0
        %v937 = vadd.f32 %v935, %v936
        %v938 = vsel %vm732, %v579, 0.0
        %v939 = vadd.f32 %v937, %v938
        %v940 = vsel %vm732, %v580, 0.0
        %v941 = vadd.f32 %v939, %v940
        %v942 = vsel %vm732, %v581, 0.0
        %v943 = vadd.f32 %v941, %v942
        %v944 = vsel %vm732, %v582, 0.0
        %v945 = vadd.f32 %v943, %v944
        %v946 = vsel %vm732, %v583, 0.0
        %v947 = vadd.f32 %v945, %v946
        %v948 = vsel %vm732, %v584, 0.0
        %v949 = vadd.f32 %v947, %v948
        %v950 = vsel %vm732, %v585, 0.0
        %v951 = vadd.f32 %v949, %v950
        %v952 = vsel %vm732, %v586, 0.0
        %v953 = vadd.f32 %v951, %v952
        %v954 = vsel %vm732, %v587, 0.0
        %v955 = vadd.f32 %v953, %v954
        %v956 = vsel %vm732, %v588, 0.0
        %v957 = vadd.f32 %v955, %v956
        %v958 = vsel %vm732, %v589, 0.0
        %v959 = vadd.f32 %v957, %v958
        %v960 = vsel %vm732, %v590, 0.0
        %v961 = vadd.f32 %v959, %v960
        %v962 = vsel %vm732, %v591, 0.0
        %v963 = vadd.f32 %v961, %v962
        %v964 = vsel %vm732, %v592, 0.0
        %v965 = vadd.f32 %v963, %v964
        %v966 = vsel %vm732, %v593, 0.0
        %v967 = vadd.f32 %v965, %v966
        %v968 = vsel %vm732, %v594, 0.0
        %v969 = vadd.f32 %v967, %v968
        %v970 = vsel %vm732, %v595, 0.0
        %v971 = vadd.f32 %v969, %v970
        %v972 = vsel %vm732, %v596, 0.0
        %v973 = vadd.f32 %v971, %v972
        %v974 = vsel %vm732, %v597, 0.0
        %v975 = vadd.f32 %v973, %v974
        %v976 = vsel %vm732, %v598, 0.0
        %v977 = vadd.f32 %v975, %v976
        %v978 = vsel %vm732, %v599, 0.0
        %v979 = vadd.f32 %v977, %v978
        %v980 = vsel %vm732, %v600, 0.0
        %v981 = vadd.f32 %v979, %v980
        %v982 = vsel %vm732, %v601, 0.0
        %v983 = vadd.f32 %v981, %v982
        %v984 = vsel %vm732, %v602, 0.0
        %v985 = vadd.f32 %v983, %v984
        %v986 = vsel %vm732, %v603, 0.0
        %v987 = vadd.f32 %v985, %v986
        %v988 = vsel %vm732, %v604, 0.0
        %v989 = vadd.f32 %v987, %v988
        %v990 = vsel %vm732, %v605, 0.0
        %v991 = vadd.f32 %v989, %v990
        %v992 = vsel %vm732, %v606, 0.0
        %v993 = vadd.f32 %v991, %v992
        %v994 = vsel %vm732, %v607, 0.0
        %v995 = vadd.f32 %v993, %v994
        %v996 = vsel %vm732, %v608, 0.0
        %v997 = vadd.f32 %v995, %v996
        %v998 = vsel %vm732, %v609, 0.0
        %v999 = vadd.f32 %v997, %v998
        %v1000 = vsel %vm732, %v610, 0.0
        %v1001 = vadd.f32 %v999, %v1000
        %v1002 = vsel %vm732, %v611, 0.0
        %v1003 = vadd.f32 %v1001, %v1002
        %v1004 = vsel %vm732, %v612, 0.0
        %v1005 = vadd.f32 %v1003, %v1004
        %v1006 = vsel %vm732, %v613, 0.0
        %v1007 = vadd.f32 %v1005, %v1006
        %v1008 = vsel %vm732, %v614, 0.0
        %v1009 = vadd.f32 %v1007, %v1008
        %v1010 = vsel %vm732, %v615, 0.0
        %v1011 = vadd.f32 %v1009, %v1010
        %v1012 = vsel %vm732, %v616, 0.0
        %v1013 = vadd.f32 %v1011, %v1012
        %v1014 = vsel %vm732, %v617, 0.0
        %v1015 = vadd.f32 %v1013, %v1014
        %v1016 = vsel %vm732, %v618, 0.0
        %v1017 = vadd.f32 %v1015, %v1016
        %v1018 = vsel %vm732, %v619, 0.0
        %v1019 = vadd.f32 %v1017, %v1018
        %v1020 = vsel %vm732, %v620, 0.0
        %v1021 = vadd.f32 %v1019, %v1020
        %v1022 = vsel %vm732, %v621, 0.0
        %v1023 = vadd.f32 %v1021, %v1022
        %v1024 = vsel %vm732, %v622, 0.0
        %v1025 = vadd.f32 %v1023, %v1024
        %v1026 = vsel %vm732, %v623, 0.0
        %v1027 = vadd.f32 %v1025, %v1026
        %v1028 = vsel %vm732, %v624, 0.0
        %v1029 = vadd.f32 %v1027, %v1028
        %v1030 = vsel %vm732, %v625, 0.0
        %v1031 = vadd.f32 %v1029, %v1030
        %v1032 = vsel %vm732, %v626, 0.0
        %v1033 = vadd.f32 %v1031, %v1032
        %v1034 = vsel %vm732, %v627, 0.0
        %v1035 = vadd.f32 %v1033, %v1034
        %v1036 = vsel %vm732, %v628, 0.0
        %v1037 = vadd.f32 %v1035, %v1036
        %v1038 = vsel %vm732, %v629, 0.0
        %v1039 = vadd.f32 %v1037, %v1038
        %v1040 = vsel %vm732, %v630, 0.0
        %v1041 = vadd.f32 %v1039, %v1040
        %v1042 = vsel %vm732, %v631, 0.0
        %v1043 = vadd.f32 %v1041, %v1042
        %v1044 = vsel %vm732, %v632, 0.0
        %v1045 = vadd.f32 %v1043, %v1044
        %v1046 = vsel %vm732, %v633, 0.0
        %v1047 = vadd.f32 %v1045, %v1046
        %v1048 = vsel %vm732, %v634, 0.0
        %v1049 = vadd.f32 %v1047, %v1048
        %v1050 = vsel %vm732, %v635, 0.0
        %v1051 = vadd.f32 %v1049, %v1050
        %v1052 = vsel %vm732, %v636, 0.0
        %v1053 = vadd.f32 %v1051, %v1052
        %v1054 = vsel %vm732, %v637, 0.0
        %v1055 = vadd.f32 %v1053, %v1054
        %v1056 = vsel %vm732, %v638, 0.0
        %v1057 = vadd.f32 %v1055, %v1056
        %v1058 = vsel %vm732, %v639, 0.0
        %v1059 = vadd.f32 %v1057, %v1058
        %v1060 = vsel %vm732, %v640, 0.0
        %v1061 = vadd.f32 %v1059, %v1060
        %v1062 = vsel %vm732, %v641, 0.0
        %v1063 = vadd.f32 %v1061, %v1062
        %v1064 = vsel %vm732, %v642, 0.0
        %v1065 = vadd.f32 %v1063, %v1064
        %v1066 = vsel %vm732, %v643, 0.0
        %v1067 = vadd.f32 %v1065, %v1066
        %v1068 = vsel %vm732, %v644, 0.0
        %v1069 = vadd.f32 %v1067, %v1068
        %v1070 = vsel %vm732, %v645, 0.0
        %v1071 = vadd.f32 %v1069, %v1070
        %v1072 = vsel %vm732, %v646, 0.0
        %v1073 = vadd.f32 %v1071, %v1072
        %v1074 = vsel %vm732, %v647, 0.0
        %v1075 = vadd.f32 %v1073, %v1074
        %v1076 = vsel %vm732, %v648, 0.0
        %v1077 = vadd.f32 %v1075, %v1076
        %v1078 = vsel %vm732, %v649, 0.0
        %v1079 = vadd.f32 %v1077, %v1078
        %v1080 = vsel %vm732, %v650, 0.0
        %v1081 = vadd.f32 %v1079, %v1080
        %v1082 = vsel %vm732, %v651, 0.0
        %v1083 = vadd.f32 %v1081, %v1082
        %v1084 = vsel %vm732, %v652, 0.0
        %v1085 = vadd.f32 %v1083, %v1084
        %v1086 = vsel %vm732, %v653, 0.0
        %v1087 = vadd.f32 %v1085, %v1086
        %v1088 = vsel %vm732, %v654, 0.0
        %v1089 = vadd.f32 %v1087, %v1088
        %v1090 = vsel %vm732, %v655, 0.0
        %v1091 = vadd.f32 %v1089, %v1090
        %v1092 = vsel %vm732, %v656, 0.0
        %v1093 = vadd.f32 %v1091, %v1092
        %v1094 = vsel %vm732, %v657, 0.0
        %v1095 = vadd.f32 %v1093, %v1094
        %v1096 = vsel %vm732, %v658, 0.0
        %v1097 = vadd.f32 %v1095, %v1096
        %v1098 = vsel %vm732, %v659, 0.0
        %v1099 = vadd.f32 %v1097, %v1098
        %v1100 = vsel %vm732, %v660, 0.0
        %v1101 = vadd.f32 %v1099, %v1100
        %v1102 = vsel %vm732, %v661, 0.0
        %v1103 = vadd.f32 %v1101, %v1102
        %v1104 = vsel %vm732, %v662, 0.0
        %v1105 = vadd.f32 %v1103, %v1104
        %v1106 = vsel %vm732, %v663, 0.0
        %v1107 = vadd.f32 %v1105, %v1106
        %v1108 = vsel %vm732, %v664, 0.0
        %v1109 = vadd.f32 %v1107, %v1108
        %v1110 = vsel %vm732, %v665, 0.0
        %v1111 = vadd.f32 %v1109, %v1110
        %v1112 = vsel %vm732, %v666, 0.0
        %v1113 = vadd.f32 %v1111, %v1112
        %v1114 = vsel %vm732, %v667, 0.0
        %v1115 = vadd.f32 %v1113, %v1114
        %v1116 = vsel %vm732, %v668, 0.0
        %v1117 = vadd.f32 %v1115, %v1116
        %v1118 = vsel %vm732, %v669, 0.0
        %v1119 = vadd.f32 %v1117, %v1118
        %v1120 = vsel %vm732, %v670, 0.0
        %v1121 = vadd.f32 %v1119, %v1120
        %v1122 = vsel %vm732, %v671, 0.0
        %v1123 = vadd.f32 %v1121, %v1122
        %v1124 = vsel %vm732, %v672, 0.0
        %v1125 = vadd.f32 %v1123, %v1124
        %v1126 = vsel %vm732, %v673, 0.0
        %v1127 = vadd.f32 %v1125, %v1126
        %v1128 = vsel %vm732, %v674, 0.0
        %v1129 = vadd.f32 %v1127, %v1128
        %v1130 = vsel %vm732, %v675, 0.0
        %v1131 = vadd.f32 %v1129, %v1130
        %v1132 = vsel %vm732, %v676, 0.0
        %v1133 = vadd.f32 %v1131, %v1132
        %v1134 = vsel %vm732, %v677, 0.0
        %v1135 = vadd.f32 %v1133, %v1134
        %v1136 = vsel %vm732, %v678, 0.0
        %v1137 = vadd.f32 %v1135, %v1136
        %v1138 = vsel %vm732, %v679, 0.0
        %v1139 = vadd.f32 %v1137, %v1138
        %v1140 = vsel %vm732, %v680, 0.0
        %v1141 = vadd.f32 %v1139, %v1140
        %v1142 = vsel %vm732, %v681, 0.0
        %v1143 = vadd.f32 %v1141, %v1142
        %v1144 = vsel %vm732, %v682, 0.0
        %v1145 = vadd.f32 %v1143, %v1144
        %v1146 = vsel %vm732, %v683, 0.0
        %v1147 = vadd.f32 %v1145, %v1146
        %v1148 = vsel %vm732, %v684, 0.0
        %v1149 = vadd.f32 %v1147, %v1148
        %v1150 = vsel %vm732, %v685, 0.0
        %v1151 = vadd.f32 %v1149, %v1150
        %v1152 = vsel %vm732, %v686, 0.0
        %v1153 = vadd.f32 %v1151, %v1152
        %v1154 = vsel %vm732, %v687, 0.0
        %v1155 = vadd.f32 %v1153, %v1154
        %v1156 = vsel %vm732, %v688, 0.0
        %v1157 = vadd.f32 %v1155, %v1156
        %v1158 = vsel %vm732, %v689, 0.0
        %v1159 = vadd.f32 %v1157, %v1158
        %v1160 = vsel %vm732, %v690, 0.0
        %v1161 = vadd.f32 %v1159, %v1160
        %v1162 = vsel %vm732, %v691, 0.0
        %v1163 = vadd.f32 %v1161, %v1162
        %v1164 = vsel %vm732, %v692, 0.0
        %v1165 = vadd.f32 %v1163, %v1164
        %v1166 = vsel %vm732, %v693, 0.0
        %v1167 = vadd.f32 %v1165, %v1166
        %v1168 = vsel %vm732, %v694, 0.0
        %v1169 = vadd.f32 %v1167, %v1168
        %v1170 = vsel %vm732, %v695, 0.0
        %v1171 = vadd.f32 %v1169, %v1170
        %v1172 = vsel %vm732, %v696, 0.0
        %v1173 = vadd.f32 %v1171, %v1172
        %v1174 = vsel %vm732, %v697, 0.0
        %v1175 = vadd.f32 %v1173, %v1174
        %v1176 = vsel %vm732, %v698, 0.0
        %v1177 = vadd.f32 %v1175, %v1176
        %v1178 = vsel %vm732, %v699, 0.0
        %v1179 = vadd.f32 %v1177, %v1178
        %v1180 = vsel %vm732, %v700, 0.0
        %v1181 = vadd.f32 %v1179, %v1180
        %v1182 = vsel %vm732, %v701, 0.0
        %v1183 = vadd.f32 %v1181, %v1182
        %v1184 = vsel %vm732, %v702, 0.0
        %v1185 = vadd.f32 %v1183, %v1184
        %v1186 = vsel %vm732, %v703, 0.0
        %v1187 = vadd.f32 %v1185, %v1186
        %v1188 = vsel %vm732, %v704, 0.0
        %v1189 = vadd.f32 %v1187, %v1188
        %v1190 = vsel %vm732, %v705, 0.0
        %v1191 = vadd.f32 %v1189, %v1190
        %v1192 = vsel %vm732, %v706, 0.0
        %v1193 = vadd.f32 %v1191, %v1192
        %v1194 = vsel %vm732, %v707, 0.0
        %v1195 = vadd.f32 %v1193, %v1194
        %v1196 = vsel %vm732, %v708, 0.0
        %v1197 = vadd.f32 %v1195, %v1196
        %v1198 = vsel %vm732, %v709, 0.0
        %v1199 = vadd.f32 %v1197, %v1198
        %v1200 = vsel %vm732, %v710, 0.0
        %v1201 = vadd.f32 %v1199, %v1200
        %v1202 = vsel %vm732, %v711, 0.0
        %v1203 = vadd.f32 %v1201, %v1202
        %v1204 = vsel %vm732, %v712, 0.0
        %v1205 = vadd.f32 %v1203, %v1204
        %v1206 = vsel %vm732, %v713, 0.0
        %v1207 = vadd.f32 %v1205, %v1206
        %v1208 = vsel %vm732, %v714, 0.0
        %v1209 = vadd.f32 %v1207, %v1208
        %v1210 = vsel %vm732, %v715, 0.0
        %v1211 = vadd.f32 %v1209, %v1210
        %v1212 = vsel %vm732, %v716, 0.0
        %v1213 = vadd.f32 %v1211, %v1212
        %v1214 = vsel %vm732, %v717, 0.0
        %v1215 = vadd.f32 %v1213, %v1214
        %v1216 = vsel %vm732, %v718, 0.0
        %v1217 = vadd.f32 %v1215, %v1216
        %v1218 = vsel %vm732, %v719, 0.0
        %v1219 = vadd.f32 %v1217, %v1218
        %v1220 = vsel %vm732, %v720, 0.0
        %v1221 = vadd.f32 %v1219, %v1220
        %v1222 = vsel %vm732, %v721, 0.0
        %v1223 = vadd.f32 %v1221, %v1222
        %v1224 = vsel %vm732, %v722, 0.0
        %v1225 = vadd.f32 %v1223, %v1224
        %v1226 = vsel %vm732, %v723, 0.0
        %v1227 = vadd.f32 %v1225, %v1226
        %v1228 = vsel %vm732, %v724, 0.0
        %v1229 = vadd.f32 %v1227, %v1228
        %v1230 = vsel %vm732, %v725, 0.0
        %v1231 = vadd.f32 %v1229, %v1230
        %v1232 = vsel %vm732, %v726, 0.0
        %v1233 = vadd.f32 %v1231, %v1232
        %v1234 = vsel %vm732, %v727, 0.0
        %v1235 = vadd.f32 %v1233, %v1234
        %v1236 = vsel %vm732, %v728, 0.0
        %v1237 = vadd.f32 %v1235, %v1236
        %v1238 = vsel %vm732, %v729, 0.0
        %v1239 = vadd.f32 %v1237, %v1238
        %v1240 = vsel %vm732, %v730, 0.0
        %v1241 = vadd.f32 %v1239, %v1240
        %v1242 = vsel %vm732, %v731, 0.0
        %v1243 = vadd.f32 %v1241, %v1242
        %v1244 = vrot.slane %v1243, 4
        %v1245 = vadd.f32 %v1243, %v1244
        %v1246 = vrot.slane %v1245, 2
        %v1247 = vadd.f32 %v1245, %v1246
        %v1248 = vrot.slane %v1247, 1
        %v1249 = vadd.f32 %v1247, %v1248
        %v1250 = vrcp.pop 2048.0
        %v1251 = vmul.f32 2048.0, %v1250
        %v1252 = vsub.f32 1.0, %v1251
        %v1253 = vmul.f32 %v1250, %v1252
        %v1254 = vadd.f32 %v1250, %v1253
        %vm1255 = vweird.f32 %v1250
        %v1256 = vsel %vm1255, %v1250, %v1254
        %v1257 = vmul.f32 %v1249, %v1256
        %v1258 = vsel %vm732, %v476, -inf
        %v1259 = vsel %vm732, %v477, -inf
        %v1260 = vsel %vm732, %v478, -inf
        %v1261 = vsel %vm732, %v479, -inf
        %v1262 = vsel %vm732, %v480, -inf
        %v1263 = vmax.f32 %v1258, %v1262
        %v1264 = vsel %vm732, %v481, -inf
        %v1265 = vmax.f32 %v1259, %v1264
        %v1266 = vsel %vm732, %v482, -inf
        %v1267 = vmax.f32 %v1260, %v1266
        %v1268 = vsel %vm732, %v483, -inf
        %v1269 = vmax.f32 %v1261, %v1268
        %v1270 = vsel %vm732, %v484, -inf
        %v1271 = vmax.f32 %v1263, %v1270
        %v1272 = vsel %vm732, %v485, -inf
        %v1273 = vmax.f32 %v1265, %v1272
        %v1274 = vsel %vm732, %v486, -inf
        %v1275 = vmax.f32 %v1267, %v1274
        %v1276 = vsel %vm732, %v487, -inf
        %v1277 = vmax.f32 %v1269, %v1276
        %v1278 = vsel %vm732, %v488, -inf
        %v1279 = vmax.f32 %v1271, %v1278
        %v1280 = vsel %vm732, %v489, -inf
        %v1281 = vmax.f32 %v1273, %v1280
        %v1282 = vsel %vm732, %v490, -inf
        %v1283 = vmax.f32 %v1275, %v1282
        %v1284 = vsel %vm732, %v491, -inf
        %v1285 = vmax.f32 %v1277, %v1284
        %v1286 = vsel %vm732, %v492, -inf
        %v1287 = vmax.f32 %v1279, %v1286
        %v1288 = vsel %vm732, %v493, -inf
        %v1289 = vmax.f32 %v1281, %v1288
        %v1290 = vsel %vm732, %v494, -inf
        %v1291 = vmax.f32 %v1283, %v1290
        %v1292 = vsel %vm732, %v495, -inf
        %v1293 = vmax.f32 %v1285, %v1292
        %v1294 = vsel %vm732, %v496, -inf
        %v1295 = vmax.f32 %v1287, %v1294
        %v1296 = vsel %vm732, %v497, -inf
        %v1297 = vmax.f32 %v1289, %v1296
        %v1298 = vsel %vm732, %v498, -inf
        %v1299 = vmax.f32 %v1291, %v1298
        %v1300 = vsel %vm732, %v499, -inf
        %v1301 = vmax.f32 %v1293, %v1300
        %v1302 = vsel %vm732, %v500, -inf
        %v1303 = vmax.f32 %v1295, %v1302
        %v1304 = vsel %vm732, %v501, -inf
        %v1305 = vmax.f32 %v1297, %v1304
        %v1306 = vsel %vm732, %v502, -inf
        %v1307 = vmax.f32 %v1299, %v1306
        %v1308 = vsel %vm732, %v503, -inf
        %v1309 = vmax.f32 %v1301, %v1308
        %v1310 = vsel %vm732, %v504, -inf
        %v1311 = vmax.f32 %v1303, %v1310
        %v1312 = vsel %vm732, %v505, -inf
        %v1313 = vmax.f32 %v1305, %v1312
        %v1314 = vsel %vm732, %v506, -inf
        %v1315 = vmax.f32 %v1307, %v1314
        %v1316 = vsel %vm732, %v507, -inf
        %v1317 = vmax.f32 %v1309, %v1316
        %v1318 = vsel %vm732, %v508, -inf
        %v1319 = vmax.f32 %v1311, %v1318
        %v1320 = vsel %vm732, %v509, -inf
        %v1321 = vmax.f32 %v1313, %v1320
        %v1322 = vsel %vm732, %v510, -inf
        %v1323 = vmax.f32 %v1315, %v1322
        %v1324 = vsel %vm732, %v511, -inf
        %v1325 = vmax.f32 %v1317, %v1324
        %v1326 = vsel %vm732, %v512, -inf
        %v1327 = vmax.f32 %v1319, %v1326
        %v1328 = vsel %vm732, %v513, -inf
        %v1329 = vmax.f32 %v1321, %v1328
        %v1330 = vsel %vm732, %v514, -inf
        %v1331 = vmax.f32 %v1323, %v1330
        %v1332 = vsel %vm732, %v515, -inf
        %v1333 = vmax.f32 %v1325, %v1332
        %v1334 = vsel %vm732, %v516, -inf
        %v1335 = vmax.f32 %v1327, %v1334
        %v1336 = vsel %vm732, %v517, -inf
        %v1337 = vmax.f32 %v1329, %v1336
        %v1338 = vsel %vm732, %v518, -inf
        %v1339 = vmax.f32 %v1331, %v1338
        %v1340 = vsel %vm732, %v519, -inf
        %v1341 = vmax.f32 %v1333, %v1340
        %v1342 = vsel %vm732, %v520, -inf
        %v1343 = vmax.f32 %v1335, %v1342
        %v1344 = vsel %vm732, %v521, -inf
        %v1345 = vmax.f32 %v1337, %v1344
        %v1346 = vsel %vm732, %v522, -inf
        %v1347 = vmax.f32 %v1339, %v1346
        %v1348 = vsel %vm732, %v523, -inf
        %v1349 = vmax.f32 %v1341, %v1348
        %v1350 = vsel %vm732, %v524, -inf
        %v1351 = vmax.f32 %v1343, %v1350
        %v1352 = vsel %vm732, %v525, -inf
        %v1353 = vmax.f32 %v1345, %v1352
        %v1354 = vsel %vm732, %v526, -inf
        %v1355 = vmax.f32 %v1347, %v1354
        %v1356 = vsel %vm732, %v527, -inf
        %v1357 = vmax.f32 %v1349, %v1356
        %v1358 = vsel %vm732, %v528, -inf
        %v1359 = vmax.f32 %v1351, %v1358
        %v1360 = vsel %vm732, %v529, -inf
        %v1361 = vmax.f32 %v1353, %v1360
        %v1362 = vsel %vm732, %v530, -inf
        %v1363 = vmax.f32 %v1355, %v1362
        %v1364 = vsel %vm732, %v531, -inf
        %v1365 = vmax.f32 %v1357, %v1364
        %v1366 = vsel %vm732, %v532, -inf
        %v1367 = vmax.f32 %v1359, %v1366
        %v1368 = vsel %vm732, %v533, -inf
        %v1369 = vmax.f32 %v1361, %v1368
        %v1370 = vsel %vm732, %v534, -inf
        %v1371 = vmax.f32 %v1363, %v1370
        %v1372 = vsel %vm732, %v535, -inf
        %v1373 = vmax.f32 %v1365, %v1372
        %v1374 = vsel %vm732, %v536, -inf
        %v1375 = vmax.f32 %v1367, %v1374
        %v1376 = vsel %vm732, %v537, -inf
        %v1377 = vmax.f32 %v1369, %v1376
        %v1378 = vsel %vm732, %v538, -inf
        %v1379 = vmax.f32 %v1371, %v1378
        %v1380 = vsel %vm732, %v539, -inf
        %v1381 = vmax.f32 %v1373, %v1380
        %v1382 = vsel %vm732, %v540, -inf
        %v1383 = vmax.f32 %v1375, %v1382
        %v1384 = vsel %vm732, %v541, -inf
        %v1385 = vmax.f32 %v1377, %v1384
        %v1386 = vsel %vm732, %v542, -inf
        %v1387 = vmax.f32 %v1379, %v1386
        %v1388 = vsel %vm732, %v543, -inf
        %v1389 = vmax.f32 %v1381, %v1388
        %v1390 = vsel %vm732, %v544, -inf
        %v1391 = vmax.f32 %v1383, %v1390
        %v1392 = vsel %vm732, %v545, -inf
        %v1393 = vmax.f32 %v1385, %v1392
        %v1394 = vsel %vm732, %v546, -inf
        %v1395 = vmax.f32 %v1387, %v1394
        %v1396 = vsel %vm732, %v547, -inf
        %v1397 = vmax.f32 %v1389, %v1396
        %v1398 = vsel %vm732, %v548, -inf
        %v1399 = vmax.f32 %v1391, %v1398
        %v1400 = vsel %vm732, %v549, -inf
        %v1401 = vmax.f32 %v1393, %v1400
        %v1402 = vsel %vm732, %v550, -inf
        %v1403 = vmax.f32 %v1395, %v1402
        %v1404 = vsel %vm732, %v551, -inf
        %v1405 = vmax.f32 %v1397, %v1404
        %v1406 = vsel %vm732, %v552, -inf
        %v1407 = vmax.f32 %v1399, %v1406
        %v1408 = vsel %vm732, %v553, -inf
        %v1409 = vmax.f32 %v1401, %v1408
        %v1410 = vsel %vm732, %v554, -inf
        %v1411 = vmax.f32 %v1403, %v1410
        %v1412 = vsel %vm732, %v555, -inf
        %v1413 = vmax.f32 %v1405, %v1412
        %v1414 = vsel %vm732, %v556, -inf
        %v1415 = vmax.f32 %v1407, %v1414
        %v1416 = vsel %vm732, %v557, -inf
        %v1417 = vmax.f32 %v1409, %v1416
        %v1418 = vsel %vm732, %v558, -inf
        %v1419 = vmax.f32 %v1411, %v1418
        %v1420 = vsel %vm732, %v559, -inf
        %v1421 = vmax.f32 %v1413, %v1420
        %v1422 = vsel %vm732, %v560, -inf
        %v1423 = vmax.f32 %v1415, %v1422
        %v1424 = vsel %vm732, %v561, -inf
        %v1425 = vmax.f32 %v1417, %v1424
        %v1426 = vsel %vm732, %v562, -inf
        %v1427 = vmax.f32 %v1419, %v1426
        %v1428 = vsel %vm732, %v563, -inf
        %v1429 = vmax.f32 %v1421, %v1428
        %v1430 = vsel %vm732, %v564, -inf
        %v1431 = vmax.f32 %v1423, %v1430
        %v1432 = vsel %vm732, %v565, -inf
        %v1433 = vmax.f32 %v1425, %v1432
        %v1434 = vsel %vm732, %v566, -inf
        %v1435 = vmax.f32 %v1427, %v1434
        %v1436 = vsel %vm732, %v567, -inf
        %v1437 = vmax.f32 %v1429, %v1436
        %v1438 = vsel %vm732, %v568, -inf
        %v1439 = vmax.f32 %v1431, %v1438
        %v1440 = vsel %vm732, %v569, -inf
        %v1441 = vmax.f32 %v1433, %v1440
        %v1442 = vsel %vm732, %v570, -inf
        %v1443 = vmax.f32 %v1435, %v1442
        %v1444 = vsel %vm732, %v571, -inf
        %v1445 = vmax.f32 %v1437, %v1444
        %v1446 = vsel %vm732, %v572, -inf
        %v1447 = vmax.f32 %v1439, %v1446
        %v1448 = vsel %vm732, %v573, -inf
        %v1449 = vmax.f32 %v1441, %v1448
        %v1450 = vsel %vm732, %v574, -inf
        %v1451 = vmax.f32 %v1443, %v1450
        %v1452 = vsel %vm732, %v575, -inf
        %v1453 = vmax.f32 %v1445, %v1452
        %v1454 = vsel %vm732, %v576, -inf
        %v1455 = vmax.f32 %v1447, %v1454
        %v1456 = vsel %vm732, %v577, -inf
        %v1457 = vmax.f32 %v1449, %v1456
        %v1458 = vsel %vm732, %v578, -inf
        %v1459 = vmax.f32 %v1451, %v1458
        %v1460 = vsel %vm732, %v579, -inf
        %v1461 = vmax.f32 %v1453, %v1460
        %v1462 = vsel %vm732, %v580, -inf
        %v1463 = vmax.f32 %v1455, %v1462
        %v1464 = vsel %vm732, %v581, -inf
        %v1465 = vmax.f32 %v1457, %v1464
        %v1466 = vsel %vm732, %v582, -inf
        %v1467 = vmax.f32 %v1459, %v1466
        %v1468 = vsel %vm732, %v583, -inf
        %v1469 = vmax.f32 %v1461, %v1468
        %v1470 = vsel %vm732, %v584, -inf
        %v1471 = vmax.f32 %v1463, %v1470
        %v1472 = vsel %vm732, %v585, -inf
        %v1473 = vmax.f32 %v1465, %v1472
        %v1474 = vsel %vm732, %v586, -inf
        %v1475 = vmax.f32 %v1467, %v1474
        %v1476 = vsel %vm732, %v587, -inf
        %v1477 = vmax.f32 %v1469, %v1476
        %v1478 = vsel %vm732, %v588, -inf
        %v1479 = vmax.f32 %v1471, %v1478
        %v1480 = vsel %vm732, %v589, -inf
        %v1481 = vmax.f32 %v1473, %v1480
        %v1482 = vsel %vm732, %v590, -inf
        %v1483 = vmax.f32 %v1475, %v1482
        %v1484 = vsel %vm732, %v591, -inf
        %v1485 = vmax.f32 %v1477, %v1484
        %v1486 = vsel %vm732, %v592, -inf
        %v1487 = vmax.f32 %v1479, %v1486
        %v1488 = vsel %vm732, %v593, -inf
        %v1489 = vmax.f32 %v1481, %v1488
        %v1490 = vsel %vm732, %v594, -inf
        %v1491 = vmax.f32 %v1483, %v1490
        %v1492 = vsel %vm732, %v595, -inf
        %v1493 = vmax.f32 %v1485, %v1492
        %v1494 = vsel %vm732, %v596, -inf
        %v1495 = vmax.f32 %v1487, %v1494
        %v1496 = vsel %vm732, %v597, -inf
        %v1497 = vmax.f32 %v1489, %v1496
        %v1498 = vsel %vm732, %v598, -inf
        %v1499 = vmax.f32 %v1491, %v1498
        %v1500 = vsel %vm732, %v599, -inf
        %v1501 = vmax.f32 %v1493, %v1500
        %v1502 = vsel %vm732, %v600, -inf
        %v1503 = vmax.f32 %v1495, %v1502
        %v1504 = vsel %vm732, %v601, -inf
        %v1505 = vmax.f32 %v1497, %v1504
        %v1506 = vsel %vm732, %v602, -inf
        %v1507 = vmax.f32 %v1499, %v1506
        %v1508 = vsel %vm732, %v603, -inf
        %v1509 = vmax.f32 %v1501, %v1508
        %v1510 = vsel %vm732, %v604, -inf
        %v1511 = vmax.f32 %v1503, %v1510
        %v1512 = vsel %vm732, %v605, -inf
        %v1513 = vmax.f32 %v1505, %v1512
        %v1514 = vsel %vm732, %v606, -inf
        %v1515 = vmax.f32 %v1507, %v1514
        %v1516 = vsel %vm732, %v607, -inf
        %v1517 = vmax.f32 %v1509, %v1516
        %v1518 = vsel %vm732, %v608, -inf
        %v1519 = vmax.f32 %v1511, %v1518
        %v1520 = vsel %vm732, %v609, -inf
        %v1521 = vmax.f32 %v1513, %v1520
        %v1522 = vsel %vm732, %v610, -inf
        %v1523 = vmax.f32 %v1515, %v1522
        %v1524 = vsel %vm732, %v611, -inf
        %v1525 = vmax.f32 %v1517, %v1524
        %v1526 = vsel %vm732, %v612, -inf
        %v1527 = vmax.f32 %v1519, %v1526
        %v1528 = vsel %vm732, %v613, -inf
        %v1529 = vmax.f32 %v1521, %v1528
        %v1530 = vsel %vm732, %v614, -inf
        %v1531 = vmax.f32 %v1523, %v1530
        %v1532 = vsel %vm732, %v615, -inf
        %v1533 = vmax.f32 %v1525, %v1532
        %v1534 = vsel %vm732, %v616, -inf
        %v1535 = vmax.f32 %v1527, %v1534
        %v1536 = vsel %vm732, %v617, -inf
        %v1537 = vmax.f32 %v1529, %v1536
        %v1538 = vsel %vm732, %v618, -inf
        %v1539 = vmax.f32 %v1531, %v1538
        %v1540 = vsel %vm732, %v619, -inf
        %v1541 = vmax.f32 %v1533, %v1540
        %v1542 = vsel %vm732, %v620, -inf
        %v1543 = vmax.f32 %v1535, %v1542
        %v1544 = vsel %vm732, %v621, -inf
        %v1545 = vmax.f32 %v1537, %v1544
        %v1546 = vsel %vm732, %v622, -inf
        %v1547 = vmax.f32 %v1539, %v1546
        %v1548 = vsel %vm732, %v623, -inf
        %v1549 = vmax.f32 %v1541, %v1548
        %v1550 = vsel %vm732, %v624, -inf
        %v1551 = vmax.f32 %v1543, %v1550
        %v1552 = vsel %vm732, %v625, -inf
        %v1553 = vmax.f32 %v1545, %v1552
        %v1554 = vsel %vm732, %v626, -inf
        %v1555 = vmax.f32 %v1547, %v1554
        %v1556 = vsel %vm732, %v627, -inf
        %v1557 = vmax.f32 %v1549, %v1556
        %v1558 = vsel %vm732, %v628, -inf
        %v1559 = vmax.f32 %v1551, %v1558
        %v1560 = vsel %vm732, %v629, -inf
        %v1561 = vmax.f32 %v1553, %v1560
        %v1562 = vsel %vm732, %v630, -inf
        %v1563 = vmax.f32 %v1555, %v1562
        %v1564 = vsel %vm732, %v631, -inf
        %v1565 = vmax.f32 %v1557, %v1564
        %v1566 = vsel %vm732, %v632, -inf
        %v1567 = vmax.f32 %v1559, %v1566
        %v1568 = vsel %vm732, %v633, -inf
        %v1569 = vmax.f32 %v1561, %v1568
        %v1570 = vsel %vm732, %v634, -inf
        %v1571 = vmax.f32 %v1563, %v1570
        %v1572 = vsel %vm732, %v635, -inf
        %v1573 = vmax.f32 %v1565, %v1572
        %v1574 = vsel %vm732, %v636, -inf
        %v1575 = vmax.f32 %v1567, %v1574
        %v1576 = vsel %vm732, %v637, -inf
        %v1577 = vmax.f32 %v1569, %v1576
        %v1578 = vsel %vm732, %v638, -inf
        %v1579 = vmax.f32 %v1571, %v1578
        %v1580 = vsel %vm732, %v639, -inf
        %v1581 = vmax.f32 %v1573, %v1580
        %v1582 = vsel %vm732, %v640, -inf
        %v1583 = vmax.f32 %v1575, %v1582
        %v1584 = vsel %vm732, %v641, -inf
        %v1585 = vmax.f32 %v1577, %v1584
        %v1586 = vsel %vm732, %v642, -inf
        %v1587 = vmax.f32 %v1579, %v1586
        %v1588 = vsel %vm732, %v643, -inf
        %v1589 = vmax.f32 %v1581, %v1588
        %v1590 = vsel %vm732, %v644, -inf
        %v1591 = vmax.f32 %v1583, %v1590
        %v1592 = vsel %vm732, %v645, -inf
        %v1593 = vmax.f32 %v1585, %v1592
        %v1594 = vsel %vm732, %v646, -inf
        %v1595 = vmax.f32 %v1587, %v1594
        %v1596 = vsel %vm732, %v647, -inf
        %v1597 = vmax.f32 %v1589, %v1596
        %v1598 = vsel %vm732, %v648, -inf
        %v1599 = vmax.f32 %v1591, %v1598
        %v1600 = vsel %vm732, %v649, -inf
        %v1601 = vmax.f32 %v1593, %v1600
        %v1602 = vsel %vm732, %v650, -inf
        %v1603 = vmax.f32 %v1595, %v1602
        %v1604 = vsel %vm732, %v651, -inf
        %v1605 = vmax.f32 %v1597, %v1604
        %v1606 = vsel %vm732, %v652, -inf
        %v1607 = vmax.f32 %v1599, %v1606
        %v1608 = vsel %vm732, %v653, -inf
        %v1609 = vmax.f32 %v1601, %v1608
        %v1610 = vsel %vm732, %v654, -inf
        %v1611 = vmax.f32 %v1603, %v1610
        %v1612 = vsel %vm732, %v655, -inf
        %v1613 = vmax.f32 %v1605, %v1612
        %v1614 = vsel %vm732, %v656, -inf
        %v1615 = vmax.f32 %v1607, %v1614
        %v1616 = vsel %vm732, %v657, -inf
        %v1617 = vmax.f32 %v1609, %v1616
        %v1618 = vsel %vm732, %v658, -inf
        %v1619 = vmax.f32 %v1611, %v1618
        %v1620 = vsel %vm732, %v659, -inf
        %v1621 = vmax.f32 %v1613, %v1620
        %v1622 = vsel %vm732, %v660, -inf
        %v1623 = vmax.f32 %v1615, %v1622
        %v1624 = vsel %vm732, %v661, -inf
        %v1625 = vmax.f32 %v1617, %v1624
        %v1626 = vsel %vm732, %v662, -inf
        %v1627 = vmax.f32 %v1619, %v1626
        %v1628 = vsel %vm732, %v663, -inf
        %v1629 = vmax.f32 %v1621, %v1628
        %v1630 = vsel %vm732, %v664, -inf
        %v1631 = vmax.f32 %v1623, %v1630
        %v1632 = vsel %vm732, %v665, -inf
        %v1633 = vmax.f32 %v1625, %v1632
        %v1634 = vsel %vm732, %v666, -inf
        %v1635 = vmax.f32 %v1627, %v1634
        %v1636 = vsel %vm732, %v667, -inf
        %v1637 = vmax.f32 %v1629, %v1636
        %v1638 = vsel %vm732, %v668, -inf
        %v1639 = vmax.f32 %v1631, %v1638
        %v1640 = vsel %vm732, %v669, -inf
        %v1641 = vmax.f32 %v1633, %v1640
        %v1642 = vsel %vm732, %v670, -inf
        %v1643 = vmax.f32 %v1635, %v1642
        %v1644 = vsel %vm732, %v671, -inf
        %v1645 = vmax.f32 %v1637, %v1644
        %v1646 = vsel %vm732, %v672, -inf
        %v1647 = vmax.f32 %v1639, %v1646
        %v1648 = vsel %vm732, %v673, -inf
        %v1649 = vmax.f32 %v1641, %v1648
        %v1650 = vsel %vm732, %v674, -inf
        %v1651 = vmax.f32 %v1643, %v1650
        %v1652 = vsel %vm732, %v675, -inf
        %v1653 = vmax.f32 %v1645, %v1652
        %v1654 = vsel %vm732, %v676, -inf
        %v1655 = vmax.f32 %v1647, %v1654
        %v1656 = vsel %vm732, %v677, -inf
        %v1657 = vmax.f32 %v1649, %v1656
        %v1658 = vsel %vm732, %v678, -inf
        %v1659 = vmax.f32 %v1651, %v1658
        %v1660 = vsel %vm732, %v679, -inf
        %v1661 = vmax.f32 %v1653, %v1660
        %v1662 = vsel %vm732, %v680, -inf
        %v1663 = vmax.f32 %v1655, %v1662
        %v1664 = vsel %vm732, %v681, -inf
        %v1665 = vmax.f32 %v1657, %v1664
        %v1666 = vsel %vm732, %v682, -inf
        %v1667 = vmax.f32 %v1659, %v1666
        %v1668 = vsel %vm732, %v683, -inf
        %v1669 = vmax.f32 %v1661, %v1668
        %v1670 = vsel %vm732, %v684, -inf
        %v1671 = vmax.f32 %v1663, %v1670
        %v1672 = vsel %vm732, %v685, -inf
        %v1673 = vmax.f32 %v1665, %v1672
        %v1674 = vsel %vm732, %v686, -inf
        %v1675 = vmax.f32 %v1667, %v1674
        %v1676 = vsel %vm732, %v687, -inf
        %v1677 = vmax.f32 %v1669, %v1676
        %v1678 = vsel %vm732, %v688, -inf
        %v1679 = vmax.f32 %v1671, %v1678
        %v1680 = vsel %vm732, %v689, -inf
        %v1681 = vmax.f32 %v1673, %v1680
        %v1682 = vsel %vm732, %v690, -inf
        %v1683 = vmax.f32 %v1675, %v1682
        %v1684 = vsel %vm732, %v691, -inf
        %v1685 = vmax.f32 %v1677, %v1684
        %v1686 = vsel %vm732, %v692, -inf
        %v1687 = vmax.f32 %v1679, %v1686
        %v1688 = vsel %vm732, %v693, -inf
        %v1689 = vmax.f32 %v1681, %v1688
        %v1690 = vsel %vm732, %v694, -inf
        %v1691 = vmax.f32 %v1683, %v1690
        %v1692 = vsel %vm732, %v695, -inf
        %v1693 = vmax.f32 %v1685, %v1692
        %v1694 = vsel %vm732, %v696, -inf
        %v1695 = vmax.f32 %v1687, %v1694
        %v1696 = vsel %vm732, %v697, -inf
        %v1697 = vmax.f32 %v1689, %v1696
        %v1698 = vsel %vm732, %v698, -inf
        %v1699 = vmax.f32 %v1691, %v1698
        %v1700 = vsel %vm732, %v699, -inf
        %v1701 = vmax.f32 %v1693, %v1700
        %v1702 = vsel %vm732, %v700, -inf
        %v1703 = vmax.f32 %v1695, %v1702
        %v1704 = vsel %vm732, %v701, -inf
        %v1705 = vmax.f32 %v1697, %v1704
        %v1706 = vsel %vm732, %v702, -inf
        %v1707 = vmax.f32 %v1699, %v1706
        %v1708 = vsel %vm732, %v703, -inf
        %v1709 = vmax.f32 %v1701, %v1708
        %v1710 = vsel %vm732, %v704, -inf
        %v1711 = vmax.f32 %v1703, %v1710
        %v1712 = vsel %vm732, %v705, -inf
        %v1713 = vmax.f32 %v1705, %v1712
        %v1714 = vsel %vm732, %v706, -inf
        %v1715 = vmax.f32 %v1707, %v1714
        %v1716 = vsel %vm732, %v707, -inf
        %v1717 = vmax.f32 %v1709, %v1716
        %v1718 = vsel %vm732, %v708, -inf
        %v1719 = vmax.f32 %v1711, %v1718
        %v1720 = vsel %vm732, %v709, -inf
        %v1721 = vmax.f32 %v1713, %v1720
        %v1722 = vsel %vm732, %v710, -inf
        %v1723 = vmax.f32 %v1715, %v1722
        %v1724 = vsel %vm732, %v711, -inf
        %v1725 = vmax.f32 %v1717, %v1724
        %v1726 = vsel %vm732, %v712, -inf
        %v1727 = vmax.f32 %v1719, %v1726
        %v1728 = vsel %vm732, %v713, -inf
        %v1729 = vmax.f32 %v1721, %v1728
        %v1730 = vsel %vm732, %v714, -inf
        %v1731 = vmax.f32 %v1723, %v1730
        %v1732 = vsel %vm732, %v715, -inf
        %v1733 = vmax.f32 %v1725, %v1732
        %v1734 = vsel %vm732, %v716, -inf
        %v1735 = vmax.f32 %v1727, %v1734
        %v1736 = vsel %vm732, %v717, -inf
        %v1737 = vmax.f32 %v1729, %v1736
        %v1738 = vsel %vm732, %v718, -inf
        %v1739 = vmax.f32 %v1731, %v1738
        %v1740 = vsel %vm732, %v719, -inf
        %v1741 = vmax.f32 %v1733, %v1740
        %v1742 = vsel %vm732, %v720, -inf
        %v1743 = vmax.f32 %v1735, %v1742
        %v1744 = vsel %vm732, %v721, -inf
        %v1745 = vmax.f32 %v1737, %v1744
        %v1746 = vsel %vm732, %v722, -inf
        %v1747 = vmax.f32 %v1739, %v1746
        %v1748 = vsel %vm732, %v723, -inf
        %v1749 = vmax.f32 %v1741, %v1748
        %v1750 = vsel %vm732, %v724, -inf
        %v1751 = vmax.f32 %v1743, %v1750
        %v1752 = vsel %vm732, %v725, -inf
        %v1753 = vmax.f32 %v1745, %v1752
        %v1754 = vsel %vm732, %v726, -inf
        %v1755 = vmax.f32 %v1747, %v1754
        %v1756 = vsel %vm732, %v727, -inf
        %v1757 = vmax.f32 %v1749, %v1756
        %v1758 = vsel %vm732, %v728, -inf
        %v1759 = vmax.f32 %v1751, %v1758
        %v1760 = vsel %vm732, %v729, -inf
        %v1761 = vmax.f32 %v1753, %v1760
        %v1762 = vsel %vm732, %v730, -inf
        %v1763 = vmax.f32 %v1755, %v1762
        %v1764 = vsel %vm732, %v731, -inf
        %v1765 = vmax.f32 %v1757, %v1764
        %v1766 = vmax.f32 %v1759, %v1761
        %v1767 = vmax.f32 %v1763, %v1765
        %v1768 = vmax.f32 %v1766, %v1767
        %v1769 = vrot.slane %v1768, 4
        %v1770 = vmax.f32 %v1768, %v1769
        %v1771 = vrot.slane %v1770, 2
        %v1772 = vmax.f32 %v1770, %v1771
        %v1773 = vrot.slane %v1772, 1
        %v1774 = vmax.f32 %v1772, %v1773
        %s1775 = sld [smem:[#allocation2]]
        %v1776 = vstv %s1775
        %v1777 = vmul.f32 %v1776, %v1257
        %s1778 = sld [smem:[#allocation2 + $0x1]]
        %v1779 = vstv %s1778
        %v1780 = vmul.f32 %v1779, %v1774
        %v1781 = vadd.f32 %v1777, %v1780
        %v1782 = vxor.u32 %v1781, 2147483648
        %v1783 = vmul.f32 %v1782, 1.442695
        %v1784 = vpow.pop %v1783
        %v1785 = vadd.f32 %v1784, 1.0
        %v1786 = vrcp.pop %v1785
        %v1787 = vmul.f32 %v1785, %v1786
        %v1788 = vsub.f32 1.0, %v1787
        %v1789 = vmul.f32 %v1786, %v1788
        %v1790 = vadd.f32 %v1786, %v1789
        %vm1791 = vweird.f32 %v1785
        %vm1792 = vweird.f32 %v1786
        %vm1793 = vmor %vm1791, %vm1792
        %v1794 = vsel %vm1793, %v1786, %v1790
        %v1795 = vand.u32 2147483647, %v1785
        %vm1796 = vcmp.eq.f32.partialorder %v1795, 8.507059e+37
        %v1797 = vand.u32 %v1785, 2147483648
        %v1798 = vor.u32 1.1754944e-38, %v1797
        %v1799 = vsel %vm1796, %v1798, %v1794
        %v1800 = vmul.f32 1.0, %v1799
        %v1801 = vmul.f32 %v1800, 0.35
        %v1802 = vadd.f32 %v1801, 0.65
        %v1803 = vmul.f32 %v476, %v1802
        %v1804 = vmul.f32 %v477, %v1802
        %v1805 = vmul.f32 %v478, %v1802
        %v1806 = vmul.f32 %v479, %v1802
        %v1807 = vmul.f32 %v480, %v1802
        %v1808 = vmul.f32 %v481, %v1802
        %v1809 = vmul.f32 %v482, %v1802
        %v1810 = vmul.f32 %v483, %v1802
        %v1811 = vmul.f32 %v484, %v1802
        %v1812 = vmul.f32 %v485, %v1802
        %v1813 = vmul.f32 %v486, %v1802
        %v1814 = vmul.f32 %v487, %v1802
        %v1815 = vmul.f32 %v488, %v1802
        %v1816 = vmul.f32 %v489, %v1802
        %v1817 = vmul.f32 %v490, %v1802
        %v1818 = vmul.f32 %v491, %v1802
        %v1819 = vmul.f32 %v492, %v1802
        %v1820 = vmul.f32 %v493, %v1802
        %v1821 = vmul.f32 %v494, %v1802
        %v1822 = vmul.f32 %v495, %v1802
        %v1823 = vmul.f32 %v496, %v1802
        %v1824 = vmul.f32 %v497, %v1802
        %v1825 = vmul.f32 %v498, %v1802
        %v1826 = vmul.f32 %v499, %v1802
        %v1827 = vmul.f32 %v500, %v1802
        %v1828 = vmul.f32 %v501, %v1802
        %v1829 = vmul.f32 %v502, %v1802
        %v1830 = vmul.f32 %v503, %v1802
        %v1831 = vmul.f32 %v504, %v1802
        %v1832 = vmul.f32 %v505, %v1802
        %v1833 = vmul.f32 %v506, %v1802
        %v1834 = vmul.f32 %v507, %v1802
        %v1835 = vmul.f32 %v508, %v1802
        %v1836 = vmul.f32 %v509, %v1802
        %v1837 = vmul.f32 %v510, %v1802
        %v1838 = vmul.f32 %v511, %v1802
        %v1839 = vmul.f32 %v512, %v1802
        %v1840 = vmul.f32 %v513, %v1802
        %v1841 = vmul.f32 %v514, %v1802
        %v1842 = vmul.f32 %v515, %v1802
        %v1843 = vmul.f32 %v516, %v1802
        %v1844 = vmul.f32 %v517, %v1802
        %v1845 = vmul.f32 %v518, %v1802
        %v1846 = vmul.f32 %v519, %v1802
        %v1847 = vmul.f32 %v520, %v1802
        %v1848 = vmul.f32 %v521, %v1802
        %v1849 = vmul.f32 %v522, %v1802
        %v1850 = vmul.f32 %v523, %v1802
        %v1851 = vmul.f32 %v524, %v1802
        %v1852 = vmul.f32 %v525, %v1802
        %v1853 = vmul.f32 %v526, %v1802
        %v1854 = vmul.f32 %v527, %v1802
        %v1855 = vmul.f32 %v528, %v1802
        %v1856 = vmul.f32 %v529, %v1802
        %v1857 = vmul.f32 %v530, %v1802
        %v1858 = vmul.f32 %v531, %v1802
        %v1859 = vmul.f32 %v532, %v1802
        %v1860 = vmul.f32 %v533, %v1802
        %v1861 = vmul.f32 %v534, %v1802
        %v1862 = vmul.f32 %v535, %v1802
        %v1863 = vmul.f32 %v536, %v1802
        %v1864 = vmul.f32 %v537, %v1802
        %v1865 = vmul.f32 %v538, %v1802
        %v1866 = vmul.f32 %v539, %v1802
        %v1867 = vmul.f32 %v540, %v1802
        %v1868 = vmul.f32 %v541, %v1802
        %v1869 = vmul.f32 %v542, %v1802
        %v1870 = vmul.f32 %v543, %v1802
        %v1871 = vmul.f32 %v544, %v1802
        %v1872 = vmul.f32 %v545, %v1802
        %v1873 = vmul.f32 %v546, %v1802
        %v1874 = vmul.f32 %v547, %v1802
        %v1875 = vmul.f32 %v548, %v1802
        %v1876 = vmul.f32 %v549, %v1802
        %v1877 = vmul.f32 %v550, %v1802
        %v1878 = vmul.f32 %v551, %v1802
        %v1879 = vmul.f32 %v552, %v1802
        %v1880 = vmul.f32 %v553, %v1802
        %v1881 = vmul.f32 %v554, %v1802
        %v1882 = vmul.f32 %v555, %v1802
        %v1883 = vmul.f32 %v556, %v1802
        %v1884 = vmul.f32 %v557, %v1802
        %v1885 = vmul.f32 %v558, %v1802
        %v1886 = vmul.f32 %v559, %v1802
        %v1887 = vmul.f32 %v560, %v1802
        %v1888 = vmul.f32 %v561, %v1802
        %v1889 = vmul.f32 %v562, %v1802
        %v1890 = vmul.f32 %v563, %v1802
        %v1891 = vmul.f32 %v564, %v1802
        %v1892 = vmul.f32 %v565, %v1802
        %v1893 = vmul.f32 %v566, %v1802
        %v1894 = vmul.f32 %v567, %v1802
        %v1895 = vmul.f32 %v568, %v1802
        %v1896 = vmul.f32 %v569, %v1802
        %v1897 = vmul.f32 %v570, %v1802
        %v1898 = vmul.f32 %v571, %v1802
        %v1899 = vmul.f32 %v572, %v1802
        %v1900 = vmul.f32 %v573, %v1802
        %v1901 = vmul.f32 %v574, %v1802
        %v1902 = vmul.f32 %v575, %v1802
        %v1903 = vmul.f32 %v576, %v1802
        %v1904 = vmul.f32 %v577, %v1802
        %v1905 = vmul.f32 %v578, %v1802
        %v1906 = vmul.f32 %v579, %v1802
        %v1907 = vmul.f32 %v580, %v1802
        %v1908 = vmul.f32 %v581, %v1802
        %v1909 = vmul.f32 %v582, %v1802
        %v1910 = vmul.f32 %v583, %v1802
        %v1911 = vmul.f32 %v584, %v1802
        %v1912 = vmul.f32 %v585, %v1802
        %v1913 = vmul.f32 %v586, %v1802
        %v1914 = vmul.f32 %v587, %v1802
        %v1915 = vmul.f32 %v588, %v1802
        %v1916 = vmul.f32 %v589, %v1802
        %v1917 = vmul.f32 %v590, %v1802
        %v1918 = vmul.f32 %v591, %v1802
        %v1919 = vmul.f32 %v592, %v1802
        %v1920 = vmul.f32 %v593, %v1802
        %v1921 = vmul.f32 %v594, %v1802
        %v1922 = vmul.f32 %v595, %v1802
        %v1923 = vmul.f32 %v596, %v1802
        %v1924 = vmul.f32 %v597, %v1802
        %v1925 = vmul.f32 %v598, %v1802
        %v1926 = vmul.f32 %v599, %v1802
        %v1927 = vmul.f32 %v600, %v1802
        %v1928 = vmul.f32 %v601, %v1802
        %v1929 = vmul.f32 %v602, %v1802
        %v1930 = vmul.f32 %v603, %v1802
        %v1931 = vmul.f32 %v604, %v1802
        %v1932 = vmul.f32 %v605, %v1802
        %v1933 = vmul.f32 %v606, %v1802
        %v1934 = vmul.f32 %v607, %v1802
        %v1935 = vmul.f32 %v608, %v1802
        %v1936 = vmul.f32 %v609, %v1802
        %v1937 = vmul.f32 %v610, %v1802
        %v1938 = vmul.f32 %v611, %v1802
        %v1939 = vmul.f32 %v612, %v1802
        %v1940 = vmul.f32 %v613, %v1802
        %v1941 = vmul.f32 %v614, %v1802
        %v1942 = vmul.f32 %v615, %v1802
        %v1943 = vmul.f32 %v616, %v1802
        %v1944 = vmul.f32 %v617, %v1802
        %v1945 = vmul.f32 %v618, %v1802
        %v1946 = vmul.f32 %v619, %v1802
        %v1947 = vmul.f32 %v620, %v1802
        %v1948 = vmul.f32 %v621, %v1802
        %v1949 = vmul.f32 %v622, %v1802
        %v1950 = vmul.f32 %v623, %v1802
        %v1951 = vmul.f32 %v624, %v1802
        %v1952 = vmul.f32 %v625, %v1802
        %v1953 = vmul.f32 %v626, %v1802
        %v1954 = vmul.f32 %v627, %v1802
        %v1955 = vmul.f32 %v628, %v1802
        %v1956 = vmul.f32 %v629, %v1802
        %v1957 = vmul.f32 %v630, %v1802
        %v1958 = vmul.f32 %v631, %v1802
        %v1959 = vmul.f32 %v632, %v1802
        %v1960 = vmul.f32 %v633, %v1802
        %v1961 = vmul.f32 %v634, %v1802
        %v1962 = vmul.f32 %v635, %v1802
        %v1963 = vmul.f32 %v636, %v1802
        %v1964 = vmul.f32 %v637, %v1802
        %v1965 = vmul.f32 %v638, %v1802
        %v1966 = vmul.f32 %v639, %v1802
        %v1967 = vmul.f32 %v640, %v1802
        %v1968 = vmul.f32 %v641, %v1802
        %v1969 = vmul.f32 %v642, %v1802
        %v1970 = vmul.f32 %v643, %v1802
        %v1971 = vmul.f32 %v644, %v1802
        %v1972 = vmul.f32 %v645, %v1802
        %v1973 = vmul.f32 %v646, %v1802
        %v1974 = vmul.f32 %v647, %v1802
        %v1975 = vmul.f32 %v648, %v1802
        %v1976 = vmul.f32 %v649, %v1802
        %v1977 = vmul.f32 %v650, %v1802
        %v1978 = vmul.f32 %v651, %v1802
        %v1979 = vmul.f32 %v652, %v1802
        %v1980 = vmul.f32 %v653, %v1802
        %v1981 = vmul.f32 %v654, %v1802
        %v1982 = vmul.f32 %v655, %v1802
        %v1983 = vmul.f32 %v656, %v1802
        %v1984 = vmul.f32 %v657, %v1802
        %v1985 = vmul.f32 %v658, %v1802
        %v1986 = vmul.f32 %v659, %v1802
        %v1987 = vmul.f32 %v660, %v1802
        %v1988 = vmul.f32 %v661, %v1802
        %v1989 = vmul.f32 %v662, %v1802
        %v1990 = vmul.f32 %v663, %v1802
        %v1991 = vmul.f32 %v664, %v1802
        %v1992 = vmul.f32 %v665, %v1802
        %v1993 = vmul.f32 %v666, %v1802
        %v1994 = vmul.f32 %v667, %v1802
        %v1995 = vmul.f32 %v668, %v1802
        %v1996 = vmul.f32 %v669, %v1802
        %v1997 = vmul.f32 %v670, %v1802
        %v1998 = vmul.f32 %v671, %v1802
        %v1999 = vmul.f32 %v672, %v1802
        %v2000 = vmul.f32 %v673, %v1802
        %v2001 = vmul.f32 %v674, %v1802
        %v2002 = vmul.f32 %v675, %v1802
        %v2003 = vmul.f32 %v676, %v1802
        %v2004 = vmul.f32 %v677, %v1802
        %v2005 = vmul.f32 %v678, %v1802
        %v2006 = vmul.f32 %v679, %v1802
        %v2007 = vmul.f32 %v680, %v1802
        %v2008 = vmul.f32 %v681, %v1802
        %v2009 = vmul.f32 %v682, %v1802
        %v2010 = vmul.f32 %v683, %v1802
        %v2011 = vmul.f32 %v684, %v1802
        %v2012 = vmul.f32 %v685, %v1802
        %v2013 = vmul.f32 %v686, %v1802
        %v2014 = vmul.f32 %v687, %v1802
        %v2015 = vmul.f32 %v688, %v1802
        %v2016 = vmul.f32 %v689, %v1802
        %v2017 = vmul.f32 %v690, %v1802
        %v2018 = vmul.f32 %v691, %v1802
        %v2019 = vmul.f32 %v692, %v1802
        %v2020 = vmul.f32 %v693, %v1802
        %v2021 = vmul.f32 %v694, %v1802
        %v2022 = vmul.f32 %v695, %v1802
        %v2023 = vmul.f32 %v696, %v1802
        %v2024 = vmul.f32 %v697, %v1802
        %v2025 = vmul.f32 %v698, %v1802
        %v2026 = vmul.f32 %v699, %v1802
        %v2027 = vmul.f32 %v700, %v1802
        %v2028 = vmul.f32 %v701, %v1802
        %v2029 = vmul.f32 %v702, %v1802
        %v2030 = vmul.f32 %v703, %v1802
        %v2031 = vmul.f32 %v704, %v1802
        %v2032 = vmul.f32 %v705, %v1802
        %v2033 = vmul.f32 %v706, %v1802
        %v2034 = vmul.f32 %v707, %v1802
        %v2035 = vmul.f32 %v708, %v1802
        %v2036 = vmul.f32 %v709, %v1802
        %v2037 = vmul.f32 %v710, %v1802
        %v2038 = vmul.f32 %v711, %v1802
        %v2039 = vmul.f32 %v712, %v1802
        %v2040 = vmul.f32 %v713, %v1802
        %v2041 = vmul.f32 %v714, %v1802
        %v2042 = vmul.f32 %v715, %v1802
        %v2043 = vmul.f32 %v716, %v1802
        %v2044 = vmul.f32 %v717, %v1802
        %v2045 = vmul.f32 %v718, %v1802
        %v2046 = vmul.f32 %v719, %v1802
        %v2047 = vmul.f32 %v720, %v1802
        %v2048 = vmul.f32 %v721, %v1802
        %v2049 = vmul.f32 %v722, %v1802
        %v2050 = vmul.f32 %v723, %v1802
        %v2051 = vmul.f32 %v724, %v1802
        %v2052 = vmul.f32 %v725, %v1802
        %v2053 = vmul.f32 %v726, %v1802
        %v2054 = vmul.f32 %v727, %v1802
        %v2055 = vmul.f32 %v728, %v1802
        %v2056 = vmul.f32 %v729, %v1802
        %v2057 = vmul.f32 %v730, %v1802
        %v2058 = vmul.f32 %v731, %v1802
        %v2059 = vmax.f32 %v1803, 0.0
        %v2060 = vmax.f32 %v1804, 0.0
        %v2061 = vmax.f32 %v1805, 0.0
        %v2062 = vmax.f32 %v1806, 0.0
        %v2063 = vmax.f32 %v1807, 0.0
        %v2064 = vmax.f32 %v1808, 0.0
        %v2065 = vmax.f32 %v1809, 0.0
        %v2066 = vmax.f32 %v1810, 0.0
        %v2067 = vmax.f32 %v1811, 0.0
        %v2068 = vmax.f32 %v1812, 0.0
        %v2069 = vmax.f32 %v1813, 0.0
        %v2070 = vmax.f32 %v1814, 0.0
        %v2071 = vmax.f32 %v1815, 0.0
        %v2072 = vmax.f32 %v1816, 0.0
        %v2073 = vmax.f32 %v1817, 0.0
        %v2074 = vmax.f32 %v1818, 0.0
        %v2075 = vmax.f32 %v1819, 0.0
        %v2076 = vmax.f32 %v1820, 0.0
        %v2077 = vmax.f32 %v1821, 0.0
        %v2078 = vmax.f32 %v1822, 0.0
        %v2079 = vmax.f32 %v1823, 0.0
        %v2080 = vmax.f32 %v1824, 0.0
        %v2081 = vmax.f32 %v1825, 0.0
        %v2082 = vmax.f32 %v1826, 0.0
        %v2083 = vmax.f32 %v1827, 0.0
        %v2084 = vmax.f32 %v1828, 0.0
        %v2085 = vmax.f32 %v1829, 0.0
        %v2086 = vmax.f32 %v1830, 0.0
        %v2087 = vmax.f32 %v1831, 0.0
        %v2088 = vmax.f32 %v1832, 0.0
        %v2089 = vmax.f32 %v1833, 0.0
        %v2090 = vmax.f32 %v1834, 0.0
        %v2091 = vmax.f32 %v1835, 0.0
        %v2092 = vmax.f32 %v1836, 0.0
        %v2093 = vmax.f32 %v1837, 0.0
        %v2094 = vmax.f32 %v1838, 0.0
        %v2095 = vmax.f32 %v1839, 0.0
        %v2096 = vmax.f32 %v1840, 0.0
        %v2097 = vmax.f32 %v1841, 0.0
        %v2098 = vmax.f32 %v1842, 0.0
        %v2099 = vmax.f32 %v1843, 0.0
        %v2100 = vmax.f32 %v1844, 0.0
        %v2101 = vmax.f32 %v1845, 0.0
        %v2102 = vmax.f32 %v1846, 0.0
        %v2103 = vmax.f32 %v1847, 0.0
        %v2104 = vmax.f32 %v1848, 0.0
        %v2105 = vmax.f32 %v1849, 0.0
        %v2106 = vmax.f32 %v1850, 0.0
        %v2107 = vmax.f32 %v1851, 0.0
        %v2108 = vmax.f32 %v1852, 0.0
        %v2109 = vmax.f32 %v1853, 0.0
        %v2110 = vmax.f32 %v1854, 0.0
        %v2111 = vmax.f32 %v1855, 0.0
        %v2112 = vmax.f32 %v1856, 0.0
        %v2113 = vmax.f32 %v1857, 0.0
        %v2114 = vmax.f32 %v1858, 0.0
        %v2115 = vmax.f32 %v1859, 0.0
        %v2116 = vmax.f32 %v1860, 0.0
        %v2117 = vmax.f32 %v1861, 0.0
        %v2118 = vmax.f32 %v1862, 0.0
        %v2119 = vmax.f32 %v1863, 0.0
        %v2120 = vmax.f32 %v1864, 0.0
        %v2121 = vmax.f32 %v1865, 0.0
        %v2122 = vmax.f32 %v1866, 0.0
        %v2123 = vmax.f32 %v1867, 0.0
        %v2124 = vmax.f32 %v1868, 0.0
        %v2125 = vmax.f32 %v1869, 0.0
        %v2126 = vmax.f32 %v1870, 0.0
        %v2127 = vmax.f32 %v1871, 0.0
        %v2128 = vmax.f32 %v1872, 0.0
        %v2129 = vmax.f32 %v1873, 0.0
        %v2130 = vmax.f32 %v1874, 0.0
        %v2131 = vmax.f32 %v1875, 0.0
        %v2132 = vmax.f32 %v1876, 0.0
        %v2133 = vmax.f32 %v1877, 0.0
        %v2134 = vmax.f32 %v1878, 0.0
        %v2135 = vmax.f32 %v1879, 0.0
        %v2136 = vmax.f32 %v1880, 0.0
        %v2137 = vmax.f32 %v1881, 0.0
        %v2138 = vmax.f32 %v1882, 0.0
        %v2139 = vmax.f32 %v1883, 0.0
        %v2140 = vmax.f32 %v1884, 0.0
        %v2141 = vmax.f32 %v1885, 0.0
        %v2142 = vmax.f32 %v1886, 0.0
        %v2143 = vmax.f32 %v1887, 0.0
        %v2144 = vmax.f32 %v1888, 0.0
        %v2145 = vmax.f32 %v1889, 0.0
        %v2146 = vmax.f32 %v1890, 0.0
        %v2147 = vmax.f32 %v1891, 0.0
        %v2148 = vmax.f32 %v1892, 0.0
        %v2149 = vmax.f32 %v1893, 0.0
        %v2150 = vmax.f32 %v1894, 0.0
        %v2151 = vmax.f32 %v1895, 0.0
        %v2152 = vmax.f32 %v1896, 0.0
        %v2153 = vmax.f32 %v1897, 0.0
        %v2154 = vmax.f32 %v1898, 0.0
        %v2155 = vmax.f32 %v1899, 0.0
        %v2156 = vmax.f32 %v1900, 0.0
        %v2157 = vmax.f32 %v1901, 0.0
        %v2158 = vmax.f32 %v1902, 0.0
        %v2159 = vmax.f32 %v1903, 0.0
        %v2160 = vmax.f32 %v1904, 0.0
        %v2161 = vmax.f32 %v1905, 0.0
        %v2162 = vmax.f32 %v1906, 0.0
        %v2163 = vmax.f32 %v1907, 0.0
        %v2164 = vmax.f32 %v1908, 0.0
        %v2165 = vmax.f32 %v1909, 0.0
        %v2166 = vmax.f32 %v1910, 0.0
        %v2167 = vmax.f32 %v1911, 0.0
        %v2168 = vmax.f32 %v1912, 0.0
        %v2169 = vmax.f32 %v1913, 0.0
        %v2170 = vmax.f32 %v1914, 0.0
        %v2171 = vmax.f32 %v1915, 0.0
        %v2172 = vmax.f32 %v1916, 0.0
        %v2173 = vmax.f32 %v1917, 0.0
        %v2174 = vmax.f32 %v1918, 0.0
        %v2175 = vmax.f32 %v1919, 0.0
        %v2176 = vmax.f32 %v1920, 0.0
        %v2177 = vmax.f32 %v1921, 0.0
        %v2178 = vmax.f32 %v1922, 0.0
        %v2179 = vmax.f32 %v1923, 0.0
        %v2180 = vmax.f32 %v1924, 0.0
        %v2181 = vmax.f32 %v1925, 0.0
        %v2182 = vmax.f32 %v1926, 0.0
        %v2183 = vmax.f32 %v1927, 0.0
        %v2184 = vmax.f32 %v1928, 0.0
        %v2185 = vmax.f32 %v1929, 0.0
        %v2186 = vmax.f32 %v1930, 0.0
        %v2187 = vmax.f32 %v1931, 0.0
        %v2188 = vmax.f32 %v1932, 0.0
        %v2189 = vmax.f32 %v1933, 0.0
        %v2190 = vmax.f32 %v1934, 0.0
        %v2191 = vmax.f32 %v1935, 0.0
        %v2192 = vmax.f32 %v1936, 0.0
        %v2193 = vmax.f32 %v1937, 0.0
        %v2194 = vmax.f32 %v1938, 0.0
        %v2195 = vmax.f32 %v1939, 0.0
        %v2196 = vmax.f32 %v1940, 0.0
        %v2197 = vmax.f32 %v1941, 0.0
        %v2198 = vmax.f32 %v1942, 0.0
        %v2199 = vmax.f32 %v1943, 0.0
        %v2200 = vmax.f32 %v1944, 0.0
        %v2201 = vmax.f32 %v1945, 0.0
        %v2202 = vmax.f32 %v1946, 0.0
        %v2203 = vmax.f32 %v1947, 0.0
        %v2204 = vmax.f32 %v1948, 0.0
        %v2205 = vmax.f32 %v1949, 0.0
        %v2206 = vmax.f32 %v1950, 0.0
        %v2207 = vmax.f32 %v1951, 0.0
        %v2208 = vmax.f32 %v1952, 0.0
        %v2209 = vmax.f32 %v1953, 0.0
        %v2210 = vmax.f32 %v1954, 0.0
        %v2211 = vmax.f32 %v1955, 0.0
        %v2212 = vmax.f32 %v1956, 0.0
        %v2213 = vmax.f32 %v1957, 0.0
        %v2214 = vmax.f32 %v1958, 0.0
        %v2215 = vmax.f32 %v1959, 0.0
        %v2216 = vmax.f32 %v1960, 0.0
        %v2217 = vmax.f32 %v1961, 0.0
        %v2218 = vmax.f32 %v1962, 0.0
        %v2219 = vmax.f32 %v1963, 0.0
        %v2220 = vmax.f32 %v1964, 0.0
        %v2221 = vmax.f32 %v1965, 0.0
        %v2222 = vmax.f32 %v1966, 0.0
        %v2223 = vmax.f32 %v1967, 0.0
        %v2224 = vmax.f32 %v1968, 0.0
        %v2225 = vmax.f32 %v1969, 0.0
        %v2226 = vmax.f32 %v1970, 0.0
        %v2227 = vmax.f32 %v1971, 0.0
        %v2228 = vmax.f32 %v1972, 0.0
        %v2229 = vmax.f32 %v1973, 0.0
        %v2230 = vmax.f32 %v1974, 0.0
        %v2231 = vmax.f32 %v1975, 0.0
        %v2232 = vmax.f32 %v1976, 0.0
        %v2233 = vmax.f32 %v1977, 0.0
        %v2234 = vmax.f32 %v1978, 0.0
        %v2235 = vmax.f32 %v1979, 0.0
        %v2236 = vmax.f32 %v1980, 0.0
        %v2237 = vmax.f32 %v1981, 0.0
        %v2238 = vmax.f32 %v1982, 0.0
        %v2239 = vmax.f32 %v1983, 0.0
        %v2240 = vmax.f32 %v1984, 0.0
        %v2241 = vmax.f32 %v1985, 0.0
        %v2242 = vmax.f32 %v1986, 0.0
        %v2243 = vmax.f32 %v1987, 0.0
        %v2244 = vmax.f32 %v1988, 0.0
        %v2245 = vmax.f32 %v1989, 0.0
        %v2246 = vmax.f32 %v1990, 0.0
        %v2247 = vmax.f32 %v1991, 0.0
        %v2248 = vmax.f32 %v1992, 0.0
        %v2249 = vmax.f32 %v1993, 0.0
        %v2250 = vmax.f32 %v1994, 0.0
        %v2251 = vmax.f32 %v1995, 0.0
        %v2252 = vmax.f32 %v1996, 0.0
        %v2253 = vmax.f32 %v1997, 0.0
        %v2254 = vmax.f32 %v1998, 0.0
        %v2255 = vmax.f32 %v1999, 0.0
        %v2256 = vmax.f32 %v2000, 0.0
        %v2257 = vmax.f32 %v2001, 0.0
        %v2258 = vmax.f32 %v2002, 0.0
        %v2259 = vmax.f32 %v2003, 0.0
        %v2260 = vmax.f32 %v2004, 0.0
        %v2261 = vmax.f32 %v2005, 0.0
        %v2262 = vmax.f32 %v2006, 0.0
        %v2263 = vmax.f32 %v2007, 0.0
        %v2264 = vmax.f32 %v2008, 0.0
        %v2265 = vmax.f32 %v2009, 0.0
        %v2266 = vmax.f32 %v2010, 0.0
        %v2267 = vmax.f32 %v2011, 0.0
        %v2268 = vmax.f32 %v2012, 0.0
        %v2269 = vmax.f32 %v2013, 0.0
        %v2270 = vmax.f32 %v2014, 0.0
        %v2271 = vmax.f32 %v2015, 0.0
        %v2272 = vmax.f32 %v2016, 0.0
        %v2273 = vmax.f32 %v2017, 0.0
        %v2274 = vmax.f32 %v2018, 0.0
        %v2275 = vmax.f32 %v2019, 0.0
        %v2276 = vmax.f32 %v2020, 0.0
        %v2277 = vmax.f32 %v2021, 0.0
        %v2278 = vmax.f32 %v2022, 0.0
        %v2279 = vmax.f32 %v2023, 0.0
        %v2280 = vmax.f32 %v2024, 0.0
        %v2281 = vmax.f32 %v2025, 0.0
        %v2282 = vmax.f32 %v2026, 0.0
        %v2283 = vmax.f32 %v2027, 0.0
        %v2284 = vmax.f32 %v2028, 0.0
        %v2285 = vmax.f32 %v2029, 0.0
        %v2286 = vmax.f32 %v2030, 0.0
        %v2287 = vmax.f32 %v2031, 0.0
        %v2288 = vmax.f32 %v2032, 0.0
        %v2289 = vmax.f32 %v2033, 0.0
        %v2290 = vmax.f32 %v2034, 0.0
        %v2291 = vmax.f32 %v2035, 0.0
        %v2292 = vmax.f32 %v2036, 0.0
        %v2293 = vmax.f32 %v2037, 0.0
        %v2294 = vmax.f32 %v2038, 0.0
        %v2295 = vmax.f32 %v2039, 0.0
        %v2296 = vmax.f32 %v2040, 0.0
        %v2297 = vmax.f32 %v2041, 0.0
        %v2298 = vmax.f32 %v2042, 0.0
        %v2299 = vmax.f32 %v2043, 0.0
        %v2300 = vmax.f32 %v2044, 0.0
        %v2301 = vmax.f32 %v2045, 0.0
        %v2302 = vmax.f32 %v2046, 0.0
        %v2303 = vmax.f32 %v2047, 0.0
        %v2304 = vmax.f32 %v2048, 0.0
        %v2305 = vmax.f32 %v2049, 0.0
        %v2306 = vmax.f32 %v2050, 0.0
        %v2307 = vmax.f32 %v2051, 0.0
        %v2308 = vmax.f32 %v2052, 0.0
        %v2309 = vmax.f32 %v2053, 0.0
        %v2310 = vmax.f32 %v2054, 0.0
        %v2311 = vmax.f32 %v2055, 0.0
        %v2312 = vmax.f32 %v2056, 0.0
        %v2313 = vmax.f32 %v2057, 0.0
        %v2314 = vmax.f32 %v2058, 0.0
        %v2315 = vsel %vm732, %v2059, 0.0
        %2316 = vadd.xlane.f32.xlu0 %v2315
        %v2317 = vpop.xlane.xlu0 %2316
        %v2318 = vsel %vm732, %v2060, 0.0
        %2319 = vadd.xlane.f32.xlu0 %v2318
        %v2320 = vpop.xlane.xlu0 %2319
        %v2321 = vsel %vm732, %v2061, 0.0
        %2322 = vadd.xlane.f32.xlu0 %v2321
        %v2323 = vpop.xlane.xlu0 %2322
        %v2324 = vsel %vm732, %v2062, 0.0
        %2325 = vadd.xlane.f32.xlu0 %v2324
        %v2326 = vpop.xlane.xlu0 %2325
        %v2327 = vsel %vm732, %v2063, 0.0
        %2328 = vadd.xlane.f32.xlu0 %v2327
        %v2329 = vpop.xlane.xlu0 %2328
        %v2330 = vsel %vm732, %v2064, 0.0
        %2331 = vadd.xlane.f32.xlu0 %v2330
        %v2332 = vpop.xlane.xlu0 %2331
        %v2333 = vsel %vm732, %v2065, 0.0
        %2334 = vadd.xlane.f32.xlu0 %v2333
        %v2335 = vpop.xlane.xlu0 %2334
        %v2336 = vsel %vm732, %v2066, 0.0
        %2337 = vadd.xlane.f32.xlu0 %v2336
        %v2338 = vpop.xlane.xlu0 %2337
        %v2339 = vsel %vm732, %v2067, 0.0
        %2340 = vadd.xlane.f32.xlu0 %v2339
        %v2341 = vpop.xlane.xlu0 %2340
        %v2342 = vsel %vm732, %v2068, 0.0
        %2343 = vadd.xlane.f32.xlu0 %v2342
        %v2344 = vpop.xlane.xlu0 %2343
        %v2345 = vsel %vm732, %v2069, 0.0
        %2346 = vadd.xlane.f32.xlu0 %v2345
        %v2347 = vpop.xlane.xlu0 %2346
        %v2348 = vsel %vm732, %v2070, 0.0
        %2349 = vadd.xlane.f32.xlu0 %v2348
        %v2350 = vpop.xlane.xlu0 %2349
        %v2351 = vsel %vm732, %v2071, 0.0
        %2352 = vadd.xlane.f32.xlu0 %v2351
        %v2353 = vpop.xlane.xlu0 %2352
        %v2354 = vsel %vm732, %v2072, 0.0
        %2355 = vadd.xlane.f32.xlu0 %v2354
        %v2356 = vpop.xlane.xlu0 %2355
        %v2357 = vsel %vm732, %v2073, 0.0
        %2358 = vadd.xlane.f32.xlu0 %v2357
        %v2359 = vpop.xlane.xlu0 %2358
        %v2360 = vsel %vm732, %v2074, 0.0
        %2361 = vadd.xlane.f32.xlu0 %v2360
        %v2362 = vpop.xlane.xlu0 %2361
        %v2363 = vsel %vm732, %v2075, 0.0
        %2364 = vadd.xlane.f32.xlu0 %v2363
        %v2365 = vpop.xlane.xlu0 %2364
        %v2366 = vsel %vm732, %v2076, 0.0
        %2367 = vadd.xlane.f32.xlu0 %v2366
        %v2368 = vpop.xlane.xlu0 %2367
        %v2369 = vsel %vm732, %v2077, 0.0
        %2370 = vadd.xlane.f32.xlu0 %v2369
        %v2371 = vpop.xlane.xlu0 %2370
        %v2372 = vsel %vm732, %v2078, 0.0
        %2373 = vadd.xlane.f32.xlu0 %v2372
        %v2374 = vpop.xlane.xlu0 %2373
        %v2375 = vsel %vm732, %v2079, 0.0
        %2376 = vadd.xlane.f32.xlu0 %v2375
        %v2377 = vpop.xlane.xlu0 %2376
        %v2378 = vsel %vm732, %v2080, 0.0
        %2379 = vadd.xlane.f32.xlu0 %v2378
        %v2380 = vpop.xlane.xlu0 %2379
        %v2381 = vsel %vm732, %v2081, 0.0
        %2382 = vadd.xlane.f32.xlu0 %v2381
        %v2383 = vpop.xlane.xlu0 %2382
        %v2384 = vsel %vm732, %v2082, 0.0
        %2385 = vadd.xlane.f32.xlu0 %v2384
        %v2386 = vpop.xlane.xlu0 %2385
        %v2387 = vsel %vm732, %v2083, 0.0
        %2388 = vadd.xlane.f32.xlu0 %v2387
        %v2389 = vpop.xlane.xlu0 %2388
        %v2390 = vsel %vm732, %v2084, 0.0
        %2391 = vadd.xlane.f32.xlu0 %v2390
        %v2392 = vpop.xlane.xlu0 %2391
        %v2393 = vsel %vm732, %v2085, 0.0
        %2394 = vadd.xlane.f32.xlu0 %v2393
        %v2395 = vpop.xlane.xlu0 %2394
        %v2396 = vsel %vm732, %v2086, 0.0
        %2397 = vadd.xlane.f32.xlu0 %v2396
        %v2398 = vpop.xlane.xlu0 %2397
        %v2399 = vsel %vm732, %v2087, 0.0
        %2400 = vadd.xlane.f32.xlu0 %v2399
        %v2401 = vpop.xlane.xlu0 %2400
        %v2402 = vsel %vm732, %v2088, 0.0
        %2403 = vadd.xlane.f32.xlu0 %v2402
        %v2404 = vpop.xlane.xlu0 %2403
        %v2405 = vsel %vm732, %v2089, 0.0
        %2406 = vadd.xlane.f32.xlu0 %v2405
        %v2407 = vpop.xlane.xlu0 %2406
        %v2408 = vsel %vm732, %v2090, 0.0
        %2409 = vadd.xlane.f32.xlu0 %v2408
        %v2410 = vpop.xlane.xlu0 %2409
        %v2411 = vsel %vm732, %v2091, 0.0
        %2412 = vadd.xlane.f32.xlu0 %v2411
        %v2413 = vpop.xlane.xlu0 %2412
        %v2414 = vsel %vm732, %v2092, 0.0
        %2415 = vadd.xlane.f32.xlu0 %v2414
        %v2416 = vpop.xlane.xlu0 %2415
        %v2417 = vsel %vm732, %v2093, 0.0
        %2418 = vadd.xlane.f32.xlu0 %v2417
        %v2419 = vpop.xlane.xlu0 %2418
        %v2420 = vsel %vm732, %v2094, 0.0
        %2421 = vadd.xlane.f32.xlu0 %v2420
        %v2422 = vpop.xlane.xlu0 %2421
        %v2423 = vsel %vm732, %v2095, 0.0
        %2424 = vadd.xlane.f32.xlu0 %v2423
        %v2425 = vpop.xlane.xlu0 %2424
        %v2426 = vsel %vm732, %v2096, 0.0
        %2427 = vadd.xlane.f32.xlu0 %v2426
        %v2428 = vpop.xlane.xlu0 %2427
        %v2429 = vsel %vm732, %v2097, 0.0
        %2430 = vadd.xlane.f32.xlu0 %v2429
        %v2431 = vpop.xlane.xlu0 %2430
        %v2432 = vsel %vm732, %v2098, 0.0
        %2433 = vadd.xlane.f32.xlu0 %v2432
        %v2434 = vpop.xlane.xlu0 %2433
        %v2435 = vsel %vm732, %v2099, 0.0
        %2436 = vadd.xlane.f32.xlu0 %v2435
        %v2437 = vpop.xlane.xlu0 %2436
        %v2438 = vsel %vm732, %v2100, 0.0
        %2439 = vadd.xlane.f32.xlu0 %v2438
        %v2440 = vpop.xlane.xlu0 %2439
        %v2441 = vsel %vm732, %v2101, 0.0
        %2442 = vadd.xlane.f32.xlu0 %v2441
        %v2443 = vpop.xlane.xlu0 %2442
        %v2444 = vsel %vm732, %v2102, 0.0
        %2445 = vadd.xlane.f32.xlu0 %v2444
        %v2446 = vpop.xlane.xlu0 %2445
        %v2447 = vsel %vm732, %v2103, 0.0
        %2448 = vadd.xlane.f32.xlu0 %v2447
        %v2449 = vpop.xlane.xlu0 %2448
        %v2450 = vsel %vm732, %v2104, 0.0
        %2451 = vadd.xlane.f32.xlu0 %v2450
        %v2452 = vpop.xlane.xlu0 %2451
        %v2453 = vsel %vm732, %v2105, 0.0
        %2454 = vadd.xlane.f32.xlu0 %v2453
        %v2455 = vpop.xlane.xlu0 %2454
        %v2456 = vsel %vm732, %v2106, 0.0
        %2457 = vadd.xlane.f32.xlu0 %v2456
        %v2458 = vpop.xlane.xlu0 %2457
        %v2459 = vsel %vm732, %v2107, 0.0
        %2460 = vadd.xlane.f32.xlu0 %v2459
        %v2461 = vpop.xlane.xlu0 %2460
        %v2462 = vsel %vm732, %v2108, 0.0
        %2463 = vadd.xlane.f32.xlu0 %v2462
        %v2464 = vpop.xlane.xlu0 %2463
        %v2465 = vsel %vm732, %v2109, 0.0
        %2466 = vadd.xlane.f32.xlu0 %v2465
        %v2467 = vpop.xlane.xlu0 %2466
        %v2468 = vsel %vm732, %v2110, 0.0
        %2469 = vadd.xlane.f32.xlu0 %v2468
        %v2470 = vpop.xlane.xlu0 %2469
        %v2471 = vsel %vm732, %v2111, 0.0
        %2472 = vadd.xlane.f32.xlu0 %v2471
        %v2473 = vpop.xlane.xlu0 %2472
        %v2474 = vsel %vm732, %v2112, 0.0
        %2475 = vadd.xlane.f32.xlu0 %v2474
        %v2476 = vpop.xlane.xlu0 %2475
        %v2477 = vsel %vm732, %v2113, 0.0
        %2478 = vadd.xlane.f32.xlu0 %v2477
        %v2479 = vpop.xlane.xlu0 %2478
        %v2480 = vsel %vm732, %v2114, 0.0
        %2481 = vadd.xlane.f32.xlu0 %v2480
        %v2482 = vpop.xlane.xlu0 %2481
        %v2483 = vsel %vm732, %v2115, 0.0
        %2484 = vadd.xlane.f32.xlu0 %v2483
        %v2485 = vpop.xlane.xlu0 %2484
        %v2486 = vsel %vm732, %v2116, 0.0
        %2487 = vadd.xlane.f32.xlu0 %v2486
        %v2488 = vpop.xlane.xlu0 %2487
        %v2489 = vsel %vm732, %v2117, 0.0
        %2490 = vadd.xlane.f32.xlu0 %v2489
        %v2491 = vpop.xlane.xlu0 %2490
        %v2492 = vsel %vm732, %v2118, 0.0
        %2493 = vadd.xlane.f32.xlu0 %v2492
        %v2494 = vpop.xlane.xlu0 %2493
        %v2495 = vsel %vm732, %v2119, 0.0
        %2496 = vadd.xlane.f32.xlu0 %v2495
        %v2497 = vpop.xlane.xlu0 %2496
        %v2498 = vsel %vm732, %v2120, 0.0
        %2499 = vadd.xlane.f32.xlu0 %v2498
        %v2500 = vpop.xlane.xlu0 %2499
        %v2501 = vsel %vm732, %v2121, 0.0
        %2502 = vadd.xlane.f32.xlu0 %v2501
        %v2503 = vpop.xlane.xlu0 %2502
        %v2504 = vsel %vm732, %v2122, 0.0
        %2505 = vadd.xlane.f32.xlu0 %v2504
        %v2506 = vpop.xlane.xlu0 %2505
        %v2507 = vsel %vm732, %v2123, 0.0
        %2508 = vadd.xlane.f32.xlu0 %v2507
        %v2509 = vpop.xlane.xlu0 %2508
        %v2510 = vsel %vm732, %v2124, 0.0
        %2511 = vadd.xlane.f32.xlu0 %v2510
        %v2512 = vpop.xlane.xlu0 %2511
        %v2513 = vsel %vm732, %v2125, 0.0
        %2514 = vadd.xlane.f32.xlu0 %v2513
        %v2515 = vpop.xlane.xlu0 %2514
        %v2516 = vsel %vm732, %v2126, 0.0
        %2517 = vadd.xlane.f32.xlu0 %v2516
        %v2518 = vpop.xlane.xlu0 %2517
        %v2519 = vsel %vm732, %v2127, 0.0
        %2520 = vadd.xlane.f32.xlu0 %v2519
        %v2521 = vpop.xlane.xlu0 %2520
        %v2522 = vsel %vm732, %v2128, 0.0
        %2523 = vadd.xlane.f32.xlu0 %v2522
        %v2524 = vpop.xlane.xlu0 %2523
        %v2525 = vsel %vm732, %v2129, 0.0
        %2526 = vadd.xlane.f32.xlu0 %v2525
        %v2527 = vpop.xlane.xlu0 %2526
        %v2528 = vsel %vm732, %v2130, 0.0
        %2529 = vadd.xlane.f32.xlu0 %v2528
        %v2530 = vpop.xlane.xlu0 %2529
        %v2531 = vsel %vm732, %v2131, 0.0
        %2532 = vadd.xlane.f32.xlu0 %v2531
        %v2533 = vpop.xlane.xlu0 %2532
        %v2534 = vsel %vm732, %v2132, 0.0
        %2535 = vadd.xlane.f32.xlu0 %v2534
        %v2536 = vpop.xlane.xlu0 %2535
        %v2537 = vsel %vm732, %v2133, 0.0
        %2538 = vadd.xlane.f32.xlu0 %v2537
        %v2539 = vpop.xlane.xlu0 %2538
        %v2540 = vsel %vm732, %v2134, 0.0
        %2541 = vadd.xlane.f32.xlu0 %v2540
        %v2542 = vpop.xlane.xlu0 %2541
        %v2543 = vsel %vm732, %v2135, 0.0
        %2544 = vadd.xlane.f32.xlu0 %v2543
        %v2545 = vpop.xlane.xlu0 %2544
        %v2546 = vsel %vm732, %v2136, 0.0
        %2547 = vadd.xlane.f32.xlu0 %v2546
        %v2548 = vpop.xlane.xlu0 %2547
        %v2549 = vsel %vm732, %v2137, 0.0
        %2550 = vadd.xlane.f32.xlu0 %v2549
        %v2551 = vpop.xlane.xlu0 %2550
        %v2552 = vsel %vm732, %v2138, 0.0
        %2553 = vadd.xlane.f32.xlu0 %v2552
        %v2554 = vpop.xlane.xlu0 %2553
        %v2555 = vsel %vm732, %v2139, 0.0
        %2556 = vadd.xlane.f32.xlu0 %v2555
        %v2557 = vpop.xlane.xlu0 %2556
        %v2558 = vsel %vm732, %v2140, 0.0
        %2559 = vadd.xlane.f32.xlu0 %v2558
        %v2560 = vpop.xlane.xlu0 %2559
        %v2561 = vsel %vm732, %v2141, 0.0
        %2562 = vadd.xlane.f32.xlu0 %v2561
        %v2563 = vpop.xlane.xlu0 %2562
        %v2564 = vsel %vm732, %v2142, 0.0
        %2565 = vadd.xlane.f32.xlu0 %v2564
        %v2566 = vpop.xlane.xlu0 %2565
        %v2567 = vsel %vm732, %v2143, 0.0
        %2568 = vadd.xlane.f32.xlu0 %v2567
        %v2569 = vpop.xlane.xlu0 %2568
        %v2570 = vsel %vm732, %v2144, 0.0
        %2571 = vadd.xlane.f32.xlu0 %v2570
        %v2572 = vpop.xlane.xlu0 %2571
        %v2573 = vsel %vm732, %v2145, 0.0
        %2574 = vadd.xlane.f32.xlu0 %v2573
        %v2575 = vpop.xlane.xlu0 %2574
        %v2576 = vsel %vm732, %v2146, 0.0
        %2577 = vadd.xlane.f32.xlu0 %v2576
        %v2578 = vpop.xlane.xlu0 %2577
        %v2579 = vsel %vm732, %v2147, 0.0
        %2580 = vadd.xlane.f32.xlu0 %v2579
        %v2581 = vpop.xlane.xlu0 %2580
        %v2582 = vsel %vm732, %v2148, 0.0
        %2583 = vadd.xlane.f32.xlu0 %v2582
        %v2584 = vpop.xlane.xlu0 %2583
        %v2585 = vsel %vm732, %v2149, 0.0
        %2586 = vadd.xlane.f32.xlu0 %v2585
        %v2587 = vpop.xlane.xlu0 %2586
        %v2588 = vsel %vm732, %v2150, 0.0
        %2589 = vadd.xlane.f32.xlu0 %v2588
        %v2590 = vpop.xlane.xlu0 %2589
        %v2591 = vsel %vm732, %v2151, 0.0
        %2592 = vadd.xlane.f32.xlu0 %v2591
        %v2593 = vpop.xlane.xlu0 %2592
        %v2594 = vsel %vm732, %v2152, 0.0
        %2595 = vadd.xlane.f32.xlu0 %v2594
        %v2596 = vpop.xlane.xlu0 %2595
        %v2597 = vsel %vm732, %v2153, 0.0
        %2598 = vadd.xlane.f32.xlu0 %v2597
        %v2599 = vpop.xlane.xlu0 %2598
        %v2600 = vsel %vm732, %v2154, 0.0
        %2601 = vadd.xlane.f32.xlu0 %v2600
        %v2602 = vpop.xlane.xlu0 %2601
        %v2603 = vsel %vm732, %v2155, 0.0
        %2604 = vadd.xlane.f32.xlu0 %v2603
        %v2605 = vpop.xlane.xlu0 %2604
        %v2606 = vsel %vm732, %v2156, 0.0
        %2607 = vadd.xlane.f32.xlu0 %v2606
        %v2608 = vpop.xlane.xlu0 %2607
        %v2609 = vsel %vm732, %v2157, 0.0
        %2610 = vadd.xlane.f32.xlu0 %v2609
        %v2611 = vpop.xlane.xlu0 %2610
        %v2612 = vsel %vm732, %v2158, 0.0
        %2613 = vadd.xlane.f32.xlu0 %v2612
        %v2614 = vpop.xlane.xlu0 %2613
        %v2615 = vsel %vm732, %v2159, 0.0
        %2616 = vadd.xlane.f32.xlu0 %v2615
        %v2617 = vpop.xlane.xlu0 %2616
        %v2618 = vsel %vm732, %v2160, 0.0
        %2619 = vadd.xlane.f32.xlu0 %v2618
        %v2620 = vpop.xlane.xlu0 %2619
        %v2621 = vsel %vm732, %v2161, 0.0
        %2622 = vadd.xlane.f32.xlu0 %v2621
        %v2623 = vpop.xlane.xlu0 %2622
        %v2624 = vsel %vm732, %v2162, 0.0
        %2625 = vadd.xlane.f32.xlu0 %v2624
        %v2626 = vpop.xlane.xlu0 %2625
        %v2627 = vsel %vm732, %v2163, 0.0
        %2628 = vadd.xlane.f32.xlu0 %v2627
        %v2629 = vpop.xlane.xlu0 %2628
        %v2630 = vsel %vm732, %v2164, 0.0
        %2631 = vadd.xlane.f32.xlu0 %v2630
        %v2632 = vpop.xlane.xlu0 %2631
        %v2633 = vsel %vm732, %v2165, 0.0
        %2634 = vadd.xlane.f32.xlu0 %v2633
        %v2635 = vpop.xlane.xlu0 %2634
        %v2636 = vsel %vm732, %v2166, 0.0
        %2637 = vadd.xlane.f32.xlu0 %v2636
        %v2638 = vpop.xlane.xlu0 %2637
        %v2639 = vsel %vm732, %v2167, 0.0
        %2640 = vadd.xlane.f32.xlu0 %v2639
        %v2641 = vpop.xlane.xlu0 %2640
        %v2642 = vsel %vm732, %v2168, 0.0
        %2643 = vadd.xlane.f32.xlu0 %v2642
        %v2644 = vpop.xlane.xlu0 %2643
        %v2645 = vsel %vm732, %v2169, 0.0
        %2646 = vadd.xlane.f32.xlu0 %v2645
        %v2647 = vpop.xlane.xlu0 %2646
        %v2648 = vsel %vm732, %v2170, 0.0
        %2649 = vadd.xlane.f32.xlu0 %v2648
        %v2650 = vpop.xlane.xlu0 %2649
        %v2651 = vsel %vm732, %v2171, 0.0
        %2652 = vadd.xlane.f32.xlu0 %v2651
        %v2653 = vpop.xlane.xlu0 %2652
        %v2654 = vsel %vm732, %v2172, 0.0
        %2655 = vadd.xlane.f32.xlu0 %v2654
        %v2656 = vpop.xlane.xlu0 %2655
        %v2657 = vsel %vm732, %v2173, 0.0
        %2658 = vadd.xlane.f32.xlu0 %v2657
        %v2659 = vpop.xlane.xlu0 %2658
        %v2660 = vsel %vm732, %v2174, 0.0
        %2661 = vadd.xlane.f32.xlu0 %v2660
        %v2662 = vpop.xlane.xlu0 %2661
        %v2663 = vsel %vm732, %v2175, 0.0
        %2664 = vadd.xlane.f32.xlu0 %v2663
        %v2665 = vpop.xlane.xlu0 %2664
        %v2666 = vsel %vm732, %v2176, 0.0
        %2667 = vadd.xlane.f32.xlu0 %v2666
        %v2668 = vpop.xlane.xlu0 %2667
        %v2669 = vsel %vm732, %v2177, 0.0
        %2670 = vadd.xlane.f32.xlu0 %v2669
        %v2671 = vpop.xlane.xlu0 %2670
        %v2672 = vsel %vm732, %v2178, 0.0
        %2673 = vadd.xlane.f32.xlu0 %v2672
        %v2674 = vpop.xlane.xlu0 %2673
        %v2675 = vsel %vm732, %v2179, 0.0
        %2676 = vadd.xlane.f32.xlu0 %v2675
        %v2677 = vpop.xlane.xlu0 %2676
        %v2678 = vsel %vm732, %v2180, 0.0
        %2679 = vadd.xlane.f32.xlu0 %v2678
        %v2680 = vpop.xlane.xlu0 %2679
        %v2681 = vsel %vm732, %v2181, 0.0
        %2682 = vadd.xlane.f32.xlu0 %v2681
        %v2683 = vpop.xlane.xlu0 %2682
        %v2684 = vsel %vm732, %v2182, 0.0
        %2685 = vadd.xlane.f32.xlu0 %v2684
        %v2686 = vpop.xlane.xlu0 %2685
        %v2687 = vsel %vm732, %v2183, 0.0
        %2688 = vadd.xlane.f32.xlu0 %v2687
        %v2689 = vpop.xlane.xlu0 %2688
        %v2690 = vsel %vm732, %v2184, 0.0
        %2691 = vadd.xlane.f32.xlu0 %v2690
        %v2692 = vpop.xlane.xlu0 %2691
        %v2693 = vsel %vm732, %v2185, 0.0
        %2694 = vadd.xlane.f32.xlu0 %v2693
        %v2695 = vpop.xlane.xlu0 %2694
        %v2696 = vsel %vm732, %v2186, 0.0
        %2697 = vadd.xlane.f32.xlu0 %v2696
        %v2698 = vpop.xlane.xlu0 %2697
        %v2699 = vsel %vm732, %v2187, 0.0
        %2700 = vadd.xlane.f32.xlu0 %v2699
        %v2701 = vpop.xlane.xlu0 %2700
        %v2702 = vsel %vm732, %v2188, 0.0
        %2703 = vadd.xlane.f32.xlu0 %v2702
        %v2704 = vpop.xlane.xlu0 %2703
        %v2705 = vsel %vm732, %v2189, 0.0
        %2706 = vadd.xlane.f32.xlu0 %v2705
        %v2707 = vpop.xlane.xlu0 %2706
        %v2708 = vsel %vm732, %v2190, 0.0
        %2709 = vadd.xlane.f32.xlu0 %v2708
        %v2710 = vpop.xlane.xlu0 %2709
        %v2711 = vsel %vm732, %v2191, 0.0
        %2712 = vadd.xlane.f32.xlu0 %v2711
        %v2713 = vpop.xlane.xlu0 %2712
        %v2714 = vsel %vm732, %v2192, 0.0
        %2715 = vadd.xlane.f32.xlu0 %v2714
        %v2716 = vpop.xlane.xlu0 %2715
        %v2717 = vsel %vm732, %v2193, 0.0
        %2718 = vadd.xlane.f32.xlu0 %v2717
        %v2719 = vpop.xlane.xlu0 %2718
        %v2720 = vsel %vm732, %v2194, 0.0
        %2721 = vadd.xlane.f32.xlu0 %v2720
        %v2722 = vpop.xlane.xlu0 %2721
        %v2723 = vsel %vm732, %v2195, 0.0
        %2724 = vadd.xlane.f32.xlu0 %v2723
        %v2725 = vpop.xlane.xlu0 %2724
        %v2726 = vsel %vm732, %v2196, 0.0
        %2727 = vadd.xlane.f32.xlu0 %v2726
        %v2728 = vpop.xlane.xlu0 %2727
        %v2729 = vsel %vm732, %v2197, 0.0
        %2730 = vadd.xlane.f32.xlu0 %v2729
        %v2731 = vpop.xlane.xlu0 %2730
        %v2732 = vsel %vm732, %v2198, 0.0
        %2733 = vadd.xlane.f32.xlu0 %v2732
        %v2734 = vpop.xlane.xlu0 %2733
        %v2735 = vsel %vm732, %v2199, 0.0
        %2736 = vadd.xlane.f32.xlu0 %v2735
        %v2737 = vpop.xlane.xlu0 %2736
        %v2738 = vsel %vm732, %v2200, 0.0
        %2739 = vadd.xlane.f32.xlu0 %v2738
        %v2740 = vpop.xlane.xlu0 %2739
        %v2741 = vsel %vm732, %v2201, 0.0
        %2742 = vadd.xlane.f32.xlu0 %v2741
        %v2743 = vpop.xlane.xlu0 %2742
        %v2744 = vsel %vm732, %v2202, 0.0
        %2745 = vadd.xlane.f32.xlu0 %v2744
        %v2746 = vpop.xlane.xlu0 %2745
        %v2747 = vsel %vm732, %v2203, 0.0
        %2748 = vadd.xlane.f32.xlu0 %v2747
        %v2749 = vpop.xlane.xlu0 %2748
        %v2750 = vsel %vm732, %v2204, 0.0
        %2751 = vadd.xlane.f32.xlu0 %v2750
        %v2752 = vpop.xlane.xlu0 %2751
        %v2753 = vsel %vm732, %v2205, 0.0
        %2754 = vadd.xlane.f32.xlu0 %v2753
        %v2755 = vpop.xlane.xlu0 %2754
        %v2756 = vsel %vm732, %v2206, 0.0
        %2757 = vadd.xlane.f32.xlu0 %v2756
        %v2758 = vpop.xlane.xlu0 %2757
        %v2759 = vsel %vm732, %v2207, 0.0
        %2760 = vadd.xlane.f32.xlu0 %v2759
        %v2761 = vpop.xlane.xlu0 %2760
        %v2762 = vsel %vm732, %v2208, 0.0
        %2763 = vadd.xlane.f32.xlu0 %v2762
        %v2764 = vpop.xlane.xlu0 %2763
        %v2765 = vsel %vm732, %v2209, 0.0
        %2766 = vadd.xlane.f32.xlu0 %v2765
        %v2767 = vpop.xlane.xlu0 %2766
        %v2768 = vsel %vm732, %v2210, 0.0
        %2769 = vadd.xlane.f32.xlu0 %v2768
        %v2770 = vpop.xlane.xlu0 %2769
        %v2771 = vsel %vm732, %v2211, 0.0
        %2772 = vadd.xlane.f32.xlu0 %v2771
        %v2773 = vpop.xlane.xlu0 %2772
        %v2774 = vsel %vm732, %v2212, 0.0
        %2775 = vadd.xlane.f32.xlu0 %v2774
        %v2776 = vpop.xlane.xlu0 %2775
        %v2777 = vsel %vm732, %v2213, 0.0
        %2778 = vadd.xlane.f32.xlu0 %v2777
        %v2779 = vpop.xlane.xlu0 %2778
        %v2780 = vsel %vm732, %v2214, 0.0
        %2781 = vadd.xlane.f32.xlu0 %v2780
        %v2782 = vpop.xlane.xlu0 %2781
        %v2783 = vsel %vm732, %v2215, 0.0
        %2784 = vadd.xlane.f32.xlu0 %v2783
        %v2785 = vpop.xlane.xlu0 %2784
        %v2786 = vsel %vm732, %v2216, 0.0
        %2787 = vadd.xlane.f32.xlu0 %v2786
        %v2788 = vpop.xlane.xlu0 %2787
        %v2789 = vsel %vm732, %v2217, 0.0
        %2790 = vadd.xlane.f32.xlu0 %v2789
        %v2791 = vpop.xlane.xlu0 %2790
        %v2792 = vsel %vm732, %v2218, 0.0
        %2793 = vadd.xlane.f32.xlu0 %v2792
        %v2794 = vpop.xlane.xlu0 %2793
        %v2795 = vsel %vm732, %v2219, 0.0
        %2796 = vadd.xlane.f32.xlu0 %v2795
        %v2797 = vpop.xlane.xlu0 %2796
        %v2798 = vsel %vm732, %v2220, 0.0
        %2799 = vadd.xlane.f32.xlu0 %v2798
        %v2800 = vpop.xlane.xlu0 %2799
        %v2801 = vsel %vm732, %v2221, 0.0
        %2802 = vadd.xlane.f32.xlu0 %v2801
        %v2803 = vpop.xlane.xlu0 %2802
        %v2804 = vsel %vm732, %v2222, 0.0
        %2805 = vadd.xlane.f32.xlu0 %v2804
        %v2806 = vpop.xlane.xlu0 %2805
        %v2807 = vsel %vm732, %v2223, 0.0
        %2808 = vadd.xlane.f32.xlu0 %v2807
        %v2809 = vpop.xlane.xlu0 %2808
        %v2810 = vsel %vm732, %v2224, 0.0
        %2811 = vadd.xlane.f32.xlu0 %v2810
        %v2812 = vpop.xlane.xlu0 %2811
        %v2813 = vsel %vm732, %v2225, 0.0
        %2814 = vadd.xlane.f32.xlu0 %v2813
        %v2815 = vpop.xlane.xlu0 %2814
        %v2816 = vsel %vm732, %v2226, 0.0
        %2817 = vadd.xlane.f32.xlu0 %v2816
        %v2818 = vpop.xlane.xlu0 %2817
        %v2819 = vsel %vm732, %v2227, 0.0
        %2820 = vadd.xlane.f32.xlu0 %v2819
        %v2821 = vpop.xlane.xlu0 %2820
        %v2822 = vsel %vm732, %v2228, 0.0
        %2823 = vadd.xlane.f32.xlu0 %v2822
        %v2824 = vpop.xlane.xlu0 %2823
        %v2825 = vsel %vm732, %v2229, 0.0
        %2826 = vadd.xlane.f32.xlu0 %v2825
        %v2827 = vpop.xlane.xlu0 %2826
        %v2828 = vsel %vm732, %v2230, 0.0
        %2829 = vadd.xlane.f32.xlu0 %v2828
        %v2830 = vpop.xlane.xlu0 %2829
        %v2831 = vsel %vm732, %v2231, 0.0
        %2832 = vadd.xlane.f32.xlu0 %v2831
        %v2833 = vpop.xlane.xlu0 %2832
        %v2834 = vsel %vm732, %v2232, 0.0
        %2835 = vadd.xlane.f32.xlu0 %v2834
        %v2836 = vpop.xlane.xlu0 %2835
        %v2837 = vsel %vm732, %v2233, 0.0
        %2838 = vadd.xlane.f32.xlu0 %v2837
        %v2839 = vpop.xlane.xlu0 %2838
        %v2840 = vsel %vm732, %v2234, 0.0
        %2841 = vadd.xlane.f32.xlu0 %v2840
        %v2842 = vpop.xlane.xlu0 %2841
        %v2843 = vsel %vm732, %v2235, 0.0
        %2844 = vadd.xlane.f32.xlu0 %v2843
        %v2845 = vpop.xlane.xlu0 %2844
        %v2846 = vsel %vm732, %v2236, 0.0
        %2847 = vadd.xlane.f32.xlu0 %v2846
        %v2848 = vpop.xlane.xlu0 %2847
        %v2849 = vsel %vm732, %v2237, 0.0
        %2850 = vadd.xlane.f32.xlu0 %v2849
        %v2851 = vpop.xlane.xlu0 %2850
        %v2852 = vsel %vm732, %v2238, 0.0
        %2853 = vadd.xlane.f32.xlu0 %v2852
        %v2854 = vpop.xlane.xlu0 %2853
        %v2855 = vsel %vm732, %v2239, 0.0
        %2856 = vadd.xlane.f32.xlu0 %v2855
        %v2857 = vpop.xlane.xlu0 %2856
        %v2858 = vsel %vm732, %v2240, 0.0
        %2859 = vadd.xlane.f32.xlu0 %v2858
        %v2860 = vpop.xlane.xlu0 %2859
        %v2861 = vsel %vm732, %v2241, 0.0
        %2862 = vadd.xlane.f32.xlu0 %v2861
        %v2863 = vpop.xlane.xlu0 %2862
        %v2864 = vsel %vm732, %v2242, 0.0
        %2865 = vadd.xlane.f32.xlu0 %v2864
        %v2866 = vpop.xlane.xlu0 %2865
        %v2867 = vsel %vm732, %v2243, 0.0
        %2868 = vadd.xlane.f32.xlu0 %v2867
        %v2869 = vpop.xlane.xlu0 %2868
        %v2870 = vsel %vm732, %v2244, 0.0
        %2871 = vadd.xlane.f32.xlu0 %v2870
        %v2872 = vpop.xlane.xlu0 %2871
        %v2873 = vsel %vm732, %v2245, 0.0
        %2874 = vadd.xlane.f32.xlu0 %v2873
        %v2875 = vpop.xlane.xlu0 %2874
        %v2876 = vsel %vm732, %v2246, 0.0
        %2877 = vadd.xlane.f32.xlu0 %v2876
        %v2878 = vpop.xlane.xlu0 %2877
        %v2879 = vsel %vm732, %v2247, 0.0
        %2880 = vadd.xlane.f32.xlu0 %v2879
        %v2881 = vpop.xlane.xlu0 %2880
        %v2882 = vsel %vm732, %v2248, 0.0
        %2883 = vadd.xlane.f32.xlu0 %v2882
        %v2884 = vpop.xlane.xlu0 %2883
        %v2885 = vsel %vm732, %v2249, 0.0
        %2886 = vadd.xlane.f32.xlu0 %v2885
        %v2887 = vpop.xlane.xlu0 %2886
        %v2888 = vsel %vm732, %v2250, 0.0
        %2889 = vadd.xlane.f32.xlu0 %v2888
        %v2890 = vpop.xlane.xlu0 %2889
        %v2891 = vsel %vm732, %v2251, 0.0
        %2892 = vadd.xlane.f32.xlu0 %v2891
        %v2893 = vpop.xlane.xlu0 %2892
        %v2894 = vsel %vm732, %v2252, 0.0
        %2895 = vadd.xlane.f32.xlu0 %v2894
        %v2896 = vpop.xlane.xlu0 %2895
        %v2897 = vsel %vm732, %v2253, 0.0
        %2898 = vadd.xlane.f32.xlu0 %v2897
        %v2899 = vpop.xlane.xlu0 %2898
        %v2900 = vsel %vm732, %v2254, 0.0
        %2901 = vadd.xlane.f32.xlu0 %v2900
        %v2902 = vpop.xlane.xlu0 %2901
        %v2903 = vsel %vm732, %v2255, 0.0
        %2904 = vadd.xlane.f32.xlu0 %v2903
        %v2905 = vpop.xlane.xlu0 %2904
        %v2906 = vsel %vm732, %v2256, 0.0
        %2907 = vadd.xlane.f32.xlu0 %v2906
        %v2908 = vpop.xlane.xlu0 %2907
        %v2909 = vsel %vm732, %v2257, 0.0
        %2910 = vadd.xlane.f32.xlu0 %v2909
        %v2911 = vpop.xlane.xlu0 %2910
        %v2912 = vsel %vm732, %v2258, 0.0
        %2913 = vadd.xlane.f32.xlu0 %v2912
        %v2914 = vpop.xlane.xlu0 %2913
        %v2915 = vsel %vm732, %v2259, 0.0
        %2916 = vadd.xlane.f32.xlu0 %v2915
        %v2917 = vpop.xlane.xlu0 %2916
        %v2918 = vsel %vm732, %v2260, 0.0
        %2919 = vadd.xlane.f32.xlu0 %v2918
        %v2920 = vpop.xlane.xlu0 %2919
        %v2921 = vsel %vm732, %v2261, 0.0
        %2922 = vadd.xlane.f32.xlu0 %v2921
        %v2923 = vpop.xlane.xlu0 %2922
        %v2924 = vsel %vm732, %v2262, 0.0
        %2925 = vadd.xlane.f32.xlu0 %v2924
        %v2926 = vpop.xlane.xlu0 %2925
        %v2927 = vsel %vm732, %v2263, 0.0
        %2928 = vadd.xlane.f32.xlu0 %v2927
        %v2929 = vpop.xlane.xlu0 %2928
        %v2930 = vsel %vm732, %v2264, 0.0
        %2931 = vadd.xlane.f32.xlu0 %v2930
        %v2932 = vpop.xlane.xlu0 %2931
        %v2933 = vsel %vm732, %v2265, 0.0
        %2934 = vadd.xlane.f32.xlu0 %v2933
        %v2935 = vpop.xlane.xlu0 %2934
        %v2936 = vsel %vm732, %v2266, 0.0
        %2937 = vadd.xlane.f32.xlu0 %v2936
        %v2938 = vpop.xlane.xlu0 %2937
        %v2939 = vsel %vm732, %v2267, 0.0
        %2940 = vadd.xlane.f32.xlu0 %v2939
        %v2941 = vpop.xlane.xlu0 %2940
        %v2942 = vsel %vm732, %v2268, 0.0
        %2943 = vadd.xlane.f32.xlu0 %v2942
        %v2944 = vpop.xlane.xlu0 %2943
        %v2945 = vsel %vm732, %v2269, 0.0
        %2946 = vadd.xlane.f32.xlu0 %v2945
        %v2947 = vpop.xlane.xlu0 %2946
        %v2948 = vsel %vm732, %v2270, 0.0
        %2949 = vadd.xlane.f32.xlu0 %v2948
        %v2950 = vpop.xlane.xlu0 %2949
        %v2951 = vsel %vm732, %v2271, 0.0
        %2952 = vadd.xlane.f32.xlu0 %v2951
        %v2953 = vpop.xlane.xlu0 %2952
        %v2954 = vsel %vm732, %v2272, 0.0
        %2955 = vadd.xlane.f32.xlu0 %v2954
        %v2956 = vpop.xlane.xlu0 %2955
        %v2957 = vsel %vm732, %v2273, 0.0
        %2958 = vadd.xlane.f32.xlu0 %v2957
        %v2959 = vpop.xlane.xlu0 %2958
        %v2960 = vsel %vm732, %v2274, 0.0
        %2961 = vadd.xlane.f32.xlu0 %v2960
        %v2962 = vpop.xlane.xlu0 %2961
        %v2963 = vsel %vm732, %v2275, 0.0
        %2964 = vadd.xlane.f32.xlu0 %v2963
        %v2965 = vpop.xlane.xlu0 %2964
        %v2966 = vsel %vm732, %v2276, 0.0
        %2967 = vadd.xlane.f32.xlu0 %v2966
        %v2968 = vpop.xlane.xlu0 %2967
        %v2969 = vsel %vm732, %v2277, 0.0
        %2970 = vadd.xlane.f32.xlu0 %v2969
        %v2971 = vpop.xlane.xlu0 %2970
        %v2972 = vsel %vm732, %v2278, 0.0
        %2973 = vadd.xlane.f32.xlu0 %v2972
        %v2974 = vpop.xlane.xlu0 %2973
        %v2975 = vsel %vm732, %v2279, 0.0
        %2976 = vadd.xlane.f32.xlu0 %v2975
        %v2977 = vpop.xlane.xlu0 %2976
        %v2978 = vsel %vm732, %v2280, 0.0
        %2979 = vadd.xlane.f32.xlu0 %v2978
        %v2980 = vpop.xlane.xlu0 %2979
        %v2981 = vsel %vm732, %v2281, 0.0
        %2982 = vadd.xlane.f32.xlu0 %v2981
        %v2983 = vpop.xlane.xlu0 %2982
        %v2984 = vsel %vm732, %v2282, 0.0
        %2985 = vadd.xlane.f32.xlu0 %v2984
        %v2986 = vpop.xlane.xlu0 %2985
        %v2987 = vsel %vm732, %v2283, 0.0
        %2988 = vadd.xlane.f32.xlu0 %v2987
        %v2989 = vpop.xlane.xlu0 %2988
        %v2990 = vsel %vm732, %v2284, 0.0
        %2991 = vadd.xlane.f32.xlu0 %v2990
        %v2992 = vpop.xlane.xlu0 %2991
        %v2993 = vsel %vm732, %v2285, 0.0
        %2994 = vadd.xlane.f32.xlu0 %v2993
        %v2995 = vpop.xlane.xlu0 %2994
        %v2996 = vsel %vm732, %v2286, 0.0
        %2997 = vadd.xlane.f32.xlu0 %v2996
        %v2998 = vpop.xlane.xlu0 %2997
        %v2999 = vsel %vm732, %v2287, 0.0
        %3000 = vadd.xlane.f32.xlu0 %v2999
        %v3001 = vpop.xlane.xlu0 %3000
        %v3002 = vsel %vm732, %v2288, 0.0
        %3003 = vadd.xlane.f32.xlu0 %v3002
        %v3004 = vpop.xlane.xlu0 %3003
        %v3005 = vsel %vm732, %v2289, 0.0
        %3006 = vadd.xlane.f32.xlu0 %v3005
        %v3007 = vpop.xlane.xlu0 %3006
        %v3008 = vsel %vm732, %v2290, 0.0
        %3009 = vadd.xlane.f32.xlu0 %v3008
        %v3010 = vpop.xlane.xlu0 %3009
        %v3011 = vsel %vm732, %v2291, 0.0
        %3012 = vadd.xlane.f32.xlu0 %v3011
        %v3013 = vpop.xlane.xlu0 %3012
        %v3014 = vsel %vm732, %v2292, 0.0
        %3015 = vadd.xlane.f32.xlu0 %v3014
        %v3016 = vpop.xlane.xlu0 %3015
        %v3017 = vsel %vm732, %v2293, 0.0
        %3018 = vadd.xlane.f32.xlu0 %v3017
        %v3019 = vpop.xlane.xlu0 %3018
        %v3020 = vsel %vm732, %v2294, 0.0
        %3021 = vadd.xlane.f32.xlu0 %v3020
        %v3022 = vpop.xlane.xlu0 %3021
        %v3023 = vsel %vm732, %v2295, 0.0
        %3024 = vadd.xlane.f32.xlu0 %v3023
        %v3025 = vpop.xlane.xlu0 %3024
        %v3026 = vsel %vm732, %v2296, 0.0
        %3027 = vadd.xlane.f32.xlu0 %v3026
        %v3028 = vpop.xlane.xlu0 %3027
        %v3029 = vsel %vm732, %v2297, 0.0
        %3030 = vadd.xlane.f32.xlu0 %v3029
        %v3031 = vpop.xlane.xlu0 %3030
        %v3032 = vsel %vm732, %v2298, 0.0
        %3033 = vadd.xlane.f32.xlu0 %v3032
        %v3034 = vpop.xlane.xlu0 %3033
        %v3035 = vsel %vm732, %v2299, 0.0
        %3036 = vadd.xlane.f32.xlu0 %v3035
        %v3037 = vpop.xlane.xlu0 %3036
        %v3038 = vsel %vm732, %v2300, 0.0
        %3039 = vadd.xlane.f32.xlu0 %v3038
        %v3040 = vpop.xlane.xlu0 %3039
        %v3041 = vsel %vm732, %v2301, 0.0
        %3042 = vadd.xlane.f32.xlu0 %v3041
        %v3043 = vpop.xlane.xlu0 %3042
        %v3044 = vsel %vm732, %v2302, 0.0
        %3045 = vadd.xlane.f32.xlu0 %v3044
        %v3046 = vpop.xlane.xlu0 %3045
        %v3047 = vsel %vm732, %v2303, 0.0
        %3048 = vadd.xlane.f32.xlu0 %v3047
        %v3049 = vpop.xlane.xlu0 %3048
        %v3050 = vsel %vm732, %v2304, 0.0
        %3051 = vadd.xlane.f32.xlu0 %v3050
        %v3052 = vpop.xlane.xlu0 %3051
        %v3053 = vsel %vm732, %v2305, 0.0
        %3054 = vadd.xlane.f32.xlu0 %v3053
        %v3055 = vpop.xlane.xlu0 %3054
        %v3056 = vsel %vm732, %v2306, 0.0
        %3057 = vadd.xlane.f32.xlu0 %v3056
        %v3058 = vpop.xlane.xlu0 %3057
        %v3059 = vsel %vm732, %v2307, 0.0
        %3060 = vadd.xlane.f32.xlu0 %v3059
        %v3061 = vpop.xlane.xlu0 %3060
        %v3062 = vsel %vm732, %v2308, 0.0
        %3063 = vadd.xlane.f32.xlu0 %v3062
        %v3064 = vpop.xlane.xlu0 %3063
        %v3065 = vsel %vm732, %v2309, 0.0
        %3066 = vadd.xlane.f32.xlu0 %v3065
        %v3067 = vpop.xlane.xlu0 %3066
        %v3068 = vsel %vm732, %v2310, 0.0
        %3069 = vadd.xlane.f32.xlu0 %v3068
        %v3070 = vpop.xlane.xlu0 %3069
        %v3071 = vsel %vm732, %v2311, 0.0
        %3072 = vadd.xlane.f32.xlu0 %v3071
        %v3073 = vpop.xlane.xlu0 %3072
        %v3074 = vsel %vm732, %v2312, 0.0
        %3075 = vadd.xlane.f32.xlu0 %v3074
        %v3076 = vpop.xlane.xlu0 %3075
        %v3077 = vsel %vm732, %v2313, 0.0
        %3078 = vadd.xlane.f32.xlu0 %v3077
        %v3079 = vpop.xlane.xlu0 %3078
        %v3080 = vsel %vm732, %v2314, 0.0
        %3081 = vadd.xlane.f32.xlu0 %v3080
        %v3082 = vpop.xlane.xlu0 %3081
        %v3083 = vrcp.pop 64.0
        %v3084 = vmul.f32 64.0, %v3083
        %v3085 = vsub.f32 1.0, %v3084
        %v3086 = vmul.f32 %v3083, %v3085
        %v3087 = vadd.f32 %v3083, %v3086
        %vm3088 = vweird.f32 %v3083
        %v3089 = vsel %vm3088, %v3083, %v3087
        %v3090 = vmul.f32 %v2317, %v3089
        %v3091 = vmul.f32 %v2320, %v3089
        %v3092 = vmul.f32 %v2323, %v3089
        %v3093 = vmul.f32 %v2326, %v3089
        %v3094 = vmul.f32 %v2329, %v3089
        %v3095 = vmul.f32 %v2332, %v3089
        %v3096 = vmul.f32 %v2335, %v3089
        %v3097 = vmul.f32 %v2338, %v3089
        %v3098 = vmul.f32 %v2341, %v3089
        %v3099 = vmul.f32 %v2344, %v3089
        %v3100 = vmul.f32 %v2347, %v3089
        %v3101 = vmul.f32 %v2350, %v3089
        %v3102 = vmul.f32 %v2353, %v3089
        %v3103 = vmul.f32 %v2356, %v3089
        %v3104 = vmul.f32 %v2359, %v3089
        %v3105 = vmul.f32 %v2362, %v3089
        %v3106 = vmul.f32 %v2365, %v3089
        %v3107 = vmul.f32 %v2368, %v3089
        %v3108 = vmul.f32 %v2371, %v3089
        %v3109 = vmul.f32 %v2374, %v3089
        %v3110 = vmul.f32 %v2377, %v3089
        %v3111 = vmul.f32 %v2380, %v3089
        %v3112 = vmul.f32 %v2383, %v3089
        %v3113 = vmul.f32 %v2386, %v3089
        %v3114 = vmul.f32 %v2389, %v3089
        %v3115 = vmul.f32 %v2392, %v3089
        %v3116 = vmul.f32 %v2395, %v3089
        %v3117 = vmul.f32 %v2398, %v3089
        %v3118 = vmul.f32 %v2401, %v3089
        %v3119 = vmul.f32 %v2404, %v3089
        %v3120 = vmul.f32 %v2407, %v3089
        %v3121 = vmul.f32 %v2410, %v3089
        %v3122 = vmul.f32 %v2413, %v3089
        %v3123 = vmul.f32 %v2416, %v3089
        %v3124 = vmul.f32 %v2419, %v3089
        %v3125 = vmul.f32 %v2422, %v3089
        %v3126 = vmul.f32 %v2425, %v3089
        %v3127 = vmul.f32 %v2428, %v3089
        %v3128 = vmul.f32 %v2431, %v3089
        %v3129 = vmul.f32 %v2434, %v3089
        %v3130 = vmul.f32 %v2437, %v3089
        %v3131 = vmul.f32 %v2440, %v3089
        %v3132 = vmul.f32 %v2443, %v3089
        %v3133 = vmul.f32 %v2446, %v3089
        %v3134 = vmul.f32 %v2449, %v3089
        %v3135 = vmul.f32 %v2452, %v3089
        %v3136 = vmul.f32 %v2455, %v3089
        %v3137 = vmul.f32 %v2458, %v3089
        %v3138 = vmul.f32 %v2461, %v3089
        %v3139 = vmul.f32 %v2464, %v3089
        %v3140 = vmul.f32 %v2467, %v3089
        %v3141 = vmul.f32 %v2470, %v3089
        %v3142 = vmul.f32 %v2473, %v3089
        %v3143 = vmul.f32 %v2476, %v3089
        %v3144 = vmul.f32 %v2479, %v3089
        %v3145 = vmul.f32 %v2482, %v3089
        %v3146 = vmul.f32 %v2485, %v3089
        %v3147 = vmul.f32 %v2488, %v3089
        %v3148 = vmul.f32 %v2491, %v3089
        %v3149 = vmul.f32 %v2494, %v3089
        %v3150 = vmul.f32 %v2497, %v3089
        %v3151 = vmul.f32 %v2500, %v3089
        %v3152 = vmul.f32 %v2503, %v3089
        %v3153 = vmul.f32 %v2506, %v3089
        %v3154 = vmul.f32 %v2509, %v3089
        %v3155 = vmul.f32 %v2512, %v3089
        %v3156 = vmul.f32 %v2515, %v3089
        %v3157 = vmul.f32 %v2518, %v3089
        %v3158 = vmul.f32 %v2521, %v3089
        %v3159 = vmul.f32 %v2524, %v3089
        %v3160 = vmul.f32 %v2527, %v3089
        %v3161 = vmul.f32 %v2530, %v3089
        %v3162 = vmul.f32 %v2533, %v3089
        %v3163 = vmul.f32 %v2536, %v3089
        %v3164 = vmul.f32 %v2539, %v3089
        %v3165 = vmul.f32 %v2542, %v3089
        %v3166 = vmul.f32 %v2545, %v3089
        %v3167 = vmul.f32 %v2548, %v3089
        %v3168 = vmul.f32 %v2551, %v3089
        %v3169 = vmul.f32 %v2554, %v3089
        %v3170 = vmul.f32 %v2557, %v3089
        %v3171 = vmul.f32 %v2560, %v3089
        %v3172 = vmul.f32 %v2563, %v3089
        %v3173 = vmul.f32 %v2566, %v3089
        %v3174 = vmul.f32 %v2569, %v3089
        %v3175 = vmul.f32 %v2572, %v3089
        %v3176 = vmul.f32 %v2575, %v3089
        %v3177 = vmul.f32 %v2578, %v3089
        %v3178 = vmul.f32 %v2581, %v3089
        %v3179 = vmul.f32 %v2584, %v3089
        %v3180 = vmul.f32 %v2587, %v3089
        %v3181 = vmul.f32 %v2590, %v3089
        %v3182 = vmul.f32 %v2593, %v3089
        %v3183 = vmul.f32 %v2596, %v3089
        %v3184 = vmul.f32 %v2599, %v3089
        %v3185 = vmul.f32 %v2602, %v3089
        %v3186 = vmul.f32 %v2605, %v3089
        %v3187 = vmul.f32 %v2608, %v3089
        %v3188 = vmul.f32 %v2611, %v3089
        %v3189 = vmul.f32 %v2614, %v3089
        %v3190 = vmul.f32 %v2617, %v3089
        %v3191 = vmul.f32 %v2620, %v3089
        %v3192 = vmul.f32 %v2623, %v3089
        %v3193 = vmul.f32 %v2626, %v3089
        %v3194 = vmul.f32 %v2629, %v3089
        %v3195 = vmul.f32 %v2632, %v3089
        %v3196 = vmul.f32 %v2635, %v3089
        %v3197 = vmul.f32 %v2638, %v3089
        %v3198 = vmul.f32 %v2641, %v3089
        %v3199 = vmul.f32 %v2644, %v3089
        %v3200 = vmul.f32 %v2647, %v3089
        %v3201 = vmul.f32 %v2650, %v3089
        %v3202 = vmul.f32 %v2653, %v3089
        %v3203 = vmul.f32 %v2656, %v3089
        %v3204 = vmul.f32 %v2659, %v3089
        %v3205 = vmul.f32 %v2662, %v3089
        %v3206 = vmul.f32 %v2665, %v3089
        %v3207 = vmul.f32 %v2668, %v3089
        %v3208 = vmul.f32 %v2671, %v3089
        %v3209 = vmul.f32 %v2674, %v3089
        %v3210 = vmul.f32 %v2677, %v3089
        %v3211 = vmul.f32 %v2680, %v3089
        %v3212 = vmul.f32 %v2683, %v3089
        %v3213 = vmul.f32 %v2686, %v3089
        %v3214 = vmul.f32 %v2689, %v3089
        %v3215 = vmul.f32 %v2692, %v3089
        %v3216 = vmul.f32 %v2695, %v3089
        %v3217 = vmul.f32 %v2698, %v3089
        %v3218 = vmul.f32 %v2701, %v3089
        %v3219 = vmul.f32 %v2704, %v3089
        %v3220 = vmul.f32 %v2707, %v3089
        %v3221 = vmul.f32 %v2710, %v3089
        %v3222 = vmul.f32 %v2713, %v3089
        %v3223 = vmul.f32 %v2716, %v3089
        %v3224 = vmul.f32 %v2719, %v3089
        %v3225 = vmul.f32 %v2722, %v3089
        %v3226 = vmul.f32 %v2725, %v3089
        %v3227 = vmul.f32 %v2728, %v3089
        %v3228 = vmul.f32 %v2731, %v3089
        %v3229 = vmul.f32 %v2734, %v3089
        %v3230 = vmul.f32 %v2737, %v3089
        %v3231 = vmul.f32 %v2740, %v3089
        %v3232 = vmul.f32 %v2743, %v3089
        %v3233 = vmul.f32 %v2746, %v3089
        %v3234 = vmul.f32 %v2749, %v3089
        %v3235 = vmul.f32 %v2752, %v3089
        %v3236 = vmul.f32 %v2755, %v3089
        %v3237 = vmul.f32 %v2758, %v3089
        %v3238 = vmul.f32 %v2761, %v3089
        %v3239 = vmul.f32 %v2764, %v3089
        %v3240 = vmul.f32 %v2767, %v3089
        %v3241 = vmul.f32 %v2770, %v3089
        %v3242 = vmul.f32 %v2773, %v3089
        %v3243 = vmul.f32 %v2776, %v3089
        %v3244 = vmul.f32 %v2779, %v3089
        %v3245 = vmul.f32 %v2782, %v3089
        %v3246 = vmul.f32 %v2785, %v3089
        %v3247 = vmul.f32 %v2788, %v3089
        %v3248 = vmul.f32 %v2791, %v3089
        %v3249 = vmul.f32 %v2794, %v3089
        %v3250 = vmul.f32 %v2797, %v3089
        %v3251 = vmul.f32 %v2800, %v3089
        %v3252 = vmul.f32 %v2803, %v3089
        %v3253 = vmul.f32 %v2806, %v3089
        %v3254 = vmul.f32 %v2809, %v3089
        %v3255 = vmul.f32 %v2812, %v3089
        %v3256 = vmul.f32 %v2815, %v3089
        %v3257 = vmul.f32 %v2818, %v3089
        %v3258 = vmul.f32 %v2821, %v3089
        %v3259 = vmul.f32 %v2824, %v3089
        %v3260 = vmul.f32 %v2827, %v3089
        %v3261 = vmul.f32 %v2830, %v3089
        %v3262 = vmul.f32 %v2833, %v3089
        %v3263 = vmul.f32 %v2836, %v3089
        %v3264 = vmul.f32 %v2839, %v3089
        %v3265 = vmul.f32 %v2842, %v3089
        %v3266 = vmul.f32 %v2845, %v3089
        %v3267 = vmul.f32 %v2848, %v3089
        %v3268 = vmul.f32 %v2851, %v3089
        %v3269 = vmul.f32 %v2854, %v3089
        %v3270 = vmul.f32 %v2857, %v3089
        %v3271 = vmul.f32 %v2860, %v3089
        %v3272 = vmul.f32 %v2863, %v3089
        %v3273 = vmul.f32 %v2866, %v3089
        %v3274 = vmul.f32 %v2869, %v3089
        %v3275 = vmul.f32 %v2872, %v3089
        %v3276 = vmul.f32 %v2875, %v3089
        %v3277 = vmul.f32 %v2878, %v3089
        %v3278 = vmul.f32 %v2881, %v3089
        %v3279 = vmul.f32 %v2884, %v3089
        %v3280 = vmul.f32 %v2887, %v3089
        %v3281 = vmul.f32 %v2890, %v3089
        %v3282 = vmul.f32 %v2893, %v3089
        %v3283 = vmul.f32 %v2896, %v3089
        %v3284 = vmul.f32 %v2899, %v3089
        %v3285 = vmul.f32 %v2902, %v3089
        %v3286 = vmul.f32 %v2905, %v3089
        %v3287 = vmul.f32 %v2908, %v3089
        %v3288 = vmul.f32 %v2911, %v3089
        %v3289 = vmul.f32 %v2914, %v3089
        %v3290 = vmul.f32 %v2917, %v3089
        %v3291 = vmul.f32 %v2920, %v3089
        %v3292 = vmul.f32 %v2923, %v3089
        %v3293 = vmul.f32 %v2926, %v3089
        %v3294 = vmul.f32 %v2929, %v3089
        %v3295 = vmul.f32 %v2932, %v3089
        %v3296 = vmul.f32 %v2935, %v3089
        %v3297 = vmul.f32 %v2938, %v3089
        %v3298 = vmul.f32 %v2941, %v3089
        %v3299 = vmul.f32 %v2944, %v3089
        %v3300 = vmul.f32 %v2947, %v3089
        %v3301 = vmul.f32 %v2950, %v3089
        %v3302 = vmul.f32 %v2953, %v3089
        %v3303 = vmul.f32 %v2956, %v3089
        %v3304 = vmul.f32 %v2959, %v3089
        %v3305 = vmul.f32 %v2962, %v3089
        %v3306 = vmul.f32 %v2965, %v3089
        %v3307 = vmul.f32 %v2968, %v3089
        %v3308 = vmul.f32 %v2971, %v3089
        %v3309 = vmul.f32 %v2974, %v3089
        %v3310 = vmul.f32 %v2977, %v3089
        %v3311 = vmul.f32 %v2980, %v3089
        %v3312 = vmul.f32 %v2983, %v3089
        %v3313 = vmul.f32 %v2986, %v3089
        %v3314 = vmul.f32 %v2989, %v3089
        %v3315 = vmul.f32 %v2992, %v3089
        %v3316 = vmul.f32 %v2995, %v3089
        %v3317 = vmul.f32 %v2998, %v3089
        %v3318 = vmul.f32 %v3001, %v3089
        %v3319 = vmul.f32 %v3004, %v3089
        %v3320 = vmul.f32 %v3007, %v3089
        %v3321 = vmul.f32 %v3010, %v3089
        %v3322 = vmul.f32 %v3013, %v3089
        %v3323 = vmul.f32 %v3016, %v3089
        %v3324 = vmul.f32 %v3019, %v3089
        %v3325 = vmul.f32 %v3022, %v3089
        %v3326 = vmul.f32 %v3025, %v3089
        %v3327 = vmul.f32 %v3028, %v3089
        %v3328 = vmul.f32 %v3031, %v3089
        %v3329 = vmul.f32 %v3034, %v3089
        %v3330 = vmul.f32 %v3037, %v3089
        %v3331 = vmul.f32 %v3040, %v3089
        %v3332 = vmul.f32 %v3043, %v3089
        %v3333 = vmul.f32 %v3046, %v3089
        %v3334 = vmul.f32 %v3049, %v3089
        %v3335 = vmul.f32 %v3052, %v3089
        %v3336 = vmul.f32 %v3055, %v3089
        %v3337 = vmul.f32 %v3058, %v3089
        %v3338 = vmul.f32 %v3061, %v3089
        %v3339 = vmul.f32 %v3064, %v3089
        %v3340 = vmul.f32 %v3067, %v3089
        %v3341 = vmul.f32 %v3070, %v3089
        %v3342 = vmul.f32 %v3073, %v3089
        %v3343 = vmul.f32 %v3076, %v3089
        %v3344 = vmul.f32 %v3079, %v3089
        %v3345 = vmul.f32 %v3082, %v3089
        %v3602 = vperm.slane %v3090, 0
        %v3603 = vperm.slane %v3090, 1
        %v3604 = vperm.slane %v3090, 2
        %v3605 = vperm.slane %v3090, 3
        %v3606 = vperm.slane %v3090, 4
        %v3607 = vperm.slane %v3090, 5
        %v3608 = vperm.slane %v3090, 6
        %v3609 = vperm.slane %v3090, 7
        %v3610 = vperm.slane %v3091, 0
        %v3611 = vperm.slane %v3091, 1
        %v3612 = vperm.slane %v3091, 2
        %v3613 = vperm.slane %v3091, 3
        %v3614 = vperm.slane %v3091, 4
        %v3615 = vperm.slane %v3091, 5
        %v3616 = vperm.slane %v3091, 6
        %v3617 = vperm.slane %v3091, 7
        %v3618 = vperm.slane %v3092, 0
        %v3619 = vperm.slane %v3092, 1
        %v3620 = vperm.slane %v3092, 2
        %v3621 = vperm.slane %v3092, 3
        %v3622 = vperm.slane %v3092, 4
        %v3623 = vperm.slane %v3092, 5
        %v3624 = vperm.slane %v3092, 6
        %v3625 = vperm.slane %v3092, 7
        %v3626 = vperm.slane %v3093, 0
        %v3627 = vperm.slane %v3093, 1
        %v3628 = vperm.slane %v3093, 2
        %v3629 = vperm.slane %v3093, 3
        %v3630 = vperm.slane %v3093, 4
        %v3631 = vperm.slane %v3093, 5
        %v3632 = vperm.slane %v3093, 6
        %v3633 = vperm.slane %v3093, 7
        %v3634 = vperm.slane %v3094, 0
        %v3635 = vperm.slane %v3094, 1
        %v3636 = vperm.slane %v3094, 2
        %v3637 = vperm.slane %v3094, 3
        %v3638 = vperm.slane %v3094, 4
        %v3639 = vperm.slane %v3094, 5
        %v3640 = vperm.slane %v3094, 6
        %v3641 = vperm.slane %v3094, 7
        %v3642 = vperm.slane %v3095, 0
        %v3643 = vperm.slane %v3095, 1
        %v3644 = vperm.slane %v3095, 2
        %v3645 = vperm.slane %v3095, 3
        %v3646 = vperm.slane %v3095, 4
        %v3647 = vperm.slane %v3095, 5
        %v3648 = vperm.slane %v3095, 6
        %v3649 = vperm.slane %v3095, 7
        %v3650 = vperm.slane %v3096, 0
        %v3651 = vperm.slane %v3096, 1
        %v3652 = vperm.slane %v3096, 2
        %v3653 = vperm.slane %v3096, 3
        %v3654 = vperm.slane %v3096, 4
        %v3655 = vperm.slane %v3096, 5
        %v3656 = vperm.slane %v3096, 6
        %v3657 = vperm.slane %v3096, 7
        %v3658 = vperm.slane %v3097, 0
        %v3659 = vperm.slane %v3097, 1
        %v3660 = vperm.slane %v3097, 2
        %v3661 = vperm.slane %v3097, 3
        %v3662 = vperm.slane %v3097, 4
        %v3663 = vperm.slane %v3097, 5
        %v3664 = vperm.slane %v3097, 6
        %v3665 = vperm.slane %v3097, 7
        %v3666 = vperm.slane %v3098, 0
        %v3667 = vperm.slane %v3098, 1
        %v3668 = vperm.slane %v3098, 2
        %v3669 = vperm.slane %v3098, 3
        %v3670 = vperm.slane %v3098, 4
        %v3671 = vperm.slane %v3098, 5
        %v3672 = vperm.slane %v3098, 6
        %v3673 = vperm.slane %v3098, 7
        %v3674 = vperm.slane %v3099, 0
        %v3675 = vperm.slane %v3099, 1
        %v3676 = vperm.slane %v3099, 2
        %v3677 = vperm.slane %v3099, 3
        %v3678 = vperm.slane %v3099, 4
        %v3679 = vperm.slane %v3099, 5
        %v3680 = vperm.slane %v3099, 6
        %v3681 = vperm.slane %v3099, 7
        %v3682 = vperm.slane %v3100, 0
        %v3683 = vperm.slane %v3100, 1
        %v3684 = vperm.slane %v3100, 2
        %v3685 = vperm.slane %v3100, 3
        %v3686 = vperm.slane %v3100, 4
        %v3687 = vperm.slane %v3100, 5
        %v3688 = vperm.slane %v3100, 6
        %v3689 = vperm.slane %v3100, 7
        %v3690 = vperm.slane %v3101, 0
        %v3691 = vperm.slane %v3101, 1
        %v3692 = vperm.slane %v3101, 2
        %v3693 = vperm.slane %v3101, 3
        %v3694 = vperm.slane %v3101, 4
        %v3695 = vperm.slane %v3101, 5
        %v3696 = vperm.slane %v3101, 6
        %v3697 = vperm.slane %v3101, 7
        %v3698 = vperm.slane %v3102, 0
        %v3699 = vperm.slane %v3102, 1
        %v3700 = vperm.slane %v3102, 2
        %v3701 = vperm.slane %v3102, 3
        %v3702 = vperm.slane %v3102, 4
        %v3703 = vperm.slane %v3102, 5
        %v3704 = vperm.slane %v3102, 6
        %v3705 = vperm.slane %v3102, 7
        %v3706 = vperm.slane %v3103, 0
        %v3707 = vperm.slane %v3103, 1
        %v3708 = vperm.slane %v3103, 2
        %v3709 = vperm.slane %v3103, 3
        %v3710 = vperm.slane %v3103, 4
        %v3711 = vperm.slane %v3103, 5
        %v3712 = vperm.slane %v3103, 6
        %v3713 = vperm.slane %v3103, 7
        %v3714 = vperm.slane %v3104, 0
        %v3715 = vperm.slane %v3104, 1
        %v3716 = vperm.slane %v3104, 2
        %v3717 = vperm.slane %v3104, 3
        %v3718 = vperm.slane %v3104, 4
        %v3719 = vperm.slane %v3104, 5
        %v3720 = vperm.slane %v3104, 6
        %v3721 = vperm.slane %v3104, 7
        %v3722 = vperm.slane %v3105, 0
        %v3723 = vperm.slane %v3105, 1
        %v3724 = vperm.slane %v3105, 2
        %v3725 = vperm.slane %v3105, 3
        %v3726 = vperm.slane %v3105, 4
        %v3727 = vperm.slane %v3105, 5
        %v3728 = vperm.slane %v3105, 6
        %v3729 = vperm.slane %v3105, 7
        %v3730 = vperm.slane %v3106, 0
        %v3731 = vperm.slane %v3106, 1
        %v3732 = vperm.slane %v3106, 2
        %v3733 = vperm.slane %v3106, 3
        %v3734 = vperm.slane %v3106, 4
        %v3735 = vperm.slane %v3106, 5
        %v3736 = vperm.slane %v3106, 6
        %v3737 = vperm.slane %v3106, 7
        %v3738 = vperm.slane %v3107, 0
        %v3739 = vperm.slane %v3107, 1
        %v3740 = vperm.slane %v3107, 2
        %v3741 = vperm.slane %v3107, 3
        %v3742 = vperm.slane %v3107, 4
        %v3743 = vperm.slane %v3107, 5
        %v3744 = vperm.slane %v3107, 6
        %v3745 = vperm.slane %v3107, 7
        %v3746 = vperm.slane %v3108, 0
        %v3747 = vperm.slane %v3108, 1
        %v3748 = vperm.slane %v3108, 2
        %v3749 = vperm.slane %v3108, 3
        %v3750 = vperm.slane %v3108, 4
        %v3751 = vperm.slane %v3108, 5
        %v3752 = vperm.slane %v3108, 6
        %v3753 = vperm.slane %v3108, 7
        %v3754 = vperm.slane %v3109, 0
        %v3755 = vperm.slane %v3109, 1
        %v3756 = vperm.slane %v3109, 2
        %v3757 = vperm.slane %v3109, 3
        %v3758 = vperm.slane %v3109, 4
        %v3759 = vperm.slane %v3109, 5
        %v3760 = vperm.slane %v3109, 6
        %v3761 = vperm.slane %v3109, 7
        %v3762 = vperm.slane %v3110, 0
        %v3763 = vperm.slane %v3110, 1
        %v3764 = vperm.slane %v3110, 2
        %v3765 = vperm.slane %v3110, 3
        %v3766 = vperm.slane %v3110, 4
        %v3767 = vperm.slane %v3110, 5
        %v3768 = vperm.slane %v3110, 6
        %v3769 = vperm.slane %v3110, 7
        %v3770 = vperm.slane %v3111, 0
        %v3771 = vperm.slane %v3111, 1
        %v3772 = vperm.slane %v3111, 2
        %v3773 = vperm.slane %v3111, 3
        %v3774 = vperm.slane %v3111, 4
        %v3775 = vperm.slane %v3111, 5
        %v3776 = vperm.slane %v3111, 6
        %v3777 = vperm.slane %v3111, 7
        %v3778 = vperm.slane %v3112, 0
        %v3779 = vperm.slane %v3112, 1
        %v3780 = vperm.slane %v3112, 2
        %v3781 = vperm.slane %v3112, 3
        %v3782 = vperm.slane %v3112, 4
        %v3783 = vperm.slane %v3112, 5
        %v3784 = vperm.slane %v3112, 6
        %v3785 = vperm.slane %v3112, 7
        %v3786 = vperm.slane %v3113, 0
        %v3787 = vperm.slane %v3113, 1
        %v3788 = vperm.slane %v3113, 2
        %v3789 = vperm.slane %v3113, 3
        %v3790 = vperm.slane %v3113, 4
        %v3791 = vperm.slane %v3113, 5
        %v3792 = vperm.slane %v3113, 6
        %v3793 = vperm.slane %v3113, 7
        %v3794 = vperm.slane %v3114, 0
        %v3795 = vperm.slane %v3114, 1
        %v3796 = vperm.slane %v3114, 2
        %v3797 = vperm.slane %v3114, 3
        %v3798 = vperm.slane %v3114, 4
        %v3799 = vperm.slane %v3114, 5
        %v3800 = vperm.slane %v3114, 6
        %v3801 = vperm.slane %v3114, 7
        %v3802 = vperm.slane %v3115, 0
        %v3803 = vperm.slane %v3115, 1
        %v3804 = vperm.slane %v3115, 2
        %v3805 = vperm.slane %v3115, 3
        %v3806 = vperm.slane %v3115, 4
        %v3807 = vperm.slane %v3115, 5
        %v3808 = vperm.slane %v3115, 6
        %v3809 = vperm.slane %v3115, 7
        %v3810 = vperm.slane %v3116, 0
        %v3811 = vperm.slane %v3116, 1
        %v3812 = vperm.slane %v3116, 2
        %v3813 = vperm.slane %v3116, 3
        %v3814 = vperm.slane %v3116, 4
        %v3815 = vperm.slane %v3116, 5
        %v3816 = vperm.slane %v3116, 6
        %v3817 = vperm.slane %v3116, 7
        %v3818 = vperm.slane %v3117, 0
        %v3819 = vperm.slane %v3117, 1
        %v3820 = vperm.slane %v3117, 2
        %v3821 = vperm.slane %v3117, 3
        %v3822 = vperm.slane %v3117, 4
        %v3823 = vperm.slane %v3117, 5
        %v3824 = vperm.slane %v3117, 6
        %v3825 = vperm.slane %v3117, 7
        %v3826 = vperm.slane %v3118, 0
        %v3827 = vperm.slane %v3118, 1
        %v3828 = vperm.slane %v3118, 2
        %v3829 = vperm.slane %v3118, 3
        %v3830 = vperm.slane %v3118, 4
        %v3831 = vperm.slane %v3118, 5
        %v3832 = vperm.slane %v3118, 6
        %v3833 = vperm.slane %v3118, 7
        %v3834 = vperm.slane %v3119, 0
        %v3835 = vperm.slane %v3119, 1
        %v3836 = vperm.slane %v3119, 2
        %v3837 = vperm.slane %v3119, 3
        %v3838 = vperm.slane %v3119, 4
        %v3839 = vperm.slane %v3119, 5
        %v3840 = vperm.slane %v3119, 6
        %v3841 = vperm.slane %v3119, 7
        %v3842 = vperm.slane %v3120, 0
        %v3843 = vperm.slane %v3120, 1
        %v3844 = vperm.slane %v3120, 2
        %v3845 = vperm.slane %v3120, 3
        %v3846 = vperm.slane %v3120, 4
        %v3847 = vperm.slane %v3120, 5
        %v3848 = vperm.slane %v3120, 6
        %v3849 = vperm.slane %v3120, 7
        %v3850 = vperm.slane %v3121, 0
        %v3851 = vperm.slane %v3121, 1
        %v3852 = vperm.slane %v3121, 2
        %v3853 = vperm.slane %v3121, 3
        %v3854 = vperm.slane %v3121, 4
        %v3855 = vperm.slane %v3121, 5
        %v3856 = vperm.slane %v3121, 6
        %v3857 = vperm.slane %v3121, 7
        %v3858 = vperm.slane %v3122, 0
        %v3859 = vperm.slane %v3122, 1
        %v3860 = vperm.slane %v3122, 2
        %v3861 = vperm.slane %v3122, 3
        %v3862 = vperm.slane %v3122, 4
        %v3863 = vperm.slane %v3122, 5
        %v3864 = vperm.slane %v3122, 6
        %v3865 = vperm.slane %v3122, 7
        %v3866 = vperm.slane %v3123, 0
        %v3867 = vperm.slane %v3123, 1
        %v3868 = vperm.slane %v3123, 2
        %v3869 = vperm.slane %v3123, 3
        %v3870 = vperm.slane %v3123, 4
        %v3871 = vperm.slane %v3123, 5
        %v3872 = vperm.slane %v3123, 6
        %v3873 = vperm.slane %v3123, 7
        %v3874 = vperm.slane %v3124, 0
        %v3875 = vperm.slane %v3124, 1
        %v3876 = vperm.slane %v3124, 2
        %v3877 = vperm.slane %v3124, 3
        %v3878 = vperm.slane %v3124, 4
        %v3879 = vperm.slane %v3124, 5
        %v3880 = vperm.slane %v3124, 6
        %v3881 = vperm.slane %v3124, 7
        %v3882 = vperm.slane %v3125, 0
        %v3883 = vperm.slane %v3125, 1
        %v3884 = vperm.slane %v3125, 2
        %v3885 = vperm.slane %v3125, 3
        %v3886 = vperm.slane %v3125, 4
        %v3887 = vperm.slane %v3125, 5
        %v3888 = vperm.slane %v3125, 6
        %v3889 = vperm.slane %v3125, 7
        %v3890 = vperm.slane %v3126, 0
        %v3891 = vperm.slane %v3126, 1
        %v3892 = vperm.slane %v3126, 2
        %v3893 = vperm.slane %v3126, 3
        %v3894 = vperm.slane %v3126, 4
        %v3895 = vperm.slane %v3126, 5
        %v3896 = vperm.slane %v3126, 6
        %v3897 = vperm.slane %v3126, 7
        %v3898 = vperm.slane %v3127, 0
        %v3899 = vperm.slane %v3127, 1
        %v3900 = vperm.slane %v3127, 2
        %v3901 = vperm.slane %v3127, 3
        %v3902 = vperm.slane %v3127, 4
        %v3903 = vperm.slane %v3127, 5
        %v3904 = vperm.slane %v3127, 6
        %v3905 = vperm.slane %v3127, 7
        %v3906 = vperm.slane %v3128, 0
        %v3907 = vperm.slane %v3128, 1
        %v3908 = vperm.slane %v3128, 2
        %v3909 = vperm.slane %v3128, 3
        %v3910 = vperm.slane %v3128, 4
        %v3911 = vperm.slane %v3128, 5
        %v3912 = vperm.slane %v3128, 6
        %v3913 = vperm.slane %v3128, 7
        %v3914 = vperm.slane %v3129, 0
        %v3915 = vperm.slane %v3129, 1
        %v3916 = vperm.slane %v3129, 2
        %v3917 = vperm.slane %v3129, 3
        %v3918 = vperm.slane %v3129, 4
        %v3919 = vperm.slane %v3129, 5
        %v3920 = vperm.slane %v3129, 6
        %v3921 = vperm.slane %v3129, 7
        %v3922 = vperm.slane %v3130, 0
        %v3923 = vperm.slane %v3130, 1
        %v3924 = vperm.slane %v3130, 2
        %v3925 = vperm.slane %v3130, 3
        %v3926 = vperm.slane %v3130, 4
        %v3927 = vperm.slane %v3130, 5
        %v3928 = vperm.slane %v3130, 6
        %v3929 = vperm.slane %v3130, 7
        %v3930 = vperm.slane %v3131, 0
        %v3931 = vperm.slane %v3131, 1
        %v3932 = vperm.slane %v3131, 2
        %v3933 = vperm.slane %v3131, 3
        %v3934 = vperm.slane %v3131, 4
        %v3935 = vperm.slane %v3131, 5
        %v3936 = vperm.slane %v3131, 6
        %v3937 = vperm.slane %v3131, 7
        %v3938 = vperm.slane %v3132, 0
        %v3939 = vperm.slane %v3132, 1
        %v3940 = vperm.slane %v3132, 2
        %v3941 = vperm.slane %v3132, 3
        %v3942 = vperm.slane %v3132, 4
        %v3943 = vperm.slane %v3132, 5
        %v3944 = vperm.slane %v3132, 6
        %v3945 = vperm.slane %v3132, 7
        %v3946 = vperm.slane %v3133, 0
        %v3947 = vperm.slane %v3133, 1
        %v3948 = vperm.slane %v3133, 2
        %v3949 = vperm.slane %v3133, 3
        %v3950 = vperm.slane %v3133, 4
        %v3951 = vperm.slane %v3133, 5
        %v3952 = vperm.slane %v3133, 6
        %v3953 = vperm.slane %v3133, 7
        %v3954 = vperm.slane %v3134, 0
        %v3955 = vperm.slane %v3134, 1
        %v3956 = vperm.slane %v3134, 2
        %v3957 = vperm.slane %v3134, 3
        %v3958 = vperm.slane %v3134, 4
        %v3959 = vperm.slane %v3134, 5
        %v3960 = vperm.slane %v3134, 6
        %v3961 = vperm.slane %v3134, 7
        %v3962 = vperm.slane %v3135, 0
        %v3963 = vperm.slane %v3135, 1
        %v3964 = vperm.slane %v3135, 2
        %v3965 = vperm.slane %v3135, 3
        %v3966 = vperm.slane %v3135, 4
        %v3967 = vperm.slane %v3135, 5
        %v3968 = vperm.slane %v3135, 6
        %v3969 = vperm.slane %v3135, 7
        %v3970 = vperm.slane %v3136, 0
        %v3971 = vperm.slane %v3136, 1
        %v3972 = vperm.slane %v3136, 2
        %v3973 = vperm.slane %v3136, 3
        %v3974 = vperm.slane %v3136, 4
        %v3975 = vperm.slane %v3136, 5
        %v3976 = vperm.slane %v3136, 6
        %v3977 = vperm.slane %v3136, 7
        %v3978 = vperm.slane %v3137, 0
        %v3979 = vperm.slane %v3137, 1
        %v3980 = vperm.slane %v3137, 2
        %v3981 = vperm.slane %v3137, 3
        %v3982 = vperm.slane %v3137, 4
        %v3983 = vperm.slane %v3137, 5
        %v3984 = vperm.slane %v3137, 6
        %v3985 = vperm.slane %v3137, 7
        %v3986 = vperm.slane %v3138, 0
        %v3987 = vperm.slane %v3138, 1
        %v3988 = vperm.slane %v3138, 2
        %v3989 = vperm.slane %v3138, 3
        %v3990 = vperm.slane %v3138, 4
        %v3991 = vperm.slane %v3138, 5
        %v3992 = vperm.slane %v3138, 6
        %v3993 = vperm.slane %v3138, 7
        %v3994 = vperm.slane %v3139, 0
        %v3995 = vperm.slane %v3139, 1
        %v3996 = vperm.slane %v3139, 2
        %v3997 = vperm.slane %v3139, 3
        %v3998 = vperm.slane %v3139, 4
        %v3999 = vperm.slane %v3139, 5
        %v4000 = vperm.slane %v3139, 6
        %v4001 = vperm.slane %v3139, 7
        %v4002 = vperm.slane %v3140, 0
        %v4003 = vperm.slane %v3140, 1
        %v4004 = vperm.slane %v3140, 2
        %v4005 = vperm.slane %v3140, 3
        %v4006 = vperm.slane %v3140, 4
        %v4007 = vperm.slane %v3140, 5
        %v4008 = vperm.slane %v3140, 6
        %v4009 = vperm.slane %v3140, 7
        %v4010 = vperm.slane %v3141, 0
        %v4011 = vperm.slane %v3141, 1
        %v4012 = vperm.slane %v3141, 2
        %v4013 = vperm.slane %v3141, 3
        %v4014 = vperm.slane %v3141, 4
        %v4015 = vperm.slane %v3141, 5
        %v4016 = vperm.slane %v3141, 6
        %v4017 = vperm.slane %v3141, 7
        %v4018 = vperm.slane %v3142, 0
        %v4019 = vperm.slane %v3142, 1
        %v4020 = vperm.slane %v3142, 2
        %v4021 = vperm.slane %v3142, 3
        %v4022 = vperm.slane %v3142, 4
        %v4023 = vperm.slane %v3142, 5
        %v4024 = vperm.slane %v3142, 6
        %v4025 = vperm.slane %v3142, 7
        %v4026 = vperm.slane %v3143, 0
        %v4027 = vperm.slane %v3143, 1
        %v4028 = vperm.slane %v3143, 2
        %v4029 = vperm.slane %v3143, 3
        %v4030 = vperm.slane %v3143, 4
        %v4031 = vperm.slane %v3143, 5
        %v4032 = vperm.slane %v3143, 6
        %v4033 = vperm.slane %v3143, 7
        %v4034 = vperm.slane %v3144, 0
        %v4035 = vperm.slane %v3144, 1
        %v4036 = vperm.slane %v3144, 2
        %v4037 = vperm.slane %v3144, 3
        %v4038 = vperm.slane %v3144, 4
        %v4039 = vperm.slane %v3144, 5
        %v4040 = vperm.slane %v3144, 6
        %v4041 = vperm.slane %v3144, 7
        %v4042 = vperm.slane %v3145, 0
        %v4043 = vperm.slane %v3145, 1
        %v4044 = vperm.slane %v3145, 2
        %v4045 = vperm.slane %v3145, 3
        %v4046 = vperm.slane %v3145, 4
        %v4047 = vperm.slane %v3145, 5
        %v4048 = vperm.slane %v3145, 6
        %v4049 = vperm.slane %v3145, 7
        %v4050 = vperm.slane %v3146, 0
        %v4051 = vperm.slane %v3146, 1
        %v4052 = vperm.slane %v3146, 2
        %v4053 = vperm.slane %v3146, 3
        %v4054 = vperm.slane %v3146, 4
        %v4055 = vperm.slane %v3146, 5
        %v4056 = vperm.slane %v3146, 6
        %v4057 = vperm.slane %v3146, 7
        %v4058 = vperm.slane %v3147, 0
        %v4059 = vperm.slane %v3147, 1
        %v4060 = vperm.slane %v3147, 2
        %v4061 = vperm.slane %v3147, 3
        %v4062 = vperm.slane %v3147, 4
        %v4063 = vperm.slane %v3147, 5
        %v4064 = vperm.slane %v3147, 6
        %v4065 = vperm.slane %v3147, 7
        %v4066 = vperm.slane %v3148, 0
        %v4067 = vperm.slane %v3148, 1
        %v4068 = vperm.slane %v3148, 2
        %v4069 = vperm.slane %v3148, 3
        %v4070 = vperm.slane %v3148, 4
        %v4071 = vperm.slane %v3148, 5
        %v4072 = vperm.slane %v3148, 6
        %v4073 = vperm.slane %v3148, 7
        %v4074 = vperm.slane %v3149, 0
        %v4075 = vperm.slane %v3149, 1
        %v4076 = vperm.slane %v3149, 2
        %v4077 = vperm.slane %v3149, 3
        %v4078 = vperm.slane %v3149, 4
        %v4079 = vperm.slane %v3149, 5
        %v4080 = vperm.slane %v3149, 6
        %v4081 = vperm.slane %v3149, 7
        %v4082 = vperm.slane %v3150, 0
        %v4083 = vperm.slane %v3150, 1
        %v4084 = vperm.slane %v3150, 2
        %v4085 = vperm.slane %v3150, 3
        %v4086 = vperm.slane %v3150, 4
        %v4087 = vperm.slane %v3150, 5
        %v4088 = vperm.slane %v3150, 6
        %v4089 = vperm.slane %v3150, 7
        %v4090 = vperm.slane %v3151, 0
        %v4091 = vperm.slane %v3151, 1
        %v4092 = vperm.slane %v3151, 2
        %v4093 = vperm.slane %v3151, 3
        %v4094 = vperm.slane %v3151, 4
        %v4095 = vperm.slane %v3151, 5
        %v4096 = vperm.slane %v3151, 6
        %v4097 = vperm.slane %v3151, 7
        %v4098 = vperm.slane %v3152, 0
        %v4099 = vperm.slane %v3152, 1
        %v4100 = vperm.slane %v3152, 2
        %v4101 = vperm.slane %v3152, 3
        %v4102 = vperm.slane %v3152, 4
        %v4103 = vperm.slane %v3152, 5
        %v4104 = vperm.slane %v3152, 6
        %v4105 = vperm.slane %v3152, 7
        %v4106 = vperm.slane %v3153, 0
        %v4107 = vperm.slane %v3153, 1
        %v4108 = vperm.slane %v3153, 2
        %v4109 = vperm.slane %v3153, 3
        %v4110 = vperm.slane %v3153, 4
        %v4111 = vperm.slane %v3153, 5
        %v4112 = vperm.slane %v3153, 6
        %v4113 = vperm.slane %v3153, 7
        %v4114 = vperm.slane %v3154, 0
        %v4115 = vperm.slane %v3154, 1
        %v4116 = vperm.slane %v3154, 2
        %v4117 = vperm.slane %v3154, 3
        %v4118 = vperm.slane %v3154, 4
        %v4119 = vperm.slane %v3154, 5
        %v4120 = vperm.slane %v3154, 6
        %v4121 = vperm.slane %v3154, 7
        %v4122 = vperm.slane %v3155, 0
        %v4123 = vperm.slane %v3155, 1
        %v4124 = vperm.slane %v3155, 2
        %v4125 = vperm.slane %v3155, 3
        %v4126 = vperm.slane %v3155, 4
        %v4127 = vperm.slane %v3155, 5
        %v4128 = vperm.slane %v3155, 6
        %v4129 = vperm.slane %v3155, 7
        %v4130 = vperm.slane %v3156, 0
        %v4131 = vperm.slane %v3156, 1
        %v4132 = vperm.slane %v3156, 2
        %v4133 = vperm.slane %v3156, 3
        %v4134 = vperm.slane %v3156, 4
        %v4135 = vperm.slane %v3156, 5
        %v4136 = vperm.slane %v3156, 6
        %v4137 = vperm.slane %v3156, 7
        %v4138 = vperm.slane %v3157, 0
        %v4139 = vperm.slane %v3157, 1
        %v4140 = vperm.slane %v3157, 2
        %v4141 = vperm.slane %v3157, 3
        %v4142 = vperm.slane %v3157, 4
        %v4143 = vperm.slane %v3157, 5
        %v4144 = vperm.slane %v3157, 6
        %v4145 = vperm.slane %v3157, 7
        %v4146 = vperm.slane %v3158, 0
        %v4147 = vperm.slane %v3158, 1
        %v4148 = vperm.slane %v3158, 2
        %v4149 = vperm.slane %v3158, 3
        %v4150 = vperm.slane %v3158, 4
        %v4151 = vperm.slane %v3158, 5
        %v4152 = vperm.slane %v3158, 6
        %v4153 = vperm.slane %v3158, 7
        %v4154 = vperm.slane %v3159, 0
        %v4155 = vperm.slane %v3159, 1
        %v4156 = vperm.slane %v3159, 2
        %v4157 = vperm.slane %v3159, 3
        %v4158 = vperm.slane %v3159, 4
        %v4159 = vperm.slane %v3159, 5
        %v4160 = vperm.slane %v3159, 6
        %v4161 = vperm.slane %v3159, 7
        %v4162 = vperm.slane %v3160, 0
        %v4163 = vperm.slane %v3160, 1
        %v4164 = vperm.slane %v3160, 2
        %v4165 = vperm.slane %v3160, 3
        %v4166 = vperm.slane %v3160, 4
        %v4167 = vperm.slane %v3160, 5
        %v4168 = vperm.slane %v3160, 6
        %v4169 = vperm.slane %v3160, 7
        %v4170 = vperm.slane %v3161, 0
        %v4171 = vperm.slane %v3161, 1
        %v4172 = vperm.slane %v3161, 2
        %v4173 = vperm.slane %v3161, 3
        %v4174 = vperm.slane %v3161, 4
        %v4175 = vperm.slane %v3161, 5
        %v4176 = vperm.slane %v3161, 6
        %v4177 = vperm.slane %v3161, 7
        %v4178 = vperm.slane %v3162, 0
        %v4179 = vperm.slane %v3162, 1
        %v4180 = vperm.slane %v3162, 2
        %v4181 = vperm.slane %v3162, 3
        %v4182 = vperm.slane %v3162, 4
        %v4183 = vperm.slane %v3162, 5
        %v4184 = vperm.slane %v3162, 6
        %v4185 = vperm.slane %v3162, 7
        %v4186 = vperm.slane %v3163, 0
        %v4187 = vperm.slane %v3163, 1
        %v4188 = vperm.slane %v3163, 2
        %v4189 = vperm.slane %v3163, 3
        %v4190 = vperm.slane %v3163, 4
        %v4191 = vperm.slane %v3163, 5
        %v4192 = vperm.slane %v3163, 6
        %v4193 = vperm.slane %v3163, 7
        %v4194 = vperm.slane %v3164, 0
        %v4195 = vperm.slane %v3164, 1
        %v4196 = vperm.slane %v3164, 2
        %v4197 = vperm.slane %v3164, 3
        %v4198 = vperm.slane %v3164, 4
        %v4199 = vperm.slane %v3164, 5
        %v4200 = vperm.slane %v3164, 6
        %v4201 = vperm.slane %v3164, 7
        %v4202 = vperm.slane %v3165, 0
        %v4203 = vperm.slane %v3165, 1
        %v4204 = vperm.slane %v3165, 2
        %v4205 = vperm.slane %v3165, 3
        %v4206 = vperm.slane %v3165, 4
        %v4207 = vperm.slane %v3165, 5
        %v4208 = vperm.slane %v3165, 6
        %v4209 = vperm.slane %v3165, 7
        %v4210 = vperm.slane %v3166, 0
        %v4211 = vperm.slane %v3166, 1
        %v4212 = vperm.slane %v3166, 2
        %v4213 = vperm.slane %v3166, 3
        %v4214 = vperm.slane %v3166, 4
        %v4215 = vperm.slane %v3166, 5
        %v4216 = vperm.slane %v3166, 6
        %v4217 = vperm.slane %v3166, 7
        %v4218 = vperm.slane %v3167, 0
        %v4219 = vperm.slane %v3167, 1
        %v4220 = vperm.slane %v3167, 2
        %v4221 = vperm.slane %v3167, 3
        %v4222 = vperm.slane %v3167, 4
        %v4223 = vperm.slane %v3167, 5
        %v4224 = vperm.slane %v3167, 6
        %v4225 = vperm.slane %v3167, 7
        %v4226 = vperm.slane %v3168, 0
        %v4227 = vperm.slane %v3168, 1
        %v4228 = vperm.slane %v3168, 2
        %v4229 = vperm.slane %v3168, 3
        %v4230 = vperm.slane %v3168, 4
        %v4231 = vperm.slane %v3168, 5
        %v4232 = vperm.slane %v3168, 6
        %v4233 = vperm.slane %v3168, 7
        %v4234 = vperm.slane %v3169, 0
        %v4235 = vperm.slane %v3169, 1
        %v4236 = vperm.slane %v3169, 2
        %v4237 = vperm.slane %v3169, 3
        %v4238 = vperm.slane %v3169, 4
        %v4239 = vperm.slane %v3169, 5
        %v4240 = vperm.slane %v3169, 6
        %v4241 = vperm.slane %v3169, 7
        %v4242 = vperm.slane %v3170, 0
        %v4243 = vperm.slane %v3170, 1
        %v4244 = vperm.slane %v3170, 2
        %v4245 = vperm.slane %v3170, 3
        %v4246 = vperm.slane %v3170, 4
        %v4247 = vperm.slane %v3170, 5
        %v4248 = vperm.slane %v3170, 6
        %v4249 = vperm.slane %v3170, 7
        %v4250 = vperm.slane %v3171, 0
        %v4251 = vperm.slane %v3171, 1
        %v4252 = vperm.slane %v3171, 2
        %v4253 = vperm.slane %v3171, 3
        %v4254 = vperm.slane %v3171, 4
        %v4255 = vperm.slane %v3171, 5
        %v4256 = vperm.slane %v3171, 6
        %v4257 = vperm.slane %v3171, 7
        %v4258 = vperm.slane %v3172, 0
        %v4259 = vperm.slane %v3172, 1
        %v4260 = vperm.slane %v3172, 2
        %v4261 = vperm.slane %v3172, 3
        %v4262 = vperm.slane %v3172, 4
        %v4263 = vperm.slane %v3172, 5
        %v4264 = vperm.slane %v3172, 6
        %v4265 = vperm.slane %v3172, 7
        %v4266 = vperm.slane %v3173, 0
        %v4267 = vperm.slane %v3173, 1
        %v4268 = vperm.slane %v3173, 2
        %v4269 = vperm.slane %v3173, 3
        %v4270 = vperm.slane %v3173, 4
        %v4271 = vperm.slane %v3173, 5
        %v4272 = vperm.slane %v3173, 6
        %v4273 = vperm.slane %v3173, 7
        %v4274 = vperm.slane %v3174, 0
        %v4275 = vperm.slane %v3174, 1
        %v4276 = vperm.slane %v3174, 2
        %v4277 = vperm.slane %v3174, 3
        %v4278 = vperm.slane %v3174, 4
        %v4279 = vperm.slane %v3174, 5
        %v4280 = vperm.slane %v3174, 6
        %v4281 = vperm.slane %v3174, 7
        %v4282 = vperm.slane %v3175, 0
        %v4283 = vperm.slane %v3175, 1
        %v4284 = vperm.slane %v3175, 2
        %v4285 = vperm.slane %v3175, 3
        %v4286 = vperm.slane %v3175, 4
        %v4287 = vperm.slane %v3175, 5
        %v4288 = vperm.slane %v3175, 6
        %v4289 = vperm.slane %v3175, 7
        %v4290 = vperm.slane %v3176, 0
        %v4291 = vperm.slane %v3176, 1
        %v4292 = vperm.slane %v3176, 2
        %v4293 = vperm.slane %v3176, 3
        %v4294 = vperm.slane %v3176, 4
        %v4295 = vperm.slane %v3176, 5
        %v4296 = vperm.slane %v3176, 6
        %v4297 = vperm.slane %v3176, 7
        %v4298 = vperm.slane %v3177, 0
        %v4299 = vperm.slane %v3177, 1
        %v4300 = vperm.slane %v3177, 2
        %v4301 = vperm.slane %v3177, 3
        %v4302 = vperm.slane %v3177, 4
        %v4303 = vperm.slane %v3177, 5
        %v4304 = vperm.slane %v3177, 6
        %v4305 = vperm.slane %v3177, 7
        %v4306 = vperm.slane %v3178, 0
        %v4307 = vperm.slane %v3178, 1
        %v4308 = vperm.slane %v3178, 2
        %v4309 = vperm.slane %v3178, 3
        %v4310 = vperm.slane %v3178, 4
        %v4311 = vperm.slane %v3178, 5
        %v4312 = vperm.slane %v3178, 6
        %v4313 = vperm.slane %v3178, 7
        %v4314 = vperm.slane %v3179, 0
        %v4315 = vperm.slane %v3179, 1
        %v4316 = vperm.slane %v3179, 2
        %v4317 = vperm.slane %v3179, 3
        %v4318 = vperm.slane %v3179, 4
        %v4319 = vperm.slane %v3179, 5
        %v4320 = vperm.slane %v3179, 6
        %v4321 = vperm.slane %v3179, 7
        %v4322 = vperm.slane %v3180, 0
        %v4323 = vperm.slane %v3180, 1
        %v4324 = vperm.slane %v3180, 2
        %v4325 = vperm.slane %v3180, 3
        %v4326 = vperm.slane %v3180, 4
        %v4327 = vperm.slane %v3180, 5
        %v4328 = vperm.slane %v3180, 6
        %v4329 = vperm.slane %v3180, 7
        %v4330 = vperm.slane %v3181, 0
        %v4331 = vperm.slane %v3181, 1
        %v4332 = vperm.slane %v3181, 2
        %v4333 = vperm.slane %v3181, 3
        %v4334 = vperm.slane %v3181, 4
        %v4335 = vperm.slane %v3181, 5
        %v4336 = vperm.slane %v3181, 6
        %v4337 = vperm.slane %v3181, 7
        %v4338 = vperm.slane %v3182, 0
        %v4339 = vperm.slane %v3182, 1
        %v4340 = vperm.slane %v3182, 2
        %v4341 = vperm.slane %v3182, 3
        %v4342 = vperm.slane %v3182, 4
        %v4343 = vperm.slane %v3182, 5
        %v4344 = vperm.slane %v3182, 6
        %v4345 = vperm.slane %v3182, 7
        %v4346 = vperm.slane %v3183, 0
        %v4347 = vperm.slane %v3183, 1
        %v4348 = vperm.slane %v3183, 2
        %v4349 = vperm.slane %v3183, 3
        %v4350 = vperm.slane %v3183, 4
        %v4351 = vperm.slane %v3183, 5
        %v4352 = vperm.slane %v3183, 6
        %v4353 = vperm.slane %v3183, 7
        %v4354 = vperm.slane %v3184, 0
        %v4355 = vperm.slane %v3184, 1
        %v4356 = vperm.slane %v3184, 2
        %v4357 = vperm.slane %v3184, 3
        %v4358 = vperm.slane %v3184, 4
        %v4359 = vperm.slane %v3184, 5
        %v4360 = vperm.slane %v3184, 6
        %v4361 = vperm.slane %v3184, 7
        %v4362 = vperm.slane %v3185, 0
        %v4363 = vperm.slane %v3185, 1
        %v4364 = vperm.slane %v3185, 2
        %v4365 = vperm.slane %v3185, 3
        %v4366 = vperm.slane %v3185, 4
        %v4367 = vperm.slane %v3185, 5
        %v4368 = vperm.slane %v3185, 6
        %v4369 = vperm.slane %v3185, 7
        %v4370 = vperm.slane %v3186, 0
        %v4371 = vperm.slane %v3186, 1
        %v4372 = vperm.slane %v3186, 2
        %v4373 = vperm.slane %v3186, 3
        %v4374 = vperm.slane %v3186, 4
        %v4375 = vperm.slane %v3186, 5
        %v4376 = vperm.slane %v3186, 6
        %v4377 = vperm.slane %v3186, 7
        %v4378 = vperm.slane %v3187, 0
        %v4379 = vperm.slane %v3187, 1
        %v4380 = vperm.slane %v3187, 2
        %v4381 = vperm.slane %v3187, 3
        %v4382 = vperm.slane %v3187, 4
        %v4383 = vperm.slane %v3187, 5
        %v4384 = vperm.slane %v3187, 6
        %v4385 = vperm.slane %v3187, 7
        %v4386 = vperm.slane %v3188, 0
        %v4387 = vperm.slane %v3188, 1
        %v4388 = vperm.slane %v3188, 2
        %v4389 = vperm.slane %v3188, 3
        %v4390 = vperm.slane %v3188, 4
        %v4391 = vperm.slane %v3188, 5
        %v4392 = vperm.slane %v3188, 6
        %v4393 = vperm.slane %v3188, 7
        %v4394 = vperm.slane %v3189, 0
        %v4395 = vperm.slane %v3189, 1
        %v4396 = vperm.slane %v3189, 2
        %v4397 = vperm.slane %v3189, 3
        %v4398 = vperm.slane %v3189, 4
        %v4399 = vperm.slane %v3189, 5
        %v4400 = vperm.slane %v3189, 6
        %v4401 = vperm.slane %v3189, 7
        %v4402 = vperm.slane %v3190, 0
        %v4403 = vperm.slane %v3190, 1
        %v4404 = vperm.slane %v3190, 2
        %v4405 = vperm.slane %v3190, 3
        %v4406 = vperm.slane %v3190, 4
        %v4407 = vperm.slane %v3190, 5
        %v4408 = vperm.slane %v3190, 6
        %v4409 = vperm.slane %v3190, 7
        %v4410 = vperm.slane %v3191, 0
        %v4411 = vperm.slane %v3191, 1
        %v4412 = vperm.slane %v3191, 2
        %v4413 = vperm.slane %v3191, 3
        %v4414 = vperm.slane %v3191, 4
        %v4415 = vperm.slane %v3191, 5
        %v4416 = vperm.slane %v3191, 6
        %v4417 = vperm.slane %v3191, 7
        %v4418 = vperm.slane %v3192, 0
        %v4419 = vperm.slane %v3192, 1
        %v4420 = vperm.slane %v3192, 2
        %v4421 = vperm.slane %v3192, 3
        %v4422 = vperm.slane %v3192, 4
        %v4423 = vperm.slane %v3192, 5
        %v4424 = vperm.slane %v3192, 6
        %v4425 = vperm.slane %v3192, 7
        %v4426 = vperm.slane %v3193, 0
        %v4427 = vperm.slane %v3193, 1
        %v4428 = vperm.slane %v3193, 2
        %v4429 = vperm.slane %v3193, 3
        %v4430 = vperm.slane %v3193, 4
        %v4431 = vperm.slane %v3193, 5
        %v4432 = vperm.slane %v3193, 6
        %v4433 = vperm.slane %v3193, 7
        %v4434 = vperm.slane %v3194, 0
        %v4435 = vperm.slane %v3194, 1
        %v4436 = vperm.slane %v3194, 2
        %v4437 = vperm.slane %v3194, 3
        %v4438 = vperm.slane %v3194, 4
        %v4439 = vperm.slane %v3194, 5
        %v4440 = vperm.slane %v3194, 6
        %v4441 = vperm.slane %v3194, 7
        %v4442 = vperm.slane %v3195, 0
        %v4443 = vperm.slane %v3195, 1
        %v4444 = vperm.slane %v3195, 2
        %v4445 = vperm.slane %v3195, 3
        %v4446 = vperm.slane %v3195, 4
        %v4447 = vperm.slane %v3195, 5
        %v4448 = vperm.slane %v3195, 6
        %v4449 = vperm.slane %v3195, 7
        %v4450 = vperm.slane %v3196, 0
        %v4451 = vperm.slane %v3196, 1
        %v4452 = vperm.slane %v3196, 2
        %v4453 = vperm.slane %v3196, 3
        %v4454 = vperm.slane %v3196, 4
        %v4455 = vperm.slane %v3196, 5
        %v4456 = vperm.slane %v3196, 6
        %v4457 = vperm.slane %v3196, 7
        %v4458 = vperm.slane %v3197, 0
        %v4459 = vperm.slane %v3197, 1
        %v4460 = vperm.slane %v3197, 2
        %v4461 = vperm.slane %v3197, 3
        %v4462 = vperm.slane %v3197, 4
        %v4463 = vperm.slane %v3197, 5
        %v4464 = vperm.slane %v3197, 6
        %v4465 = vperm.slane %v3197, 7
        %v4466 = vperm.slane %v3198, 0
        %v4467 = vperm.slane %v3198, 1
        %v4468 = vperm.slane %v3198, 2
        %v4469 = vperm.slane %v3198, 3
        %v4470 = vperm.slane %v3198, 4
        %v4471 = vperm.slane %v3198, 5
        %v4472 = vperm.slane %v3198, 6
        %v4473 = vperm.slane %v3198, 7
        %v4474 = vperm.slane %v3199, 0
        %v4475 = vperm.slane %v3199, 1
        %v4476 = vperm.slane %v3199, 2
        %v4477 = vperm.slane %v3199, 3
        %v4478 = vperm.slane %v3199, 4
        %v4479 = vperm.slane %v3199, 5
        %v4480 = vperm.slane %v3199, 6
        %v4481 = vperm.slane %v3199, 7
        %v4482 = vperm.slane %v3200, 0
        %v4483 = vperm.slane %v3200, 1
        %v4484 = vperm.slane %v3200, 2
        %v4485 = vperm.slane %v3200, 3
        %v4486 = vperm.slane %v3200, 4
        %v4487 = vperm.slane %v3200, 5
        %v4488 = vperm.slane %v3200, 6
        %v4489 = vperm.slane %v3200, 7
        %v4490 = vperm.slane %v3201, 0
        %v4491 = vperm.slane %v3201, 1
        %v4492 = vperm.slane %v3201, 2
        %v4493 = vperm.slane %v3201, 3
        %v4494 = vperm.slane %v3201, 4
        %v4495 = vperm.slane %v3201, 5
        %v4496 = vperm.slane %v3201, 6
        %v4497 = vperm.slane %v3201, 7
        %v4498 = vperm.slane %v3202, 0
        %v4499 = vperm.slane %v3202, 1
        %v4500 = vperm.slane %v3202, 2
        %v4501 = vperm.slane %v3202, 3
        %v4502 = vperm.slane %v3202, 4
        %v4503 = vperm.slane %v3202, 5
        %v4504 = vperm.slane %v3202, 6
        %v4505 = vperm.slane %v3202, 7
        %v4506 = vperm.slane %v3203, 0
        %v4507 = vperm.slane %v3203, 1
        %v4508 = vperm.slane %v3203, 2
        %v4509 = vperm.slane %v3203, 3
        %v4510 = vperm.slane %v3203, 4
        %v4511 = vperm.slane %v3203, 5
        %v4512 = vperm.slane %v3203, 6
        %v4513 = vperm.slane %v3203, 7
        %v4514 = vperm.slane %v3204, 0
        %v4515 = vperm.slane %v3204, 1
        %v4516 = vperm.slane %v3204, 2
        %v4517 = vperm.slane %v3204, 3
        %v4518 = vperm.slane %v3204, 4
        %v4519 = vperm.slane %v3204, 5
        %v4520 = vperm.slane %v3204, 6
        %v4521 = vperm.slane %v3204, 7
        %v4522 = vperm.slane %v3205, 0
        %v4523 = vperm.slane %v3205, 1
        %v4524 = vperm.slane %v3205, 2
        %v4525 = vperm.slane %v3205, 3
        %v4526 = vperm.slane %v3205, 4
        %v4527 = vperm.slane %v3205, 5
        %v4528 = vperm.slane %v3205, 6
        %v4529 = vperm.slane %v3205, 7
        %v4530 = vperm.slane %v3206, 0
        %v4531 = vperm.slane %v3206, 1
        %v4532 = vperm.slane %v3206, 2
        %v4533 = vperm.slane %v3206, 3
        %v4534 = vperm.slane %v3206, 4
        %v4535 = vperm.slane %v3206, 5
        %v4536 = vperm.slane %v3206, 6
        %v4537 = vperm.slane %v3206, 7
        %v4538 = vperm.slane %v3207, 0
        %v4539 = vperm.slane %v3207, 1
        %v4540 = vperm.slane %v3207, 2
        %v4541 = vperm.slane %v3207, 3
        %v4542 = vperm.slane %v3207, 4
        %v4543 = vperm.slane %v3207, 5
        %v4544 = vperm.slane %v3207, 6
        %v4545 = vperm.slane %v3207, 7
        %v4546 = vperm.slane %v3208, 0
        %v4547 = vperm.slane %v3208, 1
        %v4548 = vperm.slane %v3208, 2
        %v4549 = vperm.slane %v3208, 3
        %v4550 = vperm.slane %v3208, 4
        %v4551 = vperm.slane %v3208, 5
        %v4552 = vperm.slane %v3208, 6
        %v4553 = vperm.slane %v3208, 7
        %v4554 = vperm.slane %v3209, 0
        %v4555 = vperm.slane %v3209, 1
        %v4556 = vperm.slane %v3209, 2
        %v4557 = vperm.slane %v3209, 3
        %v4558 = vperm.slane %v3209, 4
        %v4559 = vperm.slane %v3209, 5
        %v4560 = vperm.slane %v3209, 6
        %v4561 = vperm.slane %v3209, 7
        %v4562 = vperm.slane %v3210, 0
        %v4563 = vperm.slane %v3210, 1
        %v4564 = vperm.slane %v3210, 2
        %v4565 = vperm.slane %v3210, 3
        %v4566 = vperm.slane %v3210, 4
        %v4567 = vperm.slane %v3210, 5
        %v4568 = vperm.slane %v3210, 6
        %v4569 = vperm.slane %v3210, 7
        %v4570 = vperm.slane %v3211, 0
        %v4571 = vperm.slane %v3211, 1
        %v4572 = vperm.slane %v3211, 2
        %v4573 = vperm.slane %v3211, 3
        %v4574 = vperm.slane %v3211, 4
        %v4575 = vperm.slane %v3211, 5
        %v4576 = vperm.slane %v3211, 6
        %v4577 = vperm.slane %v3211, 7
        %v4578 = vperm.slane %v3212, 0
        %v4579 = vperm.slane %v3212, 1
        %v4580 = vperm.slane %v3212, 2
        %v4581 = vperm.slane %v3212, 3
        %v4582 = vperm.slane %v3212, 4
        %v4583 = vperm.slane %v3212, 5
        %v4584 = vperm.slane %v3212, 6
        %v4585 = vperm.slane %v3212, 7
        %v4586 = vperm.slane %v3213, 0
        %v4587 = vperm.slane %v3213, 1
        %v4588 = vperm.slane %v3213, 2
        %v4589 = vperm.slane %v3213, 3
        %v4590 = vperm.slane %v3213, 4
        %v4591 = vperm.slane %v3213, 5
        %v4592 = vperm.slane %v3213, 6
        %v4593 = vperm.slane %v3213, 7
        %v4594 = vperm.slane %v3214, 0
        %v4595 = vperm.slane %v3214, 1
        %v4596 = vperm.slane %v3214, 2
        %v4597 = vperm.slane %v3214, 3
        %v4598 = vperm.slane %v3214, 4
        %v4599 = vperm.slane %v3214, 5
        %v4600 = vperm.slane %v3214, 6
        %v4601 = vperm.slane %v3214, 7
        %v4602 = vperm.slane %v3215, 0
        %v4603 = vperm.slane %v3215, 1
        %v4604 = vperm.slane %v3215, 2
        %v4605 = vperm.slane %v3215, 3
        %v4606 = vperm.slane %v3215, 4
        %v4607 = vperm.slane %v3215, 5
        %v4608 = vperm.slane %v3215, 6
        %v4609 = vperm.slane %v3215, 7
        %v4610 = vperm.slane %v3216, 0
        %v4611 = vperm.slane %v3216, 1
        %v4612 = vperm.slane %v3216, 2
        %v4613 = vperm.slane %v3216, 3
        %v4614 = vperm.slane %v3216, 4
        %v4615 = vperm.slane %v3216, 5
        %v4616 = vperm.slane %v3216, 6
        %v4617 = vperm.slane %v3216, 7
        %v4618 = vperm.slane %v3217, 0
        %v4619 = vperm.slane %v3217, 1
        %v4620 = vperm.slane %v3217, 2
        %v4621 = vperm.slane %v3217, 3
        %v4622 = vperm.slane %v3217, 4
        %v4623 = vperm.slane %v3217, 5
        %v4624 = vperm.slane %v3217, 6
        %v4625 = vperm.slane %v3217, 7
        %v4626 = vperm.slane %v3218, 0
        %v4627 = vperm.slane %v3218, 1
        %v4628 = vperm.slane %v3218, 2
        %v4629 = vperm.slane %v3218, 3
        %v4630 = vperm.slane %v3218, 4
        %v4631 = vperm.slane %v3218, 5
        %v4632 = vperm.slane %v3218, 6
        %v4633 = vperm.slane %v3218, 7
        %v4634 = vperm.slane %v3219, 0
        %v4635 = vperm.slane %v3219, 1
        %v4636 = vperm.slane %v3219, 2
        %v4637 = vperm.slane %v3219, 3
        %v4638 = vperm.slane %v3219, 4
        %v4639 = vperm.slane %v3219, 5
        %v4640 = vperm.slane %v3219, 6
        %v4641 = vperm.slane %v3219, 7
        %v4642 = vperm.slane %v3220, 0
        %v4643 = vperm.slane %v3220, 1
        %v4644 = vperm.slane %v3220, 2
        %v4645 = vperm.slane %v3220, 3
        %v4646 = vperm.slane %v3220, 4
        %v4647 = vperm.slane %v3220, 5
        %v4648 = vperm.slane %v3220, 6
        %v4649 = vperm.slane %v3220, 7
        %v4650 = vperm.slane %v3221, 0
        %v4651 = vperm.slane %v3221, 1
        %v4652 = vperm.slane %v3221, 2
        %v4653 = vperm.slane %v3221, 3
        %v4654 = vperm.slane %v3221, 4
        %v4655 = vperm.slane %v3221, 5
        %v4656 = vperm.slane %v3221, 6
        %v4657 = vperm.slane %v3221, 7
        %v4658 = vperm.slane %v3222, 0
        %v4659 = vperm.slane %v3222, 1
        %v4660 = vperm.slane %v3222, 2
        %v4661 = vperm.slane %v3222, 3
        %v4662 = vperm.slane %v3222, 4
        %v4663 = vperm.slane %v3222, 5
        %v4664 = vperm.slane %v3222, 6
        %v4665 = vperm.slane %v3222, 7
        %v4666 = vperm.slane %v3223, 0
        %v4667 = vperm.slane %v3223, 1
        %v4668 = vperm.slane %v3223, 2
        %v4669 = vperm.slane %v3223, 3
        %v4670 = vperm.slane %v3223, 4
        %v4671 = vperm.slane %v3223, 5
        %v4672 = vperm.slane %v3223, 6
        %v4673 = vperm.slane %v3223, 7
        %v4674 = vperm.slane %v3224, 0
        %v4675 = vperm.slane %v3224, 1
        %v4676 = vperm.slane %v3224, 2
        %v4677 = vperm.slane %v3224, 3
        %v4678 = vperm.slane %v3224, 4
        %v4679 = vperm.slane %v3224, 5
        %v4680 = vperm.slane %v3224, 6
        %v4681 = vperm.slane %v3224, 7
        %v4682 = vperm.slane %v3225, 0
        %v4683 = vperm.slane %v3225, 1
        %v4684 = vperm.slane %v3225, 2
        %v4685 = vperm.slane %v3225, 3
        %v4686 = vperm.slane %v3225, 4
        %v4687 = vperm.slane %v3225, 5
        %v4688 = vperm.slane %v3225, 6
        %v4689 = vperm.slane %v3225, 7
        %v4690 = vperm.slane %v3226, 0
        %v4691 = vperm.slane %v3226, 1
        %v4692 = vperm.slane %v3226, 2
        %v4693 = vperm.slane %v3226, 3
        %v4694 = vperm.slane %v3226, 4
        %v4695 = vperm.slane %v3226, 5
        %v4696 = vperm.slane %v3226, 6
        %v4697 = vperm.slane %v3226, 7
        %v4698 = vperm.slane %v3227, 0
        %v4699 = vperm.slane %v3227, 1
        %v4700 = vperm.slane %v3227, 2
        %v4701 = vperm.slane %v3227, 3
        %v4702 = vperm.slane %v3227, 4
        %v4703 = vperm.slane %v3227, 5
        %v4704 = vperm.slane %v3227, 6
        %v4705 = vperm.slane %v3227, 7
        %v4706 = vperm.slane %v3228, 0
        %v4707 = vperm.slane %v3228, 1
        %v4708 = vperm.slane %v3228, 2
        %v4709 = vperm.slane %v3228, 3
        %v4710 = vperm.slane %v3228, 4
        %v4711 = vperm.slane %v3228, 5
        %v4712 = vperm.slane %v3228, 6
        %v4713 = vperm.slane %v3228, 7
        %v4714 = vperm.slane %v3229, 0
        %v4715 = vperm.slane %v3229, 1
        %v4716 = vperm.slane %v3229, 2
        %v4717 = vperm.slane %v3229, 3
        %v4718 = vperm.slane %v3229, 4
        %v4719 = vperm.slane %v3229, 5
        %v4720 = vperm.slane %v3229, 6
        %v4721 = vperm.slane %v3229, 7
        %v4722 = vperm.slane %v3230, 0
        %v4723 = vperm.slane %v3230, 1
        %v4724 = vperm.slane %v3230, 2
        %v4725 = vperm.slane %v3230, 3
        %v4726 = vperm.slane %v3230, 4
        %v4727 = vperm.slane %v3230, 5
        %v4728 = vperm.slane %v3230, 6
        %v4729 = vperm.slane %v3230, 7
        %v4730 = vperm.slane %v3231, 0
        %v4731 = vperm.slane %v3231, 1
        %v4732 = vperm.slane %v3231, 2
        %v4733 = vperm.slane %v3231, 3
        %v4734 = vperm.slane %v3231, 4
        %v4735 = vperm.slane %v3231, 5
        %v4736 = vperm.slane %v3231, 6
        %v4737 = vperm.slane %v3231, 7
        %v4738 = vperm.slane %v3232, 0
        %v4739 = vperm.slane %v3232, 1
        %v4740 = vperm.slane %v3232, 2
        %v4741 = vperm.slane %v3232, 3
        %v4742 = vperm.slane %v3232, 4
        %v4743 = vperm.slane %v3232, 5
        %v4744 = vperm.slane %v3232, 6
        %v4745 = vperm.slane %v3232, 7
        %v4746 = vperm.slane %v3233, 0
        %v4747 = vperm.slane %v3233, 1
        %v4748 = vperm.slane %v3233, 2
        %v4749 = vperm.slane %v3233, 3
        %v4750 = vperm.slane %v3233, 4
        %v4751 = vperm.slane %v3233, 5
        %v4752 = vperm.slane %v3233, 6
        %v4753 = vperm.slane %v3233, 7
        %v4754 = vperm.slane %v3234, 0
        %v4755 = vperm.slane %v3234, 1
        %v4756 = vperm.slane %v3234, 2
        %v4757 = vperm.slane %v3234, 3
        %v4758 = vperm.slane %v3234, 4
        %v4759 = vperm.slane %v3234, 5
        %v4760 = vperm.slane %v3234, 6
        %v4761 = vperm.slane %v3234, 7
        %v4762 = vperm.slane %v3235, 0
        %v4763 = vperm.slane %v3235, 1
        %v4764 = vperm.slane %v3235, 2
        %v4765 = vperm.slane %v3235, 3
        %v4766 = vperm.slane %v3235, 4
        %v4767 = vperm.slane %v3235, 5
        %v4768 = vperm.slane %v3235, 6
        %v4769 = vperm.slane %v3235, 7
        %v4770 = vperm.slane %v3236, 0
        %v4771 = vperm.slane %v3236, 1
        %v4772 = vperm.slane %v3236, 2
        %v4773 = vperm.slane %v3236, 3
        %v4774 = vperm.slane %v3236, 4
        %v4775 = vperm.slane %v3236, 5
        %v4776 = vperm.slane %v3236, 6
        %v4777 = vperm.slane %v3236, 7
        %v4778 = vperm.slane %v3237, 0
        %v4779 = vperm.slane %v3237, 1
        %v4780 = vperm.slane %v3237, 2
        %v4781 = vperm.slane %v3237, 3
        %v4782 = vperm.slane %v3237, 4
        %v4783 = vperm.slane %v3237, 5
        %v4784 = vperm.slane %v3237, 6
        %v4785 = vperm.slane %v3237, 7
        %v4786 = vperm.slane %v3238, 0
        %v4787 = vperm.slane %v3238, 1
        %v4788 = vperm.slane %v3238, 2
        %v4789 = vperm.slane %v3238, 3
        %v4790 = vperm.slane %v3238, 4
        %v4791 = vperm.slane %v3238, 5
        %v4792 = vperm.slane %v3238, 6
        %v4793 = vperm.slane %v3238, 7
        %v4794 = vperm.slane %v3239, 0
        %v4795 = vperm.slane %v3239, 1
        %v4796 = vperm.slane %v3239, 2
        %v4797 = vperm.slane %v3239, 3
        %v4798 = vperm.slane %v3239, 4
        %v4799 = vperm.slane %v3239, 5
        %v4800 = vperm.slane %v3239, 6
        %v4801 = vperm.slane %v3239, 7
        %v4802 = vperm.slane %v3240, 0
        %v4803 = vperm.slane %v3240, 1
        %v4804 = vperm.slane %v3240, 2
        %v4805 = vperm.slane %v3240, 3
        %v4806 = vperm.slane %v3240, 4
        %v4807 = vperm.slane %v3240, 5
        %v4808 = vperm.slane %v3240, 6
        %v4809 = vperm.slane %v3240, 7
        %v4810 = vperm.slane %v3241, 0
        %v4811 = vperm.slane %v3241, 1
        %v4812 = vperm.slane %v3241, 2
        %v4813 = vperm.slane %v3241, 3
        %v4814 = vperm.slane %v3241, 4
        %v4815 = vperm.slane %v3241, 5
        %v4816 = vperm.slane %v3241, 6
        %v4817 = vperm.slane %v3241, 7
        %v4818 = vperm.slane %v3242, 0
        %v4819 = vperm.slane %v3242, 1
        %v4820 = vperm.slane %v3242, 2
        %v4821 = vperm.slane %v3242, 3
        %v4822 = vperm.slane %v3242, 4
        %v4823 = vperm.slane %v3242, 5
        %v4824 = vperm.slane %v3242, 6
        %v4825 = vperm.slane %v3242, 7
        %v4826 = vperm.slane %v3243, 0
        %v4827 = vperm.slane %v3243, 1
        %v4828 = vperm.slane %v3243, 2
        %v4829 = vperm.slane %v3243, 3
        %v4830 = vperm.slane %v3243, 4
        %v4831 = vperm.slane %v3243, 5
        %v4832 = vperm.slane %v3243, 6
        %v4833 = vperm.slane %v3243, 7
        %v4834 = vperm.slane %v3244, 0
        %v4835 = vperm.slane %v3244, 1
        %v4836 = vperm.slane %v3244, 2
        %v4837 = vperm.slane %v3244, 3
        %v4838 = vperm.slane %v3244, 4
        %v4839 = vperm.slane %v3244, 5
        %v4840 = vperm.slane %v3244, 6
        %v4841 = vperm.slane %v3244, 7
        %v4842 = vperm.slane %v3245, 0
        %v4843 = vperm.slane %v3245, 1
        %v4844 = vperm.slane %v3245, 2
        %v4845 = vperm.slane %v3245, 3
        %v4846 = vperm.slane %v3245, 4
        %v4847 = vperm.slane %v3245, 5
        %v4848 = vperm.slane %v3245, 6
        %v4849 = vperm.slane %v3245, 7
        %v4850 = vperm.slane %v3246, 0
        %v4851 = vperm.slane %v3246, 1
        %v4852 = vperm.slane %v3246, 2
        %v4853 = vperm.slane %v3246, 3
        %v4854 = vperm.slane %v3246, 4
        %v4855 = vperm.slane %v3246, 5
        %v4856 = vperm.slane %v3246, 6
        %v4857 = vperm.slane %v3246, 7
        %v4858 = vperm.slane %v3247, 0
        %v4859 = vperm.slane %v3247, 1
        %v4860 = vperm.slane %v3247, 2
        %v4861 = vperm.slane %v3247, 3
        %v4862 = vperm.slane %v3247, 4
        %v4863 = vperm.slane %v3247, 5
        %v4864 = vperm.slane %v3247, 6
        %v4865 = vperm.slane %v3247, 7
        %v4866 = vperm.slane %v3248, 0
        %v4867 = vperm.slane %v3248, 1
        %v4868 = vperm.slane %v3248, 2
        %v4869 = vperm.slane %v3248, 3
        %v4870 = vperm.slane %v3248, 4
        %v4871 = vperm.slane %v3248, 5
        %v4872 = vperm.slane %v3248, 6
        %v4873 = vperm.slane %v3248, 7
        %v4874 = vperm.slane %v3249, 0
        %v4875 = vperm.slane %v3249, 1
        %v4876 = vperm.slane %v3249, 2
        %v4877 = vperm.slane %v3249, 3
        %v4878 = vperm.slane %v3249, 4
        %v4879 = vperm.slane %v3249, 5
        %v4880 = vperm.slane %v3249, 6
        %v4881 = vperm.slane %v3249, 7
        %v4882 = vperm.slane %v3250, 0
        %v4883 = vperm.slane %v3250, 1
        %v4884 = vperm.slane %v3250, 2
        %v4885 = vperm.slane %v3250, 3
        %v4886 = vperm.slane %v3250, 4
        %v4887 = vperm.slane %v3250, 5
        %v4888 = vperm.slane %v3250, 6
        %v4889 = vperm.slane %v3250, 7
        %v4890 = vperm.slane %v3251, 0
        %v4891 = vperm.slane %v3251, 1
        %v4892 = vperm.slane %v3251, 2
        %v4893 = vperm.slane %v3251, 3
        %v4894 = vperm.slane %v3251, 4
        %v4895 = vperm.slane %v3251, 5
        %v4896 = vperm.slane %v3251, 6
        %v4897 = vperm.slane %v3251, 7
        %v4898 = vperm.slane %v3252, 0
        %v4899 = vperm.slane %v3252, 1
        %v4900 = vperm.slane %v3252, 2
        %v4901 = vperm.slane %v3252, 3
        %v4902 = vperm.slane %v3252, 4
        %v4903 = vperm.slane %v3252, 5
        %v4904 = vperm.slane %v3252, 6
        %v4905 = vperm.slane %v3252, 7
        %v4906 = vperm.slane %v3253, 0
        %v4907 = vperm.slane %v3253, 1
        %v4908 = vperm.slane %v3253, 2
        %v4909 = vperm.slane %v3253, 3
        %v4910 = vperm.slane %v3253, 4
        %v4911 = vperm.slane %v3253, 5
        %v4912 = vperm.slane %v3253, 6
        %v4913 = vperm.slane %v3253, 7
        %v4914 = vperm.slane %v3254, 0
        %v4915 = vperm.slane %v3254, 1
        %v4916 = vperm.slane %v3254, 2
        %v4917 = vperm.slane %v3254, 3
        %v4918 = vperm.slane %v3254, 4
        %v4919 = vperm.slane %v3254, 5
        %v4920 = vperm.slane %v3254, 6
        %v4921 = vperm.slane %v3254, 7
        %v4922 = vperm.slane %v3255, 0
        %v4923 = vperm.slane %v3255, 1
        %v4924 = vperm.slane %v3255, 2
        %v4925 = vperm.slane %v3255, 3
        %v4926 = vperm.slane %v3255, 4
        %v4927 = vperm.slane %v3255, 5
        %v4928 = vperm.slane %v3255, 6
        %v4929 = vperm.slane %v3255, 7
        %v4930 = vperm.slane %v3256, 0
        %v4931 = vperm.slane %v3256, 1
        %v4932 = vperm.slane %v3256, 2
        %v4933 = vperm.slane %v3256, 3
        %v4934 = vperm.slane %v3256, 4
        %v4935 = vperm.slane %v3256, 5
        %v4936 = vperm.slane %v3256, 6
        %v4937 = vperm.slane %v3256, 7
        %v4938 = vperm.slane %v3257, 0
        %v4939 = vperm.slane %v3257, 1
        %v4940 = vperm.slane %v3257, 2
        %v4941 = vperm.slane %v3257, 3
        %v4942 = vperm.slane %v3257, 4
        %v4943 = vperm.slane %v3257, 5
        %v4944 = vperm.slane %v3257, 6
        %v4945 = vperm.slane %v3257, 7
        %v4946 = vperm.slane %v3258, 0
        %v4947 = vperm.slane %v3258, 1
        %v4948 = vperm.slane %v3258, 2
        %v4949 = vperm.slane %v3258, 3
        %v4950 = vperm.slane %v3258, 4
        %v4951 = vperm.slane %v3258, 5
        %v4952 = vperm.slane %v3258, 6
        %v4953 = vperm.slane %v3258, 7
        %v4954 = vperm.slane %v3259, 0
        %v4955 = vperm.slane %v3259, 1
        %v4956 = vperm.slane %v3259, 2
        %v4957 = vperm.slane %v3259, 3
        %v4958 = vperm.slane %v3259, 4
        %v4959 = vperm.slane %v3259, 5
        %v4960 = vperm.slane %v3259, 6
        %v4961 = vperm.slane %v3259, 7
        %v4962 = vperm.slane %v3260, 0
        %v4963 = vperm.slane %v3260, 1
        %v4964 = vperm.slane %v3260, 2
        %v4965 = vperm.slane %v3260, 3
        %v4966 = vperm.slane %v3260, 4
        %v4967 = vperm.slane %v3260, 5
        %v4968 = vperm.slane %v3260, 6
        %v4969 = vperm.slane %v3260, 7
        %v4970 = vperm.slane %v3261, 0
        %v4971 = vperm.slane %v3261, 1
        %v4972 = vperm.slane %v3261, 2
        %v4973 = vperm.slane %v3261, 3
        %v4974 = vperm.slane %v3261, 4
        %v4975 = vperm.slane %v3261, 5
        %v4976 = vperm.slane %v3261, 6
        %v4977 = vperm.slane %v3261, 7
        %v4978 = vperm.slane %v3262, 0
        %v4979 = vperm.slane %v3262, 1
        %v4980 = vperm.slane %v3262, 2
        %v4981 = vperm.slane %v3262, 3
        %v4982 = vperm.slane %v3262, 4
        %v4983 = vperm.slane %v3262, 5
        %v4984 = vperm.slane %v3262, 6
        %v4985 = vperm.slane %v3262, 7
        %v4986 = vperm.slane %v3263, 0
        %v4987 = vperm.slane %v3263, 1
        %v4988 = vperm.slane %v3263, 2
        %v4989 = vperm.slane %v3263, 3
        %v4990 = vperm.slane %v3263, 4
        %v4991 = vperm.slane %v3263, 5
        %v4992 = vperm.slane %v3263, 6
        %v4993 = vperm.slane %v3263, 7
        %v4994 = vperm.slane %v3264, 0
        %v4995 = vperm.slane %v3264, 1
        %v4996 = vperm.slane %v3264, 2
        %v4997 = vperm.slane %v3264, 3
        %v4998 = vperm.slane %v3264, 4
        %v4999 = vperm.slane %v3264, 5
        %v5000 = vperm.slane %v3264, 6
        %v5001 = vperm.slane %v3264, 7
        %v5002 = vperm.slane %v3265, 0
        %v5003 = vperm.slane %v3265, 1
        %v5004 = vperm.slane %v3265, 2
        %v5005 = vperm.slane %v3265, 3
        %v5006 = vperm.slane %v3265, 4
        %v5007 = vperm.slane %v3265, 5
        %v5008 = vperm.slane %v3265, 6
        %v5009 = vperm.slane %v3265, 7
        %v5010 = vperm.slane %v3266, 0
        %v5011 = vperm.slane %v3266, 1
        %v5012 = vperm.slane %v3266, 2
        %v5013 = vperm.slane %v3266, 3
        %v5014 = vperm.slane %v3266, 4
        %v5015 = vperm.slane %v3266, 5
        %v5016 = vperm.slane %v3266, 6
        %v5017 = vperm.slane %v3266, 7
        %v5018 = vperm.slane %v3267, 0
        %v5019 = vperm.slane %v3267, 1
        %v5020 = vperm.slane %v3267, 2
        %v5021 = vperm.slane %v3267, 3
        %v5022 = vperm.slane %v3267, 4
        %v5023 = vperm.slane %v3267, 5
        %v5024 = vperm.slane %v3267, 6
        %v5025 = vperm.slane %v3267, 7
        %v5026 = vperm.slane %v3268, 0
        %v5027 = vperm.slane %v3268, 1
        %v5028 = vperm.slane %v3268, 2
        %v5029 = vperm.slane %v3268, 3
        %v5030 = vperm.slane %v3268, 4
        %v5031 = vperm.slane %v3268, 5
        %v5032 = vperm.slane %v3268, 6
        %v5033 = vperm.slane %v3268, 7
        %v5034 = vperm.slane %v3269, 0
        %v5035 = vperm.slane %v3269, 1
        %v5036 = vperm.slane %v3269, 2
        %v5037 = vperm.slane %v3269, 3
        %v5038 = vperm.slane %v3269, 4
        %v5039 = vperm.slane %v3269, 5
        %v5040 = vperm.slane %v3269, 6
        %v5041 = vperm.slane %v3269, 7
        %v5042 = vperm.slane %v3270, 0
        %v5043 = vperm.slane %v3270, 1
        %v5044 = vperm.slane %v3270, 2
        %v5045 = vperm.slane %v3270, 3
        %v5046 = vperm.slane %v3270, 4
        %v5047 = vperm.slane %v3270, 5
        %v5048 = vperm.slane %v3270, 6
        %v5049 = vperm.slane %v3270, 7
        %v5050 = vperm.slane %v3271, 0
        %v5051 = vperm.slane %v3271, 1
        %v5052 = vperm.slane %v3271, 2
        %v5053 = vperm.slane %v3271, 3
        %v5054 = vperm.slane %v3271, 4
        %v5055 = vperm.slane %v3271, 5
        %v5056 = vperm.slane %v3271, 6
        %v5057 = vperm.slane %v3271, 7
        %v5058 = vperm.slane %v3272, 0
        %v5059 = vperm.slane %v3272, 1
        %v5060 = vperm.slane %v3272, 2
        %v5061 = vperm.slane %v3272, 3
        %v5062 = vperm.slane %v3272, 4
        %v5063 = vperm.slane %v3272, 5
        %v5064 = vperm.slane %v3272, 6
        %v5065 = vperm.slane %v3272, 7
        %v5066 = vperm.slane %v3273, 0
        %v5067 = vperm.slane %v3273, 1
        %v5068 = vperm.slane %v3273, 2
        %v5069 = vperm.slane %v3273, 3
        %v5070 = vperm.slane %v3273, 4
        %v5071 = vperm.slane %v3273, 5
        %v5072 = vperm.slane %v3273, 6
        %v5073 = vperm.slane %v3273, 7
        %v5074 = vperm.slane %v3274, 0
        %v5075 = vperm.slane %v3274, 1
        %v5076 = vperm.slane %v3274, 2
        %v5077 = vperm.slane %v3274, 3
        %v5078 = vperm.slane %v3274, 4
        %v5079 = vperm.slane %v3274, 5
        %v5080 = vperm.slane %v3274, 6
        %v5081 = vperm.slane %v3274, 7
        %v5082 = vperm.slane %v3275, 0
        %v5083 = vperm.slane %v3275, 1
        %v5084 = vperm.slane %v3275, 2
        %v5085 = vperm.slane %v3275, 3
        %v5086 = vperm.slane %v3275, 4
        %v5087 = vperm.slane %v3275, 5
        %v5088 = vperm.slane %v3275, 6
        %v5089 = vperm.slane %v3275, 7
        %v5090 = vperm.slane %v3276, 0
        %v5091 = vperm.slane %v3276, 1
        %v5092 = vperm.slane %v3276, 2
        %v5093 = vperm.slane %v3276, 3
        %v5094 = vperm.slane %v3276, 4
        %v5095 = vperm.slane %v3276, 5
        %v5096 = vperm.slane %v3276, 6
        %v5097 = vperm.slane %v3276, 7
        %v5098 = vperm.slane %v3277, 0
        %v5099 = vperm.slane %v3277, 1
        %v5100 = vperm.slane %v3277, 2
        %v5101 = vperm.slane %v3277, 3
        %v5102 = vperm.slane %v3277, 4
        %v5103 = vperm.slane %v3277, 5
        %v5104 = vperm.slane %v3277, 6
        %v5105 = vperm.slane %v3277, 7
        %v5106 = vperm.slane %v3278, 0
        %v5107 = vperm.slane %v3278, 1
        %v5108 = vperm.slane %v3278, 2
        %v5109 = vperm.slane %v3278, 3
        %v5110 = vperm.slane %v3278, 4
        %v5111 = vperm.slane %v3278, 5
        %v5112 = vperm.slane %v3278, 6
        %v5113 = vperm.slane %v3278, 7
        %v5114 = vperm.slane %v3279, 0
        %v5115 = vperm.slane %v3279, 1
        %v5116 = vperm.slane %v3279, 2
        %v5117 = vperm.slane %v3279, 3
        %v5118 = vperm.slane %v3279, 4
        %v5119 = vperm.slane %v3279, 5
        %v5120 = vperm.slane %v3279, 6
        %v5121 = vperm.slane %v3279, 7
        %v5122 = vperm.slane %v3280, 0
        %v5123 = vperm.slane %v3280, 1
        %v5124 = vperm.slane %v3280, 2
        %v5125 = vperm.slane %v3280, 3
        %v5126 = vperm.slane %v3280, 4
        %v5127 = vperm.slane %v3280, 5
        %v5128 = vperm.slane %v3280, 6
        %v5129 = vperm.slane %v3280, 7
        %v5130 = vperm.slane %v3281, 0
        %v5131 = vperm.slane %v3281, 1
        %v5132 = vperm.slane %v3281, 2
        %v5133 = vperm.slane %v3281, 3
        %v5134 = vperm.slane %v3281, 4
        %v5135 = vperm.slane %v3281, 5
        %v5136 = vperm.slane %v3281, 6
        %v5137 = vperm.slane %v3281, 7
        %v5138 = vperm.slane %v3282, 0
        %v5139 = vperm.slane %v3282, 1
        %v5140 = vperm.slane %v3282, 2
        %v5141 = vperm.slane %v3282, 3
        %v5142 = vperm.slane %v3282, 4
        %v5143 = vperm.slane %v3282, 5
        %v5144 = vperm.slane %v3282, 6
        %v5145 = vperm.slane %v3282, 7
        %v5146 = vperm.slane %v3283, 0
        %v5147 = vperm.slane %v3283, 1
        %v5148 = vperm.slane %v3283, 2
        %v5149 = vperm.slane %v3283, 3
        %v5150 = vperm.slane %v3283, 4
        %v5151 = vperm.slane %v3283, 5
        %v5152 = vperm.slane %v3283, 6
        %v5153 = vperm.slane %v3283, 7
        %v5154 = vperm.slane %v3284, 0
        %v5155 = vperm.slane %v3284, 1
        %v5156 = vperm.slane %v3284, 2
        %v5157 = vperm.slane %v3284, 3
        %v5158 = vperm.slane %v3284, 4
        %v5159 = vperm.slane %v3284, 5
        %v5160 = vperm.slane %v3284, 6
        %v5161 = vperm.slane %v3284, 7
        %v5162 = vperm.slane %v3285, 0
        %v5163 = vperm.slane %v3285, 1
        %v5164 = vperm.slane %v3285, 2
        %v5165 = vperm.slane %v3285, 3
        %v5166 = vperm.slane %v3285, 4
        %v5167 = vperm.slane %v3285, 5
        %v5168 = vperm.slane %v3285, 6
        %v5169 = vperm.slane %v3285, 7
        %v5170 = vperm.slane %v3286, 0
        %v5171 = vperm.slane %v3286, 1
        %v5172 = vperm.slane %v3286, 2
        %v5173 = vperm.slane %v3286, 3
        %v5174 = vperm.slane %v3286, 4
        %v5175 = vperm.slane %v3286, 5
        %v5176 = vperm.slane %v3286, 6
        %v5177 = vperm.slane %v3286, 7
        %v5178 = vperm.slane %v3287, 0
        %v5179 = vperm.slane %v3287, 1
        %v5180 = vperm.slane %v3287, 2
        %v5181 = vperm.slane %v3287, 3
        %v5182 = vperm.slane %v3287, 4
        %v5183 = vperm.slane %v3287, 5
        %v5184 = vperm.slane %v3287, 6
        %v5185 = vperm.slane %v3287, 7
        %v5186 = vperm.slane %v3288, 0
        %v5187 = vperm.slane %v3288, 1
        %v5188 = vperm.slane %v3288, 2
        %v5189 = vperm.slane %v3288, 3
        %v5190 = vperm.slane %v3288, 4
        %v5191 = vperm.slane %v3288, 5
        %v5192 = vperm.slane %v3288, 6
        %v5193 = vperm.slane %v3288, 7
        %v5194 = vperm.slane %v3289, 0
        %v5195 = vperm.slane %v3289, 1
        %v5196 = vperm.slane %v3289, 2
        %v5197 = vperm.slane %v3289, 3
        %v5198 = vperm.slane %v3289, 4
        %v5199 = vperm.slane %v3289, 5
        %v5200 = vperm.slane %v3289, 6
        %v5201 = vperm.slane %v3289, 7
        %v5202 = vperm.slane %v3290, 0
        %v5203 = vperm.slane %v3290, 1
        %v5204 = vperm.slane %v3290, 2
        %v5205 = vperm.slane %v3290, 3
        %v5206 = vperm.slane %v3290, 4
        %v5207 = vperm.slane %v3290, 5
        %v5208 = vperm.slane %v3290, 6
        %v5209 = vperm.slane %v3290, 7
        %v5210 = vperm.slane %v3291, 0
        %v5211 = vperm.slane %v3291, 1
        %v5212 = vperm.slane %v3291, 2
        %v5213 = vperm.slane %v3291, 3
        %v5214 = vperm.slane %v3291, 4
        %v5215 = vperm.slane %v3291, 5
        %v5216 = vperm.slane %v3291, 6
        %v5217 = vperm.slane %v3291, 7
        %v5218 = vperm.slane %v3292, 0
        %v5219 = vperm.slane %v3292, 1
        %v5220 = vperm.slane %v3292, 2
        %v5221 = vperm.slane %v3292, 3
        %v5222 = vperm.slane %v3292, 4
        %v5223 = vperm.slane %v3292, 5
        %v5224 = vperm.slane %v3292, 6
        %v5225 = vperm.slane %v3292, 7
        %v5226 = vperm.slane %v3293, 0
        %v5227 = vperm.slane %v3293, 1
        %v5228 = vperm.slane %v3293, 2
        %v5229 = vperm.slane %v3293, 3
        %v5230 = vperm.slane %v3293, 4
        %v5231 = vperm.slane %v3293, 5
        %v5232 = vperm.slane %v3293, 6
        %v5233 = vperm.slane %v3293, 7
        %v5234 = vperm.slane %v3294, 0
        %v5235 = vperm.slane %v3294, 1
        %v5236 = vperm.slane %v3294, 2
        %v5237 = vperm.slane %v3294, 3
        %v5238 = vperm.slane %v3294, 4
        %v5239 = vperm.slane %v3294, 5
        %v5240 = vperm.slane %v3294, 6
        %v5241 = vperm.slane %v3294, 7
        %v5242 = vperm.slane %v3295, 0
        %v5243 = vperm.slane %v3295, 1
        %v5244 = vperm.slane %v3295, 2
        %v5245 = vperm.slane %v3295, 3
        %v5246 = vperm.slane %v3295, 4
        %v5247 = vperm.slane %v3295, 5
        %v5248 = vperm.slane %v3295, 6
        %v5249 = vperm.slane %v3295, 7
        %v5250 = vperm.slane %v3296, 0
        %v5251 = vperm.slane %v3296, 1
        %v5252 = vperm.slane %v3296, 2
        %v5253 = vperm.slane %v3296, 3
        %v5254 = vperm.slane %v3296, 4
        %v5255 = vperm.slane %v3296, 5
        %v5256 = vperm.slane %v3296, 6
        %v5257 = vperm.slane %v3296, 7
        %v5258 = vperm.slane %v3297, 0
        %v5259 = vperm.slane %v3297, 1
        %v5260 = vperm.slane %v3297, 2
        %v5261 = vperm.slane %v3297, 3
        %v5262 = vperm.slane %v3297, 4
        %v5263 = vperm.slane %v3297, 5
        %v5264 = vperm.slane %v3297, 6
        %v5265 = vperm.slane %v3297, 7
        %v5266 = vperm.slane %v3298, 0
        %v5267 = vperm.slane %v3298, 1
        %v5268 = vperm.slane %v3298, 2
        %v5269 = vperm.slane %v3298, 3
        %v5270 = vperm.slane %v3298, 4
        %v5271 = vperm.slane %v3298, 5
        %v5272 = vperm.slane %v3298, 6
        %v5273 = vperm.slane %v3298, 7
        %v5274 = vperm.slane %v3299, 0
        %v5275 = vperm.slane %v3299, 1
        %v5276 = vperm.slane %v3299, 2
        %v5277 = vperm.slane %v3299, 3
        %v5278 = vperm.slane %v3299, 4
        %v5279 = vperm.slane %v3299, 5
        %v5280 = vperm.slane %v3299, 6
        %v5281 = vperm.slane %v3299, 7
        %v5282 = vperm.slane %v3300, 0
        %v5283 = vperm.slane %v3300, 1
        %v5284 = vperm.slane %v3300, 2
        %v5285 = vperm.slane %v3300, 3
        %v5286 = vperm.slane %v3300, 4
        %v5287 = vperm.slane %v3300, 5
        %v5288 = vperm.slane %v3300, 6
        %v5289 = vperm.slane %v3300, 7
        %v5290 = vperm.slane %v3301, 0
        %v5291 = vperm.slane %v3301, 1
        %v5292 = vperm.slane %v3301, 2
        %v5293 = vperm.slane %v3301, 3
        %v5294 = vperm.slane %v3301, 4
        %v5295 = vperm.slane %v3301, 5
        %v5296 = vperm.slane %v3301, 6
        %v5297 = vperm.slane %v3301, 7
        %v5298 = vperm.slane %v3302, 0
        %v5299 = vperm.slane %v3302, 1
        %v5300 = vperm.slane %v3302, 2
        %v5301 = vperm.slane %v3302, 3
        %v5302 = vperm.slane %v3302, 4
        %v5303 = vperm.slane %v3302, 5
        %v5304 = vperm.slane %v3302, 6
        %v5305 = vperm.slane %v3302, 7
        %v5306 = vperm.slane %v3303, 0
        %v5307 = vperm.slane %v3303, 1
        %v5308 = vperm.slane %v3303, 2
        %v5309 = vperm.slane %v3303, 3
        %v5310 = vperm.slane %v3303, 4
        %v5311 = vperm.slane %v3303, 5
        %v5312 = vperm.slane %v3303, 6
        %v5313 = vperm.slane %v3303, 7
        %v5314 = vperm.slane %v3304, 0
        %v5315 = vperm.slane %v3304, 1
        %v5316 = vperm.slane %v3304, 2
        %v5317 = vperm.slane %v3304, 3
        %v5318 = vperm.slane %v3304, 4
        %v5319 = vperm.slane %v3304, 5
        %v5320 = vperm.slane %v3304, 6
        %v5321 = vperm.slane %v3304, 7
        %v5322 = vperm.slane %v3305, 0
        %v5323 = vperm.slane %v3305, 1
        %v5324 = vperm.slane %v3305, 2
        %v5325 = vperm.slane %v3305, 3
        %v5326 = vperm.slane %v3305, 4
        %v5327 = vperm.slane %v3305, 5
        %v5328 = vperm.slane %v3305, 6
        %v5329 = vperm.slane %v3305, 7
        %v5330 = vperm.slane %v3306, 0
        %v5331 = vperm.slane %v3306, 1
        %v5332 = vperm.slane %v3306, 2
        %v5333 = vperm.slane %v3306, 3
        %v5334 = vperm.slane %v3306, 4
        %v5335 = vperm.slane %v3306, 5
        %v5336 = vperm.slane %v3306, 6
        %v5337 = vperm.slane %v3306, 7
        %v5338 = vperm.slane %v3307, 0
        %v5339 = vperm.slane %v3307, 1
        %v5340 = vperm.slane %v3307, 2
        %v5341 = vperm.slane %v3307, 3
        %v5342 = vperm.slane %v3307, 4
        %v5343 = vperm.slane %v3307, 5
        %v5344 = vperm.slane %v3307, 6
        %v5345 = vperm.slane %v3307, 7
        %v5346 = vperm.slane %v3308, 0
        %v5347 = vperm.slane %v3308, 1
        %v5348 = vperm.slane %v3308, 2
        %v5349 = vperm.slane %v3308, 3
        %v5350 = vperm.slane %v3308, 4
        %v5351 = vperm.slane %v3308, 5
        %v5352 = vperm.slane %v3308, 6
        %v5353 = vperm.slane %v3308, 7
        %v5354 = vperm.slane %v3309, 0
        %v5355 = vperm.slane %v3309, 1
        %v5356 = vperm.slane %v3309, 2
        %v5357 = vperm.slane %v3309, 3
        %v5358 = vperm.slane %v3309, 4
        %v5359 = vperm.slane %v3309, 5
        %v5360 = vperm.slane %v3309, 6
        %v5361 = vperm.slane %v3309, 7
        %v5362 = vperm.slane %v3310, 0
        %v5363 = vperm.slane %v3310, 1
        %v5364 = vperm.slane %v3310, 2
        %v5365 = vperm.slane %v3310, 3
        %v5366 = vperm.slane %v3310, 4
        %v5367 = vperm.slane %v3310, 5
        %v5368 = vperm.slane %v3310, 6
        %v5369 = vperm.slane %v3310, 7
        %v5370 = vperm.slane %v3311, 0
        %v5371 = vperm.slane %v3311, 1
        %v5372 = vperm.slane %v3311, 2
        %v5373 = vperm.slane %v3311, 3
        %v5374 = vperm.slane %v3311, 4
        %v5375 = vperm.slane %v3311, 5
        %v5376 = vperm.slane %v3311, 6
        %v5377 = vperm.slane %v3311, 7
        %v5378 = vperm.slane %v3312, 0
        %v5379 = vperm.slane %v3312, 1
        %v5380 = vperm.slane %v3312, 2
        %v5381 = vperm.slane %v3312, 3
        %v5382 = vperm.slane %v3312, 4
        %v5383 = vperm.slane %v3312, 5
        %v5384 = vperm.slane %v3312, 6
        %v5385 = vperm.slane %v3312, 7
        %v5386 = vperm.slane %v3313, 0
        %v5387 = vperm.slane %v3313, 1
        %v5388 = vperm.slane %v3313, 2
        %v5389 = vperm.slane %v3313, 3
        %v5390 = vperm.slane %v3313, 4
        %v5391 = vperm.slane %v3313, 5
        %v5392 = vperm.slane %v3313, 6
        %v5393 = vperm.slane %v3313, 7
        %v5394 = vperm.slane %v3314, 0
        %v5395 = vperm.slane %v3314, 1
        %v5396 = vperm.slane %v3314, 2
        %v5397 = vperm.slane %v3314, 3
        %v5398 = vperm.slane %v3314, 4
        %v5399 = vperm.slane %v3314, 5
        %v5400 = vperm.slane %v3314, 6
        %v5401 = vperm.slane %v3314, 7
        %v5402 = vperm.slane %v3315, 0
        %v5403 = vperm.slane %v3315, 1
        %v5404 = vperm.slane %v3315, 2
        %v5405 = vperm.slane %v3315, 3
        %v5406 = vperm.slane %v3315, 4
        %v5407 = vperm.slane %v3315, 5
        %v5408 = vperm.slane %v3315, 6
        %v5409 = vperm.slane %v3315, 7
        %v5410 = vperm.slane %v3316, 0
        %v5411 = vperm.slane %v3316, 1
        %v5412 = vperm.slane %v3316, 2
        %v5413 = vperm.slane %v3316, 3
        %v5414 = vperm.slane %v3316, 4
        %v5415 = vperm.slane %v3316, 5
        %v5416 = vperm.slane %v3316, 6
        %v5417 = vperm.slane %v3316, 7
        %v5418 = vperm.slane %v3317, 0
        %v5419 = vperm.slane %v3317, 1
        %v5420 = vperm.slane %v3317, 2
        %v5421 = vperm.slane %v3317, 3
        %v5422 = vperm.slane %v3317, 4
        %v5423 = vperm.slane %v3317, 5
        %v5424 = vperm.slane %v3317, 6
        %v5425 = vperm.slane %v3317, 7
        %v5426 = vperm.slane %v3318, 0
        %v5427 = vperm.slane %v3318, 1
        %v5428 = vperm.slane %v3318, 2
        %v5429 = vperm.slane %v3318, 3
        %v5430 = vperm.slane %v3318, 4
        %v5431 = vperm.slane %v3318, 5
        %v5432 = vperm.slane %v3318, 6
        %v5433 = vperm.slane %v3318, 7
        %v5434 = vperm.slane %v3319, 0
        %v5435 = vperm.slane %v3319, 1
        %v5436 = vperm.slane %v3319, 2
        %v5437 = vperm.slane %v3319, 3
        %v5438 = vperm.slane %v3319, 4
        %v5439 = vperm.slane %v3319, 5
        %v5440 = vperm.slane %v3319, 6
        %v5441 = vperm.slane %v3319, 7
        %v5442 = vperm.slane %v3320, 0
        %v5443 = vperm.slane %v3320, 1
        %v5444 = vperm.slane %v3320, 2
        %v5445 = vperm.slane %v3320, 3
        %v5446 = vperm.slane %v3320, 4
        %v5447 = vperm.slane %v3320, 5
        %v5448 = vperm.slane %v3320, 6
        %v5449 = vperm.slane %v3320, 7
        %v5450 = vperm.slane %v3321, 0
        %v5451 = vperm.slane %v3321, 1
        %v5452 = vperm.slane %v3321, 2
        %v5453 = vperm.slane %v3321, 3
        %v5454 = vperm.slane %v3321, 4
        %v5455 = vperm.slane %v3321, 5
        %v5456 = vperm.slane %v3321, 6
        %v5457 = vperm.slane %v3321, 7
        %v5458 = vperm.slane %v3322, 0
        %v5459 = vperm.slane %v3322, 1
        %v5460 = vperm.slane %v3322, 2
        %v5461 = vperm.slane %v3322, 3
        %v5462 = vperm.slane %v3322, 4
        %v5463 = vperm.slane %v3322, 5
        %v5464 = vperm.slane %v3322, 6
        %v5465 = vperm.slane %v3322, 7
        %v5466 = vperm.slane %v3323, 0
        %v5467 = vperm.slane %v3323, 1
        %v5468 = vperm.slane %v3323, 2
        %v5469 = vperm.slane %v3323, 3
        %v5470 = vperm.slane %v3323, 4
        %v5471 = vperm.slane %v3323, 5
        %v5472 = vperm.slane %v3323, 6
        %v5473 = vperm.slane %v3323, 7
        %v5474 = vperm.slane %v3324, 0
        %v5475 = vperm.slane %v3324, 1
        %v5476 = vperm.slane %v3324, 2
        %v5477 = vperm.slane %v3324, 3
        %v5478 = vperm.slane %v3324, 4
        %v5479 = vperm.slane %v3324, 5
        %v5480 = vperm.slane %v3324, 6
        %v5481 = vperm.slane %v3324, 7
        %v5482 = vperm.slane %v3325, 0
        %v5483 = vperm.slane %v3325, 1
        %v5484 = vperm.slane %v3325, 2
        %v5485 = vperm.slane %v3325, 3
        %v5486 = vperm.slane %v3325, 4
        %v5487 = vperm.slane %v3325, 5
        %v5488 = vperm.slane %v3325, 6
        %v5489 = vperm.slane %v3325, 7
        %v5490 = vperm.slane %v3326, 0
        %v5491 = vperm.slane %v3326, 1
        %v5492 = vperm.slane %v3326, 2
        %v5493 = vperm.slane %v3326, 3
        %v5494 = vperm.slane %v3326, 4
        %v5495 = vperm.slane %v3326, 5
        %v5496 = vperm.slane %v3326, 6
        %v5497 = vperm.slane %v3326, 7
        %v5498 = vperm.slane %v3327, 0
        %v5499 = vperm.slane %v3327, 1
        %v5500 = vperm.slane %v3327, 2
        %v5501 = vperm.slane %v3327, 3
        %v5502 = vperm.slane %v3327, 4
        %v5503 = vperm.slane %v3327, 5
        %v5504 = vperm.slane %v3327, 6
        %v5505 = vperm.slane %v3327, 7
        %v5506 = vperm.slane %v3328, 0
        %v5507 = vperm.slane %v3328, 1
        %v5508 = vperm.slane %v3328, 2
        %v5509 = vperm.slane %v3328, 3
        %v5510 = vperm.slane %v3328, 4
        %v5511 = vperm.slane %v3328, 5
        %v5512 = vperm.slane %v3328, 6
        %v5513 = vperm.slane %v3328, 7
        %v5514 = vperm.slane %v3329, 0
        %v5515 = vperm.slane %v3329, 1
        %v5516 = vperm.slane %v3329, 2
        %v5517 = vperm.slane %v3329, 3
        %v5518 = vperm.slane %v3329, 4
        %v5519 = vperm.slane %v3329, 5
        %v5520 = vperm.slane %v3329, 6
        %v5521 = vperm.slane %v3329, 7
        %v5522 = vperm.slane %v3330, 0
        %v5523 = vperm.slane %v3330, 1
        %v5524 = vperm.slane %v3330, 2
        %v5525 = vperm.slane %v3330, 3
        %v5526 = vperm.slane %v3330, 4
        %v5527 = vperm.slane %v3330, 5
        %v5528 = vperm.slane %v3330, 6
        %v5529 = vperm.slane %v3330, 7
        %v5530 = vperm.slane %v3331, 0
        %v5531 = vperm.slane %v3331, 1
        %v5532 = vperm.slane %v3331, 2
        %v5533 = vperm.slane %v3331, 3
        %v5534 = vperm.slane %v3331, 4
        %v5535 = vperm.slane %v3331, 5
        %v5536 = vperm.slane %v3331, 6
        %v5537 = vperm.slane %v3331, 7
        %v5538 = vperm.slane %v3332, 0
        %v5539 = vperm.slane %v3332, 1
        %v5540 = vperm.slane %v3332, 2
        %v5541 = vperm.slane %v3332, 3
        %v5542 = vperm.slane %v3332, 4
        %v5543 = vperm.slane %v3332, 5
        %v5544 = vperm.slane %v3332, 6
        %v5545 = vperm.slane %v3332, 7
        %v5546 = vperm.slane %v3333, 0
        %v5547 = vperm.slane %v3333, 1
        %v5548 = vperm.slane %v3333, 2
        %v5549 = vperm.slane %v3333, 3
        %v5550 = vperm.slane %v3333, 4
        %v5551 = vperm.slane %v3333, 5
        %v5552 = vperm.slane %v3333, 6
        %v5553 = vperm.slane %v3333, 7
        %v5554 = vperm.slane %v3334, 0
        %v5555 = vperm.slane %v3334, 1
        %v5556 = vperm.slane %v3334, 2
        %v5557 = vperm.slane %v3334, 3
        %v5558 = vperm.slane %v3334, 4
        %v5559 = vperm.slane %v3334, 5
        %v5560 = vperm.slane %v3334, 6
        %v5561 = vperm.slane %v3334, 7
        %v5562 = vperm.slane %v3335, 0
        %v5563 = vperm.slane %v3335, 1
        %v5564 = vperm.slane %v3335, 2
        %v5565 = vperm.slane %v3335, 3
        %v5566 = vperm.slane %v3335, 4
        %v5567 = vperm.slane %v3335, 5
        %v5568 = vperm.slane %v3335, 6
        %v5569 = vperm.slane %v3335, 7
        %v5570 = vperm.slane %v3336, 0
        %v5571 = vperm.slane %v3336, 1
        %v5572 = vperm.slane %v3336, 2
        %v5573 = vperm.slane %v3336, 3
        %v5574 = vperm.slane %v3336, 4
        %v5575 = vperm.slane %v3336, 5
        %v5576 = vperm.slane %v3336, 6
        %v5577 = vperm.slane %v3336, 7
        %v5578 = vperm.slane %v3337, 0
        %v5579 = vperm.slane %v3337, 1
        %v5580 = vperm.slane %v3337, 2
        %v5581 = vperm.slane %v3337, 3
        %v5582 = vperm.slane %v3337, 4
        %v5583 = vperm.slane %v3337, 5
        %v5584 = vperm.slane %v3337, 6
        %v5585 = vperm.slane %v3337, 7
        %v5586 = vperm.slane %v3338, 0
        %v5587 = vperm.slane %v3338, 1
        %v5588 = vperm.slane %v3338, 2
        %v5589 = vperm.slane %v3338, 3
        %v5590 = vperm.slane %v3338, 4
        %v5591 = vperm.slane %v3338, 5
        %v5592 = vperm.slane %v3338, 6
        %v5593 = vperm.slane %v3338, 7
        %v5594 = vperm.slane %v3339, 0
        %v5595 = vperm.slane %v3339, 1
        %v5596 = vperm.slane %v3339, 2
        %v5597 = vperm.slane %v3339, 3
        %v5598 = vperm.slane %v3339, 4
        %v5599 = vperm.slane %v3339, 5
        %v5600 = vperm.slane %v3339, 6
        %v5601 = vperm.slane %v3339, 7
        %v5602 = vperm.slane %v3340, 0
        %v5603 = vperm.slane %v3340, 1
        %v5604 = vperm.slane %v3340, 2
        %v5605 = vperm.slane %v3340, 3
        %v5606 = vperm.slane %v3340, 4
        %v5607 = vperm.slane %v3340, 5
        %v5608 = vperm.slane %v3340, 6
        %v5609 = vperm.slane %v3340, 7
        %v5610 = vperm.slane %v3341, 0
        %v5611 = vperm.slane %v3341, 1
        %v5612 = vperm.slane %v3341, 2
        %v5613 = vperm.slane %v3341, 3
        %v5614 = vperm.slane %v3341, 4
        %v5615 = vperm.slane %v3341, 5
        %v5616 = vperm.slane %v3341, 6
        %v5617 = vperm.slane %v3341, 7
        %v5618 = vperm.slane %v3342, 0
        %v5619 = vperm.slane %v3342, 1
        %v5620 = vperm.slane %v3342, 2
        %v5621 = vperm.slane %v3342, 3
        %v5622 = vperm.slane %v3342, 4
        %v5623 = vperm.slane %v3342, 5
        %v5624 = vperm.slane %v3342, 6
        %v5625 = vperm.slane %v3342, 7
        %v5626 = vperm.slane %v3343, 0
        %v5627 = vperm.slane %v3343, 1
        %v5628 = vperm.slane %v3343, 2
        %v5629 = vperm.slane %v3343, 3
        %v5630 = vperm.slane %v3343, 4
        %v5631 = vperm.slane %v3343, 5
        %v5632 = vperm.slane %v3343, 6
        %v5633 = vperm.slane %v3343, 7
        %v5634 = vperm.slane %v3344, 0
        %v5635 = vperm.slane %v3344, 1
        %v5636 = vperm.slane %v3344, 2
        %v5637 = vperm.slane %v3344, 3
        %v5638 = vperm.slane %v3344, 4
        %v5639 = vperm.slane %v3344, 5
        %v5640 = vperm.slane %v3344, 6
        %v5641 = vperm.slane %v3344, 7
        %v5642 = vperm.slane %v3345, 0
        %v5643 = vperm.slane %v3345, 1
        %v5644 = vperm.slane %v3345, 2
        %v5645 = vperm.slane %v3345, 3
        %v5646 = vperm.slane %v3345, 4
        %v5647 = vperm.slane %v3345, 5
        %v5648 = vperm.slane %v3345, 6
        %v5649 = vperm.slane %v3345, 7
        %5650 = vst [vmem:[#allocation1] ss:$9 sm:$0xff] %v3602
        %s5651 = scalar_lea.vmem [#allocation1], 1
        %5652 = vst [vmem:[%s5651] ss:$9 sm:$0xff] %v3603
        %s5653 = scalar_lea.vmem [#allocation1], 2
        %5654 = vst [vmem:[%s5653] ss:$9 sm:$0xff] %v3604
        %s5655 = scalar_lea.vmem [#allocation1], 3
        %5656 = vst [vmem:[%s5655] ss:$9 sm:$0xff] %v3605
        %s5657 = scalar_lea.vmem [#allocation1], 4
        %5658 = vst [vmem:[%s5657] ss:$9 sm:$0xff] %v3606
        %s5659 = scalar_lea.vmem [#allocation1], 5
        %5660 = vst [vmem:[%s5659] ss:$9 sm:$0xff] %v3607
        %s5661 = scalar_lea.vmem [#allocation1], 6
        %5662 = vst [vmem:[%s5661] ss:$9 sm:$0xff] %v3608
        %s5663 = scalar_lea.vmem [#allocation1], 7
        %5664 = vst [vmem:[%s5663] ss:$9 sm:$0xff] %v3609
        %v5665 = vld [vmem:[#allocation1] sm:$0xff]
        %5666 = vst [vmem:[#allocation1] ss:$9 sm:$0xff] %v3610
        %5667 = vst [vmem:[%s5651] ss:$9 sm:$0xff] %v3611
        %5668 = vst [vmem:[%s5653] ss:$9 sm:$0xff] %v3612
        %5669 = vst [vmem:[%s5655] ss:$9 sm:$0xff] %v3613
        %5670 = vst [vmem:[%s5657] ss:$9 sm:$0xff] %v3614
        %5671 = vst [vmem:[%s5659] ss:$9 sm:$0xff] %v3615
        %5672 = vst [vmem:[%s5661] ss:$9 sm:$0xff] %v3616
        %5673 = vst [vmem:[%s5663] ss:$9 sm:$0xff] %v3617
        %v5674 = vld [vmem:[#allocation1] sm:$0xff]
        %5675 = vst [vmem:[#allocation1] ss:$9 sm:$0xff] %v3618
        %5676 = vst [vmem:[%s5651] ss:$9 sm:$0xff] %v3619
        %5677 = vst [vmem:[%s5653] ss:$9 sm:$0xff] %v3620
        %5678 = vst [vmem:[%s5655] ss:$9 sm:$0xff] %v3621
        %5679 = vst [vmem:[%s5657] ss:$9 sm:$0xff] %v3622
        %5680 = vst [vmem:[%s5659] ss:$9 sm:$0xff] %v3623
        %5681 = vst [vmem:[%s5661] ss:$9 sm:$0xff] %v3624
        %5682 = vst [vmem:[%s5663] ss:$9 sm:$0xff] %v3625
        %v5683 = vld [vmem:[#allocation1] sm:$0xff]
        %5684 = vst [vmem:[#allocation1] ss:$9 sm:$0xff] %v3626
        %5685 = vst [vmem:[%s5651] ss:$9 sm:$0xff] %v3627
        %5686 = vst [vmem:[%s5653] ss:$9 sm:$0xff] %v3628
        %5687 = vst [vmem:[%s5655] ss:$9 sm:$0xff] %v3629
        %5688 = vst [vmem:[%s5657] ss:$9 sm:$0xff] %v3630
        %5689 = vst [vmem:[%s5659] ss:$9 sm:$0xff] %v3631
        %5690 = vst [vmem:[%s5661] ss:$9 sm:$0xff] %v3632
        %5691 = vst [vmem:[%s5663] ss:$9 sm:$0xff] %v3633
        %v5692 = vld [vmem:[#allocation1] sm:$0xff]
        %5693 = vst [vmem:[#allocation1] ss:$9 sm:$0xff] %v3634
        %5694 = vst [vmem:[%s5651] ss:$9 sm:$0xff] %v3635
        %5695 = vst [vmem:[%s5653] ss:$9 sm:$0xff] %v3636
        %5696 = vst [vmem:[%s5655] ss:$9 sm:$0xff] %v3637
        %5697 = vst [vmem:[%s5657] ss:$9 sm:$0xff] %v3638
        %5698 = vst [vmem:[%s5659] ss:$9 sm:$0xff] %v3639
        %5699 = vst [vmem:[%s5661] ss:$9 sm:$0xff] %v3640
        %5700 = vst [vmem:[%s5663] ss:$9 sm:$0xff] %v3641
        %v5701 = vld [vmem:[#allocation1] sm:$0xff]
        %5702 = vst [vmem:[#allocation1] ss:$9 sm:$0xff] %v3642
        %5703 = vst [vmem:[%s5651] ss:$9 sm:$0xff] %v3643
        %5704 = vst [vmem:[%s5653] ss:$9 sm:$0xff] %v3644
        %5705 = vst [vmem:[%s5655] ss:$9 sm:$0xff] %v3645
        %5706 = vst [vmem:[%s5657] ss:$9 sm:$0xff] %v3646
        %5707 = vst [vmem:[%s5659] ss:$9 sm:$0xff] %v3647
        %5708 = vst [vmem:[%s5661] ss:$9 sm:$0xff] %v3648
        %5709 = vst [vmem:[%s5663] ss:$9 sm:$0xff] %v3649
        %v5710 = vld [vmem:[#allocation1] sm:$0xff]
        %5711 = vst [vmem:[#allocation1] ss:$9 sm:$0xff] %v3650
        %5712 = vst [vmem:[%s5651] ss:$9 sm:$0xff] %v3651
        %5713 = vst [vmem:[%s5653] ss:$9 sm:$0xff] %v3652
        %5714 = vst [vmem:[%s5655] ss:$9 sm:$0xff] %v3653
        %5715 = vst [vmem:[%s5657] ss:$9 sm:$0xff] %v3654
        %5716 = vst [vmem:[%s5659] ss:$9 sm:$0xff] %v3655
        %5717 = vst [vmem:[%s5661] ss:$9 sm:$0xff] %v3656
        %5718 = vst [vmem:[%s5663] ss:$9 sm:$0xff] %v3657
        %v5719 = vld [vmem:[#allocation1] sm:$0xff]
        %5720 = vst [vmem:[#allocation1] ss:$9 sm:$0xff] %v3658
        %5721 = vst [vmem:[%s5651] ss:$9 sm:$0xff] %v3659
        %5722 = vst [vmem:[%s5653] ss:$9 sm:$0xff] %v3660
        %5723 = vst [vmem:[%s5655] ss:$9 sm:$0xff] %v3661
        %5724 = vst [vmem:[%s5657] ss:$9 sm:$0xff] %v3662
        %5725 = vst [vmem:[%s5659] ss:$9 sm:$0xff] %v3663
        %5726 = vst [vmem:[%s5661] ss:$9 sm:$0xff] %v3664
        %5727 = vst [vmem:[%s5663] ss:$9 sm:$0xff] %v3665
        %v5728 = vld [vmem:[#allocation1] sm:$0xff]
        %5729 = vst [vmem:[#allocation1] ss:$9 sm:$0xff] %v3666
        %5730 = vst [vmem:[%s5651] ss:$9 sm:$0xff] %v3667
        %5731 = vst [vmem:[%s5653] ss:$9 sm:$0xff] %v3668
        %5732 = vst [vmem:[%s5655] ss:$9 sm:$0xff] %v3669
        %5733 = vst [vmem:[%s5657] ss:$9 sm:$0xff] %v3670
        %5734 = vst [vmem:[%s5659] ss:$9 sm:$0xff] %v3671
        %5735 = vst [vmem:[%s5661] ss:$9 sm:$0xff] %v3672
        %5736 = vst [vmem:[%s5663] ss:$9 sm:$0xff] %v3673
        %v5737 = vld [vmem:[#allocation1] sm:$0xff]
        %5738 = vst [vmem:[#allocation1] ss:$9 sm:$0xff] %v3674
        %5739 = vst [vmem:[%s5651] ss:$9 sm:$0xff] %v3675
        %5740 = vst [vmem:[%s5653] ss:$9 sm:$0xff] %v3676
        %5741 = vst [vmem:[%s5655] ss:$9 sm:$0xff] %v3677
        %5742 = vst [vmem:[%s5657] ss:$9 sm:$0xff] %v3678
        %5743 = vst [vmem:[%s5659] ss:$9 sm:$0xff] %v3679
        %5744 = vst [vmem:[%s5661] ss:$9 sm:$0xff] %v3680
        %5745 = vst [vmem:[%s5663] ss:$9 sm:$0xff] %v3681
        %v5746 = vld [vmem:[#allocation1] sm:$0xff]
        %5747 = vst [vmem:[#allocation1] ss:$9 sm:$0xff] %v3682
        %5748 = vst [vmem:[%s5651] ss:$9 sm:$0xff] %v3683
        %5749 = vst [vmem:[%s5653] ss:$9 sm:$0xff] %v3684
        %5750 = vst [vmem:[%s5655] ss:$9 sm:$0xff] %v3685
        %5751 = vst [vmem:[%s5657] ss:$9 sm:$0xff] %v3686
        %5752 = vst [vmem:[%s5659] ss:$9 sm:$0xff] %v3687
        %5753 = vst [vmem:[%s5661] ss:$9 sm:$0xff] %v3688
        %5754 = vst [vmem:[%s5663] ss:$9 sm:$0xff] %v3689
        %v5755 = vld [vmem:[#allocation1] sm:$0xff]
        %5756 = vst [vmem:[#allocation1] ss:$9 sm:$0xff] %v3690
        %5757 = vst [vmem:[%s5651] ss:$9 sm:$0xff] %v3691
        %5758 = vst [vmem:[%s5653] ss:$9 sm:$0xff] %v3692
        %5759 = vst [vmem:[%s5655] ss:$9 sm:$0xff] %v3693
        %5760 = vst [vmem:[%s5657] ss:$9 sm:$0xff] %v3694
        %5761 = vst [vmem:[%s5659] ss:$9 sm:$0xff] %v3695
        %5762 = vst [vmem:[%s5661] ss:$9 sm:$0xff] %v3696
        %5763 = vst [vmem:[%s5663] ss:$9 sm:$0xff] %v3697
        %v5764 = vld [vmem:[#allocation1] sm:$0xff]
        %5765 = vst [vmem:[#allocation1] ss:$9 sm:$0xff] %v3698
        %5766 = vst [vmem:[%s5651] ss:$9 sm:$0xff] %v3699
        %5767 = vst [vmem:[%s5653] ss:$9 sm:$0xff] %v3700
        %5768 = vst [vmem:[%s5655] ss:$9 sm:$0xff] %v3701
        %5769 = vst [vmem:[%s5657] ss:$9 sm:$0xff] %v3702
        %5770 = vst [vmem:[%s5659] ss:$9 sm:$0xff] %v3703
        %5771 = vst [vmem:[%s5661] ss:$9 sm:$0xff] %v3704
        %5772 = vst [vmem:[%s5663] ss:$9 sm:$0xff] %v3705
        %v5773 = vld [vmem:[#allocation1] sm:$0xff]
        %5774 = vst [vmem:[#allocation1] ss:$9 sm:$0xff] %v3706
        %5775 = vst [vmem:[%s5651] ss:$9 sm:$0xff] %v3707
        %5776 = vst [vmem:[%s5653] ss:$9 sm:$0xff] %v3708
        %5777 = vst [vmem:[%s5655] ss:$9 sm:$0xff] %v3709
        %5778 = vst [vmem:[%s5657] ss:$9 sm:$0xff] %v3710
        %5779 = vst [vmem:[%s5659] ss:$9 sm:$0xff] %v3711
        %5780 = vst [vmem:[%s5661] ss:$9 sm:$0xff] %v3712
        %5781 = vst [vmem:[%s5663] ss:$9 sm:$0xff] %v3713
        %v5782 = vld [vmem:[#allocation1] sm:$0xff]
        %5783 = vst [vmem:[#allocation1] ss:$9 sm:$0xff] %v3714
        %5784 = vst [vmem:[%s5651] ss:$9 sm:$0xff] %v3715
        %5785 = vst [vmem:[%s5653] ss:$9 sm:$0xff] %v3716
        %5786 = vst [vmem:[%s5655] ss:$9 sm:$0xff] %v3717
        %5787 = vst [vmem:[%s5657] ss:$9 sm:$0xff] %v3718
        %5788 = vst [vmem:[%s5659] ss:$9 sm:$0xff] %v3719
        %5789 = vst [vmem:[%s5661] ss:$9 sm:$0xff] %v3720
        %5790 = vst [vmem:[%s5663] ss:$9 sm:$0xff] %v3721
        %v5791 = vld [vmem:[#allocation1] sm:$0xff]
        %5792 = vst [vmem:[#allocation1] ss:$9 sm:$0xff] %v3722
        %5793 = vst [vmem:[%s5651] ss:$9 sm:$0xff] %v3723
        %5794 = vst [vmem:[%s5653] ss:$9 sm:$0xff] %v3724
        %5795 = vst [vmem:[%s5655] ss:$9 sm:$0xff] %v3725
        %5796 = vst [vmem:[%s5657] ss:$9 sm:$0xff] %v3726
        %5797 = vst [vmem:[%s5659] ss:$9 sm:$0xff] %v3727
        %5798 = vst [vmem:[%s5661] ss:$9 sm:$0xff] %v3728
        %5799 = vst [vmem:[%s5663] ss:$9 sm:$0xff] %v3729
        %v5800 = vld [vmem:[#allocation1] sm:$0xff]
        %5801 = vst [vmem:[#allocation1] ss:$9 sm:$0xff] %v3730
        %5802 = vst [vmem:[%s5651] ss:$9 sm:$0xff] %v3731
        %5803 = vst [vmem:[%s5653] ss:$9 sm:$0xff] %v3732
        %5804 = vst [vmem:[%s5655] ss:$9 sm:$0xff] %v3733
        %5805 = vst [vmem:[%s5657] ss:$9 sm:$0xff] %v3734
        %5806 = vst [vmem:[%s5659] ss:$9 sm:$0xff] %v3735
        %5807 = vst [vmem:[%s5661] ss:$9 sm:$0xff] %v3736
        %5808 = vst [vmem:[%s5663] ss:$9 sm:$0xff] %v3737
        %v5809 = vld [vmem:[#allocation1] sm:$0xff]
        %5810 = vst [vmem:[#allocation1] ss:$9 sm:$0xff] %v3738
        %5811 = vst [vmem:[%s5651] ss:$9 sm:$0xff] %v3739
        %5812 = vst [vmem:[%s5653] ss:$9 sm:$0xff] %v3740
        %5813 = vst [vmem:[%s5655] ss:$9 sm:$0xff] %v3741
        %5814 = vst [vmem:[%s5657] ss:$9 sm:$0xff] %v3742
        %5815 = vst [vmem:[%s5659] ss:$9 sm:$0xff] %v3743
        %5816 = vst [vmem:[%s5661] ss:$9 sm:$0xff] %v3744
        %5817 = vst [vmem:[%s5663] ss:$9 sm:$0xff] %v3745
        %v5818 = vld [vmem:[#allocation1] sm:$0xff]
        %5819 = vst [vmem:[#allocation1] ss:$9 sm:$0xff] %v3746
        %5820 = vst [vmem:[%s5651] ss:$9 sm:$0xff] %v3747
        %5821 = vst [vmem:[%s5653] ss:$9 sm:$0xff] %v3748
        %5822 = vst [vmem:[%s5655] ss:$9 sm:$0xff] %v3749
        %5823 = vst [vmem:[%s5657] ss:$9 sm:$0xff] %v3750
        %5824 = vst [vmem:[%s5659] ss:$9 sm:$0xff] %v3751
        %5825 = vst [vmem:[%s5661] ss:$9 sm:$0xff] %v3752
        %5826 = vst [vmem:[%s5663] ss:$9 sm:$0xff] %v3753
        %v5827 = vld [vmem:[#allocation1] sm:$0xff]
        %5828 = vst [vmem:[#allocation1] ss:$9 sm:$0xff] %v3754
        %5829 = vst [vmem:[%s5651] ss:$9 sm:$0xff] %v3755
        %5830 = vst [vmem:[%s5653] ss:$9 sm:$0xff] %v3756
        %5831 = vst [vmem:[%s5655] ss:$9 sm:$0xff] %v3757
        %5832 = vst [vmem:[%s5657] ss:$9 sm:$0xff] %v3758
        %5833 = vst [vmem:[%s5659] ss:$9 sm:$0xff] %v3759
        %5834 = vst [vmem:[%s5661] ss:$9 sm:$0xff] %v3760
        %5835 = vst [vmem:[%s5663] ss:$9 sm:$0xff] %v3761
        %v5836 = vld [vmem:[#allocation1] sm:$0xff]
        %5837 = vst [vmem:[#allocation1] ss:$9 sm:$0xff] %v3762
        %5838 = vst [vmem:[%s5651] ss:$9 sm:$0xff] %v3763
        %5839 = vst [vmem:[%s5653] ss:$9 sm:$0xff] %v3764
        %5840 = vst [vmem:[%s5655] ss:$9 sm:$0xff] %v3765
        %5841 = vst [vmem:[%s5657] ss:$9 sm:$0xff] %v3766
        %5842 = vst [vmem:[%s5659] ss:$9 sm:$0xff] %v3767
        %5843 = vst [vmem:[%s5661] ss:$9 sm:$0xff] %v3768
        %5844 = vst [vmem:[%s5663] ss:$9 sm:$0xff] %v3769
        %v5845 = vld [vmem:[#allocation1] sm:$0xff]
        %5846 = vst [vmem:[#allocation1] ss:$9 sm:$0xff] %v3770
        %5847 = vst [vmem:[%s5651] ss:$9 sm:$0xff] %v3771
        %5848 = vst [vmem:[%s5653] ss:$9 sm:$0xff] %v3772
        %5849 = vst [vmem:[%s5655] ss:$9 sm:$0xff] %v3773
        %5850 = vst [vmem:[%s5657] ss:$9 sm:$0xff] %v3774
        %5851 = vst [vmem:[%s5659] ss:$9 sm:$0xff] %v3775
        %5852 = vst [vmem:[%s5661] ss:$9 sm:$0xff] %v3776
        %5853 = vst [vmem:[%s5663] ss:$9 sm:$0xff] %v3777
        %v5854 = vld [vmem:[#allocation1] sm:$0xff]
        %5855 = vst [vmem:[#allocation1] ss:$9 sm:$0xff] %v3778
        %5856 = vst [vmem:[%s5651] ss:$9 sm:$0xff] %v3779
        %5857 = vst [vmem:[%s5653] ss:$9 sm:$0xff] %v3780
        %5858 = vst [vmem:[%s5655] ss:$9 sm:$0xff] %v3781
        %5859 = vst [vmem:[%s5657] ss:$9 sm:$0xff] %v3782
        %5860 = vst [vmem:[%s5659] ss:$9 sm:$0xff] %v3783
        %5861 = vst [vmem:[%s5661] ss:$9 sm:$0xff] %v3784
        %5862 = vst [vmem:[%s5663] ss:$9 sm:$0xff] %v3785
        %v5863 = vld [vmem:[#allocation1] sm:$0xff]
        %5864 = vst [vmem:[#allocation1] ss:$9 sm:$0xff] %v3786
        %5865 = vst [vmem:[%s5651] ss:$9 sm:$0xff] %v3787
        %5866 = vst [vmem:[%s5653] ss:$9 sm:$0xff] %v3788
        %5867 = vst [vmem:[%s5655] ss:$9 sm:$0xff] %v3789
        %5868 = vst [vmem:[%s5657] ss:$9 sm:$0xff] %v3790
        %5869 = vst [vmem:[%s5659] ss:$9 sm:$0xff] %v3791
        %5870 = vst [vmem:[%s5661] ss:$9 sm:$0xff] %v3792
        %5871 = vst [vmem:[%s5663] ss:$9 sm:$0xff] %v3793
        %v5872 = vld [vmem:[#allocation1] sm:$0xff]
        %5873 = vst [vmem:[#allocation1] ss:$9 sm:$0xff] %v3794
        %5874 = vst [vmem:[%s5651] ss:$9 sm:$0xff] %v3795
        %5875 = vst [vmem:[%s5653] ss:$9 sm:$0xff] %v3796
        %5876 = vst [vmem:[%s5655] ss:$9 sm:$0xff] %v3797
        %5877 = vst [vmem:[%s5657] ss:$9 sm:$0xff] %v3798
        %5878 = vst [vmem:[%s5659] ss:$9 sm:$0xff] %v3799
        %5879 = vst [vmem:[%s5661] ss:$9 sm:$0xff] %v3800
        %5880 = vst [vmem:[%s5663] ss:$9 sm:$0xff] %v3801
        %v5881 = vld [vmem:[#allocation1] sm:$0xff]
        %5882 = vst [vmem:[#allocation1] ss:$9 sm:$0xff] %v3802
        %5883 = vst [vmem:[%s5651] ss:$9 sm:$0xff] %v3803
        %5884 = vst [vmem:[%s5653] ss:$9 sm:$0xff] %v3804
        %5885 = vst [vmem:[%s5655] ss:$9 sm:$0xff] %v3805
        %5886 = vst [vmem:[%s5657] ss:$9 sm:$0xff] %v3806
        %5887 = vst [vmem:[%s5659] ss:$9 sm:$0xff] %v3807
        %5888 = vst [vmem:[%s5661] ss:$9 sm:$0xff] %v3808
        %5889 = vst [vmem:[%s5663] ss:$9 sm:$0xff] %v3809
        %v5890 = vld [vmem:[#allocation1] sm:$0xff]
        %5891 = vst [vmem:[#allocation1] ss:$9 sm:$0xff] %v3810
        %5892 = vst [vmem:[%s5651] ss:$9 sm:$0xff] %v3811
        %5893 = vst [vmem:[%s5653] ss:$9 sm:$0xff] %v3812
        %5894 = vst [vmem:[%s5655] ss:$9 sm:$0xff] %v3813
        %5895 = vst [vmem:[%s5657] ss:$9 sm:$0xff] %v3814
        %5896 = vst [vmem:[%s5659] ss:$9 sm:$0xff] %v3815
        %5897 = vst [vmem:[%s5661] ss:$9 sm:$0xff] %v3816
        %5898 = vst [vmem:[%s5663] ss:$9 sm:$0xff] %v3817
        %v5899 = vld [vmem:[#allocation1] sm:$0xff]
        %5900 = vst [vmem:[#allocation1] ss:$9 sm:$0xff] %v3818
        %5901 = vst [vmem:[%s5651] ss:$9 sm:$0xff] %v3819
        %5902 = vst [vmem:[%s5653] ss:$9 sm:$0xff] %v3820
        %5903 = vst [vmem:[%s5655] ss:$9 sm:$0xff] %v3821
        %5904 = vst [vmem:[%s5657] ss:$9 sm:$0xff] %v3822
        %5905 = vst [vmem:[%s5659] ss:$9 sm:$0xff] %v3823
        %5906 = vst [vmem:[%s5661] ss:$9 sm:$0xff] %v3824
        %5907 = vst [vmem:[%s5663] ss:$9 sm:$0xff] %v3825
        %v5908 = vld [vmem:[#allocation1] sm:$0xff]
        %5909 = vst [vmem:[#allocation1] ss:$9 sm:$0xff] %v3826
        %5910 = vst [vmem:[%s5651] ss:$9 sm:$0xff] %v3827
        %5911 = vst [vmem:[%s5653] ss:$9 sm:$0xff] %v3828
        %5912 = vst [vmem:[%s5655] ss:$9 sm:$0xff] %v3829
        %5913 = vst [vmem:[%s5657] ss:$9 sm:$0xff] %v3830
        %5914 = vst [vmem:[%s5659] ss:$9 sm:$0xff] %v3831
        %5915 = vst [vmem:[%s5661] ss:$9 sm:$0xff] %v3832
        %5916 = vst [vmem:[%s5663] ss:$9 sm:$0xff] %v3833
        %v5917 = vld [vmem:[#allocation1] sm:$0xff]
        %5918 = vst [vmem:[#allocation1] ss:$9 sm:$0xff] %v3834
        %5919 = vst [vmem:[%s5651] ss:$9 sm:$0xff] %v3835
        %5920 = vst [vmem:[%s5653] ss:$9 sm:$0xff] %v3836
        %5921 = vst [vmem:[%s5655] ss:$9 sm:$0xff] %v3837
        %5922 = vst [vmem:[%s5657] ss:$9 sm:$0xff] %v3838
        %5923 = vst [vmem:[%s5659] ss:$9 sm:$0xff] %v3839
        %5924 = vst [vmem:[%s5661] ss:$9 sm:$0xff] %v3840
        %5925 = vst [vmem:[%s5663] ss:$9 sm:$0xff] %v3841
        %v5926 = vld [vmem:[#allocation1] sm:$0xff]
        %5927 = vst [vmem:[#allocation1] ss:$9 sm:$0xff] %v3842
        %5928 = vst [vmem:[%s5651] ss:$9 sm:$0xff] %v3843
        %5929 = vst [vmem:[%s5653] ss:$9 sm:$0xff] %v3844
        %5930 = vst [vmem:[%s5655] ss:$9 sm:$0xff] %v3845
        %5931 = vst [vmem:[%s5657] ss:$9 sm:$0xff] %v3846
        %5932 = vst [vmem:[%s5659] ss:$9 sm:$0xff] %v3847
        %5933 = vst [vmem:[%s5661] ss:$9 sm:$0xff] %v3848
        %5934 = vst [vmem:[%s5663] ss:$9 sm:$0xff] %v3849
        %v5935 = vld [vmem:[#allocation1] sm:$0xff]
        %5936 = vst [vmem:[#allocation1] ss:$9 sm:$0xff] %v3850
        %5937 = vst [vmem:[%s5651] ss:$9 sm:$0xff] %v3851
        %5938 = vst [vmem:[%s5653] ss:$9 sm:$0xff] %v3852
        %5939 = vst [vmem:[%s5655] ss:$9 sm:$0xff] %v3853
        %5940 = vst [vmem:[%s5657] ss:$9 sm:$0xff] %v3854
        %5941 = vst [vmem:[%s5659] ss:$9 sm:$0xff] %v3855
        %5942 = vst [vmem:[%s5661] ss:$9 sm:$0xff] %v3856
        %5943 = vst [vmem:[%s5663] ss:$9 sm:$0xff] %v3857
        %v5944 = vld [vmem:[#allocation1] sm:$0xff]
        %5945 = vst [vmem:[#allocation1] ss:$9 sm:$0xff] %v3858
        %5946 = vst [vmem:[%s5651] ss:$9 sm:$0xff] %v3859
        %5947 = vst [vmem:[%s5653] ss:$9 sm:$0xff] %v3860
        %5948 = vst [vmem:[%s5655] ss:$9 sm:$0xff] %v3861
        %5949 = vst [vmem:[%s5657] ss:$9 sm:$0xff] %v3862
        %5950 = vst [vmem:[%s5659] ss:$9 sm:$0xff] %v3863
        %5951 = vst [vmem:[%s5661] ss:$9 sm:$0xff] %v3864
        %5952 = vst [vmem:[%s5663] ss:$9 sm:$0xff] %v3865
        %v5953 = vld [vmem:[#allocation1] sm:$0xff]
        %5954 = vst [vmem:[#allocation1] ss:$9 sm:$0xff] %v3866
        %5955 = vst [vmem:[%s5651] ss:$9 sm:$0xff] %v3867
        %5956 = vst [vmem:[%s5653] ss:$9 sm:$0xff] %v3868
        %5957 = vst [vmem:[%s5655] ss:$9 sm:$0xff] %v3869
        %5958 = vst [vmem:[%s5657] ss:$9 sm:$0xff] %v3870
        %5959 = vst [vmem:[%s5659] ss:$9 sm:$0xff] %v3871
        %5960 = vst [vmem:[%s5661] ss:$9 sm:$0xff] %v3872
        %5961 = vst [vmem:[%s5663] ss:$9 sm:$0xff] %v3873
        %v5962 = vld [vmem:[#allocation1] sm:$0xff]
        %5963 = vst [vmem:[#allocation1] ss:$9 sm:$0xff] %v3874
        %5964 = vst [vmem:[%s5651] ss:$9 sm:$0xff] %v3875
        %5965 = vst [vmem:[%s5653] ss:$9 sm:$0xff] %v3876
        %5966 = vst [vmem:[%s5655] ss:$9 sm:$0xff] %v3877
        %5967 = vst [vmem:[%s5657] ss:$9 sm:$0xff] %v3878
        %5968 = vst [vmem:[%s5659] ss:$9 sm:$0xff] %v3879
        %5969 = vst [vmem:[%s5661] ss:$9 sm:$0xff] %v3880
        %5970 = vst [vmem:[%s5663] ss:$9 sm:$0xff] %v3881
        %v5971 = vld [vmem:[#allocation1] sm:$0xff]
        %5972 = vst [vmem:[#allocation1] ss:$9 sm:$0xff] %v3882
        %5973 = vst [vmem:[%s5651] ss:$9 sm:$0xff] %v3883
        %5974 = vst [vmem:[%s5653] ss:$9 sm:$0xff] %v3884
        %5975 = vst [vmem:[%s5655] ss:$9 sm:$0xff] %v3885
        %5976 = vst [vmem:[%s5657] ss:$9 sm:$0xff] %v3886
        %5977 = vst [vmem:[%s5659] ss:$9 sm:$0xff] %v3887
        %5978 = vst [vmem:[%s5661] ss:$9 sm:$0xff] %v3888
        %5979 = vst [vmem:[%s5663] ss:$9 sm:$0xff] %v3889
        %v5980 = vld [vmem:[#allocation1] sm:$0xff]
        %5981 = vst [vmem:[#allocation1] ss:$9 sm:$0xff] %v3890
        %5982 = vst [vmem:[%s5651] ss:$9 sm:$0xff] %v3891
        %5983 = vst [vmem:[%s5653] ss:$9 sm:$0xff] %v3892
        %5984 = vst [vmem:[%s5655] ss:$9 sm:$0xff] %v3893
        %5985 = vst [vmem:[%s5657] ss:$9 sm:$0xff] %v3894
        %5986 = vst [vmem:[%s5659] ss:$9 sm:$0xff] %v3895
        %5987 = vst [vmem:[%s5661] ss:$9 sm:$0xff] %v3896
        %5988 = vst [vmem:[%s5663] ss:$9 sm:$0xff] %v3897
        %v5989 = vld [vmem:[#allocation1] sm:$0xff]
        %5990 = vst [vmem:[#allocation1] ss:$9 sm:$0xff] %v3898
        %5991 = vst [vmem:[%s5651] ss:$9 sm:$0xff] %v3899
        %5992 = vst [vmem:[%s5653] ss:$9 sm:$0xff] %v3900
        %5993 = vst [vmem:[%s5655] ss:$9 sm:$0xff] %v3901
        %5994 = vst [vmem:[%s5657] ss:$9 sm:$0xff] %v3902
        %5995 = vst [vmem:[%s5659] ss:$9 sm:$0xff] %v3903
        %5996 = vst [vmem:[%s5661] ss:$9 sm:$0xff] %v3904
        %5997 = vst [vmem:[%s5663] ss:$9 sm:$0xff] %v3905
        %v5998 = vld [vmem:[#allocation1] sm:$0xff]
        %5999 = vst [vmem:[#allocation1] ss:$9 sm:$0xff] %v3906
        %6000 = vst [vmem:[%s5651] ss:$9 sm:$0xff] %v3907
        %6001 = vst [vmem:[%s5653] ss:$9 sm:$0xff] %v3908
        %6002 = vst [vmem:[%s5655] ss:$9 sm:$0xff] %v3909
        %6003 = vst [vmem:[%s5657] ss:$9 sm:$0xff] %v3910
        %6004 = vst [vmem:[%s5659] ss:$9 sm:$0xff] %v3911
        %6005 = vst [vmem:[%s5661] ss:$9 sm:$0xff] %v3912
        %6006 = vst [vmem:[%s5663] ss:$9 sm:$0xff] %v3913
        %v6007 = vld [vmem:[#allocation1] sm:$0xff]
        %6008 = vst [vmem:[#allocation1] ss:$9 sm:$0xff] %v3914
        %6009 = vst [vmem:[%s5651] ss:$9 sm:$0xff] %v3915
        %6010 = vst [vmem:[%s5653] ss:$9 sm:$0xff] %v3916
        %6011 = vst [vmem:[%s5655] ss:$9 sm:$0xff] %v3917
        %6012 = vst [vmem:[%s5657] ss:$9 sm:$0xff] %v3918
        %6013 = vst [vmem:[%s5659] ss:$9 sm:$0xff] %v3919
        %6014 = vst [vmem:[%s5661] ss:$9 sm:$0xff] %v3920
        %6015 = vst [vmem:[%s5663] ss:$9 sm:$0xff] %v3921
        %v6016 = vld [vmem:[#allocation1] sm:$0xff]
        %6017 = vst [vmem:[#allocation1] ss:$9 sm:$0xff] %v3922
        %6018 = vst [vmem:[%s5651] ss:$9 sm:$0xff] %v3923
        %6019 = vst [vmem:[%s5653] ss:$9 sm:$0xff] %v3924
        %6020 = vst [vmem:[%s5655] ss:$9 sm:$0xff] %v3925
        %6021 = vst [vmem:[%s5657] ss:$9 sm:$0xff] %v3926
        %6022 = vst [vmem:[%s5659] ss:$9 sm:$0xff] %v3927
        %6023 = vst [vmem:[%s5661] ss:$9 sm:$0xff] %v3928
        %6024 = vst [vmem:[%s5663] ss:$9 sm:$0xff] %v3929
        %v6025 = vld [vmem:[#allocation1] sm:$0xff]
        %6026 = vst [vmem:[#allocation1] ss:$9 sm:$0xff] %v3930
        %6027 = vst [vmem:[%s5651] ss:$9 sm:$0xff] %v3931
        %6028 = vst [vmem:[%s5653] ss:$9 sm:$0xff] %v3932
        %6029 = vst [vmem:[%s5655] ss:$9 sm:$0xff] %v3933
        %6030 = vst [vmem:[%s5657] ss:$9 sm:$0xff] %v3934
        %6031 = vst [vmem:[%s5659] ss:$9 sm:$0xff] %v3935
        %6032 = vst [vmem:[%s5661] ss:$9 sm:$0xff] %v3936
        %6033 = vst [vmem:[%s5663] ss:$9 sm:$0xff] %v3937
        %v6034 = vld [vmem:[#allocation1] sm:$0xff]
        %6035 = vst [vmem:[#allocation1] ss:$9 sm:$0xff] %v3938
        %6036 = vst [vmem:[%s5651] ss:$9 sm:$0xff] %v3939
        %6037 = vst [vmem:[%s5653] ss:$9 sm:$0xff] %v3940
        %6038 = vst [vmem:[%s5655] ss:$9 sm:$0xff] %v3941
        %6039 = vst [vmem:[%s5657] ss:$9 sm:$0xff] %v3942
        %6040 = vst [vmem:[%s5659] ss:$9 sm:$0xff] %v3943
        %6041 = vst [vmem:[%s5661] ss:$9 sm:$0xff] %v3944
        %6042 = vst [vmem:[%s5663] ss:$9 sm:$0xff] %v3945
        %v6043 = vld [vmem:[#allocation1] sm:$0xff]
        %6044 = vst [vmem:[#allocation1] ss:$9 sm:$0xff] %v3946
        %6045 = vst [vmem:[%s5651] ss:$9 sm:$0xff] %v3947
        %6046 = vst [vmem:[%s5653] ss:$9 sm:$0xff] %v3948
        %6047 = vst [vmem:[%s5655] ss:$9 sm:$0xff] %v3949
        %6048 = vst [vmem:[%s5657] ss:$9 sm:$0xff] %v3950
        %6049 = vst [vmem:[%s5659] ss:$9 sm:$0xff] %v3951
        %6050 = vst [vmem:[%s5661] ss:$9 sm:$0xff] %v3952
        %6051 = vst [vmem:[%s5663] ss:$9 sm:$0xff] %v3953
        %v6052 = vld [vmem:[#allocation1] sm:$0xff]
        %6053 = vst [vmem:[#allocation1] ss:$9 sm:$0xff] %v3954
        %6054 = vst [vmem:[%s5651] ss:$9 sm:$0xff] %v3955
        %6055 = vst [vmem:[%s5653] ss:$9 sm:$0xff] %v3956
        %6056 = vst [vmem:[%s5655] ss:$9 sm:$0xff] %v3957
        %6057 = vst [vmem:[%s5657] ss:$9 sm:$0xff] %v3958
        %6058 = vst [vmem:[%s5659] ss:$9 sm:$0xff] %v3959
        %6059 = vst [vmem:[%s5661] ss:$9 sm:$0xff] %v3960
        %6060 = vst [vmem:[%s5663] ss:$9 sm:$0xff] %v3961
        %v6061 = vld [vmem:[#allocation1] sm:$0xff]
        %6062 = vst [vmem:[#allocation1] ss:$9 sm:$0xff] %v3962
        %6063 = vst [vmem:[%s5651] ss:$9 sm:$0xff] %v3963
        %6064 = vst [vmem:[%s5653] ss:$9 sm:$0xff] %v3964
        %6065 = vst [vmem:[%s5655] ss:$9 sm:$0xff] %v3965
        %6066 = vst [vmem:[%s5657] ss:$9 sm:$0xff] %v3966
        %6067 = vst [vmem:[%s5659] ss:$9 sm:$0xff] %v3967
        %6068 = vst [vmem:[%s5661] ss:$9 sm:$0xff] %v3968
        %6069 = vst [vmem:[%s5663] ss:$9 sm:$0xff] %v3969
        %v6070 = vld [vmem:[#allocation1] sm:$0xff]
        %6071 = vst [vmem:[#allocation1] ss:$9 sm:$0xff] %v3970
        %6072 = vst [vmem:[%s5651] ss:$9 sm:$0xff] %v3971
        %6073 = vst [vmem:[%s5653] ss:$9 sm:$0xff] %v3972
        %6074 = vst [vmem:[%s5655] ss:$9 sm:$0xff] %v3973
        %6075 = vst [vmem:[%s5657] ss:$9 sm:$0xff] %v3974
        %6076 = vst [vmem:[%s5659] ss:$9 sm:$0xff] %v3975
        %6077 = vst [vmem:[%s5661] ss:$9 sm:$0xff] %v3976
        %6078 = vst [vmem:[%s5663] ss:$9 sm:$0xff] %v3977
        %v6079 = vld [vmem:[#allocation1] sm:$0xff]
        %6080 = vst [vmem:[#allocation1] ss:$9 sm:$0xff] %v3978
        %6081 = vst [vmem:[%s5651] ss:$9 sm:$0xff] %v3979
        %6082 = vst [vmem:[%s5653] ss:$9 sm:$0xff] %v3980
        %6083 = vst [vmem:[%s5655] ss:$9 sm:$0xff] %v3981
        %6084 = vst [vmem:[%s5657] ss:$9 sm:$0xff] %v3982
        %6085 = vst [vmem:[%s5659] ss:$9 sm:$0xff] %v3983
        %6086 = vst [vmem:[%s5661] ss:$9 sm:$0xff] %v3984
        %6087 = vst [vmem:[%s5663] ss:$9 sm:$0xff] %v3985
        %v6088 = vld [vmem:[#allocation1] sm:$0xff]
        %6089 = vst [vmem:[#allocation1] ss:$9 sm:$0xff] %v3986
        %6090 = vst [vmem:[%s5651] ss:$9 sm:$0xff] %v3987
        %6091 = vst [vmem:[%s5653] ss:$9 sm:$0xff] %v3988
        %6092 = vst [vmem:[%s5655] ss:$9 sm:$0xff] %v3989
        %6093 = vst [vmem:[%s5657] ss:$9 sm:$0xff] %v3990
        %6094 = vst [vmem:[%s5659] ss:$9 sm:$0xff] %v3991
        %6095 = vst [vmem:[%s5661] ss:$9 sm:$0xff] %v3992
        %6096 = vst [vmem:[%s5663] ss:$9 sm:$0xff] %v3993
        %v6097 = vld [vmem:[#allocation1] sm:$0xff]
        %6098 = vst [vmem:[#allocation1] ss:$9 sm:$0xff] %v3994
        %6099 = vst [vmem:[%s5651] ss:$9 sm:$0xff] %v3995
        %6100 = vst [vmem:[%s5653] ss:$9 sm:$0xff] %v3996
        %6101 = vst [vmem:[%s5655] ss:$9 sm:$0xff] %v3997
        %6102 = vst [vmem:[%s5657] ss:$9 sm:$0xff] %v3998
        %6103 = vst [vmem:[%s5659] ss:$9 sm:$0xff] %v3999
        %6104 = vst [vmem:[%s5661] ss:$9 sm:$0xff] %v4000
        %6105 = vst [vmem:[%s5663] ss:$9 sm:$0xff] %v4001
        %v6106 = vld [vmem:[#allocation1] sm:$0xff]
        %6107 = vst [vmem:[#allocation1] ss:$9 sm:$0xff] %v4002
        %6108 = vst [vmem:[%s5651] ss:$9 sm:$0xff] %v4003
        %6109 = vst [vmem:[%s5653] ss:$9 sm:$0xff] %v4004
        %6110 = vst [vmem:[%s5655] ss:$9 sm:$0xff] %v4005
        %6111 = vst [vmem:[%s5657] ss:$9 sm:$0xff] %v4006
        %6112 = vst [vmem:[%s5659] ss:$9 sm:$0xff] %v4007
        %6113 = vst [vmem:[%s5661] ss:$9 sm:$0xff] %v4008
        %6114 = vst [vmem:[%s5663] ss:$9 sm:$0xff] %v4009
        %v6115 = vld [vmem:[#allocation1] sm:$0xff]
        %6116 = vst [vmem:[#allocation1] ss:$9 sm:$0xff] %v4010
        %6117 = vst [vmem:[%s5651] ss:$9 sm:$0xff] %v4011
        %6118 = vst [vmem:[%s5653] ss:$9 sm:$0xff] %v4012
        %6119 = vst [vmem:[%s5655] ss:$9 sm:$0xff] %v4013
        %6120 = vst [vmem:[%s5657] ss:$9 sm:$0xff] %v4014
        %6121 = vst [vmem:[%s5659] ss:$9 sm:$0xff] %v4015
        %6122 = vst [vmem:[%s5661] ss:$9 sm:$0xff] %v4016
        %6123 = vst [vmem:[%s5663] ss:$9 sm:$0xff] %v4017
        %v6124 = vld [vmem:[#allocation1] sm:$0xff]
        %6125 = vst [vmem:[#allocation1] ss:$9 sm:$0xff] %v4018
        %6126 = vst [vmem:[%s5651] ss:$9 sm:$0xff] %v4019
        %6127 = vst [vmem:[%s5653] ss:$9 sm:$0xff] %v4020
        %6128 = vst [vmem:[%s5655] ss:$9 sm:$0xff] %v4021
        %6129 = vst [vmem:[%s5657] ss:$9 sm:$0xff] %v4022
        %6130 = vst [vmem:[%s5659] ss:$9 sm:$0xff] %v4023
        %6131 = vst [vmem:[%s5661] ss:$9 sm:$0xff] %v4024
        %6132 = vst [vmem:[%s5663] ss:$9 sm:$0xff] %v4025
        %v6133 = vld [vmem:[#allocation1] sm:$0xff]
        %6134 = vst [vmem:[#allocation1] ss:$9 sm:$0xff] %v4026
        %6135 = vst [vmem:[%s5651] ss:$9 sm:$0xff] %v4027
        %6136 = vst [vmem:[%s5653] ss:$9 sm:$0xff] %v4028
        %6137 = vst [vmem:[%s5655] ss:$9 sm:$0xff] %v4029
        %6138 = vst [vmem:[%s5657] ss:$9 sm:$0xff] %v4030
        %6139 = vst [vmem:[%s5659] ss:$9 sm:$0xff] %v4031
        %6140 = vst [vmem:[%s5661] ss:$9 sm:$0xff] %v4032
        %6141 = vst [vmem:[%s5663] ss:$9 sm:$0xff] %v4033
        %v6142 = vld [vmem:[#allocation1] sm:$0xff]
        %6143 = vst [vmem:[#allocation1] ss:$9 sm:$0xff] %v4034
        %6144 = vst [vmem:[%s5651] ss:$9 sm:$0xff] %v4035
        %6145 = vst [vmem:[%s5653] ss:$9 sm:$0xff] %v4036
        %6146 = vst [vmem:[%s5655] ss:$9 sm:$0xff] %v4037
        %6147 = vst [vmem:[%s5657] ss:$9 sm:$0xff] %v4038
        %6148 = vst [vmem:[%s5659] ss:$9 sm:$0xff] %v4039
        %6149 = vst [vmem:[%s5661] ss:$9 sm:$0xff] %v4040
        %6150 = vst [vmem:[%s5663] ss:$9 sm:$0xff] %v4041
        %v6151 = vld [vmem:[#allocation1] sm:$0xff]
        %6152 = vst [vmem:[#allocation1] ss:$9 sm:$0xff] %v4042
        %6153 = vst [vmem:[%s5651] ss:$9 sm:$0xff] %v4043
        %6154 = vst [vmem:[%s5653] ss:$9 sm:$0xff] %v4044
        %6155 = vst [vmem:[%s5655] ss:$9 sm:$0xff] %v4045
        %6156 = vst [vmem:[%s5657] ss:$9 sm:$0xff] %v4046
        %6157 = vst [vmem:[%s5659] ss:$9 sm:$0xff] %v4047
        %6158 = vst [vmem:[%s5661] ss:$9 sm:$0xff] %v4048
        %6159 = vst [vmem:[%s5663] ss:$9 sm:$0xff] %v4049
        %v6160 = vld [vmem:[#allocation1] sm:$0xff]
        %6161 = vst [vmem:[#allocation1] ss:$9 sm:$0xff] %v4050
        %6162 = vst [vmem:[%s5651] ss:$9 sm:$0xff] %v4051
        %6163 = vst [vmem:[%s5653] ss:$9 sm:$0xff] %v4052
        %6164 = vst [vmem:[%s5655] ss:$9 sm:$0xff] %v4053
        %6165 = vst [vmem:[%s5657] ss:$9 sm:$0xff] %v4054
        %6166 = vst [vmem:[%s5659] ss:$9 sm:$0xff] %v4055
        %6167 = vst [vmem:[%s5661] ss:$9 sm:$0xff] %v4056
        %6168 = vst [vmem:[%s5663] ss:$9 sm:$0xff] %v4057
        %v6169 = vld [vmem:[#allocation1] sm:$0xff]
        %6170 = vst [vmem:[#allocation1] ss:$9 sm:$0xff] %v4058
        %6171 = vst [vmem:[%s5651] ss:$9 sm:$0xff] %v4059
        %6172 = vst [vmem:[%s5653] ss:$9 sm:$0xff] %v4060
        %6173 = vst [vmem:[%s5655] ss:$9 sm:$0xff] %v4061
        %6174 = vst [vmem:[%s5657] ss:$9 sm:$0xff] %v4062
        %6175 = vst [vmem:[%s5659] ss:$9 sm:$0xff] %v4063
        %6176 = vst [vmem:[%s5661] ss:$9 sm:$0xff] %v4064
        %6177 = vst [vmem:[%s5663] ss:$9 sm:$0xff] %v4065
        %v6178 = vld [vmem:[#allocation1] sm:$0xff]
        %6179 = vst [vmem:[#allocation1] ss:$9 sm:$0xff] %v4066
        %6180 = vst [vmem:[%s5651] ss:$9 sm:$0xff] %v4067
        %6181 = vst [vmem:[%s5653] ss:$9 sm:$0xff] %v4068
        %6182 = vst [vmem:[%s5655] ss:$9 sm:$0xff] %v4069
        %6183 = vst [vmem:[%s5657] ss:$9 sm:$0xff] %v4070
        %6184 = vst [vmem:[%s5659] ss:$9 sm:$0xff] %v4071
        %6185 = vst [vmem:[%s5661] ss:$9 sm:$0xff] %v4072
        %6186 = vst [vmem:[%s5663] ss:$9 sm:$0xff] %v4073
        %v6187 = vld [vmem:[#allocation1] sm:$0xff]
        %6188 = vst [vmem:[#allocation1] ss:$9 sm:$0xff] %v4074
        %6189 = vst [vmem:[%s5651] ss:$9 sm:$0xff] %v4075
        %6190 = vst [vmem:[%s5653] ss:$9 sm:$0xff] %v4076
        %6191 = vst [vmem:[%s5655] ss:$9 sm:$0xff] %v4077
        %6192 = vst [vmem:[%s5657] ss:$9 sm:$0xff] %v4078
        %6193 = vst [vmem:[%s5659] ss:$9 sm:$0xff] %v4079
        %6194 = vst [vmem:[%s5661] ss:$9 sm:$0xff] %v4080
        %6195 = vst [vmem:[%s5663] ss:$9 sm:$0xff] %v4081
        %v6196 = vld [vmem:[#allocation1] sm:$0xff]
        %6197 = vst [vmem:[#allocation1] ss:$9 sm:$0xff] %v4082
        %6198 = vst [vmem:[%s5651] ss:$9 sm:$0xff] %v4083
        %6199 = vst [vmem:[%s5653] ss:$9 sm:$0xff] %v4084
        %6200 = vst [vmem:[%s5655] ss:$9 sm:$0xff] %v4085
        %6201 = vst [vmem:[%s5657] ss:$9 sm:$0xff] %v4086
        %6202 = vst [vmem:[%s5659] ss:$9 sm:$0xff] %v4087
        %6203 = vst [vmem:[%s5661] ss:$9 sm:$0xff] %v4088
        %6204 = vst [vmem:[%s5663] ss:$9 sm:$0xff] %v4089
        %v6205 = vld [vmem:[#allocation1] sm:$0xff]
        %6206 = vst [vmem:[#allocation1] ss:$9 sm:$0xff] %v4090
        %6207 = vst [vmem:[%s5651] ss:$9 sm:$0xff] %v4091
        %6208 = vst [vmem:[%s5653] ss:$9 sm:$0xff] %v4092
        %6209 = vst [vmem:[%s5655] ss:$9 sm:$0xff] %v4093
        %6210 = vst [vmem:[%s5657] ss:$9 sm:$0xff] %v4094
        %6211 = vst [vmem:[%s5659] ss:$9 sm:$0xff] %v4095
        %6212 = vst [vmem:[%s5661] ss:$9 sm:$0xff] %v4096
        %6213 = vst [vmem:[%s5663] ss:$9 sm:$0xff] %v4097
        %v6214 = vld [vmem:[#allocation1] sm:$0xff]
        %6215 = vst [vmem:[#allocation1] ss:$9 sm:$0xff] %v4098
        %6216 = vst [vmem:[%s5651] ss:$9 sm:$0xff] %v4099
        %6217 = vst [vmem:[%s5653] ss:$9 sm:$0xff] %v4100
        %6218 = vst [vmem:[%s5655] ss:$9 sm:$0xff] %v4101
        %6219 = vst [vmem:[%s5657] ss:$9 sm:$0xff] %v4102
        %6220 = vst [vmem:[%s5659] ss:$9 sm:$0xff] %v4103
        %6221 = vst [vmem:[%s5661] ss:$9 sm:$0xff] %v4104
        %6222 = vst [vmem:[%s5663] ss:$9 sm:$0xff] %v4105
        %v6223 = vld [vmem:[#allocation1] sm:$0xff]
        %6224 = vst [vmem:[#allocation1] ss:$9 sm:$0xff] %v4106
        %6225 = vst [vmem:[%s5651] ss:$9 sm:$0xff] %v4107
        %6226 = vst [vmem:[%s5653] ss:$9 sm:$0xff] %v4108
        %6227 = vst [vmem:[%s5655] ss:$9 sm:$0xff] %v4109
        %6228 = vst [vmem:[%s5657] ss:$9 sm:$0xff] %v4110
        %6229 = vst [vmem:[%s5659] ss:$9 sm:$0xff] %v4111
        %6230 = vst [vmem:[%s5661] ss:$9 sm:$0xff] %v4112
        %6231 = vst [vmem:[%s5663] ss:$9 sm:$0xff] %v4113
        %v6232 = vld [vmem:[#allocation1] sm:$0xff]
        %6233 = vst [vmem:[#allocation1] ss:$9 sm:$0xff] %v4114
        %6234 = vst [vmem:[%s5651] ss:$9 sm:$0xff] %v4115
        %6235 = vst [vmem:[%s5653] ss:$9 sm:$0xff] %v4116
        %6236 = vst [vmem:[%s5655] ss:$9 sm:$0xff] %v4117
        %6237 = vst [vmem:[%s5657] ss:$9 sm:$0xff] %v4118
        %6238 = vst [vmem:[%s5659] ss:$9 sm:$0xff] %v4119
        %6239 = vst [vmem:[%s5661] ss:$9 sm:$0xff] %v4120
        %6240 = vst [vmem:[%s5663] ss:$9 sm:$0xff] %v4121
        %v6241 = vld [vmem:[#allocation1] sm:$0xff]
        %6242 = vst [vmem:[#allocation1] ss:$9 sm:$0xff] %v4122
        %6243 = vst [vmem:[%s5651] ss:$9 sm:$0xff] %v4123
        %6244 = vst [vmem:[%s5653] ss:$9 sm:$0xff] %v4124
        %6245 = vst [vmem:[%s5655] ss:$9 sm:$0xff] %v4125
        %6246 = vst [vmem:[%s5657] ss:$9 sm:$0xff] %v4126
        %6247 = vst [vmem:[%s5659] ss:$9 sm:$0xff] %v4127
        %6248 = vst [vmem:[%s5661] ss:$9 sm:$0xff] %v4128
        %6249 = vst [vmem:[%s5663] ss:$9 sm:$0xff] %v4129
        %v6250 = vld [vmem:[#allocation1] sm:$0xff]
        %6251 = vst [vmem:[#allocation1] ss:$9 sm:$0xff] %v4130
        %6252 = vst [vmem:[%s5651] ss:$9 sm:$0xff] %v4131
        %6253 = vst [vmem:[%s5653] ss:$9 sm:$0xff] %v4132
        %6254 = vst [vmem:[%s5655] ss:$9 sm:$0xff] %v4133
        %6255 = vst [vmem:[%s5657] ss:$9 sm:$0xff] %v4134
        %6256 = vst [vmem:[%s5659] ss:$9 sm:$0xff] %v4135
        %6257 = vst [vmem:[%s5661] ss:$9 sm:$0xff] %v4136
        %6258 = vst [vmem:[%s5663] ss:$9 sm:$0xff] %v4137
        %v6259 = vld [vmem:[#allocation1] sm:$0xff]
        %6260 = vst [vmem:[#allocation1] ss:$9 sm:$0xff] %v4138
        %6261 = vst [vmem:[%s5651] ss:$9 sm:$0xff] %v4139
        %6262 = vst [vmem:[%s5653] ss:$9 sm:$0xff] %v4140
        %6263 = vst [vmem:[%s5655] ss:$9 sm:$0xff] %v4141
        %6264 = vst [vmem:[%s5657] ss:$9 sm:$0xff] %v4142
        %6265 = vst [vmem:[%s5659] ss:$9 sm:$0xff] %v4143
        %6266 = vst [vmem:[%s5661] ss:$9 sm:$0xff] %v4144
        %6267 = vst [vmem:[%s5663] ss:$9 sm:$0xff] %v4145
        %v6268 = vld [vmem:[#allocation1] sm:$0xff]
        %6269 = vst [vmem:[#allocation1] ss:$9 sm:$0xff] %v4146
        %6270 = vst [vmem:[%s5651] ss:$9 sm:$0xff] %v4147
        %6271 = vst [vmem:[%s5653] ss:$9 sm:$0xff] %v4148
        %6272 = vst [vmem:[%s5655] ss:$9 sm:$0xff] %v4149
        %6273 = vst [vmem:[%s5657] ss:$9 sm:$0xff] %v4150
        %6274 = vst [vmem:[%s5659] ss:$9 sm:$0xff] %v4151
        %6275 = vst [vmem:[%s5661] ss:$9 sm:$0xff] %v4152
        %6276 = vst [vmem:[%s5663] ss:$9 sm:$0xff] %v4153
        %v6277 = vld [vmem:[#allocation1] sm:$0xff]
        %6278 = vst [vmem:[#allocation1] ss:$9 sm:$0xff] %v4154
        %6279 = vst [vmem:[%s5651] ss:$9 sm:$0xff] %v4155
        %6280 = vst [vmem:[%s5653] ss:$9 sm:$0xff] %v4156
        %6281 = vst [vmem:[%s5655] ss:$9 sm:$0xff] %v4157
        %6282 = vst [vmem:[%s5657] ss:$9 sm:$0xff] %v4158
        %6283 = vst [vmem:[%s5659] ss:$9 sm:$0xff] %v4159
        %6284 = vst [vmem:[%s5661] ss:$9 sm:$0xff] %v4160
        %6285 = vst [vmem:[%s5663] ss:$9 sm:$0xff] %v4161
        %v6286 = vld [vmem:[#allocation1] sm:$0xff]
        %6287 = vst [vmem:[#allocation1] ss:$9 sm:$0xff] %v4162
        %6288 = vst [vmem:[%s5651] ss:$9 sm:$0xff] %v4163
        %6289 = vst [vmem:[%s5653] ss:$9 sm:$0xff] %v4164
        %6290 = vst [vmem:[%s5655] ss:$9 sm:$0xff] %v4165
        %6291 = vst [vmem:[%s5657] ss:$9 sm:$0xff] %v4166
        %6292 = vst [vmem:[%s5659] ss:$9 sm:$0xff] %v4167
        %6293 = vst [vmem:[%s5661] ss:$9 sm:$0xff] %v4168
        %6294 = vst [vmem:[%s5663] ss:$9 sm:$0xff] %v4169
        %v6295 = vld [vmem:[#allocation1] sm:$0xff]
        %6296 = vst [vmem:[#allocation1] ss:$9 sm:$0xff] %v4170
        %6297 = vst [vmem:[%s5651] ss:$9 sm:$0xff] %v4171
        %6298 = vst [vmem:[%s5653] ss:$9 sm:$0xff] %v4172
        %6299 = vst [vmem:[%s5655] ss:$9 sm:$0xff] %v4173
        %6300 = vst [vmem:[%s5657] ss:$9 sm:$0xff] %v4174
        %6301 = vst [vmem:[%s5659] ss:$9 sm:$0xff] %v4175
        %6302 = vst [vmem:[%s5661] ss:$9 sm:$0xff] %v4176
        %6303 = vst [vmem:[%s5663] ss:$9 sm:$0xff] %v4177
        %v6304 = vld [vmem:[#allocation1] sm:$0xff]
        %6305 = vst [vmem:[#allocation1] ss:$9 sm:$0xff] %v4178
        %6306 = vst [vmem:[%s5651] ss:$9 sm:$0xff] %v4179
        %6307 = vst [vmem:[%s5653] ss:$9 sm:$0xff] %v4180
        %6308 = vst [vmem:[%s5655] ss:$9 sm:$0xff] %v4181
        %6309 = vst [vmem:[%s5657] ss:$9 sm:$0xff] %v4182
        %6310 = vst [vmem:[%s5659] ss:$9 sm:$0xff] %v4183
        %6311 = vst [vmem:[%s5661] ss:$9 sm:$0xff] %v4184
        %6312 = vst [vmem:[%s5663] ss:$9 sm:$0xff] %v4185
        %v6313 = vld [vmem:[#allocation1] sm:$0xff]
        %6314 = vst [vmem:[#allocation1] ss:$9 sm:$0xff] %v4186
        %6315 = vst [vmem:[%s5651] ss:$9 sm:$0xff] %v4187
        %6316 = vst [vmem:[%s5653] ss:$9 sm:$0xff] %v4188
        %6317 = vst [vmem:[%s5655] ss:$9 sm:$0xff] %v4189
        %6318 = vst [vmem:[%s5657] ss:$9 sm:$0xff] %v4190
        %6319 = vst [vmem:[%s5659] ss:$9 sm:$0xff] %v4191
        %6320 = vst [vmem:[%s5661] ss:$9 sm:$0xff] %v4192
        %6321 = vst [vmem:[%s5663] ss:$9 sm:$0xff] %v4193
        %v6322 = vld [vmem:[#allocation1] sm:$0xff]
        %6323 = vst [vmem:[#allocation1] ss:$9 sm:$0xff] %v4194
        %6324 = vst [vmem:[%s5651] ss:$9 sm:$0xff] %v4195
        %6325 = vst [vmem:[%s5653] ss:$9 sm:$0xff] %v4196
        %6326 = vst [vmem:[%s5655] ss:$9 sm:$0xff] %v4197
        %6327 = vst [vmem:[%s5657] ss:$9 sm:$0xff] %v4198
        %6328 = vst [vmem:[%s5659] ss:$9 sm:$0xff] %v4199
        %6329 = vst [vmem:[%s5661] ss:$9 sm:$0xff] %v4200
        %6330 = vst [vmem:[%s5663] ss:$9 sm:$0xff] %v4201
        %v6331 = vld [vmem:[#allocation1] sm:$0xff]
        %6332 = vst [vmem:[#allocation1] ss:$9 sm:$0xff] %v4202
        %6333 = vst [vmem:[%s5651] ss:$9 sm:$0xff] %v4203
        %6334 = vst [vmem:[%s5653] ss:$9 sm:$0xff] %v4204
        %6335 = vst [vmem:[%s5655] ss:$9 sm:$0xff] %v4205
        %6336 = vst [vmem:[%s5657] ss:$9 sm:$0xff] %v4206
        %6337 = vst [vmem:[%s5659] ss:$9 sm:$0xff] %v4207
        %6338 = vst [vmem:[%s5661] ss:$9 sm:$0xff] %v4208
        %6339 = vst [vmem:[%s5663] ss:$9 sm:$0xff] %v4209
        %v6340 = vld [vmem:[#allocation1] sm:$0xff]
        %6341 = vst [vmem:[#allocation1] ss:$9 sm:$0xff] %v4210
        %6342 = vst [vmem:[%s5651] ss:$9 sm:$0xff] %v4211
        %6343 = vst [vmem:[%s5653] ss:$9 sm:$0xff] %v4212
        %6344 = vst [vmem:[%s5655] ss:$9 sm:$0xff] %v4213
        %6345 = vst [vmem:[%s5657] ss:$9 sm:$0xff] %v4214
        %6346 = vst [vmem:[%s5659] ss:$9 sm:$0xff] %v4215
        %6347 = vst [vmem:[%s5661] ss:$9 sm:$0xff] %v4216
        %6348 = vst [vmem:[%s5663] ss:$9 sm:$0xff] %v4217
        %v6349 = vld [vmem:[#allocation1] sm:$0xff]
        %6350 = vst [vmem:[#allocation1] ss:$9 sm:$0xff] %v4218
        %6351 = vst [vmem:[%s5651] ss:$9 sm:$0xff] %v4219
        %6352 = vst [vmem:[%s5653] ss:$9 sm:$0xff] %v4220
        %6353 = vst [vmem:[%s5655] ss:$9 sm:$0xff] %v4221
        %6354 = vst [vmem:[%s5657] ss:$9 sm:$0xff] %v4222
        %6355 = vst [vmem:[%s5659] ss:$9 sm:$0xff] %v4223
        %6356 = vst [vmem:[%s5661] ss:$9 sm:$0xff] %v4224
        %6357 = vst [vmem:[%s5663] ss:$9 sm:$0xff] %v4225
        %v6358 = vld [vmem:[#allocation1] sm:$0xff]
        %6359 = vst [vmem:[#allocation1] ss:$9 sm:$0xff] %v4226
        %6360 = vst [vmem:[%s5651] ss:$9 sm:$0xff] %v4227
        %6361 = vst [vmem:[%s5653] ss:$9 sm:$0xff] %v4228
        %6362 = vst [vmem:[%s5655] ss:$9 sm:$0xff] %v4229
        %6363 = vst [vmem:[%s5657] ss:$9 sm:$0xff] %v4230
        %6364 = vst [vmem:[%s5659] ss:$9 sm:$0xff] %v4231
        %6365 = vst [vmem:[%s5661] ss:$9 sm:$0xff] %v4232
        %6366 = vst [vmem:[%s5663] ss:$9 sm:$0xff] %v4233
        %v6367 = vld [vmem:[#allocation1] sm:$0xff]
        %6368 = vst [vmem:[#allocation1] ss:$9 sm:$0xff] %v4234
        %6369 = vst [vmem:[%s5651] ss:$9 sm:$0xff] %v4235
        %6370 = vst [vmem:[%s5653] ss:$9 sm:$0xff] %v4236
        %6371 = vst [vmem:[%s5655] ss:$9 sm:$0xff] %v4237
        %6372 = vst [vmem:[%s5657] ss:$9 sm:$0xff] %v4238
        %6373 = vst [vmem:[%s5659] ss:$9 sm:$0xff] %v4239
        %6374 = vst [vmem:[%s5661] ss:$9 sm:$0xff] %v4240
        %6375 = vst [vmem:[%s5663] ss:$9 sm:$0xff] %v4241
        %v6376 = vld [vmem:[#allocation1] sm:$0xff]
        %6377 = vst [vmem:[#allocation1] ss:$9 sm:$0xff] %v4242
        %6378 = vst [vmem:[%s5651] ss:$9 sm:$0xff] %v4243
        %6379 = vst [vmem:[%s5653] ss:$9 sm:$0xff] %v4244
        %6380 = vst [vmem:[%s5655] ss:$9 sm:$0xff] %v4245
        %6381 = vst [vmem:[%s5657] ss:$9 sm:$0xff] %v4246
        %6382 = vst [vmem:[%s5659] ss:$9 sm:$0xff] %v4247
        %6383 = vst [vmem:[%s5661] ss:$9 sm:$0xff] %v4248
        %6384 = vst [vmem:[%s5663] ss:$9 sm:$0xff] %v4249
        %v6385 = vld [vmem:[#allocation1] sm:$0xff]
        %6386 = vst [vmem:[#allocation1] ss:$9 sm:$0xff] %v4250
        %6387 = vst [vmem:[%s5651] ss:$9 sm:$0xff] %v4251
        %6388 = vst [vmem:[%s5653] ss:$9 sm:$0xff] %v4252
        %6389 = vst [vmem:[%s5655] ss:$9 sm:$0xff] %v4253
        %6390 = vst [vmem:[%s5657] ss:$9 sm:$0xff] %v4254
        %6391 = vst [vmem:[%s5659] ss:$9 sm:$0xff] %v4255
        %6392 = vst [vmem:[%s5661] ss:$9 sm:$0xff] %v4256
        %6393 = vst [vmem:[%s5663] ss:$9 sm:$0xff] %v4257
        %v6394 = vld [vmem:[#allocation1] sm:$0xff]
        %6395 = vst [vmem:[#allocation1] ss:$9 sm:$0xff] %v4258
        %6396 = vst [vmem:[%s5651] ss:$9 sm:$0xff] %v4259
        %6397 = vst [vmem:[%s5653] ss:$9 sm:$0xff] %v4260
        %6398 = vst [vmem:[%s5655] ss:$9 sm:$0xff] %v4261
        %6399 = vst [vmem:[%s5657] ss:$9 sm:$0xff] %v4262
        %6400 = vst [vmem:[%s5659] ss:$9 sm:$0xff] %v4263
        %6401 = vst [vmem:[%s5661] ss:$9 sm:$0xff] %v4264
        %6402 = vst [vmem:[%s5663] ss:$9 sm:$0xff] %v4265
        %v6403 = vld [vmem:[#allocation1] sm:$0xff]
        %6404 = vst [vmem:[#allocation1] ss:$9 sm:$0xff] %v4266
        %6405 = vst [vmem:[%s5651] ss:$9 sm:$0xff] %v4267
        %6406 = vst [vmem:[%s5653] ss:$9 sm:$0xff] %v4268
        %6407 = vst [vmem:[%s5655] ss:$9 sm:$0xff] %v4269
        %6408 = vst [vmem:[%s5657] ss:$9 sm:$0xff] %v4270
        %6409 = vst [vmem:[%s5659] ss:$9 sm:$0xff] %v4271
        %6410 = vst [vmem:[%s5661] ss:$9 sm:$0xff] %v4272
        %6411 = vst [vmem:[%s5663] ss:$9 sm:$0xff] %v4273
        %v6412 = vld [vmem:[#allocation1] sm:$0xff]
        %6413 = vst [vmem:[#allocation1] ss:$9 sm:$0xff] %v4274
        %6414 = vst [vmem:[%s5651] ss:$9 sm:$0xff] %v4275
        %6415 = vst [vmem:[%s5653] ss:$9 sm:$0xff] %v4276
        %6416 = vst [vmem:[%s5655] ss:$9 sm:$0xff] %v4277
        %6417 = vst [vmem:[%s5657] ss:$9 sm:$0xff] %v4278
        %6418 = vst [vmem:[%s5659] ss:$9 sm:$0xff] %v4279
        %6419 = vst [vmem:[%s5661] ss:$9 sm:$0xff] %v4280
        %6420 = vst [vmem:[%s5663] ss:$9 sm:$0xff] %v4281
        %v6421 = vld [vmem:[#allocation1] sm:$0xff]
        %6422 = vst [vmem:[#allocation1] ss:$9 sm:$0xff] %v4282
        %6423 = vst [vmem:[%s5651] ss:$9 sm:$0xff] %v4283
        %6424 = vst [vmem:[%s5653] ss:$9 sm:$0xff] %v4284
        %6425 = vst [vmem:[%s5655] ss:$9 sm:$0xff] %v4285
        %6426 = vst [vmem:[%s5657] ss:$9 sm:$0xff] %v4286
        %6427 = vst [vmem:[%s5659] ss:$9 sm:$0xff] %v4287
        %6428 = vst [vmem:[%s5661] ss:$9 sm:$0xff] %v4288
        %6429 = vst [vmem:[%s5663] ss:$9 sm:$0xff] %v4289
        %v6430 = vld [vmem:[#allocation1] sm:$0xff]
        %6431 = vst [vmem:[#allocation1] ss:$9 sm:$0xff] %v4290
        %6432 = vst [vmem:[%s5651] ss:$9 sm:$0xff] %v4291
        %6433 = vst [vmem:[%s5653] ss:$9 sm:$0xff] %v4292
        %6434 = vst [vmem:[%s5655] ss:$9 sm:$0xff] %v4293
        %6435 = vst [vmem:[%s5657] ss:$9 sm:$0xff] %v4294
        %6436 = vst [vmem:[%s5659] ss:$9 sm:$0xff] %v4295
        %6437 = vst [vmem:[%s5661] ss:$9 sm:$0xff] %v4296
        %6438 = vst [vmem:[%s5663] ss:$9 sm:$0xff] %v4297
        %v6439 = vld [vmem:[#allocation1] sm:$0xff]
        %6440 = vst [vmem:[#allocation1] ss:$9 sm:$0xff] %v4298
        %6441 = vst [vmem:[%s5651] ss:$9 sm:$0xff] %v4299
        %6442 = vst [vmem:[%s5653] ss:$9 sm:$0xff] %v4300
        %6443 = vst [vmem:[%s5655] ss:$9 sm:$0xff] %v4301
        %6444 = vst [vmem:[%s5657] ss:$9 sm:$0xff] %v4302
        %6445 = vst [vmem:[%s5659] ss:$9 sm:$0xff] %v4303
        %6446 = vst [vmem:[%s5661] ss:$9 sm:$0xff] %v4304
        %6447 = vst [vmem:[%s5663] ss:$9 sm:$0xff] %v4305
        %v6448 = vld [vmem:[#allocation1] sm:$0xff]
        %6449 = vst [vmem:[#allocation1] ss:$9 sm:$0xff] %v4306
        %6450 = vst [vmem:[%s5651] ss:$9 sm:$0xff] %v4307
        %6451 = vst [vmem:[%s5653] ss:$9 sm:$0xff] %v4308
        %6452 = vst [vmem:[%s5655] ss:$9 sm:$0xff] %v4309
        %6453 = vst [vmem:[%s5657] ss:$9 sm:$0xff] %v4310
        %6454 = vst [vmem:[%s5659] ss:$9 sm:$0xff] %v4311
        %6455 = vst [vmem:[%s5661] ss:$9 sm:$0xff] %v4312
        %6456 = vst [vmem:[%s5663] ss:$9 sm:$0xff] %v4313
        %v6457 = vld [vmem:[#allocation1] sm:$0xff]
        %6458 = vst [vmem:[#allocation1] ss:$9 sm:$0xff] %v4314
        %6459 = vst [vmem:[%s5651] ss:$9 sm:$0xff] %v4315
        %6460 = vst [vmem:[%s5653] ss:$9 sm:$0xff] %v4316
        %6461 = vst [vmem:[%s5655] ss:$9 sm:$0xff] %v4317
        %6462 = vst [vmem:[%s5657] ss:$9 sm:$0xff] %v4318
        %6463 = vst [vmem:[%s5659] ss:$9 sm:$0xff] %v4319
        %6464 = vst [vmem:[%s5661] ss:$9 sm:$0xff] %v4320
        %6465 = vst [vmem:[%s5663] ss:$9 sm:$0xff] %v4321
        %v6466 = vld [vmem:[#allocation1] sm:$0xff]
        %6467 = vst [vmem:[#allocation1] ss:$9 sm:$0xff] %v4322
        %6468 = vst [vmem:[%s5651] ss:$9 sm:$0xff] %v4323
        %6469 = vst [vmem:[%s5653] ss:$9 sm:$0xff] %v4324
        %6470 = vst [vmem:[%s5655] ss:$9 sm:$0xff] %v4325
        %6471 = vst [vmem:[%s5657] ss:$9 sm:$0xff] %v4326
        %6472 = vst [vmem:[%s5659] ss:$9 sm:$0xff] %v4327
        %6473 = vst [vmem:[%s5661] ss:$9 sm:$0xff] %v4328
        %6474 = vst [vmem:[%s5663] ss:$9 sm:$0xff] %v4329
        %v6475 = vld [vmem:[#allocation1] sm:$0xff]
        %6476 = vst [vmem:[#allocation1] ss:$9 sm:$0xff] %v4330
        %6477 = vst [vmem:[%s5651] ss:$9 sm:$0xff] %v4331
        %6478 = vst [vmem:[%s5653] ss:$9 sm:$0xff] %v4332
        %6479 = vst [vmem:[%s5655] ss:$9 sm:$0xff] %v4333
        %6480 = vst [vmem:[%s5657] ss:$9 sm:$0xff] %v4334
        %6481 = vst [vmem:[%s5659] ss:$9 sm:$0xff] %v4335
        %6482 = vst [vmem:[%s5661] ss:$9 sm:$0xff] %v4336
        %6483 = vst [vmem:[%s5663] ss:$9 sm:$0xff] %v4337
        %v6484 = vld [vmem:[#allocation1] sm:$0xff]
        %6485 = vst [vmem:[#allocation1] ss:$9 sm:$0xff] %v4338
        %6486 = vst [vmem:[%s5651] ss:$9 sm:$0xff] %v4339
        %6487 = vst [vmem:[%s5653] ss:$9 sm:$0xff] %v4340
        %6488 = vst [vmem:[%s5655] ss:$9 sm:$0xff] %v4341
        %6489 = vst [vmem:[%s5657] ss:$9 sm:$0xff] %v4342
        %6490 = vst [vmem:[%s5659] ss:$9 sm:$0xff] %v4343
        %6491 = vst [vmem:[%s5661] ss:$9 sm:$0xff] %v4344
        %6492 = vst [vmem:[%s5663] ss:$9 sm:$0xff] %v4345
        %v6493 = vld [vmem:[#allocation1] sm:$0xff]
        %6494 = vst [vmem:[#allocation1] ss:$9 sm:$0xff] %v4346
        %6495 = vst [vmem:[%s5651] ss:$9 sm:$0xff] %v4347
        %6496 = vst [vmem:[%s5653] ss:$9 sm:$0xff] %v4348
        %6497 = vst [vmem:[%s5655] ss:$9 sm:$0xff] %v4349
        %6498 = vst [vmem:[%s5657] ss:$9 sm:$0xff] %v4350
        %6499 = vst [vmem:[%s5659] ss:$9 sm:$0xff] %v4351
        %6500 = vst [vmem:[%s5661] ss:$9 sm:$0xff] %v4352
        %6501 = vst [vmem:[%s5663] ss:$9 sm:$0xff] %v4353
        %v6502 = vld [vmem:[#allocation1] sm:$0xff]
        %6503 = vst [vmem:[#allocation1] ss:$9 sm:$0xff] %v4354
        %6504 = vst [vmem:[%s5651] ss:$9 sm:$0xff] %v4355
        %6505 = vst [vmem:[%s5653] ss:$9 sm:$0xff] %v4356
        %6506 = vst [vmem:[%s5655] ss:$9 sm:$0xff] %v4357
        %6507 = vst [vmem:[%s5657] ss:$9 sm:$0xff] %v4358
        %6508 = vst [vmem:[%s5659] ss:$9 sm:$0xff] %v4359
        %6509 = vst [vmem:[%s5661] ss:$9 sm:$0xff] %v4360
        %6510 = vst [vmem:[%s5663] ss:$9 sm:$0xff] %v4361
        %v6511 = vld [vmem:[#allocation1] sm:$0xff]
        %6512 = vst [vmem:[#allocation1] ss:$9 sm:$0xff] %v4362
        %6513 = vst [vmem:[%s5651] ss:$9 sm:$0xff] %v4363
        %6514 = vst [vmem:[%s5653] ss:$9 sm:$0xff] %v4364
        %6515 = vst [vmem:[%s5655] ss:$9 sm:$0xff] %v4365
        %6516 = vst [vmem:[%s5657] ss:$9 sm:$0xff] %v4366
        %6517 = vst [vmem:[%s5659] ss:$9 sm:$0xff] %v4367
        %6518 = vst [vmem:[%s5661] ss:$9 sm:$0xff] %v4368
        %6519 = vst [vmem:[%s5663] ss:$9 sm:$0xff] %v4369
        %v6520 = vld [vmem:[#allocation1] sm:$0xff]
        %6521 = vst [vmem:[#allocation1] ss:$9 sm:$0xff] %v4370
        %6522 = vst [vmem:[%s5651] ss:$9 sm:$0xff] %v4371
        %6523 = vst [vmem:[%s5653] ss:$9 sm:$0xff] %v4372
        %6524 = vst [vmem:[%s5655] ss:$9 sm:$0xff] %v4373
        %6525 = vst [vmem:[%s5657] ss:$9 sm:$0xff] %v4374
        %6526 = vst [vmem:[%s5659] ss:$9 sm:$0xff] %v4375
        %6527 = vst [vmem:[%s5661] ss:$9 sm:$0xff] %v4376
        %6528 = vst [vmem:[%s5663] ss:$9 sm:$0xff] %v4377
        %v6529 = vld [vmem:[#allocation1] sm:$0xff]
        %6530 = vst [vmem:[#allocation1] ss:$9 sm:$0xff] %v4378
        %6531 = vst [vmem:[%s5651] ss:$9 sm:$0xff] %v4379
        %6532 = vst [vmem:[%s5653] ss:$9 sm:$0xff] %v4380
        %6533 = vst [vmem:[%s5655] ss:$9 sm:$0xff] %v4381
        %6534 = vst [vmem:[%s5657] ss:$9 sm:$0xff] %v4382
        %6535 = vst [vmem:[%s5659] ss:$9 sm:$0xff] %v4383
        %6536 = vst [vmem:[%s5661] ss:$9 sm:$0xff] %v4384
        %6537 = vst [vmem:[%s5663] ss:$9 sm:$0xff] %v4385
        %v6538 = vld [vmem:[#allocation1] sm:$0xff]
        %6539 = vst [vmem:[#allocation1] ss:$9 sm:$0xff] %v4386
        %6540 = vst [vmem:[%s5651] ss:$9 sm:$0xff] %v4387
        %6541 = vst [vmem:[%s5653] ss:$9 sm:$0xff] %v4388
        %6542 = vst [vmem:[%s5655] ss:$9 sm:$0xff] %v4389
        %6543 = vst [vmem:[%s5657] ss:$9 sm:$0xff] %v4390
        %6544 = vst [vmem:[%s5659] ss:$9 sm:$0xff] %v4391
        %6545 = vst [vmem:[%s5661] ss:$9 sm:$0xff] %v4392
        %6546 = vst [vmem:[%s5663] ss:$9 sm:$0xff] %v4393
        %v6547 = vld [vmem:[#allocation1] sm:$0xff]
        %6548 = vst [vmem:[#allocation1] ss:$9 sm:$0xff] %v4394
        %6549 = vst [vmem:[%s5651] ss:$9 sm:$0xff] %v4395
        %6550 = vst [vmem:[%s5653] ss:$9 sm:$0xff] %v4396
        %6551 = vst [vmem:[%s5655] ss:$9 sm:$0xff] %v4397
        %6552 = vst [vmem:[%s5657] ss:$9 sm:$0xff] %v4398
        %6553 = vst [vmem:[%s5659] ss:$9 sm:$0xff] %v4399
        %6554 = vst [vmem:[%s5661] ss:$9 sm:$0xff] %v4400
        %6555 = vst [vmem:[%s5663] ss:$9 sm:$0xff] %v4401
        %v6556 = vld [vmem:[#allocation1] sm:$0xff]
        %6557 = vst [vmem:[#allocation1] ss:$9 sm:$0xff] %v4402
        %6558 = vst [vmem:[%s5651] ss:$9 sm:$0xff] %v4403
        %6559 = vst [vmem:[%s5653] ss:$9 sm:$0xff] %v4404
        %6560 = vst [vmem:[%s5655] ss:$9 sm:$0xff] %v4405
        %6561 = vst [vmem:[%s5657] ss:$9 sm:$0xff] %v4406
        %6562 = vst [vmem:[%s5659] ss:$9 sm:$0xff] %v4407
        %6563 = vst [vmem:[%s5661] ss:$9 sm:$0xff] %v4408
        %6564 = vst [vmem:[%s5663] ss:$9 sm:$0xff] %v4409
        %v6565 = vld [vmem:[#allocation1] sm:$0xff]
        %6566 = vst [vmem:[#allocation1] ss:$9 sm:$0xff] %v4410
        %6567 = vst [vmem:[%s5651] ss:$9 sm:$0xff] %v4411
        %6568 = vst [vmem:[%s5653] ss:$9 sm:$0xff] %v4412
        %6569 = vst [vmem:[%s5655] ss:$9 sm:$0xff] %v4413
        %6570 = vst [vmem:[%s5657] ss:$9 sm:$0xff] %v4414
        %6571 = vst [vmem:[%s5659] ss:$9 sm:$0xff] %v4415
        %6572 = vst [vmem:[%s5661] ss:$9 sm:$0xff] %v4416
        %6573 = vst [vmem:[%s5663] ss:$9 sm:$0xff] %v4417
        %v6574 = vld [vmem:[#allocation1] sm:$0xff]
        %6575 = vst [vmem:[#allocation1] ss:$9 sm:$0xff] %v4418
        %6576 = vst [vmem:[%s5651] ss:$9 sm:$0xff] %v4419
        %6577 = vst [vmem:[%s5653] ss:$9 sm:$0xff] %v4420
        %6578 = vst [vmem:[%s5655] ss:$9 sm:$0xff] %v4421
        %6579 = vst [vmem:[%s5657] ss:$9 sm:$0xff] %v4422
        %6580 = vst [vmem:[%s5659] ss:$9 sm:$0xff] %v4423
        %6581 = vst [vmem:[%s5661] ss:$9 sm:$0xff] %v4424
        %6582 = vst [vmem:[%s5663] ss:$9 sm:$0xff] %v4425
        %v6583 = vld [vmem:[#allocation1] sm:$0xff]
        %6584 = vst [vmem:[#allocation1] ss:$9 sm:$0xff] %v4426
        %6585 = vst [vmem:[%s5651] ss:$9 sm:$0xff] %v4427
        %6586 = vst [vmem:[%s5653] ss:$9 sm:$0xff] %v4428
        %6587 = vst [vmem:[%s5655] ss:$9 sm:$0xff] %v4429
        %6588 = vst [vmem:[%s5657] ss:$9 sm:$0xff] %v4430
        %6589 = vst [vmem:[%s5659] ss:$9 sm:$0xff] %v4431
        %6590 = vst [vmem:[%s5661] ss:$9 sm:$0xff] %v4432
        %6591 = vst [vmem:[%s5663] ss:$9 sm:$0xff] %v4433
        %v6592 = vld [vmem:[#allocation1] sm:$0xff]
        %6593 = vst [vmem:[#allocation1] ss:$9 sm:$0xff] %v4434
        %6594 = vst [vmem:[%s5651] ss:$9 sm:$0xff] %v4435
        %6595 = vst [vmem:[%s5653] ss:$9 sm:$0xff] %v4436
        %6596 = vst [vmem:[%s5655] ss:$9 sm:$0xff] %v4437
        %6597 = vst [vmem:[%s5657] ss:$9 sm:$0xff] %v4438
        %6598 = vst [vmem:[%s5659] ss:$9 sm:$0xff] %v4439
        %6599 = vst [vmem:[%s5661] ss:$9 sm:$0xff] %v4440
        %6600 = vst [vmem:[%s5663] ss:$9 sm:$0xff] %v4441
        %v6601 = vld [vmem:[#allocation1] sm:$0xff]
        %6602 = vst [vmem:[#allocation1] ss:$9 sm:$0xff] %v4442
        %6603 = vst [vmem:[%s5651] ss:$9 sm:$0xff] %v4443
        %6604 = vst [vmem:[%s5653] ss:$9 sm:$0xff] %v4444
        %6605 = vst [vmem:[%s5655] ss:$9 sm:$0xff] %v4445
        %6606 = vst [vmem:[%s5657] ss:$9 sm:$0xff] %v4446
        %6607 = vst [vmem:[%s5659] ss:$9 sm:$0xff] %v4447
        %6608 = vst [vmem:[%s5661] ss:$9 sm:$0xff] %v4448
        %6609 = vst [vmem:[%s5663] ss:$9 sm:$0xff] %v4449
        %v6610 = vld [vmem:[#allocation1] sm:$0xff]
        %6611 = vst [vmem:[#allocation1] ss:$9 sm:$0xff] %v4450
        %6612 = vst [vmem:[%s5651] ss:$9 sm:$0xff] %v4451
        %6613 = vst [vmem:[%s5653] ss:$9 sm:$0xff] %v4452
        %6614 = vst [vmem:[%s5655] ss:$9 sm:$0xff] %v4453
        %6615 = vst [vmem:[%s5657] ss:$9 sm:$0xff] %v4454
        %6616 = vst [vmem:[%s5659] ss:$9 sm:$0xff] %v4455
        %6617 = vst [vmem:[%s5661] ss:$9 sm:$0xff] %v4456
        %6618 = vst [vmem:[%s5663] ss:$9 sm:$0xff] %v4457
        %v6619 = vld [vmem:[#allocation1] sm:$0xff]
        %6620 = vst [vmem:[#allocation1] ss:$9 sm:$0xff] %v4458
        %6621 = vst [vmem:[%s5651] ss:$9 sm:$0xff] %v4459
        %6622 = vst [vmem:[%s5653] ss:$9 sm:$0xff] %v4460
        %6623 = vst [vmem:[%s5655] ss:$9 sm:$0xff] %v4461
        %6624 = vst [vmem:[%s5657] ss:$9 sm:$0xff] %v4462
        %6625 = vst [vmem:[%s5659] ss:$9 sm:$0xff] %v4463
        %6626 = vst [vmem:[%s5661] ss:$9 sm:$0xff] %v4464
        %6627 = vst [vmem:[%s5663] ss:$9 sm:$0xff] %v4465
        %v6628 = vld [vmem:[#allocation1] sm:$0xff]
        %6629 = vst [vmem:[#allocation1] ss:$9 sm:$0xff] %v4466
        %6630 = vst [vmem:[%s5651] ss:$9 sm:$0xff] %v4467
        %6631 = vst [vmem:[%s5653] ss:$9 sm:$0xff] %v4468
        %6632 = vst [vmem:[%s5655] ss:$9 sm:$0xff] %v4469
        %6633 = vst [vmem:[%s5657] ss:$9 sm:$0xff] %v4470
        %6634 = vst [vmem:[%s5659] ss:$9 sm:$0xff] %v4471
        %6635 = vst [vmem:[%s5661] ss:$9 sm:$0xff] %v4472
        %6636 = vst [vmem:[%s5663] ss:$9 sm:$0xff] %v4473
        %v6637 = vld [vmem:[#allocation1] sm:$0xff]
        %6638 = vst [vmem:[#allocation1] ss:$9 sm:$0xff] %v4474
        %6639 = vst [vmem:[%s5651] ss:$9 sm:$0xff] %v4475
        %6640 = vst [vmem:[%s5653] ss:$9 sm:$0xff] %v4476
        %6641 = vst [vmem:[%s5655] ss:$9 sm:$0xff] %v4477
        %6642 = vst [vmem:[%s5657] ss:$9 sm:$0xff] %v4478
        %6643 = vst [vmem:[%s5659] ss:$9 sm:$0xff] %v4479
        %6644 = vst [vmem:[%s5661] ss:$9 sm:$0xff] %v4480
        %6645 = vst [vmem:[%s5663] ss:$9 sm:$0xff] %v4481
        %v6646 = vld [vmem:[#allocation1] sm:$0xff]
        %6647 = vst [vmem:[#allocation1] ss:$9 sm:$0xff] %v4482
        %6648 = vst [vmem:[%s5651] ss:$9 sm:$0xff] %v4483
        %6649 = vst [vmem:[%s5653] ss:$9 sm:$0xff] %v4484
        %6650 = vst [vmem:[%s5655] ss:$9 sm:$0xff] %v4485
        %6651 = vst [vmem:[%s5657] ss:$9 sm:$0xff] %v4486
        %6652 = vst [vmem:[%s5659] ss:$9 sm:$0xff] %v4487
        %6653 = vst [vmem:[%s5661] ss:$9 sm:$0xff] %v4488
        %6654 = vst [vmem:[%s5663] ss:$9 sm:$0xff] %v4489
        %v6655 = vld [vmem:[#allocation1] sm:$0xff]
        %6656 = vst [vmem:[#allocation1] ss:$9 sm:$0xff] %v4490
        %6657 = vst [vmem:[%s5651] ss:$9 sm:$0xff] %v4491
        %6658 = vst [vmem:[%s5653] ss:$9 sm:$0xff] %v4492
        %6659 = vst [vmem:[%s5655] ss:$9 sm:$0xff] %v4493
        %6660 = vst [vmem:[%s5657] ss:$9 sm:$0xff] %v4494
        %6661 = vst [vmem:[%s5659] ss:$9 sm:$0xff] %v4495
        %6662 = vst [vmem:[%s5661] ss:$9 sm:$0xff] %v4496
        %6663 = vst [vmem:[%s5663] ss:$9 sm:$0xff] %v4497
        %v6664 = vld [vmem:[#allocation1] sm:$0xff]
        %6665 = vst [vmem:[#allocation1] ss:$9 sm:$0xff] %v4498
        %6666 = vst [vmem:[%s5651] ss:$9 sm:$0xff] %v4499
        %6667 = vst [vmem:[%s5653] ss:$9 sm:$0xff] %v4500
        %6668 = vst [vmem:[%s5655] ss:$9 sm:$0xff] %v4501
        %6669 = vst [vmem:[%s5657] ss:$9 sm:$0xff] %v4502
        %6670 = vst [vmem:[%s5659] ss:$9 sm:$0xff] %v4503
        %6671 = vst [vmem:[%s5661] ss:$9 sm:$0xff] %v4504
        %6672 = vst [vmem:[%s5663] ss:$9 sm:$0xff] %v4505
        %v6673 = vld [vmem:[#allocation1] sm:$0xff]
        %6674 = vst [vmem:[#allocation1] ss:$9 sm:$0xff] %v4506
        %6675 = vst [vmem:[%s5651] ss:$9 sm:$0xff] %v4507
        %6676 = vst [vmem:[%s5653] ss:$9 sm:$0xff] %v4508
        %6677 = vst [vmem:[%s5655] ss:$9 sm:$0xff] %v4509
        %6678 = vst [vmem:[%s5657] ss:$9 sm:$0xff] %v4510
        %6679 = vst [vmem:[%s5659] ss:$9 sm:$0xff] %v4511
        %6680 = vst [vmem:[%s5661] ss:$9 sm:$0xff] %v4512
        %6681 = vst [vmem:[%s5663] ss:$9 sm:$0xff] %v4513
        %v6682 = vld [vmem:[#allocation1] sm:$0xff]
        %6683 = vst [vmem:[#allocation1] ss:$9 sm:$0xff] %v4514
        %6684 = vst [vmem:[%s5651] ss:$9 sm:$0xff] %v4515
        %6685 = vst [vmem:[%s5653] ss:$9 sm:$0xff] %v4516
        %6686 = vst [vmem:[%s5655] ss:$9 sm:$0xff] %v4517
        %6687 = vst [vmem:[%s5657] ss:$9 sm:$0xff] %v4518
        %6688 = vst [vmem:[%s5659] ss:$9 sm:$0xff] %v4519
        %6689 = vst [vmem:[%s5661] ss:$9 sm:$0xff] %v4520
        %6690 = vst [vmem:[%s5663] ss:$9 sm:$0xff] %v4521
        %v6691 = vld [vmem:[#allocation1] sm:$0xff]
        %6692 = vst [vmem:[#allocation1] ss:$9 sm:$0xff] %v4522
        %6693 = vst [vmem:[%s5651] ss:$9 sm:$0xff] %v4523
        %6694 = vst [vmem:[%s5653] ss:$9 sm:$0xff] %v4524
        %6695 = vst [vmem:[%s5655] ss:$9 sm:$0xff] %v4525
        %6696 = vst [vmem:[%s5657] ss:$9 sm:$0xff] %v4526
        %6697 = vst [vmem:[%s5659] ss:$9 sm:$0xff] %v4527
        %6698 = vst [vmem:[%s5661] ss:$9 sm:$0xff] %v4528
        %6699 = vst [vmem:[%s5663] ss:$9 sm:$0xff] %v4529
        %v6700 = vld [vmem:[#allocation1] sm:$0xff]
        %6701 = vst [vmem:[#allocation1] ss:$9 sm:$0xff] %v4530
        %6702 = vst [vmem:[%s5651] ss:$9 sm:$0xff] %v4531
        %6703 = vst [vmem:[%s5653] ss:$9 sm:$0xff] %v4532
        %6704 = vst [vmem:[%s5655] ss:$9 sm:$0xff] %v4533
        %6705 = vst [vmem:[%s5657] ss:$9 sm:$0xff] %v4534
        %6706 = vst [vmem:[%s5659] ss:$9 sm:$0xff] %v4535
        %6707 = vst [vmem:[%s5661] ss:$9 sm:$0xff] %v4536
        %6708 = vst [vmem:[%s5663] ss:$9 sm:$0xff] %v4537
        %v6709 = vld [vmem:[#allocation1] sm:$0xff]
        %6710 = vst [vmem:[#allocation1] ss:$9 sm:$0xff] %v4538
        %6711 = vst [vmem:[%s5651] ss:$9 sm:$0xff] %v4539
        %6712 = vst [vmem:[%s5653] ss:$9 sm:$0xff] %v4540
        %6713 = vst [vmem:[%s5655] ss:$9 sm:$0xff] %v4541
        %6714 = vst [vmem:[%s5657] ss:$9 sm:$0xff] %v4542
        %6715 = vst [vmem:[%s5659] ss:$9 sm:$0xff] %v4543
        %6716 = vst [vmem:[%s5661] ss:$9 sm:$0xff] %v4544
        %6717 = vst [vmem:[%s5663] ss:$9 sm:$0xff] %v4545
        %v6718 = vld [vmem:[#allocation1] sm:$0xff]
        %6719 = vst [vmem:[#allocation1] ss:$9 sm:$0xff] %v4546
        %6720 = vst [vmem:[%s5651] ss:$9 sm:$0xff] %v4547
        %6721 = vst [vmem:[%s5653] ss:$9 sm:$0xff] %v4548
        %6722 = vst [vmem:[%s5655] ss:$9 sm:$0xff] %v4549
        %6723 = vst [vmem:[%s5657] ss:$9 sm:$0xff] %v4550
        %6724 = vst [vmem:[%s5659] ss:$9 sm:$0xff] %v4551
        %6725 = vst [vmem:[%s5661] ss:$9 sm:$0xff] %v4552
        %6726 = vst [vmem:[%s5663] ss:$9 sm:$0xff] %v4553
        %v6727 = vld [vmem:[#allocation1] sm:$0xff]
        %6728 = vst [vmem:[#allocation1] ss:$9 sm:$0xff] %v4554
        %6729 = vst [vmem:[%s5651] ss:$9 sm:$0xff] %v4555
        %6730 = vst [vmem:[%s5653] ss:$9 sm:$0xff] %v4556
        %6731 = vst [vmem:[%s5655] ss:$9 sm:$0xff] %v4557
        %6732 = vst [vmem:[%s5657] ss:$9 sm:$0xff] %v4558
        %6733 = vst [vmem:[%s5659] ss:$9 sm:$0xff] %v4559
        %6734 = vst [vmem:[%s5661] ss:$9 sm:$0xff] %v4560
        %6735 = vst [vmem:[%s5663] ss:$9 sm:$0xff] %v4561
        %v6736 = vld [vmem:[#allocation1] sm:$0xff]
        %6737 = vst [vmem:[#allocation1] ss:$9 sm:$0xff] %v4562
        %6738 = vst [vmem:[%s5651] ss:$9 sm:$0xff] %v4563
        %6739 = vst [vmem:[%s5653] ss:$9 sm:$0xff] %v4564
        %6740 = vst [vmem:[%s5655] ss:$9 sm:$0xff] %v4565
        %6741 = vst [vmem:[%s5657] ss:$9 sm:$0xff] %v4566
        %6742 = vst [vmem:[%s5659] ss:$9 sm:$0xff] %v4567
        %6743 = vst [vmem:[%s5661] ss:$9 sm:$0xff] %v4568
        %6744 = vst [vmem:[%s5663] ss:$9 sm:$0xff] %v4569
        %v6745 = vld [vmem:[#allocation1] sm:$0xff]
        %6746 = vst [vmem:[#allocation1] ss:$9 sm:$0xff] %v4570
        %6747 = vst [vmem:[%s5651] ss:$9 sm:$0xff] %v4571
        %6748 = vst [vmem:[%s5653] ss:$9 sm:$0xff] %v4572
        %6749 = vst [vmem:[%s5655] ss:$9 sm:$0xff] %v4573
        %6750 = vst [vmem:[%s5657] ss:$9 sm:$0xff] %v4574
        %6751 = vst [vmem:[%s5659] ss:$9 sm:$0xff] %v4575
        %6752 = vst [vmem:[%s5661] ss:$9 sm:$0xff] %v4576
        %6753 = vst [vmem:[%s5663] ss:$9 sm:$0xff] %v4577
        %v6754 = vld [vmem:[#allocation1] sm:$0xff]
        %6755 = vst [vmem:[#allocation1] ss:$9 sm:$0xff] %v4578
        %6756 = vst [vmem:[%s5651] ss:$9 sm:$0xff] %v4579
        %6757 = vst [vmem:[%s5653] ss:$9 sm:$0xff] %v4580
        %6758 = vst [vmem:[%s5655] ss:$9 sm:$0xff] %v4581
        %6759 = vst [vmem:[%s5657] ss:$9 sm:$0xff] %v4582
        %6760 = vst [vmem:[%s5659] ss:$9 sm:$0xff] %v4583
        %6761 = vst [vmem:[%s5661] ss:$9 sm:$0xff] %v4584
        %6762 = vst [vmem:[%s5663] ss:$9 sm:$0xff] %v4585
        %v6763 = vld [vmem:[#allocation1] sm:$0xff]
        %6764 = vst [vmem:[#allocation1] ss:$9 sm:$0xff] %v4586
        %6765 = vst [vmem:[%s5651] ss:$9 sm:$0xff] %v4587
        %6766 = vst [vmem:[%s5653] ss:$9 sm:$0xff] %v4588
        %6767 = vst [vmem:[%s5655] ss:$9 sm:$0xff] %v4589
        %6768 = vst [vmem:[%s5657] ss:$9 sm:$0xff] %v4590
        %6769 = vst [vmem:[%s5659] ss:$9 sm:$0xff] %v4591
        %6770 = vst [vmem:[%s5661] ss:$9 sm:$0xff] %v4592
        %6771 = vst [vmem:[%s5663] ss:$9 sm:$0xff] %v4593
        %v6772 = vld [vmem:[#allocation1] sm:$0xff]
        %6773 = vst [vmem:[#allocation1] ss:$9 sm:$0xff] %v4594
        %6774 = vst [vmem:[%s5651] ss:$9 sm:$0xff] %v4595
        %6775 = vst [vmem:[%s5653] ss:$9 sm:$0xff] %v4596
        %6776 = vst [vmem:[%s5655] ss:$9 sm:$0xff] %v4597
        %6777 = vst [vmem:[%s5657] ss:$9 sm:$0xff] %v4598
        %6778 = vst [vmem:[%s5659] ss:$9 sm:$0xff] %v4599
        %6779 = vst [vmem:[%s5661] ss:$9 sm:$0xff] %v4600
        %6780 = vst [vmem:[%s5663] ss:$9 sm:$0xff] %v4601
        %v6781 = vld [vmem:[#allocation1] sm:$0xff]
        %6782 = vst [vmem:[#allocation1] ss:$9 sm:$0xff] %v4602
        %6783 = vst [vmem:[%s5651] ss:$9 sm:$0xff] %v4603
        %6784 = vst [vmem:[%s5653] ss:$9 sm:$0xff] %v4604
        %6785 = vst [vmem:[%s5655] ss:$9 sm:$0xff] %v4605
        %6786 = vst [vmem:[%s5657] ss:$9 sm:$0xff] %v4606
        %6787 = vst [vmem:[%s5659] ss:$9 sm:$0xff] %v4607
        %6788 = vst [vmem:[%s5661] ss:$9 sm:$0xff] %v4608
        %6789 = vst [vmem:[%s5663] ss:$9 sm:$0xff] %v4609
        %v6790 = vld [vmem:[#allocation1] sm:$0xff]
        %6791 = vst [vmem:[#allocation1] ss:$9 sm:$0xff] %v4610
        %6792 = vst [vmem:[%s5651] ss:$9 sm:$0xff] %v4611
        %6793 = vst [vmem:[%s5653] ss:$9 sm:$0xff] %v4612
        %6794 = vst [vmem:[%s5655] ss:$9 sm:$0xff] %v4613
        %6795 = vst [vmem:[%s5657] ss:$9 sm:$0xff] %v4614
        %6796 = vst [vmem:[%s5659] ss:$9 sm:$0xff] %v4615
        %6797 = vst [vmem:[%s5661] ss:$9 sm:$0xff] %v4616
        %6798 = vst [vmem:[%s5663] ss:$9 sm:$0xff] %v4617
        %v6799 = vld [vmem:[#allocation1] sm:$0xff]
        %6800 = vst [vmem:[#allocation1] ss:$9 sm:$0xff] %v4618
        %6801 = vst [vmem:[%s5651] ss:$9 sm:$0xff] %v4619
        %6802 = vst [vmem:[%s5653] ss:$9 sm:$0xff] %v4620
        %6803 = vst [vmem:[%s5655] ss:$9 sm:$0xff] %v4621
        %6804 = vst [vmem:[%s5657] ss:$9 sm:$0xff] %v4622
        %6805 = vst [vmem:[%s5659] ss:$9 sm:$0xff] %v4623
        %6806 = vst [vmem:[%s5661] ss:$9 sm:$0xff] %v4624
        %6807 = vst [vmem:[%s5663] ss:$9 sm:$0xff] %v4625
        %v6808 = vld [vmem:[#allocation1] sm:$0xff]
        %6809 = vst [vmem:[#allocation1] ss:$9 sm:$0xff] %v4626
        %6810 = vst [vmem:[%s5651] ss:$9 sm:$0xff] %v4627
        %6811 = vst [vmem:[%s5653] ss:$9 sm:$0xff] %v4628
        %6812 = vst [vmem:[%s5655] ss:$9 sm:$0xff] %v4629
        %6813 = vst [vmem:[%s5657] ss:$9 sm:$0xff] %v4630
        %6814 = vst [vmem:[%s5659] ss:$9 sm:$0xff] %v4631
        %6815 = vst [vmem:[%s5661] ss:$9 sm:$0xff] %v4632
        %6816 = vst [vmem:[%s5663] ss:$9 sm:$0xff] %v4633
        %v6817 = vld [vmem:[#allocation1] sm:$0xff]
        %6818 = vst [vmem:[#allocation1] ss:$9 sm:$0xff] %v4634
        %6819 = vst [vmem:[%s5651] ss:$9 sm:$0xff] %v4635
        %6820 = vst [vmem:[%s5653] ss:$9 sm:$0xff] %v4636
        %6821 = vst [vmem:[%s5655] ss:$9 sm:$0xff] %v4637
        %6822 = vst [vmem:[%s5657] ss:$9 sm:$0xff] %v4638
        %6823 = vst [vmem:[%s5659] ss:$9 sm:$0xff] %v4639
        %6824 = vst [vmem:[%s5661] ss:$9 sm:$0xff] %v4640
        %6825 = vst [vmem:[%s5663] ss:$9 sm:$0xff] %v4641
        %v6826 = vld [vmem:[#allocation1] sm:$0xff]
        %6827 = vst [vmem:[#allocation1] ss:$9 sm:$0xff] %v4642
        %6828 = vst [vmem:[%s5651] ss:$9 sm:$0xff] %v4643
        %6829 = vst [vmem:[%s5653] ss:$9 sm:$0xff] %v4644
        %6830 = vst [vmem:[%s5655] ss:$9 sm:$0xff] %v4645
        %6831 = vst [vmem:[%s5657] ss:$9 sm:$0xff] %v4646
        %6832 = vst [vmem:[%s5659] ss:$9 sm:$0xff] %v4647
        %6833 = vst [vmem:[%s5661] ss:$9 sm:$0xff] %v4648
        %6834 = vst [vmem:[%s5663] ss:$9 sm:$0xff] %v4649
        %v6835 = vld [vmem:[#allocation1] sm:$0xff]
        %6836 = vst [vmem:[#allocation1] ss:$9 sm:$0xff] %v4650
        %6837 = vst [vmem:[%s5651] ss:$9 sm:$0xff] %v4651
        %6838 = vst [vmem:[%s5653] ss:$9 sm:$0xff] %v4652
        %6839 = vst [vmem:[%s5655] ss:$9 sm:$0xff] %v4653
        %6840 = vst [vmem:[%s5657] ss:$9 sm:$0xff] %v4654
        %6841 = vst [vmem:[%s5659] ss:$9 sm:$0xff] %v4655
        %6842 = vst [vmem:[%s5661] ss:$9 sm:$0xff] %v4656
        %6843 = vst [vmem:[%s5663] ss:$9 sm:$0xff] %v4657
        %v6844 = vld [vmem:[#allocation1] sm:$0xff]
        %6845 = vst [vmem:[#allocation1] ss:$9 sm:$0xff] %v4658
        %6846 = vst [vmem:[%s5651] ss:$9 sm:$0xff] %v4659
        %6847 = vst [vmem:[%s5653] ss:$9 sm:$0xff] %v4660
        %6848 = vst [vmem:[%s5655] ss:$9 sm:$0xff] %v4661
        %6849 = vst [vmem:[%s5657] ss:$9 sm:$0xff] %v4662
        %6850 = vst [vmem:[%s5659] ss:$9 sm:$0xff] %v4663
        %6851 = vst [vmem:[%s5661] ss:$9 sm:$0xff] %v4664
        %6852 = vst [vmem:[%s5663] ss:$9 sm:$0xff] %v4665
        %v6853 = vld [vmem:[#allocation1] sm:$0xff]
        %6854 = vst [vmem:[#allocation1] ss:$9 sm:$0xff] %v4666
        %6855 = vst [vmem:[%s5651] ss:$9 sm:$0xff] %v4667
        %6856 = vst [vmem:[%s5653] ss:$9 sm:$0xff] %v4668
        %6857 = vst [vmem:[%s5655] ss:$9 sm:$0xff] %v4669
        %6858 = vst [vmem:[%s5657] ss:$9 sm:$0xff] %v4670
        %6859 = vst [vmem:[%s5659] ss:$9 sm:$0xff] %v4671
        %6860 = vst [vmem:[%s5661] ss:$9 sm:$0xff] %v4672
        %6861 = vst [vmem:[%s5663] ss:$9 sm:$0xff] %v4673
        %v6862 = vld [vmem:[#allocation1] sm:$0xff]
        %6863 = vst [vmem:[#allocation1] ss:$9 sm:$0xff] %v4674
        %6864 = vst [vmem:[%s5651] ss:$9 sm:$0xff] %v4675
        %6865 = vst [vmem:[%s5653] ss:$9 sm:$0xff] %v4676
        %6866 = vst [vmem:[%s5655] ss:$9 sm:$0xff] %v4677
        %6867 = vst [vmem:[%s5657] ss:$9 sm:$0xff] %v4678
        %6868 = vst [vmem:[%s5659] ss:$9 sm:$0xff] %v4679
        %6869 = vst [vmem:[%s5661] ss:$9 sm:$0xff] %v4680
        %6870 = vst [vmem:[%s5663] ss:$9 sm:$0xff] %v4681
        %v6871 = vld [vmem:[#allocation1] sm:$0xff]
        %6872 = vst [vmem:[#allocation1] ss:$9 sm:$0xff] %v4682
        %6873 = vst [vmem:[%s5651] ss:$9 sm:$0xff] %v4683
        %6874 = vst [vmem:[%s5653] ss:$9 sm:$0xff] %v4684
        %6875 = vst [vmem:[%s5655] ss:$9 sm:$0xff] %v4685
        %6876 = vst [vmem:[%s5657] ss:$9 sm:$0xff] %v4686
        %6877 = vst [vmem:[%s5659] ss:$9 sm:$0xff] %v4687
        %6878 = vst [vmem:[%s5661] ss:$9 sm:$0xff] %v4688
        %6879 = vst [vmem:[%s5663] ss:$9 sm:$0xff] %v4689
        %v6880 = vld [vmem:[#allocation1] sm:$0xff]
        %6881 = vst [vmem:[#allocation1] ss:$9 sm:$0xff] %v4690
        %6882 = vst [vmem:[%s5651] ss:$9 sm:$0xff] %v4691
        %6883 = vst [vmem:[%s5653] ss:$9 sm:$0xff] %v4692
        %6884 = vst [vmem:[%s5655] ss:$9 sm:$0xff] %v4693
        %6885 = vst [vmem:[%s5657] ss:$9 sm:$0xff] %v4694
        %6886 = vst [vmem:[%s5659] ss:$9 sm:$0xff] %v4695
        %6887 = vst [vmem:[%s5661] ss:$9 sm:$0xff] %v4696
        %6888 = vst [vmem:[%s5663] ss:$9 sm:$0xff] %v4697
        %v6889 = vld [vmem:[#allocation1] sm:$0xff]
        %6890 = vst [vmem:[#allocation1] ss:$9 sm:$0xff] %v4698
        %6891 = vst [vmem:[%s5651] ss:$9 sm:$0xff] %v4699
        %6892 = vst [vmem:[%s5653] ss:$9 sm:$0xff] %v4700
        %6893 = vst [vmem:[%s5655] ss:$9 sm:$0xff] %v4701
        %6894 = vst [vmem:[%s5657] ss:$9 sm:$0xff] %v4702
        %6895 = vst [vmem:[%s5659] ss:$9 sm:$0xff] %v4703
        %6896 = vst [vmem:[%s5661] ss:$9 sm:$0xff] %v4704
        %6897 = vst [vmem:[%s5663] ss:$9 sm:$0xff] %v4705
        %v6898 = vld [vmem:[#allocation1] sm:$0xff]
        %6899 = vst [vmem:[#allocation1] ss:$9 sm:$0xff] %v4706
        %6900 = vst [vmem:[%s5651] ss:$9 sm:$0xff] %v4707
        %6901 = vst [vmem:[%s5653] ss:$9 sm:$0xff] %v4708
        %6902 = vst [vmem:[%s5655] ss:$9 sm:$0xff] %v4709
        %6903 = vst [vmem:[%s5657] ss:$9 sm:$0xff] %v4710
        %6904 = vst [vmem:[%s5659] ss:$9 sm:$0xff] %v4711
        %6905 = vst [vmem:[%s5661] ss:$9 sm:$0xff] %v4712
        %6906 = vst [vmem:[%s5663] ss:$9 sm:$0xff] %v4713
        %v6907 = vld [vmem:[#allocation1] sm:$0xff]
        %6908 = vst [vmem:[#allocation1] ss:$9 sm:$0xff] %v4714
        %6909 = vst [vmem:[%s5651] ss:$9 sm:$0xff] %v4715
        %6910 = vst [vmem:[%s5653] ss:$9 sm:$0xff] %v4716
        %6911 = vst [vmem:[%s5655] ss:$9 sm:$0xff] %v4717
        %6912 = vst [vmem:[%s5657] ss:$9 sm:$0xff] %v4718
        %6913 = vst [vmem:[%s5659] ss:$9 sm:$0xff] %v4719
        %6914 = vst [vmem:[%s5661] ss:$9 sm:$0xff] %v4720
        %6915 = vst [vmem:[%s5663] ss:$9 sm:$0xff] %v4721
        %v6916 = vld [vmem:[#allocation1] sm:$0xff]
        %6917 = vst [vmem:[#allocation1] ss:$9 sm:$0xff] %v4722
        %6918 = vst [vmem:[%s5651] ss:$9 sm:$0xff] %v4723
        %6919 = vst [vmem:[%s5653] ss:$9 sm:$0xff] %v4724
        %6920 = vst [vmem:[%s5655] ss:$9 sm:$0xff] %v4725
        %6921 = vst [vmem:[%s5657] ss:$9 sm:$0xff] %v4726
        %6922 = vst [vmem:[%s5659] ss:$9 sm:$0xff] %v4727
        %6923 = vst [vmem:[%s5661] ss:$9 sm:$0xff] %v4728
        %6924 = vst [vmem:[%s5663] ss:$9 sm:$0xff] %v4729
        %v6925 = vld [vmem:[#allocation1] sm:$0xff]
        %6926 = vst [vmem:[#allocation1] ss:$9 sm:$0xff] %v4730
        %6927 = vst [vmem:[%s5651] ss:$9 sm:$0xff] %v4731
        %6928 = vst [vmem:[%s5653] ss:$9 sm:$0xff] %v4732
        %6929 = vst [vmem:[%s5655] ss:$9 sm:$0xff] %v4733
        %6930 = vst [vmem:[%s5657] ss:$9 sm:$0xff] %v4734
        %6931 = vst [vmem:[%s5659] ss:$9 sm:$0xff] %v4735
        %6932 = vst [vmem:[%s5661] ss:$9 sm:$0xff] %v4736
        %6933 = vst [vmem:[%s5663] ss:$9 sm:$0xff] %v4737
        %v6934 = vld [vmem:[#allocation1] sm:$0xff]
        %6935 = vst [vmem:[#allocation1] ss:$9 sm:$0xff] %v4738
        %6936 = vst [vmem:[%s5651] ss:$9 sm:$0xff] %v4739
        %6937 = vst [vmem:[%s5653] ss:$9 sm:$0xff] %v4740
        %6938 = vst [vmem:[%s5655] ss:$9 sm:$0xff] %v4741
        %6939 = vst [vmem:[%s5657] ss:$9 sm:$0xff] %v4742
        %6940 = vst [vmem:[%s5659] ss:$9 sm:$0xff] %v4743
        %6941 = vst [vmem:[%s5661] ss:$9 sm:$0xff] %v4744
        %6942 = vst [vmem:[%s5663] ss:$9 sm:$0xff] %v4745
        %v6943 = vld [vmem:[#allocation1] sm:$0xff]
        %6944 = vst [vmem:[#allocation1] ss:$9 sm:$0xff] %v4746
        %6945 = vst [vmem:[%s5651] ss:$9 sm:$0xff] %v4747
        %6946 = vst [vmem:[%s5653] ss:$9 sm:$0xff] %v4748
        %6947 = vst [vmem:[%s5655] ss:$9 sm:$0xff] %v4749
        %6948 = vst [vmem:[%s5657] ss:$9 sm:$0xff] %v4750
        %6949 = vst [vmem:[%s5659] ss:$9 sm:$0xff] %v4751
        %6950 = vst [vmem:[%s5661] ss:$9 sm:$0xff] %v4752
        %6951 = vst [vmem:[%s5663] ss:$9 sm:$0xff] %v4753
        %v6952 = vld [vmem:[#allocation1] sm:$0xff]
        %6953 = vst [vmem:[#allocation1] ss:$9 sm:$0xff] %v4754
        %6954 = vst [vmem:[%s5651] ss:$9 sm:$0xff] %v4755
        %6955 = vst [vmem:[%s5653] ss:$9 sm:$0xff] %v4756
        %6956 = vst [vmem:[%s5655] ss:$9 sm:$0xff] %v4757
        %6957 = vst [vmem:[%s5657] ss:$9 sm:$0xff] %v4758
        %6958 = vst [vmem:[%s5659] ss:$9 sm:$0xff] %v4759
        %6959 = vst [vmem:[%s5661] ss:$9 sm:$0xff] %v4760
        %6960 = vst [vmem:[%s5663] ss:$9 sm:$0xff] %v4761
        %v6961 = vld [vmem:[#allocation1] sm:$0xff]
        %6962 = vst [vmem:[#allocation1] ss:$9 sm:$0xff] %v4762
        %6963 = vst [vmem:[%s5651] ss:$9 sm:$0xff] %v4763
        %6964 = vst [vmem:[%s5653] ss:$9 sm:$0xff] %v4764
        %6965 = vst [vmem:[%s5655] ss:$9 sm:$0xff] %v4765
        %6966 = vst [vmem:[%s5657] ss:$9 sm:$0xff] %v4766
        %6967 = vst [vmem:[%s5659] ss:$9 sm:$0xff] %v4767
        %6968 = vst [vmem:[%s5661] ss:$9 sm:$0xff] %v4768
        %6969 = vst [vmem:[%s5663] ss:$9 sm:$0xff] %v4769
        %v6970 = vld [vmem:[#allocation1] sm:$0xff]
        %6971 = vst [vmem:[#allocation1] ss:$9 sm:$0xff] %v4770
        %6972 = vst [vmem:[%s5651] ss:$9 sm:$0xff] %v4771
        %6973 = vst [vmem:[%s5653] ss:$9 sm:$0xff] %v4772
        %6974 = vst [vmem:[%s5655] ss:$9 sm:$0xff] %v4773
        %6975 = vst [vmem:[%s5657] ss:$9 sm:$0xff] %v4774
        %6976 = vst [vmem:[%s5659] ss:$9 sm:$0xff] %v4775
        %6977 = vst [vmem:[%s5661] ss:$9 sm:$0xff] %v4776
        %6978 = vst [vmem:[%s5663] ss:$9 sm:$0xff] %v4777
        %v6979 = vld [vmem:[#allocation1] sm:$0xff]
        %6980 = vst [vmem:[#allocation1] ss:$9 sm:$0xff] %v4778
        %6981 = vst [vmem:[%s5651] ss:$9 sm:$0xff] %v4779
        %6982 = vst [vmem:[%s5653] ss:$9 sm:$0xff] %v4780
        %6983 = vst [vmem:[%s5655] ss:$9 sm:$0xff] %v4781
        %6984 = vst [vmem:[%s5657] ss:$9 sm:$0xff] %v4782
        %6985 = vst [vmem:[%s5659] ss:$9 sm:$0xff] %v4783
        %6986 = vst [vmem:[%s5661] ss:$9 sm:$0xff] %v4784
        %6987 = vst [vmem:[%s5663] ss:$9 sm:$0xff] %v4785
        %v6988 = vld [vmem:[#allocation1] sm:$0xff]
        %6989 = vst [vmem:[#allocation1] ss:$9 sm:$0xff] %v4786
        %6990 = vst [vmem:[%s5651] ss:$9 sm:$0xff] %v4787
        %6991 = vst [vmem:[%s5653] ss:$9 sm:$0xff] %v4788
        %6992 = vst [vmem:[%s5655] ss:$9 sm:$0xff] %v4789
        %6993 = vst [vmem:[%s5657] ss:$9 sm:$0xff] %v4790
        %6994 = vst [vmem:[%s5659] ss:$9 sm:$0xff] %v4791
        %6995 = vst [vmem:[%s5661] ss:$9 sm:$0xff] %v4792
        %6996 = vst [vmem:[%s5663] ss:$9 sm:$0xff] %v4793
        %v6997 = vld [vmem:[#allocation1] sm:$0xff]
        %6998 = vst [vmem:[#allocation1] ss:$9 sm:$0xff] %v4794
        %6999 = vst [vmem:[%s5651] ss:$9 sm:$0xff] %v4795
        %7000 = vst [vmem:[%s5653] ss:$9 sm:$0xff] %v4796
        %7001 = vst [vmem:[%s5655] ss:$9 sm:$0xff] %v4797
        %7002 = vst [vmem:[%s5657] ss:$9 sm:$0xff] %v4798
        %7003 = vst [vmem:[%s5659] ss:$9 sm:$0xff] %v4799
        %7004 = vst [vmem:[%s5661] ss:$9 sm:$0xff] %v4800
        %7005 = vst [vmem:[%s5663] ss:$9 sm:$0xff] %v4801
        %v7006 = vld [vmem:[#allocation1] sm:$0xff]
        %7007 = vst [vmem:[#allocation1] ss:$9 sm:$0xff] %v4802
        %7008 = vst [vmem:[%s5651] ss:$9 sm:$0xff] %v4803
        %7009 = vst [vmem:[%s5653] ss:$9 sm:$0xff] %v4804
        %7010 = vst [vmem:[%s5655] ss:$9 sm:$0xff] %v4805
        %7011 = vst [vmem:[%s5657] ss:$9 sm:$0xff] %v4806
        %7012 = vst [vmem:[%s5659] ss:$9 sm:$0xff] %v4807
        %7013 = vst [vmem:[%s5661] ss:$9 sm:$0xff] %v4808
        %7014 = vst [vmem:[%s5663] ss:$9 sm:$0xff] %v4809
        %v7015 = vld [vmem:[#allocation1] sm:$0xff]
        %7016 = vst [vmem:[#allocation1] ss:$9 sm:$0xff] %v4810
        %7017 = vst [vmem:[%s5651] ss:$9 sm:$0xff] %v4811
        %7018 = vst [vmem:[%s5653] ss:$9 sm:$0xff] %v4812
        %7019 = vst [vmem:[%s5655] ss:$9 sm:$0xff] %v4813
        %7020 = vst [vmem:[%s5657] ss:$9 sm:$0xff] %v4814
        %7021 = vst [vmem:[%s5659] ss:$9 sm:$0xff] %v4815
        %7022 = vst [vmem:[%s5661] ss:$9 sm:$0xff] %v4816
        %7023 = vst [vmem:[%s5663] ss:$9 sm:$0xff] %v4817
        %v7024 = vld [vmem:[#allocation1] sm:$0xff]
        %7025 = vst [vmem:[#allocation1] ss:$9 sm:$0xff] %v4818
        %7026 = vst [vmem:[%s5651] ss:$9 sm:$0xff] %v4819
        %7027 = vst [vmem:[%s5653] ss:$9 sm:$0xff] %v4820
        %7028 = vst [vmem:[%s5655] ss:$9 sm:$0xff] %v4821
        %7029 = vst [vmem:[%s5657] ss:$9 sm:$0xff] %v4822
        %7030 = vst [vmem:[%s5659] ss:$9 sm:$0xff] %v4823
        %7031 = vst [vmem:[%s5661] ss:$9 sm:$0xff] %v4824
        %7032 = vst [vmem:[%s5663] ss:$9 sm:$0xff] %v4825
        %v7033 = vld [vmem:[#allocation1] sm:$0xff]
        %7034 = vst [vmem:[#allocation1] ss:$9 sm:$0xff] %v4826
        %7035 = vst [vmem:[%s5651] ss:$9 sm:$0xff] %v4827
        %7036 = vst [vmem:[%s5653] ss:$9 sm:$0xff] %v4828
        %7037 = vst [vmem:[%s5655] ss:$9 sm:$0xff] %v4829
        %7038 = vst [vmem:[%s5657] ss:$9 sm:$0xff] %v4830
        %7039 = vst [vmem:[%s5659] ss:$9 sm:$0xff] %v4831
        %7040 = vst [vmem:[%s5661] ss:$9 sm:$0xff] %v4832
        %7041 = vst [vmem:[%s5663] ss:$9 sm:$0xff] %v4833
        %v7042 = vld [vmem:[#allocation1] sm:$0xff]
        %7043 = vst [vmem:[#allocation1] ss:$9 sm:$0xff] %v4834
        %7044 = vst [vmem:[%s5651] ss:$9 sm:$0xff] %v4835
        %7045 = vst [vmem:[%s5653] ss:$9 sm:$0xff] %v4836
        %7046 = vst [vmem:[%s5655] ss:$9 sm:$0xff] %v4837
        %7047 = vst [vmem:[%s5657] ss:$9 sm:$0xff] %v4838
        %7048 = vst [vmem:[%s5659] ss:$9 sm:$0xff] %v4839
        %7049 = vst [vmem:[%s5661] ss:$9 sm:$0xff] %v4840
        %7050 = vst [vmem:[%s5663] ss:$9 sm:$0xff] %v4841
        %v7051 = vld [vmem:[#allocation1] sm:$0xff]
        %7052 = vst [vmem:[#allocation1] ss:$9 sm:$0xff] %v4842
        %7053 = vst [vmem:[%s5651] ss:$9 sm:$0xff] %v4843
        %7054 = vst [vmem:[%s5653] ss:$9 sm:$0xff] %v4844
        %7055 = vst [vmem:[%s5655] ss:$9 sm:$0xff] %v4845
        %7056 = vst [vmem:[%s5657] ss:$9 sm:$0xff] %v4846
        %7057 = vst [vmem:[%s5659] ss:$9 sm:$0xff] %v4847
        %7058 = vst [vmem:[%s5661] ss:$9 sm:$0xff] %v4848
        %7059 = vst [vmem:[%s5663] ss:$9 sm:$0xff] %v4849
        %v7060 = vld [vmem:[#allocation1] sm:$0xff]
        %7061 = vst [vmem:[#allocation1] ss:$9 sm:$0xff] %v4850
        %7062 = vst [vmem:[%s5651] ss:$9 sm:$0xff] %v4851
        %7063 = vst [vmem:[%s5653] ss:$9 sm:$0xff] %v4852
        %7064 = vst [vmem:[%s5655] ss:$9 sm:$0xff] %v4853
        %7065 = vst [vmem:[%s5657] ss:$9 sm:$0xff] %v4854
        %7066 = vst [vmem:[%s5659] ss:$9 sm:$0xff] %v4855
        %7067 = vst [vmem:[%s5661] ss:$9 sm:$0xff] %v4856
        %7068 = vst [vmem:[%s5663] ss:$9 sm:$0xff] %v4857
        %v7069 = vld [vmem:[#allocation1] sm:$0xff]
        %7070 = vst [vmem:[#allocation1] ss:$9 sm:$0xff] %v4858
        %7071 = vst [vmem:[%s5651] ss:$9 sm:$0xff] %v4859
        %7072 = vst [vmem:[%s5653] ss:$9 sm:$0xff] %v4860
        %7073 = vst [vmem:[%s5655] ss:$9 sm:$0xff] %v4861
        %7074 = vst [vmem:[%s5657] ss:$9 sm:$0xff] %v4862
        %7075 = vst [vmem:[%s5659] ss:$9 sm:$0xff] %v4863
        %7076 = vst [vmem:[%s5661] ss:$9 sm:$0xff] %v4864
        %7077 = vst [vmem:[%s5663] ss:$9 sm:$0xff] %v4865
        %v7078 = vld [vmem:[#allocation1] sm:$0xff]
        %7079 = vst [vmem:[#allocation1] ss:$9 sm:$0xff] %v4866
        %7080 = vst [vmem:[%s5651] ss:$9 sm:$0xff] %v4867
        %7081 = vst [vmem:[%s5653] ss:$9 sm:$0xff] %v4868
        %7082 = vst [vmem:[%s5655] ss:$9 sm:$0xff] %v4869
        %7083 = vst [vmem:[%s5657] ss:$9 sm:$0xff] %v4870
        %7084 = vst [vmem:[%s5659] ss:$9 sm:$0xff] %v4871
        %7085 = vst [vmem:[%s5661] ss:$9 sm:$0xff] %v4872
        %7086 = vst [vmem:[%s5663] ss:$9 sm:$0xff] %v4873
        %v7087 = vld [vmem:[#allocation1] sm:$0xff]
        %7088 = vst [vmem:[#allocation1] ss:$9 sm:$0xff] %v4874
        %7089 = vst [vmem:[%s5651] ss:$9 sm:$0xff] %v4875
        %7090 = vst [vmem:[%s5653] ss:$9 sm:$0xff] %v4876
        %7091 = vst [vmem:[%s5655] ss:$9 sm:$0xff] %v4877
        %7092 = vst [vmem:[%s5657] ss:$9 sm:$0xff] %v4878
        %7093 = vst [vmem:[%s5659] ss:$9 sm:$0xff] %v4879
        %7094 = vst [vmem:[%s5661] ss:$9 sm:$0xff] %v4880
        %7095 = vst [vmem:[%s5663] ss:$9 sm:$0xff] %v4881
        %v7096 = vld [vmem:[#allocation1] sm:$0xff]
        %7097 = vst [vmem:[#allocation1] ss:$9 sm:$0xff] %v4882
        %7098 = vst [vmem:[%s5651] ss:$9 sm:$0xff] %v4883
        %7099 = vst [vmem:[%s5653] ss:$9 sm:$0xff] %v4884
        %7100 = vst [vmem:[%s5655] ss:$9 sm:$0xff] %v4885
        %7101 = vst [vmem:[%s5657] ss:$9 sm:$0xff] %v4886
        %7102 = vst [vmem:[%s5659] ss:$9 sm:$0xff] %v4887
        %7103 = vst [vmem:[%s5661] ss:$9 sm:$0xff] %v4888
        %7104 = vst [vmem:[%s5663] ss:$9 sm:$0xff] %v4889
        %v7105 = vld [vmem:[#allocation1] sm:$0xff]
        %7106 = vst [vmem:[#allocation1] ss:$9 sm:$0xff] %v4890
        %7107 = vst [vmem:[%s5651] ss:$9 sm:$0xff] %v4891
        %7108 = vst [vmem:[%s5653] ss:$9 sm:$0xff] %v4892
        %7109 = vst [vmem:[%s5655] ss:$9 sm:$0xff] %v4893
        %7110 = vst [vmem:[%s5657] ss:$9 sm:$0xff] %v4894
        %7111 = vst [vmem:[%s5659] ss:$9 sm:$0xff] %v4895
        %7112 = vst [vmem:[%s5661] ss:$9 sm:$0xff] %v4896
        %7113 = vst [vmem:[%s5663] ss:$9 sm:$0xff] %v4897
        %v7114 = vld [vmem:[#allocation1] sm:$0xff]
        %7115 = vst [vmem:[#allocation1] ss:$9 sm:$0xff] %v4898
        %7116 = vst [vmem:[%s5651] ss:$9 sm:$0xff] %v4899
        %7117 = vst [vmem:[%s5653] ss:$9 sm:$0xff] %v4900
        %7118 = vst [vmem:[%s5655] ss:$9 sm:$0xff] %v4901
        %7119 = vst [vmem:[%s5657] ss:$9 sm:$0xff] %v4902
        %7120 = vst [vmem:[%s5659] ss:$9 sm:$0xff] %v4903
        %7121 = vst [vmem:[%s5661] ss:$9 sm:$0xff] %v4904
        %7122 = vst [vmem:[%s5663] ss:$9 sm:$0xff] %v4905
        %v7123 = vld [vmem:[#allocation1] sm:$0xff]
        %7124 = vst [vmem:[#allocation1] ss:$9 sm:$0xff] %v4906
        %7125 = vst [vmem:[%s5651] ss:$9 sm:$0xff] %v4907
        %7126 = vst [vmem:[%s5653] ss:$9 sm:$0xff] %v4908
        %7127 = vst [vmem:[%s5655] ss:$9 sm:$0xff] %v4909
        %7128 = vst [vmem:[%s5657] ss:$9 sm:$0xff] %v4910
        %7129 = vst [vmem:[%s5659] ss:$9 sm:$0xff] %v4911
        %7130 = vst [vmem:[%s5661] ss:$9 sm:$0xff] %v4912
        %7131 = vst [vmem:[%s5663] ss:$9 sm:$0xff] %v4913
        %v7132 = vld [vmem:[#allocation1] sm:$0xff]
        %7133 = vst [vmem:[#allocation1] ss:$9 sm:$0xff] %v4914
        %7134 = vst [vmem:[%s5651] ss:$9 sm:$0xff] %v4915
        %7135 = vst [vmem:[%s5653] ss:$9 sm:$0xff] %v4916
        %7136 = vst [vmem:[%s5655] ss:$9 sm:$0xff] %v4917
        %7137 = vst [vmem:[%s5657] ss:$9 sm:$0xff] %v4918
        %7138 = vst [vmem:[%s5659] ss:$9 sm:$0xff] %v4919
        %7139 = vst [vmem:[%s5661] ss:$9 sm:$0xff] %v4920
        %7140 = vst [vmem:[%s5663] ss:$9 sm:$0xff] %v4921
        %v7141 = vld [vmem:[#allocation1] sm:$0xff]
        %7142 = vst [vmem:[#allocation1] ss:$9 sm:$0xff] %v4922
        %7143 = vst [vmem:[%s5651] ss:$9 sm:$0xff] %v4923
        %7144 = vst [vmem:[%s5653] ss:$9 sm:$0xff] %v4924
        %7145 = vst [vmem:[%s5655] ss:$9 sm:$0xff] %v4925
        %7146 = vst [vmem:[%s5657] ss:$9 sm:$0xff] %v4926
        %7147 = vst [vmem:[%s5659] ss:$9 sm:$0xff] %v4927
        %7148 = vst [vmem:[%s5661] ss:$9 sm:$0xff] %v4928
        %7149 = vst [vmem:[%s5663] ss:$9 sm:$0xff] %v4929
        %v7150 = vld [vmem:[#allocation1] sm:$0xff]
        %7151 = vst [vmem:[#allocation1] ss:$9 sm:$0xff] %v4930
        %7152 = vst [vmem:[%s5651] ss:$9 sm:$0xff] %v4931
        %7153 = vst [vmem:[%s5653] ss:$9 sm:$0xff] %v4932
        %7154 = vst [vmem:[%s5655] ss:$9 sm:$0xff] %v4933
        %7155 = vst [vmem:[%s5657] ss:$9 sm:$0xff] %v4934
        %7156 = vst [vmem:[%s5659] ss:$9 sm:$0xff] %v4935
        %7157 = vst [vmem:[%s5661] ss:$9 sm:$0xff] %v4936
        %7158 = vst [vmem:[%s5663] ss:$9 sm:$0xff] %v4937
        %v7159 = vld [vmem:[#allocation1] sm:$0xff]
        %7160 = vst [vmem:[#allocation1] ss:$9 sm:$0xff] %v4938
        %7161 = vst [vmem:[%s5651] ss:$9 sm:$0xff] %v4939
        %7162 = vst [vmem:[%s5653] ss:$9 sm:$0xff] %v4940
        %7163 = vst [vmem:[%s5655] ss:$9 sm:$0xff] %v4941
        %7164 = vst [vmem:[%s5657] ss:$9 sm:$0xff] %v4942
        %7165 = vst [vmem:[%s5659] ss:$9 sm:$0xff] %v4943
        %7166 = vst [vmem:[%s5661] ss:$9 sm:$0xff] %v4944
        %7167 = vst [vmem:[%s5663] ss:$9 sm:$0xff] %v4945
        %v7168 = vld [vmem:[#allocation1] sm:$0xff]
        %7169 = vst [vmem:[#allocation1] ss:$9 sm:$0xff] %v4946
        %7170 = vst [vmem:[%s5651] ss:$9 sm:$0xff] %v4947
        %7171 = vst [vmem:[%s5653] ss:$9 sm:$0xff] %v4948
        %7172 = vst [vmem:[%s5655] ss:$9 sm:$0xff] %v4949
        %7173 = vst [vmem:[%s5657] ss:$9 sm:$0xff] %v4950
        %7174 = vst [vmem:[%s5659] ss:$9 sm:$0xff] %v4951
        %7175 = vst [vmem:[%s5661] ss:$9 sm:$0xff] %v4952
        %7176 = vst [vmem:[%s5663] ss:$9 sm:$0xff] %v4953
        %v7177 = vld [vmem:[#allocation1] sm:$0xff]
        %7178 = vst [vmem:[#allocation1] ss:$9 sm:$0xff] %v4954
        %7179 = vst [vmem:[%s5651] ss:$9 sm:$0xff] %v4955
        %7180 = vst [vmem:[%s5653] ss:$9 sm:$0xff] %v4956
        %7181 = vst [vmem:[%s5655] ss:$9 sm:$0xff] %v4957
        %7182 = vst [vmem:[%s5657] ss:$9 sm:$0xff] %v4958
        %7183 = vst [vmem:[%s5659] ss:$9 sm:$0xff] %v4959
        %7184 = vst [vmem:[%s5661] ss:$9 sm:$0xff] %v4960
        %7185 = vst [vmem:[%s5663] ss:$9 sm:$0xff] %v4961
        %v7186 = vld [vmem:[#allocation1] sm:$0xff]
        %7187 = vst [vmem:[#allocation1] ss:$9 sm:$0xff] %v4962
        %7188 = vst [vmem:[%s5651] ss:$9 sm:$0xff] %v4963
        %7189 = vst [vmem:[%s5653] ss:$9 sm:$0xff] %v4964
        %7190 = vst [vmem:[%s5655] ss:$9 sm:$0xff] %v4965
        %7191 = vst [vmem:[%s5657] ss:$9 sm:$0xff] %v4966
        %7192 = vst [vmem:[%s5659] ss:$9 sm:$0xff] %v4967
        %7193 = vst [vmem:[%s5661] ss:$9 sm:$0xff] %v4968
        %7194 = vst [vmem:[%s5663] ss:$9 sm:$0xff] %v4969
        %v7195 = vld [vmem:[#allocation1] sm:$0xff]
        %7196 = vst [vmem:[#allocation1] ss:$9 sm:$0xff] %v4970
        %7197 = vst [vmem:[%s5651] ss:$9 sm:$0xff] %v4971
        %7198 = vst [vmem:[%s5653] ss:$9 sm:$0xff] %v4972
        %7199 = vst [vmem:[%s5655] ss:$9 sm:$0xff] %v4973
        %7200 = vst [vmem:[%s5657] ss:$9 sm:$0xff] %v4974
        %7201 = vst [vmem:[%s5659] ss:$9 sm:$0xff] %v4975
        %7202 = vst [vmem:[%s5661] ss:$9 sm:$0xff] %v4976
        %7203 = vst [vmem:[%s5663] ss:$9 sm:$0xff] %v4977
        %v7204 = vld [vmem:[#allocation1] sm:$0xff]
        %7205 = vst [vmem:[#allocation1] ss:$9 sm:$0xff] %v4978
        %7206 = vst [vmem:[%s5651] ss:$9 sm:$0xff] %v4979
        %7207 = vst [vmem:[%s5653] ss:$9 sm:$0xff] %v4980
        %7208 = vst [vmem:[%s5655] ss:$9 sm:$0xff] %v4981
        %7209 = vst [vmem:[%s5657] ss:$9 sm:$0xff] %v4982
        %7210 = vst [vmem:[%s5659] ss:$9 sm:$0xff] %v4983
        %7211 = vst [vmem:[%s5661] ss:$9 sm:$0xff] %v4984
        %7212 = vst [vmem:[%s5663] ss:$9 sm:$0xff] %v4985
        %v7213 = vld [vmem:[#allocation1] sm:$0xff]
        %7214 = vst [vmem:[#allocation1] ss:$9 sm:$0xff] %v4986
        %7215 = vst [vmem:[%s5651] ss:$9 sm:$0xff] %v4987
        %7216 = vst [vmem:[%s5653] ss:$9 sm:$0xff] %v4988
        %7217 = vst [vmem:[%s5655] ss:$9 sm:$0xff] %v4989
        %7218 = vst [vmem:[%s5657] ss:$9 sm:$0xff] %v4990
        %7219 = vst [vmem:[%s5659] ss:$9 sm:$0xff] %v4991
        %7220 = vst [vmem:[%s5661] ss:$9 sm:$0xff] %v4992
        %7221 = vst [vmem:[%s5663] ss:$9 sm:$0xff] %v4993
        %v7222 = vld [vmem:[#allocation1] sm:$0xff]
        %7223 = vst [vmem:[#allocation1] ss:$9 sm:$0xff] %v4994
        %7224 = vst [vmem:[%s5651] ss:$9 sm:$0xff] %v4995
        %7225 = vst [vmem:[%s5653] ss:$9 sm:$0xff] %v4996
        %7226 = vst [vmem:[%s5655] ss:$9 sm:$0xff] %v4997
        %7227 = vst [vmem:[%s5657] ss:$9 sm:$0xff] %v4998
        %7228 = vst [vmem:[%s5659] ss:$9 sm:$0xff] %v4999
        %7229 = vst [vmem:[%s5661] ss:$9 sm:$0xff] %v5000
        %7230 = vst [vmem:[%s5663] ss:$9 sm:$0xff] %v5001
        %v7231 = vld [vmem:[#allocation1] sm:$0xff]
        %7232 = vst [vmem:[#allocation1] ss:$9 sm:$0xff] %v5002
        %7233 = vst [vmem:[%s5651] ss:$9 sm:$0xff] %v5003
        %7234 = vst [vmem:[%s5653] ss:$9 sm:$0xff] %v5004
        %7235 = vst [vmem:[%s5655] ss:$9 sm:$0xff] %v5005
        %7236 = vst [vmem:[%s5657] ss:$9 sm:$0xff] %v5006
        %7237 = vst [vmem:[%s5659] ss:$9 sm:$0xff] %v5007
        %7238 = vst [vmem:[%s5661] ss:$9 sm:$0xff] %v5008
        %7239 = vst [vmem:[%s5663] ss:$9 sm:$0xff] %v5009
        %v7240 = vld [vmem:[#allocation1] sm:$0xff]
        %7241 = vst [vmem:[#allocation1] ss:$9 sm:$0xff] %v5010
        %7242 = vst [vmem:[%s5651] ss:$9 sm:$0xff] %v5011
        %7243 = vst [vmem:[%s5653] ss:$9 sm:$0xff] %v5012
        %7244 = vst [vmem:[%s5655] ss:$9 sm:$0xff] %v5013
        %7245 = vst [vmem:[%s5657] ss:$9 sm:$0xff] %v5014
        %7246 = vst [vmem:[%s5659] ss:$9 sm:$0xff] %v5015
        %7247 = vst [vmem:[%s5661] ss:$9 sm:$0xff] %v5016
        %7248 = vst [vmem:[%s5663] ss:$9 sm:$0xff] %v5017
        %v7249 = vld [vmem:[#allocation1] sm:$0xff]
        %7250 = vst [vmem:[#allocation1] ss:$9 sm:$0xff] %v5018
        %7251 = vst [vmem:[%s5651] ss:$9 sm:$0xff] %v5019
        %7252 = vst [vmem:[%s5653] ss:$9 sm:$0xff] %v5020
        %7253 = vst [vmem:[%s5655] ss:$9 sm:$0xff] %v5021
        %7254 = vst [vmem:[%s5657] ss:$9 sm:$0xff] %v5022
        %7255 = vst [vmem:[%s5659] ss:$9 sm:$0xff] %v5023
        %7256 = vst [vmem:[%s5661] ss:$9 sm:$0xff] %v5024
        %7257 = vst [vmem:[%s5663] ss:$9 sm:$0xff] %v5025
        %v7258 = vld [vmem:[#allocation1] sm:$0xff]
        %7259 = vst [vmem:[#allocation1] ss:$9 sm:$0xff] %v5026
        %7260 = vst [vmem:[%s5651] ss:$9 sm:$0xff] %v5027
        %7261 = vst [vmem:[%s5653] ss:$9 sm:$0xff] %v5028
        %7262 = vst [vmem:[%s5655] ss:$9 sm:$0xff] %v5029
        %7263 = vst [vmem:[%s5657] ss:$9 sm:$0xff] %v5030
        %7264 = vst [vmem:[%s5659] ss:$9 sm:$0xff] %v5031
        %7265 = vst [vmem:[%s5661] ss:$9 sm:$0xff] %v5032
        %7266 = vst [vmem:[%s5663] ss:$9 sm:$0xff] %v5033
        %v7267 = vld [vmem:[#allocation1] sm:$0xff]
        %7268 = vst [vmem:[#allocation1] ss:$9 sm:$0xff] %v5034
        %7269 = vst [vmem:[%s5651] ss:$9 sm:$0xff] %v5035
        %7270 = vst [vmem:[%s5653] ss:$9 sm:$0xff] %v5036
        %7271 = vst [vmem:[%s5655] ss:$9 sm:$0xff] %v5037
        %7272 = vst [vmem:[%s5657] ss:$9 sm:$0xff] %v5038
        %7273 = vst [vmem:[%s5659] ss:$9 sm:$0xff] %v5039
        %7274 = vst [vmem:[%s5661] ss:$9 sm:$0xff] %v5040
        %7275 = vst [vmem:[%s5663] ss:$9 sm:$0xff] %v5041
        %v7276 = vld [vmem:[#allocation1] sm:$0xff]
        %7277 = vst [vmem:[#allocation1] ss:$9 sm:$0xff] %v5042
        %7278 = vst [vmem:[%s5651] ss:$9 sm:$0xff] %v5043
        %7279 = vst [vmem:[%s5653] ss:$9 sm:$0xff] %v5044
        %7280 = vst [vmem:[%s5655] ss:$9 sm:$0xff] %v5045
        %7281 = vst [vmem:[%s5657] ss:$9 sm:$0xff] %v5046
        %7282 = vst [vmem:[%s5659] ss:$9 sm:$0xff] %v5047
        %7283 = vst [vmem:[%s5661] ss:$9 sm:$0xff] %v5048
        %7284 = vst [vmem:[%s5663] ss:$9 sm:$0xff] %v5049
        %v7285 = vld [vmem:[#allocation1] sm:$0xff]
        %7286 = vst [vmem:[#allocation1] ss:$9 sm:$0xff] %v5050
        %7287 = vst [vmem:[%s5651] ss:$9 sm:$0xff] %v5051
        %7288 = vst [vmem:[%s5653] ss:$9 sm:$0xff] %v5052
        %7289 = vst [vmem:[%s5655] ss:$9 sm:$0xff] %v5053
        %7290 = vst [vmem:[%s5657] ss:$9 sm:$0xff] %v5054
        %7291 = vst [vmem:[%s5659] ss:$9 sm:$0xff] %v5055
        %7292 = vst [vmem:[%s5661] ss:$9 sm:$0xff] %v5056
        %7293 = vst [vmem:[%s5663] ss:$9 sm:$0xff] %v5057
        %v7294 = vld [vmem:[#allocation1] sm:$0xff]
        %7295 = vst [vmem:[#allocation1] ss:$9 sm:$0xff] %v5058
        %7296 = vst [vmem:[%s5651] ss:$9 sm:$0xff] %v5059
        %7297 = vst [vmem:[%s5653] ss:$9 sm:$0xff] %v5060
        %7298 = vst [vmem:[%s5655] ss:$9 sm:$0xff] %v5061
        %7299 = vst [vmem:[%s5657] ss:$9 sm:$0xff] %v5062
        %7300 = vst [vmem:[%s5659] ss:$9 sm:$0xff] %v5063
        %7301 = vst [vmem:[%s5661] ss:$9 sm:$0xff] %v5064
        %7302 = vst [vmem:[%s5663] ss:$9 sm:$0xff] %v5065
        %v7303 = vld [vmem:[#allocation1] sm:$0xff]
        %7304 = vst [vmem:[#allocation1] ss:$9 sm:$0xff] %v5066
        %7305 = vst [vmem:[%s5651] ss:$9 sm:$0xff] %v5067
        %7306 = vst [vmem:[%s5653] ss:$9 sm:$0xff] %v5068
        %7307 = vst [vmem:[%s5655] ss:$9 sm:$0xff] %v5069
        %7308 = vst [vmem:[%s5657] ss:$9 sm:$0xff] %v5070
        %7309 = vst [vmem:[%s5659] ss:$9 sm:$0xff] %v5071
        %7310 = vst [vmem:[%s5661] ss:$9 sm:$0xff] %v5072
        %7311 = vst [vmem:[%s5663] ss:$9 sm:$0xff] %v5073
        %v7312 = vld [vmem:[#allocation1] sm:$0xff]
        %7313 = vst [vmem:[#allocation1] ss:$9 sm:$0xff] %v5074
        %7314 = vst [vmem:[%s5651] ss:$9 sm:$0xff] %v5075
        %7315 = vst [vmem:[%s5653] ss:$9 sm:$0xff] %v5076
        %7316 = vst [vmem:[%s5655] ss:$9 sm:$0xff] %v5077
        %7317 = vst [vmem:[%s5657] ss:$9 sm:$0xff] %v5078
        %7318 = vst [vmem:[%s5659] ss:$9 sm:$0xff] %v5079
        %7319 = vst [vmem:[%s5661] ss:$9 sm:$0xff] %v5080
        %7320 = vst [vmem:[%s5663] ss:$9 sm:$0xff] %v5081
        %v7321 = vld [vmem:[#allocation1] sm:$0xff]
        %7322 = vst [vmem:[#allocation1] ss:$9 sm:$0xff] %v5082
        %7323 = vst [vmem:[%s5651] ss:$9 sm:$0xff] %v5083
        %7324 = vst [vmem:[%s5653] ss:$9 sm:$0xff] %v5084
        %7325 = vst [vmem:[%s5655] ss:$9 sm:$0xff] %v5085
        %7326 = vst [vmem:[%s5657] ss:$9 sm:$0xff] %v5086
        %7327 = vst [vmem:[%s5659] ss:$9 sm:$0xff] %v5087
        %7328 = vst [vmem:[%s5661] ss:$9 sm:$0xff] %v5088
        %7329 = vst [vmem:[%s5663] ss:$9 sm:$0xff] %v5089
        %v7330 = vld [vmem:[#allocation1] sm:$0xff]
        %7331 = vst [vmem:[#allocation1] ss:$9 sm:$0xff] %v5090
        %7332 = vst [vmem:[%s5651] ss:$9 sm:$0xff] %v5091
        %7333 = vst [vmem:[%s5653] ss:$9 sm:$0xff] %v5092
        %7334 = vst [vmem:[%s5655] ss:$9 sm:$0xff] %v5093
        %7335 = vst [vmem:[%s5657] ss:$9 sm:$0xff] %v5094
        %7336 = vst [vmem:[%s5659] ss:$9 sm:$0xff] %v5095
        %7337 = vst [vmem:[%s5661] ss:$9 sm:$0xff] %v5096
        %7338 = vst [vmem:[%s5663] ss:$9 sm:$0xff] %v5097
        %v7339 = vld [vmem:[#allocation1] sm:$0xff]
        %7340 = vst [vmem:[#allocation1] ss:$9 sm:$0xff] %v5098
        %7341 = vst [vmem:[%s5651] ss:$9 sm:$0xff] %v5099
        %7342 = vst [vmem:[%s5653] ss:$9 sm:$0xff] %v5100
        %7343 = vst [vmem:[%s5655] ss:$9 sm:$0xff] %v5101
        %7344 = vst [vmem:[%s5657] ss:$9 sm:$0xff] %v5102
        %7345 = vst [vmem:[%s5659] ss:$9 sm:$0xff] %v5103
        %7346 = vst [vmem:[%s5661] ss:$9 sm:$0xff] %v5104
        %7347 = vst [vmem:[%s5663] ss:$9 sm:$0xff] %v5105
        %v7348 = vld [vmem:[#allocation1] sm:$0xff]
        %7349 = vst [vmem:[#allocation1] ss:$9 sm:$0xff] %v5106
        %7350 = vst [vmem:[%s5651] ss:$9 sm:$0xff] %v5107
        %7351 = vst [vmem:[%s5653] ss:$9 sm:$0xff] %v5108
        %7352 = vst [vmem:[%s5655] ss:$9 sm:$0xff] %v5109
        %7353 = vst [vmem:[%s5657] ss:$9 sm:$0xff] %v5110
        %7354 = vst [vmem:[%s5659] ss:$9 sm:$0xff] %v5111
        %7355 = vst [vmem:[%s5661] ss:$9 sm:$0xff] %v5112
        %7356 = vst [vmem:[%s5663] ss:$9 sm:$0xff] %v5113
        %v7357 = vld [vmem:[#allocation1] sm:$0xff]
        %7358 = vst [vmem:[#allocation1] ss:$9 sm:$0xff] %v5114
        %7359 = vst [vmem:[%s5651] ss:$9 sm:$0xff] %v5115
        %7360 = vst [vmem:[%s5653] ss:$9 sm:$0xff] %v5116
        %7361 = vst [vmem:[%s5655] ss:$9 sm:$0xff] %v5117
        %7362 = vst [vmem:[%s5657] ss:$9 sm:$0xff] %v5118
        %7363 = vst [vmem:[%s5659] ss:$9 sm:$0xff] %v5119
        %7364 = vst [vmem:[%s5661] ss:$9 sm:$0xff] %v5120
        %7365 = vst [vmem:[%s5663] ss:$9 sm:$0xff] %v5121
        %v7366 = vld [vmem:[#allocation1] sm:$0xff]
        %7367 = vst [vmem:[#allocation1] ss:$9 sm:$0xff] %v5122
        %7368 = vst [vmem:[%s5651] ss:$9 sm:$0xff] %v5123
        %7369 = vst [vmem:[%s5653] ss:$9 sm:$0xff] %v5124
        %7370 = vst [vmem:[%s5655] ss:$9 sm:$0xff] %v5125
        %7371 = vst [vmem:[%s5657] ss:$9 sm:$0xff] %v5126
        %7372 = vst [vmem:[%s5659] ss:$9 sm:$0xff] %v5127
        %7373 = vst [vmem:[%s5661] ss:$9 sm:$0xff] %v5128
        %7374 = vst [vmem:[%s5663] ss:$9 sm:$0xff] %v5129
        %v7375 = vld [vmem:[#allocation1] sm:$0xff]
        %7376 = vst [vmem:[#allocation1] ss:$9 sm:$0xff] %v5130
        %7377 = vst [vmem:[%s5651] ss:$9 sm:$0xff] %v5131
        %7378 = vst [vmem:[%s5653] ss:$9 sm:$0xff] %v5132
        %7379 = vst [vmem:[%s5655] ss:$9 sm:$0xff] %v5133
        %7380 = vst [vmem:[%s5657] ss:$9 sm:$0xff] %v5134
        %7381 = vst [vmem:[%s5659] ss:$9 sm:$0xff] %v5135
        %7382 = vst [vmem:[%s5661] ss:$9 sm:$0xff] %v5136
        %7383 = vst [vmem:[%s5663] ss:$9 sm:$0xff] %v5137
        %v7384 = vld [vmem:[#allocation1] sm:$0xff]
        %7385 = vst [vmem:[#allocation1] ss:$9 sm:$0xff] %v5138
        %7386 = vst [vmem:[%s5651] ss:$9 sm:$0xff] %v5139
        %7387 = vst [vmem:[%s5653] ss:$9 sm:$0xff] %v5140
        %7388 = vst [vmem:[%s5655] ss:$9 sm:$0xff] %v5141
        %7389 = vst [vmem:[%s5657] ss:$9 sm:$0xff] %v5142
        %7390 = vst [vmem:[%s5659] ss:$9 sm:$0xff] %v5143
        %7391 = vst [vmem:[%s5661] ss:$9 sm:$0xff] %v5144
        %7392 = vst [vmem:[%s5663] ss:$9 sm:$0xff] %v5145
        %v7393 = vld [vmem:[#allocation1] sm:$0xff]
        %7394 = vst [vmem:[#allocation1] ss:$9 sm:$0xff] %v5146
        %7395 = vst [vmem:[%s5651] ss:$9 sm:$0xff] %v5147
        %7396 = vst [vmem:[%s5653] ss:$9 sm:$0xff] %v5148
        %7397 = vst [vmem:[%s5655] ss:$9 sm:$0xff] %v5149
        %7398 = vst [vmem:[%s5657] ss:$9 sm:$0xff] %v5150
        %7399 = vst [vmem:[%s5659] ss:$9 sm:$0xff] %v5151
        %7400 = vst [vmem:[%s5661] ss:$9 sm:$0xff] %v5152
        %7401 = vst [vmem:[%s5663] ss:$9 sm:$0xff] %v5153
        %v7402 = vld [vmem:[#allocation1] sm:$0xff]
        %7403 = vst [vmem:[#allocation1] ss:$9 sm:$0xff] %v5154
        %7404 = vst [vmem:[%s5651] ss:$9 sm:$0xff] %v5155
        %7405 = vst [vmem:[%s5653] ss:$9 sm:$0xff] %v5156
        %7406 = vst [vmem:[%s5655] ss:$9 sm:$0xff] %v5157
        %7407 = vst [vmem:[%s5657] ss:$9 sm:$0xff] %v5158
        %7408 = vst [vmem:[%s5659] ss:$9 sm:$0xff] %v5159
        %7409 = vst [vmem:[%s5661] ss:$9 sm:$0xff] %v5160
        %7410 = vst [vmem:[%s5663] ss:$9 sm:$0xff] %v5161
        %v7411 = vld [vmem:[#allocation1] sm:$0xff]
        %7412 = vst [vmem:[#allocation1] ss:$9 sm:$0xff] %v5162
        %7413 = vst [vmem:[%s5651] ss:$9 sm:$0xff] %v5163
        %7414 = vst [vmem:[%s5653] ss:$9 sm:$0xff] %v5164
        %7415 = vst [vmem:[%s5655] ss:$9 sm:$0xff] %v5165
        %7416 = vst [vmem:[%s5657] ss:$9 sm:$0xff] %v5166
        %7417 = vst [vmem:[%s5659] ss:$9 sm:$0xff] %v5167
        %7418 = vst [vmem:[%s5661] ss:$9 sm:$0xff] %v5168
        %7419 = vst [vmem:[%s5663] ss:$9 sm:$0xff] %v5169
        %v7420 = vld [vmem:[#allocation1] sm:$0xff]
        %7421 = vst [vmem:[#allocation1] ss:$9 sm:$0xff] %v5170
        %7422 = vst [vmem:[%s5651] ss:$9 sm:$0xff] %v5171
        %7423 = vst [vmem:[%s5653] ss:$9 sm:$0xff] %v5172
        %7424 = vst [vmem:[%s5655] ss:$9 sm:$0xff] %v5173
        %7425 = vst [vmem:[%s5657] ss:$9 sm:$0xff] %v5174
        %7426 = vst [vmem:[%s5659] ss:$9 sm:$0xff] %v5175
        %7427 = vst [vmem:[%s5661] ss:$9 sm:$0xff] %v5176
        %7428 = vst [vmem:[%s5663] ss:$9 sm:$0xff] %v5177
        %v7429 = vld [vmem:[#allocation1] sm:$0xff]
        %7430 = vst [vmem:[#allocation1] ss:$9 sm:$0xff] %v5178
        %7431 = vst [vmem:[%s5651] ss:$9 sm:$0xff] %v5179
        %7432 = vst [vmem:[%s5653] ss:$9 sm:$0xff] %v5180
        %7433 = vst [vmem:[%s5655] ss:$9 sm:$0xff] %v5181
        %7434 = vst [vmem:[%s5657] ss:$9 sm:$0xff] %v5182
        %7435 = vst [vmem:[%s5659] ss:$9 sm:$0xff] %v5183
        %7436 = vst [vmem:[%s5661] ss:$9 sm:$0xff] %v5184
        %7437 = vst [vmem:[%s5663] ss:$9 sm:$0xff] %v5185
        %v7438 = vld [vmem:[#allocation1] sm:$0xff]
        %7439 = vst [vmem:[#allocation1] ss:$9 sm:$0xff] %v5186
        %7440 = vst [vmem:[%s5651] ss:$9 sm:$0xff] %v5187
        %7441 = vst [vmem:[%s5653] ss:$9 sm:$0xff] %v5188
        %7442 = vst [vmem:[%s5655] ss:$9 sm:$0xff] %v5189
        %7443 = vst [vmem:[%s5657] ss:$9 sm:$0xff] %v5190
        %7444 = vst [vmem:[%s5659] ss:$9 sm:$0xff] %v5191
        %7445 = vst [vmem:[%s5661] ss:$9 sm:$0xff] %v5192
        %7446 = vst [vmem:[%s5663] ss:$9 sm:$0xff] %v5193
        %v7447 = vld [vmem:[#allocation1] sm:$0xff]
        %7448 = vst [vmem:[#allocation1] ss:$9 sm:$0xff] %v5194
        %7449 = vst [vmem:[%s5651] ss:$9 sm:$0xff] %v5195
        %7450 = vst [vmem:[%s5653] ss:$9 sm:$0xff] %v5196
        %7451 = vst [vmem:[%s5655] ss:$9 sm:$0xff] %v5197
        %7452 = vst [vmem:[%s5657] ss:$9 sm:$0xff] %v5198
        %7453 = vst [vmem:[%s5659] ss:$9 sm:$0xff] %v5199
        %7454 = vst [vmem:[%s5661] ss:$9 sm:$0xff] %v5200
        %7455 = vst [vmem:[%s5663] ss:$9 sm:$0xff] %v5201
        %v7456 = vld [vmem:[#allocation1] sm:$0xff]
        %7457 = vst [vmem:[#allocation1] ss:$9 sm:$0xff] %v5202
        %7458 = vst [vmem:[%s5651] ss:$9 sm:$0xff] %v5203
        %7459 = vst [vmem:[%s5653] ss:$9 sm:$0xff] %v5204
        %7460 = vst [vmem:[%s5655] ss:$9 sm:$0xff] %v5205
        %7461 = vst [vmem:[%s5657] ss:$9 sm:$0xff] %v5206
        %7462 = vst [vmem:[%s5659] ss:$9 sm:$0xff] %v5207
        %7463 = vst [vmem:[%s5661] ss:$9 sm:$0xff] %v5208
        %7464 = vst [vmem:[%s5663] ss:$9 sm:$0xff] %v5209
        %v7465 = vld [vmem:[#allocation1] sm:$0xff]
        %7466 = vst [vmem:[#allocation1] ss:$9 sm:$0xff] %v5210
        %7467 = vst [vmem:[%s5651] ss:$9 sm:$0xff] %v5211
        %7468 = vst [vmem:[%s5653] ss:$9 sm:$0xff] %v5212
        %7469 = vst [vmem:[%s5655] ss:$9 sm:$0xff] %v5213
        %7470 = vst [vmem:[%s5657] ss:$9 sm:$0xff] %v5214
        %7471 = vst [vmem:[%s5659] ss:$9 sm:$0xff] %v5215
        %7472 = vst [vmem:[%s5661] ss:$9 sm:$0xff] %v5216
        %7473 = vst [vmem:[%s5663] ss:$9 sm:$0xff] %v5217
        %v7474 = vld [vmem:[#allocation1] sm:$0xff]
        %7475 = vst [vmem:[#allocation1] ss:$9 sm:$0xff] %v5218
        %7476 = vst [vmem:[%s5651] ss:$9 sm:$0xff] %v5219
        %7477 = vst [vmem:[%s5653] ss:$9 sm:$0xff] %v5220
        %7478 = vst [vmem:[%s5655] ss:$9 sm:$0xff] %v5221
        %7479 = vst [vmem:[%s5657] ss:$9 sm:$0xff] %v5222
        %7480 = vst [vmem:[%s5659] ss:$9 sm:$0xff] %v5223
        %7481 = vst [vmem:[%s5661] ss:$9 sm:$0xff] %v5224
        %7482 = vst [vmem:[%s5663] ss:$9 sm:$0xff] %v5225
        %v7483 = vld [vmem:[#allocation1] sm:$0xff]
        %7484 = vst [vmem:[#allocation1] ss:$9 sm:$0xff] %v5226
        %7485 = vst [vmem:[%s5651] ss:$9 sm:$0xff] %v5227
        %7486 = vst [vmem:[%s5653] ss:$9 sm:$0xff] %v5228
        %7487 = vst [vmem:[%s5655] ss:$9 sm:$0xff] %v5229
        %7488 = vst [vmem:[%s5657] ss:$9 sm:$0xff] %v5230
        %7489 = vst [vmem:[%s5659] ss:$9 sm:$0xff] %v5231
        %7490 = vst [vmem:[%s5661] ss:$9 sm:$0xff] %v5232
        %7491 = vst [vmem:[%s5663] ss:$9 sm:$0xff] %v5233
        %v7492 = vld [vmem:[#allocation1] sm:$0xff]
        %7493 = vst [vmem:[#allocation1] ss:$9 sm:$0xff] %v5234
        %7494 = vst [vmem:[%s5651] ss:$9 sm:$0xff] %v5235
        %7495 = vst [vmem:[%s5653] ss:$9 sm:$0xff] %v5236
        %7496 = vst [vmem:[%s5655] ss:$9 sm:$0xff] %v5237
        %7497 = vst [vmem:[%s5657] ss:$9 sm:$0xff] %v5238
        %7498 = vst [vmem:[%s5659] ss:$9 sm:$0xff] %v5239
        %7499 = vst [vmem:[%s5661] ss:$9 sm:$0xff] %v5240
        %7500 = vst [vmem:[%s5663] ss:$9 sm:$0xff] %v5241
        %v7501 = vld [vmem:[#allocation1] sm:$0xff]
        %7502 = vst [vmem:[#allocation1] ss:$9 sm:$0xff] %v5242
        %7503 = vst [vmem:[%s5651] ss:$9 sm:$0xff] %v5243
        %7504 = vst [vmem:[%s5653] ss:$9 sm:$0xff] %v5244
        %7505 = vst [vmem:[%s5655] ss:$9 sm:$0xff] %v5245
        %7506 = vst [vmem:[%s5657] ss:$9 sm:$0xff] %v5246
        %7507 = vst [vmem:[%s5659] ss:$9 sm:$0xff] %v5247
        %7508 = vst [vmem:[%s5661] ss:$9 sm:$0xff] %v5248
        %7509 = vst [vmem:[%s5663] ss:$9 sm:$0xff] %v5249
        %v7510 = vld [vmem:[#allocation1] sm:$0xff]
        %7511 = vst [vmem:[#allocation1] ss:$9 sm:$0xff] %v5250
        %7512 = vst [vmem:[%s5651] ss:$9 sm:$0xff] %v5251
        %7513 = vst [vmem:[%s5653] ss:$9 sm:$0xff] %v5252
        %7514 = vst [vmem:[%s5655] ss:$9 sm:$0xff] %v5253
        %7515 = vst [vmem:[%s5657] ss:$9 sm:$0xff] %v5254
        %7516 = vst [vmem:[%s5659] ss:$9 sm:$0xff] %v5255
        %7517 = vst [vmem:[%s5661] ss:$9 sm:$0xff] %v5256
        %7518 = vst [vmem:[%s5663] ss:$9 sm:$0xff] %v5257
        %v7519 = vld [vmem:[#allocation1] sm:$0xff]
        %7520 = vst [vmem:[#allocation1] ss:$9 sm:$0xff] %v5258
        %7521 = vst [vmem:[%s5651] ss:$9 sm:$0xff] %v5259
        %7522 = vst [vmem:[%s5653] ss:$9 sm:$0xff] %v5260
        %7523 = vst [vmem:[%s5655] ss:$9 sm:$0xff] %v5261
        %7524 = vst [vmem:[%s5657] ss:$9 sm:$0xff] %v5262
        %7525 = vst [vmem:[%s5659] ss:$9 sm:$0xff] %v5263
        %7526 = vst [vmem:[%s5661] ss:$9 sm:$0xff] %v5264
        %7527 = vst [vmem:[%s5663] ss:$9 sm:$0xff] %v5265
        %v7528 = vld [vmem:[#allocation1] sm:$0xff]
        %7529 = vst [vmem:[#allocation1] ss:$9 sm:$0xff] %v5266
        %7530 = vst [vmem:[%s5651] ss:$9 sm:$0xff] %v5267
        %7531 = vst [vmem:[%s5653] ss:$9 sm:$0xff] %v5268
        %7532 = vst [vmem:[%s5655] ss:$9 sm:$0xff] %v5269
        %7533 = vst [vmem:[%s5657] ss:$9 sm:$0xff] %v5270
        %7534 = vst [vmem:[%s5659] ss:$9 sm:$0xff] %v5271
        %7535 = vst [vmem:[%s5661] ss:$9 sm:$0xff] %v5272
        %7536 = vst [vmem:[%s5663] ss:$9 sm:$0xff] %v5273
        %v7537 = vld [vmem:[#allocation1] sm:$0xff]
        %7538 = vst [vmem:[#allocation1] ss:$9 sm:$0xff] %v5274
        %7539 = vst [vmem:[%s5651] ss:$9 sm:$0xff] %v5275
        %7540 = vst [vmem:[%s5653] ss:$9 sm:$0xff] %v5276
        %7541 = vst [vmem:[%s5655] ss:$9 sm:$0xff] %v5277
        %7542 = vst [vmem:[%s5657] ss:$9 sm:$0xff] %v5278
        %7543 = vst [vmem:[%s5659] ss:$9 sm:$0xff] %v5279
        %7544 = vst [vmem:[%s5661] ss:$9 sm:$0xff] %v5280
        %7545 = vst [vmem:[%s5663] ss:$9 sm:$0xff] %v5281
        %v7546 = vld [vmem:[#allocation1] sm:$0xff]
        %7547 = vst [vmem:[#allocation1] ss:$9 sm:$0xff] %v5282
        %7548 = vst [vmem:[%s5651] ss:$9 sm:$0xff] %v5283
        %7549 = vst [vmem:[%s5653] ss:$9 sm:$0xff] %v5284
        %7550 = vst [vmem:[%s5655] ss:$9 sm:$0xff] %v5285
        %7551 = vst [vmem:[%s5657] ss:$9 sm:$0xff] %v5286
        %7552 = vst [vmem:[%s5659] ss:$9 sm:$0xff] %v5287
        %7553 = vst [vmem:[%s5661] ss:$9 sm:$0xff] %v5288
        %7554 = vst [vmem:[%s5663] ss:$9 sm:$0xff] %v5289
        %v7555 = vld [vmem:[#allocation1] sm:$0xff]
        %7556 = vst [vmem:[#allocation1] ss:$9 sm:$0xff] %v5290
        %7557 = vst [vmem:[%s5651] ss:$9 sm:$0xff] %v5291
        %7558 = vst [vmem:[%s5653] ss:$9 sm:$0xff] %v5292
        %7559 = vst [vmem:[%s5655] ss:$9 sm:$0xff] %v5293
        %7560 = vst [vmem:[%s5657] ss:$9 sm:$0xff] %v5294
        %7561 = vst [vmem:[%s5659] ss:$9 sm:$0xff] %v5295
        %7562 = vst [vmem:[%s5661] ss:$9 sm:$0xff] %v5296
        %7563 = vst [vmem:[%s5663] ss:$9 sm:$0xff] %v5297
        %v7564 = vld [vmem:[#allocation1] sm:$0xff]
        %7565 = vst [vmem:[#allocation1] ss:$9 sm:$0xff] %v5298
        %7566 = vst [vmem:[%s5651] ss:$9 sm:$0xff] %v5299
        %7567 = vst [vmem:[%s5653] ss:$9 sm:$0xff] %v5300
        %7568 = vst [vmem:[%s5655] ss:$9 sm:$0xff] %v5301
        %7569 = vst [vmem:[%s5657] ss:$9 sm:$0xff] %v5302
        %7570 = vst [vmem:[%s5659] ss:$9 sm:$0xff] %v5303
        %7571 = vst [vmem:[%s5661] ss:$9 sm:$0xff] %v5304
        %7572 = vst [vmem:[%s5663] ss:$9 sm:$0xff] %v5305
        %v7573 = vld [vmem:[#allocation1] sm:$0xff]
        %7574 = vst [vmem:[#allocation1] ss:$9 sm:$0xff] %v5306
        %7575 = vst [vmem:[%s5651] ss:$9 sm:$0xff] %v5307
        %7576 = vst [vmem:[%s5653] ss:$9 sm:$0xff] %v5308
        %7577 = vst [vmem:[%s5655] ss:$9 sm:$0xff] %v5309
        %7578 = vst [vmem:[%s5657] ss:$9 sm:$0xff] %v5310
        %7579 = vst [vmem:[%s5659] ss:$9 sm:$0xff] %v5311
        %7580 = vst [vmem:[%s5661] ss:$9 sm:$0xff] %v5312
        %7581 = vst [vmem:[%s5663] ss:$9 sm:$0xff] %v5313
        %v7582 = vld [vmem:[#allocation1] sm:$0xff]
        %7583 = vst [vmem:[#allocation1] ss:$9 sm:$0xff] %v5314
        %7584 = vst [vmem:[%s5651] ss:$9 sm:$0xff] %v5315
        %7585 = vst [vmem:[%s5653] ss:$9 sm:$0xff] %v5316
        %7586 = vst [vmem:[%s5655] ss:$9 sm:$0xff] %v5317
        %7587 = vst [vmem:[%s5657] ss:$9 sm:$0xff] %v5318
        %7588 = vst [vmem:[%s5659] ss:$9 sm:$0xff] %v5319
        %7589 = vst [vmem:[%s5661] ss:$9 sm:$0xff] %v5320
        %7590 = vst [vmem:[%s5663] ss:$9 sm:$0xff] %v5321
        %v7591 = vld [vmem:[#allocation1] sm:$0xff]
        %7592 = vst [vmem:[#allocation1] ss:$9 sm:$0xff] %v5322
        %7593 = vst [vmem:[%s5651] ss:$9 sm:$0xff] %v5323
        %7594 = vst [vmem:[%s5653] ss:$9 sm:$0xff] %v5324
        %7595 = vst [vmem:[%s5655] ss:$9 sm:$0xff] %v5325
        %7596 = vst [vmem:[%s5657] ss:$9 sm:$0xff] %v5326
        %7597 = vst [vmem:[%s5659] ss:$9 sm:$0xff] %v5327
        %7598 = vst [vmem:[%s5661] ss:$9 sm:$0xff] %v5328
        %7599 = vst [vmem:[%s5663] ss:$9 sm:$0xff] %v5329
        %v7600 = vld [vmem:[#allocation1] sm:$0xff]
        %7601 = vst [vmem:[#allocation1] ss:$9 sm:$0xff] %v5330
        %7602 = vst [vmem:[%s5651] ss:$9 sm:$0xff] %v5331
        %7603 = vst [vmem:[%s5653] ss:$9 sm:$0xff] %v5332
        %7604 = vst [vmem:[%s5655] ss:$9 sm:$0xff] %v5333
        %7605 = vst [vmem:[%s5657] ss:$9 sm:$0xff] %v5334
        %7606 = vst [vmem:[%s5659] ss:$9 sm:$0xff] %v5335
        %7607 = vst [vmem:[%s5661] ss:$9 sm:$0xff] %v5336
        %7608 = vst [vmem:[%s5663] ss:$9 sm:$0xff] %v5337
        %v7609 = vld [vmem:[#allocation1] sm:$0xff]
        %7610 = vst [vmem:[#allocation1] ss:$9 sm:$0xff] %v5338
        %7611 = vst [vmem:[%s5651] ss:$9 sm:$0xff] %v5339
        %7612 = vst [vmem:[%s5653] ss:$9 sm:$0xff] %v5340
        %7613 = vst [vmem:[%s5655] ss:$9 sm:$0xff] %v5341
        %7614 = vst [vmem:[%s5657] ss:$9 sm:$0xff] %v5342
        %7615 = vst [vmem:[%s5659] ss:$9 sm:$0xff] %v5343
        %7616 = vst [vmem:[%s5661] ss:$9 sm:$0xff] %v5344
        %7617 = vst [vmem:[%s5663] ss:$9 sm:$0xff] %v5345
        %v7618 = vld [vmem:[#allocation1] sm:$0xff]
        %7619 = vst [vmem:[#allocation1] ss:$9 sm:$0xff] %v5346
        %7620 = vst [vmem:[%s5651] ss:$9 sm:$0xff] %v5347
        %7621 = vst [vmem:[%s5653] ss:$9 sm:$0xff] %v5348
        %7622 = vst [vmem:[%s5655] ss:$9 sm:$0xff] %v5349
        %7623 = vst [vmem:[%s5657] ss:$9 sm:$0xff] %v5350
        %7624 = vst [vmem:[%s5659] ss:$9 sm:$0xff] %v5351
        %7625 = vst [vmem:[%s5661] ss:$9 sm:$0xff] %v5352
        %7626 = vst [vmem:[%s5663] ss:$9 sm:$0xff] %v5353
        %v7627 = vld [vmem:[#allocation1] sm:$0xff]
        %7628 = vst [vmem:[#allocation1] ss:$9 sm:$0xff] %v5354
        %7629 = vst [vmem:[%s5651] ss:$9 sm:$0xff] %v5355
        %7630 = vst [vmem:[%s5653] ss:$9 sm:$0xff] %v5356
        %7631 = vst [vmem:[%s5655] ss:$9 sm:$0xff] %v5357
        %7632 = vst [vmem:[%s5657] ss:$9 sm:$0xff] %v5358
        %7633 = vst [vmem:[%s5659] ss:$9 sm:$0xff] %v5359
        %7634 = vst [vmem:[%s5661] ss:$9 sm:$0xff] %v5360
        %7635 = vst [vmem:[%s5663] ss:$9 sm:$0xff] %v5361
        %v7636 = vld [vmem:[#allocation1] sm:$0xff]
        %7637 = vst [vmem:[#allocation1] ss:$9 sm:$0xff] %v5362
        %7638 = vst [vmem:[%s5651] ss:$9 sm:$0xff] %v5363
        %7639 = vst [vmem:[%s5653] ss:$9 sm:$0xff] %v5364
        %7640 = vst [vmem:[%s5655] ss:$9 sm:$0xff] %v5365
        %7641 = vst [vmem:[%s5657] ss:$9 sm:$0xff] %v5366
        %7642 = vst [vmem:[%s5659] ss:$9 sm:$0xff] %v5367
        %7643 = vst [vmem:[%s5661] ss:$9 sm:$0xff] %v5368
        %7644 = vst [vmem:[%s5663] ss:$9 sm:$0xff] %v5369
        %v7645 = vld [vmem:[#allocation1] sm:$0xff]
        %7646 = vst [vmem:[#allocation1] ss:$9 sm:$0xff] %v5370
        %7647 = vst [vmem:[%s5651] ss:$9 sm:$0xff] %v5371
        %7648 = vst [vmem:[%s5653] ss:$9 sm:$0xff] %v5372
        %7649 = vst [vmem:[%s5655] ss:$9 sm:$0xff] %v5373
        %7650 = vst [vmem:[%s5657] ss:$9 sm:$0xff] %v5374
        %7651 = vst [vmem:[%s5659] ss:$9 sm:$0xff] %v5375
        %7652 = vst [vmem:[%s5661] ss:$9 sm:$0xff] %v5376
        %7653 = vst [vmem:[%s5663] ss:$9 sm:$0xff] %v5377
        %v7654 = vld [vmem:[#allocation1] sm:$0xff]
        %7655 = vst [vmem:[#allocation1] ss:$9 sm:$0xff] %v5378
        %7656 = vst [vmem:[%s5651] ss:$9 sm:$0xff] %v5379
        %7657 = vst [vmem:[%s5653] ss:$9 sm:$0xff] %v5380
        %7658 = vst [vmem:[%s5655] ss:$9 sm:$0xff] %v5381
        %7659 = vst [vmem:[%s5657] ss:$9 sm:$0xff] %v5382
        %7660 = vst [vmem:[%s5659] ss:$9 sm:$0xff] %v5383
        %7661 = vst [vmem:[%s5661] ss:$9 sm:$0xff] %v5384
        %7662 = vst [vmem:[%s5663] ss:$9 sm:$0xff] %v5385
        %v7663 = vld [vmem:[#allocation1] sm:$0xff]
        %7664 = vst [vmem:[#allocation1] ss:$9 sm:$0xff] %v5386
        %7665 = vst [vmem:[%s5651] ss:$9 sm:$0xff] %v5387
        %7666 = vst [vmem:[%s5653] ss:$9 sm:$0xff] %v5388
        %7667 = vst [vmem:[%s5655] ss:$9 sm:$0xff] %v5389
        %7668 = vst [vmem:[%s5657] ss:$9 sm:$0xff] %v5390
        %7669 = vst [vmem:[%s5659] ss:$9 sm:$0xff] %v5391
        %7670 = vst [vmem:[%s5661] ss:$9 sm:$0xff] %v5392
        %7671 = vst [vmem:[%s5663] ss:$9 sm:$0xff] %v5393
        %v7672 = vld [vmem:[#allocation1] sm:$0xff]
        %7673 = vst [vmem:[#allocation1] ss:$9 sm:$0xff] %v5394
        %7674 = vst [vmem:[%s5651] ss:$9 sm:$0xff] %v5395
        %7675 = vst [vmem:[%s5653] ss:$9 sm:$0xff] %v5396
        %7676 = vst [vmem:[%s5655] ss:$9 sm:$0xff] %v5397
        %7677 = vst [vmem:[%s5657] ss:$9 sm:$0xff] %v5398
        %7678 = vst [vmem:[%s5659] ss:$9 sm:$0xff] %v5399
        %7679 = vst [vmem:[%s5661] ss:$9 sm:$0xff] %v5400
        %7680 = vst [vmem:[%s5663] ss:$9 sm:$0xff] %v5401
        %v7681 = vld [vmem:[#allocation1] sm:$0xff]
        %7682 = vst [vmem:[#allocation1] ss:$9 sm:$0xff] %v5402
        %7683 = vst [vmem:[%s5651] ss:$9 sm:$0xff] %v5403
        %7684 = vst [vmem:[%s5653] ss:$9 sm:$0xff] %v5404
        %7685 = vst [vmem:[%s5655] ss:$9 sm:$0xff] %v5405
        %7686 = vst [vmem:[%s5657] ss:$9 sm:$0xff] %v5406
        %7687 = vst [vmem:[%s5659] ss:$9 sm:$0xff] %v5407
        %7688 = vst [vmem:[%s5661] ss:$9 sm:$0xff] %v5408
        %7689 = vst [vmem:[%s5663] ss:$9 sm:$0xff] %v5409
        %v7690 = vld [vmem:[#allocation1] sm:$0xff]
        %7691 = vst [vmem:[#allocation1] ss:$9 sm:$0xff] %v5410
        %7692 = vst [vmem:[%s5651] ss:$9 sm:$0xff] %v5411
        %7693 = vst [vmem:[%s5653] ss:$9 sm:$0xff] %v5412
        %7694 = vst [vmem:[%s5655] ss:$9 sm:$0xff] %v5413
        %7695 = vst [vmem:[%s5657] ss:$9 sm:$0xff] %v5414
        %7696 = vst [vmem:[%s5659] ss:$9 sm:$0xff] %v5415
        %7697 = vst [vmem:[%s5661] ss:$9 sm:$0xff] %v5416
        %7698 = vst [vmem:[%s5663] ss:$9 sm:$0xff] %v5417
        %v7699 = vld [vmem:[#allocation1] sm:$0xff]
        %7700 = vst [vmem:[#allocation1] ss:$9 sm:$0xff] %v5418
        %7701 = vst [vmem:[%s5651] ss:$9 sm:$0xff] %v5419
        %7702 = vst [vmem:[%s5653] ss:$9 sm:$0xff] %v5420
        %7703 = vst [vmem:[%s5655] ss:$9 sm:$0xff] %v5421
        %7704 = vst [vmem:[%s5657] ss:$9 sm:$0xff] %v5422
        %7705 = vst [vmem:[%s5659] ss:$9 sm:$0xff] %v5423
        %7706 = vst [vmem:[%s5661] ss:$9 sm:$0xff] %v5424
        %7707 = vst [vmem:[%s5663] ss:$9 sm:$0xff] %v5425
        %v7708 = vld [vmem:[#allocation1] sm:$0xff]
        %7709 = vst [vmem:[#allocation1] ss:$9 sm:$0xff] %v5426
        %7710 = vst [vmem:[%s5651] ss:$9 sm:$0xff] %v5427
        %7711 = vst [vmem:[%s5653] ss:$9 sm:$0xff] %v5428
        %7712 = vst [vmem:[%s5655] ss:$9 sm:$0xff] %v5429
        %7713 = vst [vmem:[%s5657] ss:$9 sm:$0xff] %v5430
        %7714 = vst [vmem:[%s5659] ss:$9 sm:$0xff] %v5431
        %7715 = vst [vmem:[%s5661] ss:$9 sm:$0xff] %v5432
        %7716 = vst [vmem:[%s5663] ss:$9 sm:$0xff] %v5433
        %v7717 = vld [vmem:[#allocation1] sm:$0xff]
        %7718 = vst [vmem:[#allocation1] ss:$9 sm:$0xff] %v5434
        %7719 = vst [vmem:[%s5651] ss:$9 sm:$0xff] %v5435
        %7720 = vst [vmem:[%s5653] ss:$9 sm:$0xff] %v5436
        %7721 = vst [vmem:[%s5655] ss:$9 sm:$0xff] %v5437
        %7722 = vst [vmem:[%s5657] ss:$9 sm:$0xff] %v5438
        %7723 = vst [vmem:[%s5659] ss:$9 sm:$0xff] %v5439
        %7724 = vst [vmem:[%s5661] ss:$9 sm:$0xff] %v5440
        %7725 = vst [vmem:[%s5663] ss:$9 sm:$0xff] %v5441
        %v7726 = vld [vmem:[#allocation1] sm:$0xff]
        %7727 = vst [vmem:[#allocation1] ss:$9 sm:$0xff] %v5442
        %7728 = vst [vmem:[%s5651] ss:$9 sm:$0xff] %v5443
        %7729 = vst [vmem:[%s5653] ss:$9 sm:$0xff] %v5444
        %7730 = vst [vmem:[%s5655] ss:$9 sm:$0xff] %v5445
        %7731 = vst [vmem:[%s5657] ss:$9 sm:$0xff] %v5446
        %7732 = vst [vmem:[%s5659] ss:$9 sm:$0xff] %v5447
        %7733 = vst [vmem:[%s5661] ss:$9 sm:$0xff] %v5448
        %7734 = vst [vmem:[%s5663] ss:$9 sm:$0xff] %v5449
        %v7735 = vld [vmem:[#allocation1] sm:$0xff]
        %7736 = vst [vmem:[#allocation1] ss:$9 sm:$0xff] %v5450
        %7737 = vst [vmem:[%s5651] ss:$9 sm:$0xff] %v5451
        %7738 = vst [vmem:[%s5653] ss:$9 sm:$0xff] %v5452
        %7739 = vst [vmem:[%s5655] ss:$9 sm:$0xff] %v5453
        %7740 = vst [vmem:[%s5657] ss:$9 sm:$0xff] %v5454
        %7741 = vst [vmem:[%s5659] ss:$9 sm:$0xff] %v5455
        %7742 = vst [vmem:[%s5661] ss:$9 sm:$0xff] %v5456
        %7743 = vst [vmem:[%s5663] ss:$9 sm:$0xff] %v5457
        %v7744 = vld [vmem:[#allocation1] sm:$0xff]
        %7745 = vst [vmem:[#allocation1] ss:$9 sm:$0xff] %v5458
        %7746 = vst [vmem:[%s5651] ss:$9 sm:$0xff] %v5459
        %7747 = vst [vmem:[%s5653] ss:$9 sm:$0xff] %v5460
        %7748 = vst [vmem:[%s5655] ss:$9 sm:$0xff] %v5461
        %7749 = vst [vmem:[%s5657] ss:$9 sm:$0xff] %v5462
        %7750 = vst [vmem:[%s5659] ss:$9 sm:$0xff] %v5463
        %7751 = vst [vmem:[%s5661] ss:$9 sm:$0xff] %v5464
        %7752 = vst [vmem:[%s5663] ss:$9 sm:$0xff] %v5465
        %v7753 = vld [vmem:[#allocation1] sm:$0xff]
        %7754 = vst [vmem:[#allocation1] ss:$9 sm:$0xff] %v5466
        %7755 = vst [vmem:[%s5651] ss:$9 sm:$0xff] %v5467
        %7756 = vst [vmem:[%s5653] ss:$9 sm:$0xff] %v5468
        %7757 = vst [vmem:[%s5655] ss:$9 sm:$0xff] %v5469
        %7758 = vst [vmem:[%s5657] ss:$9 sm:$0xff] %v5470
        %7759 = vst [vmem:[%s5659] ss:$9 sm:$0xff] %v5471
        %7760 = vst [vmem:[%s5661] ss:$9 sm:$0xff] %v5472
        %7761 = vst [vmem:[%s5663] ss:$9 sm:$0xff] %v5473
        %v7762 = vld [vmem:[#allocation1] sm:$0xff]
        %7763 = vst [vmem:[#allocation1] ss:$9 sm:$0xff] %v5474
        %7764 = vst [vmem:[%s5651] ss:$9 sm:$0xff] %v5475
        %7765 = vst [vmem:[%s5653] ss:$9 sm:$0xff] %v5476
        %7766 = vst [vmem:[%s5655] ss:$9 sm:$0xff] %v5477
        %7767 = vst [vmem:[%s5657] ss:$9 sm:$0xff] %v5478
        %7768 = vst [vmem:[%s5659] ss:$9 sm:$0xff] %v5479
        %7769 = vst [vmem:[%s5661] ss:$9 sm:$0xff] %v5480
        %7770 = vst [vmem:[%s5663] ss:$9 sm:$0xff] %v5481
        %v7771 = vld [vmem:[#allocation1] sm:$0xff]
        %7772 = vst [vmem:[#allocation1] ss:$9 sm:$0xff] %v5482
        %7773 = vst [vmem:[%s5651] ss:$9 sm:$0xff] %v5483
        %7774 = vst [vmem:[%s5653] ss:$9 sm:$0xff] %v5484
        %7775 = vst [vmem:[%s5655] ss:$9 sm:$0xff] %v5485
        %7776 = vst [vmem:[%s5657] ss:$9 sm:$0xff] %v5486
        %7777 = vst [vmem:[%s5659] ss:$9 sm:$0xff] %v5487
        %7778 = vst [vmem:[%s5661] ss:$9 sm:$0xff] %v5488
        %7779 = vst [vmem:[%s5663] ss:$9 sm:$0xff] %v5489
        %v7780 = vld [vmem:[#allocation1] sm:$0xff]
        %7781 = vst [vmem:[#allocation1] ss:$9 sm:$0xff] %v5490
        %7782 = vst [vmem:[%s5651] ss:$9 sm:$0xff] %v5491
        %7783 = vst [vmem:[%s5653] ss:$9 sm:$0xff] %v5492
        %7784 = vst [vmem:[%s5655] ss:$9 sm:$0xff] %v5493
        %7785 = vst [vmem:[%s5657] ss:$9 sm:$0xff] %v5494
        %7786 = vst [vmem:[%s5659] ss:$9 sm:$0xff] %v5495
        %7787 = vst [vmem:[%s5661] ss:$9 sm:$0xff] %v5496
        %7788 = vst [vmem:[%s5663] ss:$9 sm:$0xff] %v5497
        %v7789 = vld [vmem:[#allocation1] sm:$0xff]
        %7790 = vst [vmem:[#allocation1] ss:$9 sm:$0xff] %v5498
        %7791 = vst [vmem:[%s5651] ss:$9 sm:$0xff] %v5499
        %7792 = vst [vmem:[%s5653] ss:$9 sm:$0xff] %v5500
        %7793 = vst [vmem:[%s5655] ss:$9 sm:$0xff] %v5501
        %7794 = vst [vmem:[%s5657] ss:$9 sm:$0xff] %v5502
        %7795 = vst [vmem:[%s5659] ss:$9 sm:$0xff] %v5503
        %7796 = vst [vmem:[%s5661] ss:$9 sm:$0xff] %v5504
        %7797 = vst [vmem:[%s5663] ss:$9 sm:$0xff] %v5505
        %v7798 = vld [vmem:[#allocation1] sm:$0xff]
        %7799 = vst [vmem:[#allocation1] ss:$9 sm:$0xff] %v5506
        %7800 = vst [vmem:[%s5651] ss:$9 sm:$0xff] %v5507
        %7801 = vst [vmem:[%s5653] ss:$9 sm:$0xff] %v5508
        %7802 = vst [vmem:[%s5655] ss:$9 sm:$0xff] %v5509
        %7803 = vst [vmem:[%s5657] ss:$9 sm:$0xff] %v5510
        %7804 = vst [vmem:[%s5659] ss:$9 sm:$0xff] %v5511
        %7805 = vst [vmem:[%s5661] ss:$9 sm:$0xff] %v5512
        %7806 = vst [vmem:[%s5663] ss:$9 sm:$0xff] %v5513
        %v7807 = vld [vmem:[#allocation1] sm:$0xff]
        %7808 = vst [vmem:[#allocation1] ss:$9 sm:$0xff] %v5514
        %7809 = vst [vmem:[%s5651] ss:$9 sm:$0xff] %v5515
        %7810 = vst [vmem:[%s5653] ss:$9 sm:$0xff] %v5516
        %7811 = vst [vmem:[%s5655] ss:$9 sm:$0xff] %v5517
        %7812 = vst [vmem:[%s5657] ss:$9 sm:$0xff] %v5518
        %7813 = vst [vmem:[%s5659] ss:$9 sm:$0xff] %v5519
        %7814 = vst [vmem:[%s5661] ss:$9 sm:$0xff] %v5520
        %7815 = vst [vmem:[%s5663] ss:$9 sm:$0xff] %v5521
        %v7816 = vld [vmem:[#allocation1] sm:$0xff]
        %7817 = vst [vmem:[#allocation1] ss:$9 sm:$0xff] %v5522
        %7818 = vst [vmem:[%s5651] ss:$9 sm:$0xff] %v5523
        %7819 = vst [vmem:[%s5653] ss:$9 sm:$0xff] %v5524
        %7820 = vst [vmem:[%s5655] ss:$9 sm:$0xff] %v5525
        %7821 = vst [vmem:[%s5657] ss:$9 sm:$0xff] %v5526
        %7822 = vst [vmem:[%s5659] ss:$9 sm:$0xff] %v5527
        %7823 = vst [vmem:[%s5661] ss:$9 sm:$0xff] %v5528
        %7824 = vst [vmem:[%s5663] ss:$9 sm:$0xff] %v5529
        %v7825 = vld [vmem:[#allocation1] sm:$0xff]
        %7826 = vst [vmem:[#allocation1] ss:$9 sm:$0xff] %v5530
        %7827 = vst [vmem:[%s5651] ss:$9 sm:$0xff] %v5531
        %7828 = vst [vmem:[%s5653] ss:$9 sm:$0xff] %v5532
        %7829 = vst [vmem:[%s5655] ss:$9 sm:$0xff] %v5533
        %7830 = vst [vmem:[%s5657] ss:$9 sm:$0xff] %v5534
        %7831 = vst [vmem:[%s5659] ss:$9 sm:$0xff] %v5535
        %7832 = vst [vmem:[%s5661] ss:$9 sm:$0xff] %v5536
        %7833 = vst [vmem:[%s5663] ss:$9 sm:$0xff] %v5537
        %v7834 = vld [vmem:[#allocation1] sm:$0xff]
        %7835 = vst [vmem:[#allocation1] ss:$9 sm:$0xff] %v5538
        %7836 = vst [vmem:[%s5651] ss:$9 sm:$0xff] %v5539
        %7837 = vst [vmem:[%s5653] ss:$9 sm:$0xff] %v5540
        %7838 = vst [vmem:[%s5655] ss:$9 sm:$0xff] %v5541
        %7839 = vst [vmem:[%s5657] ss:$9 sm:$0xff] %v5542
        %7840 = vst [vmem:[%s5659] ss:$9 sm:$0xff] %v5543
        %7841 = vst [vmem:[%s5661] ss:$9 sm:$0xff] %v5544
        %7842 = vst [vmem:[%s5663] ss:$9 sm:$0xff] %v5545
        %v7843 = vld [vmem:[#allocation1] sm:$0xff]
        %7844 = vst [vmem:[#allocation1] ss:$9 sm:$0xff] %v5546
        %7845 = vst [vmem:[%s5651] ss:$9 sm:$0xff] %v5547
        %7846 = vst [vmem:[%s5653] ss:$9 sm:$0xff] %v5548
        %7847 = vst [vmem:[%s5655] ss:$9 sm:$0xff] %v5549
        %7848 = vst [vmem:[%s5657] ss:$9 sm:$0xff] %v5550
        %7849 = vst [vmem:[%s5659] ss:$9 sm:$0xff] %v5551
        %7850 = vst [vmem:[%s5661] ss:$9 sm:$0xff] %v5552
        %7851 = vst [vmem:[%s5663] ss:$9 sm:$0xff] %v5553
        %v7852 = vld [vmem:[#allocation1] sm:$0xff]
        %7853 = vst [vmem:[#allocation1] ss:$9 sm:$0xff] %v5554
        %7854 = vst [vmem:[%s5651] ss:$9 sm:$0xff] %v5555
        %7855 = vst [vmem:[%s5653] ss:$9 sm:$0xff] %v5556
        %7856 = vst [vmem:[%s5655] ss:$9 sm:$0xff] %v5557
        %7857 = vst [vmem:[%s5657] ss:$9 sm:$0xff] %v5558
        %7858 = vst [vmem:[%s5659] ss:$9 sm:$0xff] %v5559
        %7859 = vst [vmem:[%s5661] ss:$9 sm:$0xff] %v5560
        %7860 = vst [vmem:[%s5663] ss:$9 sm:$0xff] %v5561
        %v7861 = vld [vmem:[#allocation1] sm:$0xff]
        %7862 = vst [vmem:[#allocation1] ss:$9 sm:$0xff] %v5562
        %7863 = vst [vmem:[%s5651] ss:$9 sm:$0xff] %v5563
        %7864 = vst [vmem:[%s5653] ss:$9 sm:$0xff] %v5564
        %7865 = vst [vmem:[%s5655] ss:$9 sm:$0xff] %v5565
        %7866 = vst [vmem:[%s5657] ss:$9 sm:$0xff] %v5566
        %7867 = vst [vmem:[%s5659] ss:$9 sm:$0xff] %v5567
        %7868 = vst [vmem:[%s5661] ss:$9 sm:$0xff] %v5568
        %7869 = vst [vmem:[%s5663] ss:$9 sm:$0xff] %v5569
        %v7870 = vld [vmem:[#allocation1] sm:$0xff]
        %7871 = vst [vmem:[#allocation1] ss:$9 sm:$0xff] %v5570
        %7872 = vst [vmem:[%s5651] ss:$9 sm:$0xff] %v5571
        %7873 = vst [vmem:[%s5653] ss:$9 sm:$0xff] %v5572
        %7874 = vst [vmem:[%s5655] ss:$9 sm:$0xff] %v5573
        %7875 = vst [vmem:[%s5657] ss:$9 sm:$0xff] %v5574
        %7876 = vst [vmem:[%s5659] ss:$9 sm:$0xff] %v5575
        %7877 = vst [vmem:[%s5661] ss:$9 sm:$0xff] %v5576
        %7878 = vst [vmem:[%s5663] ss:$9 sm:$0xff] %v5577
        %v7879 = vld [vmem:[#allocation1] sm:$0xff]
        %7880 = vst [vmem:[#allocation1] ss:$9 sm:$0xff] %v5578
        %7881 = vst [vmem:[%s5651] ss:$9 sm:$0xff] %v5579
        %7882 = vst [vmem:[%s5653] ss:$9 sm:$0xff] %v5580
        %7883 = vst [vmem:[%s5655] ss:$9 sm:$0xff] %v5581
        %7884 = vst [vmem:[%s5657] ss:$9 sm:$0xff] %v5582
        %7885 = vst [vmem:[%s5659] ss:$9 sm:$0xff] %v5583
        %7886 = vst [vmem:[%s5661] ss:$9 sm:$0xff] %v5584
        %7887 = vst [vmem:[%s5663] ss:$9 sm:$0xff] %v5585
        %v7888 = vld [vmem:[#allocation1] sm:$0xff]
        %7889 = vst [vmem:[#allocation1] ss:$9 sm:$0xff] %v5586
        %7890 = vst [vmem:[%s5651] ss:$9 sm:$0xff] %v5587
        %7891 = vst [vmem:[%s5653] ss:$9 sm:$0xff] %v5588
        %7892 = vst [vmem:[%s5655] ss:$9 sm:$0xff] %v5589
        %7893 = vst [vmem:[%s5657] ss:$9 sm:$0xff] %v5590
        %7894 = vst [vmem:[%s5659] ss:$9 sm:$0xff] %v5591
        %7895 = vst [vmem:[%s5661] ss:$9 sm:$0xff] %v5592
        %7896 = vst [vmem:[%s5663] ss:$9 sm:$0xff] %v5593
        %v7897 = vld [vmem:[#allocation1] sm:$0xff]
        %7898 = vst [vmem:[#allocation1] ss:$9 sm:$0xff] %v5594
        %7899 = vst [vmem:[%s5651] ss:$9 sm:$0xff] %v5595
        %7900 = vst [vmem:[%s5653] ss:$9 sm:$0xff] %v5596
        %7901 = vst [vmem:[%s5655] ss:$9 sm:$0xff] %v5597
        %7902 = vst [vmem:[%s5657] ss:$9 sm:$0xff] %v5598
        %7903 = vst [vmem:[%s5659] ss:$9 sm:$0xff] %v5599
        %7904 = vst [vmem:[%s5661] ss:$9 sm:$0xff] %v5600
        %7905 = vst [vmem:[%s5663] ss:$9 sm:$0xff] %v5601
        %v7906 = vld [vmem:[#allocation1] sm:$0xff]
        %7907 = vst [vmem:[#allocation1] ss:$9 sm:$0xff] %v5602
        %7908 = vst [vmem:[%s5651] ss:$9 sm:$0xff] %v5603
        %7909 = vst [vmem:[%s5653] ss:$9 sm:$0xff] %v5604
        %7910 = vst [vmem:[%s5655] ss:$9 sm:$0xff] %v5605
        %7911 = vst [vmem:[%s5657] ss:$9 sm:$0xff] %v5606
        %7912 = vst [vmem:[%s5659] ss:$9 sm:$0xff] %v5607
        %7913 = vst [vmem:[%s5661] ss:$9 sm:$0xff] %v5608
        %7914 = vst [vmem:[%s5663] ss:$9 sm:$0xff] %v5609
        %v7915 = vld [vmem:[#allocation1] sm:$0xff]
        %7916 = vst [vmem:[#allocation1] ss:$9 sm:$0xff] %v5610
        %7917 = vst [vmem:[%s5651] ss:$9 sm:$0xff] %v5611
        %7918 = vst [vmem:[%s5653] ss:$9 sm:$0xff] %v5612
        %7919 = vst [vmem:[%s5655] ss:$9 sm:$0xff] %v5613
        %7920 = vst [vmem:[%s5657] ss:$9 sm:$0xff] %v5614
        %7921 = vst [vmem:[%s5659] ss:$9 sm:$0xff] %v5615
        %7922 = vst [vmem:[%s5661] ss:$9 sm:$0xff] %v5616
        %7923 = vst [vmem:[%s5663] ss:$9 sm:$0xff] %v5617
        %v7924 = vld [vmem:[#allocation1] sm:$0xff]
        %7925 = vst [vmem:[#allocation1] ss:$9 sm:$0xff] %v5618
        %7926 = vst [vmem:[%s5651] ss:$9 sm:$0xff] %v5619
        %7927 = vst [vmem:[%s5653] ss:$9 sm:$0xff] %v5620
        %7928 = vst [vmem:[%s5655] ss:$9 sm:$0xff] %v5621
        %7929 = vst [vmem:[%s5657] ss:$9 sm:$0xff] %v5622
        %7930 = vst [vmem:[%s5659] ss:$9 sm:$0xff] %v5623
        %7931 = vst [vmem:[%s5661] ss:$9 sm:$0xff] %v5624
        %7932 = vst [vmem:[%s5663] ss:$9 sm:$0xff] %v5625
        %v7933 = vld [vmem:[#allocation1] sm:$0xff]
        %7934 = vst [vmem:[#allocation1] ss:$9 sm:$0xff] %v5626
        %7935 = vst [vmem:[%s5651] ss:$9 sm:$0xff] %v5627
        %7936 = vst [vmem:[%s5653] ss:$9 sm:$0xff] %v5628
        %7937 = vst [vmem:[%s5655] ss:$9 sm:$0xff] %v5629
        %7938 = vst [vmem:[%s5657] ss:$9 sm:$0xff] %v5630
        %7939 = vst [vmem:[%s5659] ss:$9 sm:$0xff] %v5631
        %7940 = vst [vmem:[%s5661] ss:$9 sm:$0xff] %v5632
        %7941 = vst [vmem:[%s5663] ss:$9 sm:$0xff] %v5633
        %v7942 = vld [vmem:[#allocation1] sm:$0xff]
        %7943 = vst [vmem:[#allocation1] ss:$9 sm:$0xff] %v5634
        %7944 = vst [vmem:[%s5651] ss:$9 sm:$0xff] %v5635
        %7945 = vst [vmem:[%s5653] ss:$9 sm:$0xff] %v5636
        %7946 = vst [vmem:[%s5655] ss:$9 sm:$0xff] %v5637
        %7947 = vst [vmem:[%s5657] ss:$9 sm:$0xff] %v5638
        %7948 = vst [vmem:[%s5659] ss:$9 sm:$0xff] %v5639
        %7949 = vst [vmem:[%s5661] ss:$9 sm:$0xff] %v5640
        %7950 = vst [vmem:[%s5663] ss:$9 sm:$0xff] %v5641
        %v7951 = vld [vmem:[#allocation1] sm:$0xff]
        %7952 = vst [vmem:[#allocation1] ss:$9 sm:$0xff] %v5642
        %7953 = vst [vmem:[%s5651] ss:$9 sm:$0xff] %v5643
        %7954 = vst [vmem:[%s5653] ss:$9 sm:$0xff] %v5644
        %7955 = vst [vmem:[%s5655] ss:$9 sm:$0xff] %v5645
        %7956 = vst [vmem:[%s5657] ss:$9 sm:$0xff] %v5646
        %7957 = vst [vmem:[%s5659] ss:$9 sm:$0xff] %v5647
        %7958 = vst [vmem:[%s5661] ss:$9 sm:$0xff] %v5648
        %7959 = vst [vmem:[%s5663] ss:$9 sm:$0xff] %v5649
        %v7960 = vld [vmem:[#allocation1] sm:$0xff]
        %7961 = vset.pattern.permute.xlu0 0
        %7962 = vperm.xlu0 %7961, %v5665
        %v7963 = vpop.permute.xlu0 %7962
        %7964 = vset.pattern.permute.xlu0 0
        %7965 = vperm.xlu0 %7964, %v5674
        %v7966 = vpop.permute.xlu0 %7965
        %7967 = vset.pattern.permute.xlu0 0
        %7968 = vperm.xlu0 %7967, %v5683
        %v7969 = vpop.permute.xlu0 %7968
        %7970 = vset.pattern.permute.xlu0 0
        %7971 = vperm.xlu0 %7970, %v5692
        %v7972 = vpop.permute.xlu0 %7971
        %7973 = vset.pattern.permute.xlu0 0
        %7974 = vperm.xlu0 %7973, %v5701
        %v7975 = vpop.permute.xlu0 %7974
        %7976 = vset.pattern.permute.xlu0 0
        %7977 = vperm.xlu0 %7976, %v5710
        %v7978 = vpop.permute.xlu0 %7977
        %7979 = vset.pattern.permute.xlu0 0
        %7980 = vperm.xlu0 %7979, %v5719
        %v7981 = vpop.permute.xlu0 %7980
        %7982 = vset.pattern.permute.xlu0 0
        %7983 = vperm.xlu0 %7982, %v5728
        %v7984 = vpop.permute.xlu0 %7983
        %7985 = vset.pattern.permute.xlu0 0
        %7986 = vperm.xlu0 %7985, %v5737
        %v7987 = vpop.permute.xlu0 %7986
        %7988 = vset.pattern.permute.xlu0 0
        %7989 = vperm.xlu0 %7988, %v5746
        %v7990 = vpop.permute.xlu0 %7989
        %7991 = vset.pattern.permute.xlu0 0
        %7992 = vperm.xlu0 %7991, %v5755
        %v7993 = vpop.permute.xlu0 %7992
        %7994 = vset.pattern.permute.xlu0 0
        %7995 = vperm.xlu0 %7994, %v5764
        %v7996 = vpop.permute.xlu0 %7995
        %7997 = vset.pattern.permute.xlu0 0
        %7998 = vperm.xlu0 %7997, %v5773
        %v7999 = vpop.permute.xlu0 %7998
        %8000 = vset.pattern.permute.xlu0 0
        %8001 = vperm.xlu0 %8000, %v5782
        %v8002 = vpop.permute.xlu0 %8001
        %8003 = vset.pattern.permute.xlu0 0
        %8004 = vperm.xlu0 %8003, %v5791
        %v8005 = vpop.permute.xlu0 %8004
        %8006 = vset.pattern.permute.xlu0 0
        %8007 = vperm.xlu0 %8006, %v5800
        %v8008 = vpop.permute.xlu0 %8007
        %8009 = vset.pattern.permute.xlu0 0
        %8010 = vperm.xlu0 %8009, %v5809
        %v8011 = vpop.permute.xlu0 %8010
        %8012 = vset.pattern.permute.xlu0 0
        %8013 = vperm.xlu0 %8012, %v5818
        %v8014 = vpop.permute.xlu0 %8013
        %8015 = vset.pattern.permute.xlu0 0
        %8016 = vperm.xlu0 %8015, %v5827
        %v8017 = vpop.permute.xlu0 %8016
        %8018 = vset.pattern.permute.xlu0 0
        %8019 = vperm.xlu0 %8018, %v5836
        %v8020 = vpop.permute.xlu0 %8019
        %8021 = vset.pattern.permute.xlu0 0
        %8022 = vperm.xlu0 %8021, %v5845
        %v8023 = vpop.permute.xlu0 %8022
        %8024 = vset.pattern.permute.xlu0 0
        %8025 = vperm.xlu0 %8024, %v5854
        %v8026 = vpop.permute.xlu0 %8025
        %8027 = vset.pattern.permute.xlu0 0
        %8028 = vperm.xlu0 %8027, %v5863
        %v8029 = vpop.permute.xlu0 %8028
        %8030 = vset.pattern.permute.xlu0 0
        %8031 = vperm.xlu0 %8030, %v5872
        %v8032 = vpop.permute.xlu0 %8031
        %8033 = vset.pattern.permute.xlu0 0
        %8034 = vperm.xlu0 %8033, %v5881
        %v8035 = vpop.permute.xlu0 %8034
        %8036 = vset.pattern.permute.xlu0 0
        %8037 = vperm.xlu0 %8036, %v5890
        %v8038 = vpop.permute.xlu0 %8037
        %8039 = vset.pattern.permute.xlu0 0
        %8040 = vperm.xlu0 %8039, %v5899
        %v8041 = vpop.permute.xlu0 %8040
        %8042 = vset.pattern.permute.xlu0 0
        %8043 = vperm.xlu0 %8042, %v5908
        %v8044 = vpop.permute.xlu0 %8043
        %8045 = vset.pattern.permute.xlu0 0
        %8046 = vperm.xlu0 %8045, %v5917
        %v8047 = vpop.permute.xlu0 %8046
        %8048 = vset.pattern.permute.xlu0 0
        %8049 = vperm.xlu0 %8048, %v5926
        %v8050 = vpop.permute.xlu0 %8049
        %8051 = vset.pattern.permute.xlu0 0
        %8052 = vperm.xlu0 %8051, %v5935
        %v8053 = vpop.permute.xlu0 %8052
        %8054 = vset.pattern.permute.xlu0 0
        %8055 = vperm.xlu0 %8054, %v5944
        %v8056 = vpop.permute.xlu0 %8055
        %8057 = vset.pattern.permute.xlu0 0
        %8058 = vperm.xlu0 %8057, %v5953
        %v8059 = vpop.permute.xlu0 %8058
        %8060 = vset.pattern.permute.xlu0 0
        %8061 = vperm.xlu0 %8060, %v5962
        %v8062 = vpop.permute.xlu0 %8061
        %8063 = vset.pattern.permute.xlu0 0
        %8064 = vperm.xlu0 %8063, %v5971
        %v8065 = vpop.permute.xlu0 %8064
        %8066 = vset.pattern.permute.xlu0 0
        %8067 = vperm.xlu0 %8066, %v5980
        %v8068 = vpop.permute.xlu0 %8067
        %8069 = vset.pattern.permute.xlu0 0
        %8070 = vperm.xlu0 %8069, %v5989
        %v8071 = vpop.permute.xlu0 %8070
        %8072 = vset.pattern.permute.xlu0 0
        %8073 = vperm.xlu0 %8072, %v5998
        %v8074 = vpop.permute.xlu0 %8073
        %8075 = vset.pattern.permute.xlu0 0
        %8076 = vperm.xlu0 %8075, %v6007
        %v8077 = vpop.permute.xlu0 %8076
        %8078 = vset.pattern.permute.xlu0 0
        %8079 = vperm.xlu0 %8078, %v6016
        %v8080 = vpop.permute.xlu0 %8079
        %8081 = vset.pattern.permute.xlu0 0
        %8082 = vperm.xlu0 %8081, %v6025
        %v8083 = vpop.permute.xlu0 %8082
        %8084 = vset.pattern.permute.xlu0 0
        %8085 = vperm.xlu0 %8084, %v6034
        %v8086 = vpop.permute.xlu0 %8085
        %8087 = vset.pattern.permute.xlu0 0
        %8088 = vperm.xlu0 %8087, %v6043
        %v8089 = vpop.permute.xlu0 %8088
        %8090 = vset.pattern.permute.xlu0 0
        %8091 = vperm.xlu0 %8090, %v6052
        %v8092 = vpop.permute.xlu0 %8091
        %8093 = vset.pattern.permute.xlu0 0
        %8094 = vperm.xlu0 %8093, %v6061
        %v8095 = vpop.permute.xlu0 %8094
        %8096 = vset.pattern.permute.xlu0 0
        %8097 = vperm.xlu0 %8096, %v6070
        %v8098 = vpop.permute.xlu0 %8097
        %8099 = vset.pattern.permute.xlu0 0
        %8100 = vperm.xlu0 %8099, %v6079
        %v8101 = vpop.permute.xlu0 %8100
        %8102 = vset.pattern.permute.xlu0 0
        %8103 = vperm.xlu0 %8102, %v6088
        %v8104 = vpop.permute.xlu0 %8103
        %8105 = vset.pattern.permute.xlu0 0
        %8106 = vperm.xlu0 %8105, %v6097
        %v8107 = vpop.permute.xlu0 %8106
        %8108 = vset.pattern.permute.xlu0 0
        %8109 = vperm.xlu0 %8108, %v6106
        %v8110 = vpop.permute.xlu0 %8109
        %8111 = vset.pattern.permute.xlu0 0
        %8112 = vperm.xlu0 %8111, %v6115
        %v8113 = vpop.permute.xlu0 %8112
        %8114 = vset.pattern.permute.xlu0 0
        %8115 = vperm.xlu0 %8114, %v6124
        %v8116 = vpop.permute.xlu0 %8115
        %8117 = vset.pattern.permute.xlu0 0
        %8118 = vperm.xlu0 %8117, %v6133
        %v8119 = vpop.permute.xlu0 %8118
        %8120 = vset.pattern.permute.xlu0 0
        %8121 = vperm.xlu0 %8120, %v6142
        %v8122 = vpop.permute.xlu0 %8121
        %8123 = vset.pattern.permute.xlu0 0
        %8124 = vperm.xlu0 %8123, %v6151
        %v8125 = vpop.permute.xlu0 %8124
        %8126 = vset.pattern.permute.xlu0 0
        %8127 = vperm.xlu0 %8126, %v6160
        %v8128 = vpop.permute.xlu0 %8127
        %8129 = vset.pattern.permute.xlu0 0
        %8130 = vperm.xlu0 %8129, %v6169
        %v8131 = vpop.permute.xlu0 %8130
        %8132 = vset.pattern.permute.xlu0 0
        %8133 = vperm.xlu0 %8132, %v6178
        %v8134 = vpop.permute.xlu0 %8133
        %8135 = vset.pattern.permute.xlu0 0
        %8136 = vperm.xlu0 %8135, %v6187
        %v8137 = vpop.permute.xlu0 %8136
        %8138 = vset.pattern.permute.xlu0 0
        %8139 = vperm.xlu0 %8138, %v6196
        %v8140 = vpop.permute.xlu0 %8139
        %8141 = vset.pattern.permute.xlu0 0
        %8142 = vperm.xlu0 %8141, %v6205
        %v8143 = vpop.permute.xlu0 %8142
        %8144 = vset.pattern.permute.xlu0 0
        %8145 = vperm.xlu0 %8144, %v6214
        %v8146 = vpop.permute.xlu0 %8145
        %8147 = vset.pattern.permute.xlu0 0
        %8148 = vperm.xlu0 %8147, %v6223
        %v8149 = vpop.permute.xlu0 %8148
        %8150 = vset.pattern.permute.xlu0 0
        %8151 = vperm.xlu0 %8150, %v6232
        %v8152 = vpop.permute.xlu0 %8151
        %8153 = vset.pattern.permute.xlu0 0
        %8154 = vperm.xlu0 %8153, %v6241
        %v8155 = vpop.permute.xlu0 %8154
        %8156 = vset.pattern.permute.xlu0 0
        %8157 = vperm.xlu0 %8156, %v6250
        %v8158 = vpop.permute.xlu0 %8157
        %8159 = vset.pattern.permute.xlu0 0
        %8160 = vperm.xlu0 %8159, %v6259
        %v8161 = vpop.permute.xlu0 %8160
        %8162 = vset.pattern.permute.xlu0 0
        %8163 = vperm.xlu0 %8162, %v6268
        %v8164 = vpop.permute.xlu0 %8163
        %8165 = vset.pattern.permute.xlu0 0
        %8166 = vperm.xlu0 %8165, %v6277
        %v8167 = vpop.permute.xlu0 %8166
        %8168 = vset.pattern.permute.xlu0 0
        %8169 = vperm.xlu0 %8168, %v6286
        %v8170 = vpop.permute.xlu0 %8169
        %8171 = vset.pattern.permute.xlu0 0
        %8172 = vperm.xlu0 %8171, %v6295
        %v8173 = vpop.permute.xlu0 %8172
        %8174 = vset.pattern.permute.xlu0 0
        %8175 = vperm.xlu0 %8174, %v6304
        %v8176 = vpop.permute.xlu0 %8175
        %8177 = vset.pattern.permute.xlu0 0
        %8178 = vperm.xlu0 %8177, %v6313
        %v8179 = vpop.permute.xlu0 %8178
        %8180 = vset.pattern.permute.xlu0 0
        %8181 = vperm.xlu0 %8180, %v6322
        %v8182 = vpop.permute.xlu0 %8181
        %8183 = vset.pattern.permute.xlu0 0
        %8184 = vperm.xlu0 %8183, %v6331
        %v8185 = vpop.permute.xlu0 %8184
        %8186 = vset.pattern.permute.xlu0 0
        %8187 = vperm.xlu0 %8186, %v6340
        %v8188 = vpop.permute.xlu0 %8187
        %8189 = vset.pattern.permute.xlu0 0
        %8190 = vperm.xlu0 %8189, %v6349
        %v8191 = vpop.permute.xlu0 %8190
        %8192 = vset.pattern.permute.xlu0 0
        %8193 = vperm.xlu0 %8192, %v6358
        %v8194 = vpop.permute.xlu0 %8193
        %8195 = vset.pattern.permute.xlu0 0
        %8196 = vperm.xlu0 %8195, %v6367
        %v8197 = vpop.permute.xlu0 %8196
        %8198 = vset.pattern.permute.xlu0 0
        %8199 = vperm.xlu0 %8198, %v6376
        %v8200 = vpop.permute.xlu0 %8199
        %8201 = vset.pattern.permute.xlu0 0
        %8202 = vperm.xlu0 %8201, %v6385
        %v8203 = vpop.permute.xlu0 %8202
        %8204 = vset.pattern.permute.xlu0 0
        %8205 = vperm.xlu0 %8204, %v6394
        %v8206 = vpop.permute.xlu0 %8205
        %8207 = vset.pattern.permute.xlu0 0
        %8208 = vperm.xlu0 %8207, %v6403
        %v8209 = vpop.permute.xlu0 %8208
        %8210 = vset.pattern.permute.xlu0 0
        %8211 = vperm.xlu0 %8210, %v6412
        %v8212 = vpop.permute.xlu0 %8211
        %8213 = vset.pattern.permute.xlu0 0
        %8214 = vperm.xlu0 %8213, %v6421
        %v8215 = vpop.permute.xlu0 %8214
        %8216 = vset.pattern.permute.xlu0 0
        %8217 = vperm.xlu0 %8216, %v6430
        %v8218 = vpop.permute.xlu0 %8217
        %8219 = vset.pattern.permute.xlu0 0
        %8220 = vperm.xlu0 %8219, %v6439
        %v8221 = vpop.permute.xlu0 %8220
        %8222 = vset.pattern.permute.xlu0 0
        %8223 = vperm.xlu0 %8222, %v6448
        %v8224 = vpop.permute.xlu0 %8223
        %8225 = vset.pattern.permute.xlu0 0
        %8226 = vperm.xlu0 %8225, %v6457
        %v8227 = vpop.permute.xlu0 %8226
        %8228 = vset.pattern.permute.xlu0 0
        %8229 = vperm.xlu0 %8228, %v6466
        %v8230 = vpop.permute.xlu0 %8229
        %8231 = vset.pattern.permute.xlu0 0
        %8232 = vperm.xlu0 %8231, %v6475
        %v8233 = vpop.permute.xlu0 %8232
        %8234 = vset.pattern.permute.xlu0 0
        %8235 = vperm.xlu0 %8234, %v6484
        %v8236 = vpop.permute.xlu0 %8235
        %8237 = vset.pattern.permute.xlu0 0
        %8238 = vperm.xlu0 %8237, %v6493
        %v8239 = vpop.permute.xlu0 %8238
        %8240 = vset.pattern.permute.xlu0 0
        %8241 = vperm.xlu0 %8240, %v6502
        %v8242 = vpop.permute.xlu0 %8241
        %8243 = vset.pattern.permute.xlu0 0
        %8244 = vperm.xlu0 %8243, %v6511
        %v8245 = vpop.permute.xlu0 %8244
        %8246 = vset.pattern.permute.xlu0 0
        %8247 = vperm.xlu0 %8246, %v6520
        %v8248 = vpop.permute.xlu0 %8247
        %8249 = vset.pattern.permute.xlu0 0
        %8250 = vperm.xlu0 %8249, %v6529
        %v8251 = vpop.permute.xlu0 %8250
        %8252 = vset.pattern.permute.xlu0 0
        %8253 = vperm.xlu0 %8252, %v6538
        %v8254 = vpop.permute.xlu0 %8253
        %8255 = vset.pattern.permute.xlu0 0
        %8256 = vperm.xlu0 %8255, %v6547
        %v8257 = vpop.permute.xlu0 %8256
        %8258 = vset.pattern.permute.xlu0 0
        %8259 = vperm.xlu0 %8258, %v6556
        %v8260 = vpop.permute.xlu0 %8259
        %8261 = vset.pattern.permute.xlu0 0
        %8262 = vperm.xlu0 %8261, %v6565
        %v8263 = vpop.permute.xlu0 %8262
        %8264 = vset.pattern.permute.xlu0 0
        %8265 = vperm.xlu0 %8264, %v6574
        %v8266 = vpop.permute.xlu0 %8265
        %8267 = vset.pattern.permute.xlu0 0
        %8268 = vperm.xlu0 %8267, %v6583
        %v8269 = vpop.permute.xlu0 %8268
        %8270 = vset.pattern.permute.xlu0 0
        %8271 = vperm.xlu0 %8270, %v6592
        %v8272 = vpop.permute.xlu0 %8271
        %8273 = vset.pattern.permute.xlu0 0
        %8274 = vperm.xlu0 %8273, %v6601
        %v8275 = vpop.permute.xlu0 %8274
        %8276 = vset.pattern.permute.xlu0 0
        %8277 = vperm.xlu0 %8276, %v6610
        %v8278 = vpop.permute.xlu0 %8277
        %8279 = vset.pattern.permute.xlu0 0
        %8280 = vperm.xlu0 %8279, %v6619
        %v8281 = vpop.permute.xlu0 %8280
        %8282 = vset.pattern.permute.xlu0 0
        %8283 = vperm.xlu0 %8282, %v6628
        %v8284 = vpop.permute.xlu0 %8283
        %8285 = vset.pattern.permute.xlu0 0
        %8286 = vperm.xlu0 %8285, %v6637
        %v8287 = vpop.permute.xlu0 %8286
        %8288 = vset.pattern.permute.xlu0 0
        %8289 = vperm.xlu0 %8288, %v6646
        %v8290 = vpop.permute.xlu0 %8289
        %8291 = vset.pattern.permute.xlu0 0
        %8292 = vperm.xlu0 %8291, %v6655
        %v8293 = vpop.permute.xlu0 %8292
        %8294 = vset.pattern.permute.xlu0 0
        %8295 = vperm.xlu0 %8294, %v6664
        %v8296 = vpop.permute.xlu0 %8295
        %8297 = vset.pattern.permute.xlu0 0
        %8298 = vperm.xlu0 %8297, %v6673
        %v8299 = vpop.permute.xlu0 %8298
        %8300 = vset.pattern.permute.xlu0 0
        %8301 = vperm.xlu0 %8300, %v6682
        %v8302 = vpop.permute.xlu0 %8301
        %8303 = vset.pattern.permute.xlu0 0
        %8304 = vperm.xlu0 %8303, %v6691
        %v8305 = vpop.permute.xlu0 %8304
        %8306 = vset.pattern.permute.xlu0 0
        %8307 = vperm.xlu0 %8306, %v6700
        %v8308 = vpop.permute.xlu0 %8307
        %8309 = vset.pattern.permute.xlu0 0
        %8310 = vperm.xlu0 %8309, %v6709
        %v8311 = vpop.permute.xlu0 %8310
        %8312 = vset.pattern.permute.xlu0 0
        %8313 = vperm.xlu0 %8312, %v6718
        %v8314 = vpop.permute.xlu0 %8313
        %8315 = vset.pattern.permute.xlu0 0
        %8316 = vperm.xlu0 %8315, %v6727
        %v8317 = vpop.permute.xlu0 %8316
        %8318 = vset.pattern.permute.xlu0 0
        %8319 = vperm.xlu0 %8318, %v6736
        %v8320 = vpop.permute.xlu0 %8319
        %8321 = vset.pattern.permute.xlu0 0
        %8322 = vperm.xlu0 %8321, %v6745
        %v8323 = vpop.permute.xlu0 %8322
        %8324 = vset.pattern.permute.xlu0 0
        %8325 = vperm.xlu0 %8324, %v6754
        %v8326 = vpop.permute.xlu0 %8325
        %8327 = vset.pattern.permute.xlu0 0
        %8328 = vperm.xlu0 %8327, %v6763
        %v8329 = vpop.permute.xlu0 %8328
        %8330 = vset.pattern.permute.xlu0 0
        %8331 = vperm.xlu0 %8330, %v6772
        %v8332 = vpop.permute.xlu0 %8331
        %8333 = vset.pattern.permute.xlu0 0
        %8334 = vperm.xlu0 %8333, %v6781
        %v8335 = vpop.permute.xlu0 %8334
        %8336 = vset.pattern.permute.xlu0 0
        %8337 = vperm.xlu0 %8336, %v6790
        %v8338 = vpop.permute.xlu0 %8337
        %8339 = vset.pattern.permute.xlu0 0
        %8340 = vperm.xlu0 %8339, %v6799
        %v8341 = vpop.permute.xlu0 %8340
        %8342 = vset.pattern.permute.xlu0 0
        %8343 = vperm.xlu0 %8342, %v6808
        %v8344 = vpop.permute.xlu0 %8343
        %8345 = vset.pattern.permute.xlu0 0
        %8346 = vperm.xlu0 %8345, %v6817
        %v8347 = vpop.permute.xlu0 %8346
        %8348 = vset.pattern.permute.xlu0 0
        %8349 = vperm.xlu0 %8348, %v6826
        %v8350 = vpop.permute.xlu0 %8349
        %8351 = vset.pattern.permute.xlu0 0
        %8352 = vperm.xlu0 %8351, %v6835
        %v8353 = vpop.permute.xlu0 %8352
        %8354 = vset.pattern.permute.xlu0 0
        %8355 = vperm.xlu0 %8354, %v6844
        %v8356 = vpop.permute.xlu0 %8355
        %8357 = vset.pattern.permute.xlu0 0
        %8358 = vperm.xlu0 %8357, %v6853
        %v8359 = vpop.permute.xlu0 %8358
        %8360 = vset.pattern.permute.xlu0 0
        %8361 = vperm.xlu0 %8360, %v6862
        %v8362 = vpop.permute.xlu0 %8361
        %8363 = vset.pattern.permute.xlu0 0
        %8364 = vperm.xlu0 %8363, %v6871
        %v8365 = vpop.permute.xlu0 %8364
        %8366 = vset.pattern.permute.xlu0 0
        %8367 = vperm.xlu0 %8366, %v6880
        %v8368 = vpop.permute.xlu0 %8367
        %8369 = vset.pattern.permute.xlu0 0
        %8370 = vperm.xlu0 %8369, %v6889
        %v8371 = vpop.permute.xlu0 %8370
        %8372 = vset.pattern.permute.xlu0 0
        %8373 = vperm.xlu0 %8372, %v6898
        %v8374 = vpop.permute.xlu0 %8373
        %8375 = vset.pattern.permute.xlu0 0
        %8376 = vperm.xlu0 %8375, %v6907
        %v8377 = vpop.permute.xlu0 %8376
        %8378 = vset.pattern.permute.xlu0 0
        %8379 = vperm.xlu0 %8378, %v6916
        %v8380 = vpop.permute.xlu0 %8379
        %8381 = vset.pattern.permute.xlu0 0
        %8382 = vperm.xlu0 %8381, %v6925
        %v8383 = vpop.permute.xlu0 %8382
        %8384 = vset.pattern.permute.xlu0 0
        %8385 = vperm.xlu0 %8384, %v6934
        %v8386 = vpop.permute.xlu0 %8385
        %8387 = vset.pattern.permute.xlu0 0
        %8388 = vperm.xlu0 %8387, %v6943
        %v8389 = vpop.permute.xlu0 %8388
        %8390 = vset.pattern.permute.xlu0 0
        %8391 = vperm.xlu0 %8390, %v6952
        %v8392 = vpop.permute.xlu0 %8391
        %8393 = vset.pattern.permute.xlu0 0
        %8394 = vperm.xlu0 %8393, %v6961
        %v8395 = vpop.permute.xlu0 %8394
        %8396 = vset.pattern.permute.xlu0 0
        %8397 = vperm.xlu0 %8396, %v6970
        %v8398 = vpop.permute.xlu0 %8397
        %8399 = vset.pattern.permute.xlu0 0
        %8400 = vperm.xlu0 %8399, %v6979
        %v8401 = vpop.permute.xlu0 %8400
        %8402 = vset.pattern.permute.xlu0 0
        %8403 = vperm.xlu0 %8402, %v6988
        %v8404 = vpop.permute.xlu0 %8403
        %8405 = vset.pattern.permute.xlu0 0
        %8406 = vperm.xlu0 %8405, %v6997
        %v8407 = vpop.permute.xlu0 %8406
        %8408 = vset.pattern.permute.xlu0 0
        %8409 = vperm.xlu0 %8408, %v7006
        %v8410 = vpop.permute.xlu0 %8409
        %8411 = vset.pattern.permute.xlu0 0
        %8412 = vperm.xlu0 %8411, %v7015
        %v8413 = vpop.permute.xlu0 %8412
        %8414 = vset.pattern.permute.xlu0 0
        %8415 = vperm.xlu0 %8414, %v7024
        %v8416 = vpop.permute.xlu0 %8415
        %8417 = vset.pattern.permute.xlu0 0
        %8418 = vperm.xlu0 %8417, %v7033
        %v8419 = vpop.permute.xlu0 %8418
        %8420 = vset.pattern.permute.xlu0 0
        %8421 = vperm.xlu0 %8420, %v7042
        %v8422 = vpop.permute.xlu0 %8421
        %8423 = vset.pattern.permute.xlu0 0
        %8424 = vperm.xlu0 %8423, %v7051
        %v8425 = vpop.permute.xlu0 %8424
        %8426 = vset.pattern.permute.xlu0 0
        %8427 = vperm.xlu0 %8426, %v7060
        %v8428 = vpop.permute.xlu0 %8427
        %8429 = vset.pattern.permute.xlu0 0
        %8430 = vperm.xlu0 %8429, %v7069
        %v8431 = vpop.permute.xlu0 %8430
        %8432 = vset.pattern.permute.xlu0 0
        %8433 = vperm.xlu0 %8432, %v7078
        %v8434 = vpop.permute.xlu0 %8433
        %8435 = vset.pattern.permute.xlu0 0
        %8436 = vperm.xlu0 %8435, %v7087
        %v8437 = vpop.permute.xlu0 %8436
        %8438 = vset.pattern.permute.xlu0 0
        %8439 = vperm.xlu0 %8438, %v7096
        %v8440 = vpop.permute.xlu0 %8439
        %8441 = vset.pattern.permute.xlu0 0
        %8442 = vperm.xlu0 %8441, %v7105
        %v8443 = vpop.permute.xlu0 %8442
        %8444 = vset.pattern.permute.xlu0 0
        %8445 = vperm.xlu0 %8444, %v7114
        %v8446 = vpop.permute.xlu0 %8445
        %8447 = vset.pattern.permute.xlu0 0
        %8448 = vperm.xlu0 %8447, %v7123
        %v8449 = vpop.permute.xlu0 %8448
        %8450 = vset.pattern.permute.xlu0 0
        %8451 = vperm.xlu0 %8450, %v7132
        %v8452 = vpop.permute.xlu0 %8451
        %8453 = vset.pattern.permute.xlu0 0
        %8454 = vperm.xlu0 %8453, %v7141
        %v8455 = vpop.permute.xlu0 %8454
        %8456 = vset.pattern.permute.xlu0 0
        %8457 = vperm.xlu0 %8456, %v7150
        %v8458 = vpop.permute.xlu0 %8457
        %8459 = vset.pattern.permute.xlu0 0
        %8460 = vperm.xlu0 %8459, %v7159
        %v8461 = vpop.permute.xlu0 %8460
        %8462 = vset.pattern.permute.xlu0 0
        %8463 = vperm.xlu0 %8462, %v7168
        %v8464 = vpop.permute.xlu0 %8463
        %8465 = vset.pattern.permute.xlu0 0
        %8466 = vperm.xlu0 %8465, %v7177
        %v8467 = vpop.permute.xlu0 %8466
        %8468 = vset.pattern.permute.xlu0 0
        %8469 = vperm.xlu0 %8468, %v7186
        %v8470 = vpop.permute.xlu0 %8469
        %8471 = vset.pattern.permute.xlu0 0
        %8472 = vperm.xlu0 %8471, %v7195
        %v8473 = vpop.permute.xlu0 %8472
        %8474 = vset.pattern.permute.xlu0 0
        %8475 = vperm.xlu0 %8474, %v7204
        %v8476 = vpop.permute.xlu0 %8475
        %8477 = vset.pattern.permute.xlu0 0
        %8478 = vperm.xlu0 %8477, %v7213
        %v8479 = vpop.permute.xlu0 %8478
        %8480 = vset.pattern.permute.xlu0 0
        %8481 = vperm.xlu0 %8480, %v7222
        %v8482 = vpop.permute.xlu0 %8481
        %8483 = vset.pattern.permute.xlu0 0
        %8484 = vperm.xlu0 %8483, %v7231
        %v8485 = vpop.permute.xlu0 %8484
        %8486 = vset.pattern.permute.xlu0 0
        %8487 = vperm.xlu0 %8486, %v7240
        %v8488 = vpop.permute.xlu0 %8487
        %8489 = vset.pattern.permute.xlu0 0
        %8490 = vperm.xlu0 %8489, %v7249
        %v8491 = vpop.permute.xlu0 %8490
        %8492 = vset.pattern.permute.xlu0 0
        %8493 = vperm.xlu0 %8492, %v7258
        %v8494 = vpop.permute.xlu0 %8493
        %8495 = vset.pattern.permute.xlu0 0
        %8496 = vperm.xlu0 %8495, %v7267
        %v8497 = vpop.permute.xlu0 %8496
        %8498 = vset.pattern.permute.xlu0 0
        %8499 = vperm.xlu0 %8498, %v7276
        %v8500 = vpop.permute.xlu0 %8499
        %8501 = vset.pattern.permute.xlu0 0
        %8502 = vperm.xlu0 %8501, %v7285
        %v8503 = vpop.permute.xlu0 %8502
        %8504 = vset.pattern.permute.xlu0 0
        %8505 = vperm.xlu0 %8504, %v7294
        %v8506 = vpop.permute.xlu0 %8505
        %8507 = vset.pattern.permute.xlu0 0
        %8508 = vperm.xlu0 %8507, %v7303
        %v8509 = vpop.permute.xlu0 %8508
        %8510 = vset.pattern.permute.xlu0 0
        %8511 = vperm.xlu0 %8510, %v7312
        %v8512 = vpop.permute.xlu0 %8511
        %8513 = vset.pattern.permute.xlu0 0
        %8514 = vperm.xlu0 %8513, %v7321
        %v8515 = vpop.permute.xlu0 %8514
        %8516 = vset.pattern.permute.xlu0 0
        %8517 = vperm.xlu0 %8516, %v7330
        %v8518 = vpop.permute.xlu0 %8517
        %8519 = vset.pattern.permute.xlu0 0
        %8520 = vperm.xlu0 %8519, %v7339
        %v8521 = vpop.permute.xlu0 %8520
        %8522 = vset.pattern.permute.xlu0 0
        %8523 = vperm.xlu0 %8522, %v7348
        %v8524 = vpop.permute.xlu0 %8523
        %8525 = vset.pattern.permute.xlu0 0
        %8526 = vperm.xlu0 %8525, %v7357
        %v8527 = vpop.permute.xlu0 %8526
        %8528 = vset.pattern.permute.xlu0 0
        %8529 = vperm.xlu0 %8528, %v7366
        %v8530 = vpop.permute.xlu0 %8529
        %8531 = vset.pattern.permute.xlu0 0
        %8532 = vperm.xlu0 %8531, %v7375
        %v8533 = vpop.permute.xlu0 %8532
        %8534 = vset.pattern.permute.xlu0 0
        %8535 = vperm.xlu0 %8534, %v7384
        %v8536 = vpop.permute.xlu0 %8535
        %8537 = vset.pattern.permute.xlu0 0
        %8538 = vperm.xlu0 %8537, %v7393
        %v8539 = vpop.permute.xlu0 %8538
        %8540 = vset.pattern.permute.xlu0 0
        %8541 = vperm.xlu0 %8540, %v7402
        %v8542 = vpop.permute.xlu0 %8541
        %8543 = vset.pattern.permute.xlu0 0
        %8544 = vperm.xlu0 %8543, %v7411
        %v8545 = vpop.permute.xlu0 %8544
        %8546 = vset.pattern.permute.xlu0 0
        %8547 = vperm.xlu0 %8546, %v7420
        %v8548 = vpop.permute.xlu0 %8547
        %8549 = vset.pattern.permute.xlu0 0
        %8550 = vperm.xlu0 %8549, %v7429
        %v8551 = vpop.permute.xlu0 %8550
        %8552 = vset.pattern.permute.xlu0 0
        %8553 = vperm.xlu0 %8552, %v7438
        %v8554 = vpop.permute.xlu0 %8553
        %8555 = vset.pattern.permute.xlu0 0
        %8556 = vperm.xlu0 %8555, %v7447
        %v8557 = vpop.permute.xlu0 %8556
        %8558 = vset.pattern.permute.xlu0 0
        %8559 = vperm.xlu0 %8558, %v7456
        %v8560 = vpop.permute.xlu0 %8559
        %8561 = vset.pattern.permute.xlu0 0
        %8562 = vperm.xlu0 %8561, %v7465
        %v8563 = vpop.permute.xlu0 %8562
        %8564 = vset.pattern.permute.xlu0 0
        %8565 = vperm.xlu0 %8564, %v7474
        %v8566 = vpop.permute.xlu0 %8565
        %8567 = vset.pattern.permute.xlu0 0
        %8568 = vperm.xlu0 %8567, %v7483
        %v8569 = vpop.permute.xlu0 %8568
        %8570 = vset.pattern.permute.xlu0 0
        %8571 = vperm.xlu0 %8570, %v7492
        %v8572 = vpop.permute.xlu0 %8571
        %8573 = vset.pattern.permute.xlu0 0
        %8574 = vperm.xlu0 %8573, %v7501
        %v8575 = vpop.permute.xlu0 %8574
        %8576 = vset.pattern.permute.xlu0 0
        %8577 = vperm.xlu0 %8576, %v7510
        %v8578 = vpop.permute.xlu0 %8577
        %8579 = vset.pattern.permute.xlu0 0
        %8580 = vperm.xlu0 %8579, %v7519
        %v8581 = vpop.permute.xlu0 %8580
        %8582 = vset.pattern.permute.xlu0 0
        %8583 = vperm.xlu0 %8582, %v7528
        %v8584 = vpop.permute.xlu0 %8583
        %8585 = vset.pattern.permute.xlu0 0
        %8586 = vperm.xlu0 %8585, %v7537
        %v8587 = vpop.permute.xlu0 %8586
        %8588 = vset.pattern.permute.xlu0 0
        %8589 = vperm.xlu0 %8588, %v7546
        %v8590 = vpop.permute.xlu0 %8589
        %8591 = vset.pattern.permute.xlu0 0
        %8592 = vperm.xlu0 %8591, %v7555
        %v8593 = vpop.permute.xlu0 %8592
        %8594 = vset.pattern.permute.xlu0 0
        %8595 = vperm.xlu0 %8594, %v7564
        %v8596 = vpop.permute.xlu0 %8595
        %8597 = vset.pattern.permute.xlu0 0
        %8598 = vperm.xlu0 %8597, %v7573
        %v8599 = vpop.permute.xlu0 %8598
        %8600 = vset.pattern.permute.xlu0 0
        %8601 = vperm.xlu0 %8600, %v7582
        %v8602 = vpop.permute.xlu0 %8601
        %8603 = vset.pattern.permute.xlu0 0
        %8604 = vperm.xlu0 %8603, %v7591
        %v8605 = vpop.permute.xlu0 %8604
        %8606 = vset.pattern.permute.xlu0 0
        %8607 = vperm.xlu0 %8606, %v7600
        %v8608 = vpop.permute.xlu0 %8607
        %8609 = vset.pattern.permute.xlu0 0
        %8610 = vperm.xlu0 %8609, %v7609
        %v8611 = vpop.permute.xlu0 %8610
        %8612 = vset.pattern.permute.xlu0 0
        %8613 = vperm.xlu0 %8612, %v7618
        %v8614 = vpop.permute.xlu0 %8613
        %8615 = vset.pattern.permute.xlu0 0
        %8616 = vperm.xlu0 %8615, %v7627
        %v8617 = vpop.permute.xlu0 %8616
        %8618 = vset.pattern.permute.xlu0 0
        %8619 = vperm.xlu0 %8618, %v7636
        %v8620 = vpop.permute.xlu0 %8619
        %8621 = vset.pattern.permute.xlu0 0
        %8622 = vperm.xlu0 %8621, %v7645
        %v8623 = vpop.permute.xlu0 %8622
        %8624 = vset.pattern.permute.xlu0 0
        %8625 = vperm.xlu0 %8624, %v7654
        %v8626 = vpop.permute.xlu0 %8625
        %8627 = vset.pattern.permute.xlu0 0
        %8628 = vperm.xlu0 %8627, %v7663
        %v8629 = vpop.permute.xlu0 %8628
        %8630 = vset.pattern.permute.xlu0 0
        %8631 = vperm.xlu0 %8630, %v7672
        %v8632 = vpop.permute.xlu0 %8631
        %8633 = vset.pattern.permute.xlu0 0
        %8634 = vperm.xlu0 %8633, %v7681
        %v8635 = vpop.permute.xlu0 %8634
        %8636 = vset.pattern.permute.xlu0 0
        %8637 = vperm.xlu0 %8636, %v7690
        %v8638 = vpop.permute.xlu0 %8637
        %8639 = vset.pattern.permute.xlu0 0
        %8640 = vperm.xlu0 %8639, %v7699
        %v8641 = vpop.permute.xlu0 %8640
        %8642 = vset.pattern.permute.xlu0 0
        %8643 = vperm.xlu0 %8642, %v7708
        %v8644 = vpop.permute.xlu0 %8643
        %8645 = vset.pattern.permute.xlu0 0
        %8646 = vperm.xlu0 %8645, %v7717
        %v8647 = vpop.permute.xlu0 %8646
        %8648 = vset.pattern.permute.xlu0 0
        %8649 = vperm.xlu0 %8648, %v7726
        %v8650 = vpop.permute.xlu0 %8649
        %8651 = vset.pattern.permute.xlu0 0
        %8652 = vperm.xlu0 %8651, %v7735
        %v8653 = vpop.permute.xlu0 %8652
        %8654 = vset.pattern.permute.xlu0 0
        %8655 = vperm.xlu0 %8654, %v7744
        %v8656 = vpop.permute.xlu0 %8655
        %8657 = vset.pattern.permute.xlu0 0
        %8658 = vperm.xlu0 %8657, %v7753
        %v8659 = vpop.permute.xlu0 %8658
        %8660 = vset.pattern.permute.xlu0 0
        %8661 = vperm.xlu0 %8660, %v7762
        %v8662 = vpop.permute.xlu0 %8661
        %8663 = vset.pattern.permute.xlu0 0
        %8664 = vperm.xlu0 %8663, %v7771
        %v8665 = vpop.permute.xlu0 %8664
        %8666 = vset.pattern.permute.xlu0 0
        %8667 = vperm.xlu0 %8666, %v7780
        %v8668 = vpop.permute.xlu0 %8667
        %8669 = vset.pattern.permute.xlu0 0
        %8670 = vperm.xlu0 %8669, %v7789
        %v8671 = vpop.permute.xlu0 %8670
        %8672 = vset.pattern.permute.xlu0 0
        %8673 = vperm.xlu0 %8672, %v7798
        %v8674 = vpop.permute.xlu0 %8673
        %8675 = vset.pattern.permute.xlu0 0
        %8676 = vperm.xlu0 %8675, %v7807
        %v8677 = vpop.permute.xlu0 %8676
        %8678 = vset.pattern.permute.xlu0 0
        %8679 = vperm.xlu0 %8678, %v7816
        %v8680 = vpop.permute.xlu0 %8679
        %8681 = vset.pattern.permute.xlu0 0
        %8682 = vperm.xlu0 %8681, %v7825
        %v8683 = vpop.permute.xlu0 %8682
        %8684 = vset.pattern.permute.xlu0 0
        %8685 = vperm.xlu0 %8684, %v7834
        %v8686 = vpop.permute.xlu0 %8685
        %8687 = vset.pattern.permute.xlu0 0
        %8688 = vperm.xlu0 %8687, %v7843
        %v8689 = vpop.permute.xlu0 %8688
        %8690 = vset.pattern.permute.xlu0 0
        %8691 = vperm.xlu0 %8690, %v7852
        %v8692 = vpop.permute.xlu0 %8691
        %8693 = vset.pattern.permute.xlu0 0
        %8694 = vperm.xlu0 %8693, %v7861
        %v8695 = vpop.permute.xlu0 %8694
        %8696 = vset.pattern.permute.xlu0 0
        %8697 = vperm.xlu0 %8696, %v7870
        %v8698 = vpop.permute.xlu0 %8697
        %8699 = vset.pattern.permute.xlu0 0
        %8700 = vperm.xlu0 %8699, %v7879
        %v8701 = vpop.permute.xlu0 %8700
        %8702 = vset.pattern.permute.xlu0 0
        %8703 = vperm.xlu0 %8702, %v7888
        %v8704 = vpop.permute.xlu0 %8703
        %8705 = vset.pattern.permute.xlu0 0
        %8706 = vperm.xlu0 %8705, %v7897
        %v8707 = vpop.permute.xlu0 %8706
        %8708 = vset.pattern.permute.xlu0 0
        %8709 = vperm.xlu0 %8708, %v7906
        %v8710 = vpop.permute.xlu0 %8709
        %8711 = vset.pattern.permute.xlu0 0
        %8712 = vperm.xlu0 %8711, %v7915
        %v8713 = vpop.permute.xlu0 %8712
        %8714 = vset.pattern.permute.xlu0 0
        %8715 = vperm.xlu0 %8714, %v7924
        %v8716 = vpop.permute.xlu0 %8715
        %8717 = vset.pattern.permute.xlu0 0
        %8718 = vperm.xlu0 %8717, %v7933
        %v8719 = vpop.permute.xlu0 %8718
        %8720 = vset.pattern.permute.xlu0 0
        %8721 = vperm.xlu0 %8720, %v7942
        %v8722 = vpop.permute.xlu0 %8721
        %8723 = vset.pattern.permute.xlu0 0
        %8724 = vperm.xlu0 %8723, %v7951
        %v8725 = vpop.permute.xlu0 %8724
        %8726 = vset.pattern.permute.xlu0 0
        %8727 = vperm.xlu0 %8726, %v7960
        %v8728 = vpop.permute.xlu0 %8727
        %v8729 = vlaneseq
        %v8730 = vand.u32 %v8729, 127
        %v8731 = vperm.slane %v7963, %v8730
        %v8732 = vadd.s32 %v8730, 4294967288
        %v8733 = vperm.slane %v7966, %v8732
        %vm8734 = vcmask 130112
        %v8735 = vsel %vm8734, %v8733, %v8731
        %v8736 = vadd.s32 %v8730, 4294967280
        %v8737 = vperm.slane %v7969, %v8736
        %vm8738 = vcmask 195712
        %v8739 = vsel %vm8738, %v8737, %v8735
        %v8740 = vadd.s32 %v8730, 4294967272
        %v8741 = vperm.slane %v7972, %v8740
        %vm8742 = vcmask 261312
        %v8743 = vsel %vm8742, %v8741, %v8739
        %v8744 = vadd.s32 %v8730, 4294967264
        %v8745 = vperm.slane %v7975, %v8744
        %vm8746 = vcmask 326912
        %v8747 = vsel %vm8746, %v8745, %v8743
        %v8748 = vadd.s32 %v8730, 4294967256
        %v8749 = vperm.slane %v7978, %v8748
        %vm8750 = vcmask 392512
        %v8751 = vsel %vm8750, %v8749, %v8747
        %v8752 = vadd.s32 %v8730, 4294967248
        %v8753 = vperm.slane %v7981, %v8752
        %vm8754 = vcmask 458112
        %v8755 = vsel %vm8754, %v8753, %v8751
        %v8756 = vadd.s32 %v8730, 4294967240
        %v8757 = vperm.slane %v7984, %v8756
        %vm8758 = vcmask 523712
        %v8759 = vsel %vm8758, %v8757, %v8755
        %v8760 = vadd.s32 %v8730, 4294967232
        %v8761 = vperm.slane %v7987, %v8760
        %vm8762 = vcmask 589312
        %v8763 = vsel %vm8762, %v8761, %v8759
        %v8764 = vadd.s32 %v8730, 4294967224
        %v8765 = vperm.slane %v7990, %v8764
        %vm8766 = vcmask 654912
        %v8767 = vsel %vm8766, %v8765, %v8763
        %v8768 = vadd.s32 %v8730, 4294967216
        %v8769 = vperm.slane %v7993, %v8768
        %vm8770 = vcmask 720512
        %v8771 = vsel %vm8770, %v8769, %v8767
        %v8772 = vadd.s32 %v8730, 4294967208
        %v8773 = vperm.slane %v7996, %v8772
        %vm8774 = vcmask 786112
        %v8775 = vsel %vm8774, %v8773, %v8771
        %v8776 = vadd.s32 %v8730, 4294967200
        %v8777 = vperm.slane %v7999, %v8776
        %vm8778 = vcmask 851712
        %v8779 = vsel %vm8778, %v8777, %v8775
        %v8780 = vadd.s32 %v8730, 4294967192
        %v8781 = vperm.slane %v8002, %v8780
        %vm8782 = vcmask 917312
        %v8783 = vsel %vm8782, %v8781, %v8779
        %v8784 = vadd.s32 %v8730, 4294967184
        %v8785 = vperm.slane %v8005, %v8784
        %vm8786 = vcmask 982912
        %v8787 = vsel %vm8786, %v8785, %v8783
        %v8788 = vadd.s32 %v8730, 4294967176
        %v8789 = vperm.slane %v8008, %v8788
        %vm8790 = vcmask 1048512
        %v8791 = vsel %vm8790, %v8789, %v8787
        %v8792 = vperm.slane %v8011, %v8730
        %v8793 = vperm.slane %v8014, %v8732
        %v8794 = vsel %vm8734, %v8793, %v8792
        %v8795 = vperm.slane %v8017, %v8736
        %v8796 = vsel %vm8738, %v8795, %v8794
        %v8797 = vperm.slane %v8020, %v8740
        %v8798 = vsel %vm8742, %v8797, %v8796
        %v8799 = vperm.slane %v8023, %v8744
        %v8800 = vsel %vm8746, %v8799, %v8798
        %v8801 = vperm.slane %v8026, %v8748
        %v8802 = vsel %vm8750, %v8801, %v8800
        %v8803 = vperm.slane %v8029, %v8752
        %v8804 = vsel %vm8754, %v8803, %v8802
        %v8805 = vperm.slane %v8032, %v8756
        %v8806 = vsel %vm8758, %v8805, %v8804
        %v8807 = vperm.slane %v8035, %v8760
        %v8808 = vsel %vm8762, %v8807, %v8806
        %v8809 = vperm.slane %v8038, %v8764
        %v8810 = vsel %vm8766, %v8809, %v8808
        %v8811 = vperm.slane %v8041, %v8768
        %v8812 = vsel %vm8770, %v8811, %v8810
        %v8813 = vperm.slane %v8044, %v8772
        %v8814 = vsel %vm8774, %v8813, %v8812
        %v8815 = vperm.slane %v8047, %v8776
        %v8816 = vsel %vm8778, %v8815, %v8814
        %v8817 = vperm.slane %v8050, %v8780
        %v8818 = vsel %vm8782, %v8817, %v8816
        %v8819 = vperm.slane %v8053, %v8784
        %v8820 = vsel %vm8786, %v8819, %v8818
        %v8821 = vperm.slane %v8056, %v8788
        %v8822 = vsel %vm8790, %v8821, %v8820
        %v8823 = vperm.slane %v8059, %v8730
        %v8824 = vperm.slane %v8062, %v8732
        %v8825 = vsel %vm8734, %v8824, %v8823
        %v8826 = vperm.slane %v8065, %v8736
        %v8827 = vsel %vm8738, %v8826, %v8825
        %v8828 = vperm.slane %v8068, %v8740
        %v8829 = vsel %vm8742, %v8828, %v8827
        %v8830 = vperm.slane %v8071, %v8744
        %v8831 = vsel %vm8746, %v8830, %v8829
        %v8832 = vperm.slane %v8074, %v8748
        %v8833 = vsel %vm8750, %v8832, %v8831
        %v8834 = vperm.slane %v8077, %v8752
        %v8835 = vsel %vm8754, %v8834, %v8833
        %v8836 = vperm.slane %v8080, %v8756
        %v8837 = vsel %vm8758, %v8836, %v8835
        %v8838 = vperm.slane %v8083, %v8760
        %v8839 = vsel %vm8762, %v8838, %v8837
        %v8840 = vperm.slane %v8086, %v8764
        %v8841 = vsel %vm8766, %v8840, %v8839
        %v8842 = vperm.slane %v8089, %v8768
        %v8843 = vsel %vm8770, %v8842, %v8841
        %v8844 = vperm.slane %v8092, %v8772
        %v8845 = vsel %vm8774, %v8844, %v8843
        %v8846 = vperm.slane %v8095, %v8776
        %v8847 = vsel %vm8778, %v8846, %v8845
        %v8848 = vperm.slane %v8098, %v8780
        %v8849 = vsel %vm8782, %v8848, %v8847
        %v8850 = vperm.slane %v8101, %v8784
        %v8851 = vsel %vm8786, %v8850, %v8849
        %v8852 = vperm.slane %v8104, %v8788
        %v8853 = vsel %vm8790, %v8852, %v8851
        %v8854 = vperm.slane %v8107, %v8730
        %v8855 = vperm.slane %v8110, %v8732
        %v8856 = vsel %vm8734, %v8855, %v8854
        %v8857 = vperm.slane %v8113, %v8736
        %v8858 = vsel %vm8738, %v8857, %v8856
        %v8859 = vperm.slane %v8116, %v8740
        %v8860 = vsel %vm8742, %v8859, %v8858
        %v8861 = vperm.slane %v8119, %v8744
        %v8862 = vsel %vm8746, %v8861, %v8860
        %v8863 = vperm.slane %v8122, %v8748
        %v8864 = vsel %vm8750, %v8863, %v8862
        %v8865 = vperm.slane %v8125, %v8752
        %v8866 = vsel %vm8754, %v8865, %v8864
        %v8867 = vperm.slane %v8128, %v8756
        %v8868 = vsel %vm8758, %v8867, %v8866
        %v8869 = vperm.slane %v8131, %v8760
        %v8870 = vsel %vm8762, %v8869, %v8868
        %v8871 = vperm.slane %v8134, %v8764
        %v8872 = vsel %vm8766, %v8871, %v8870
        %v8873 = vperm.slane %v8137, %v8768
        %v8874 = vsel %vm8770, %v8873, %v8872
        %v8875 = vperm.slane %v8140, %v8772
        %v8876 = vsel %vm8774, %v8875, %v8874
        %v8877 = vperm.slane %v8143, %v8776
        %v8878 = vsel %vm8778, %v8877, %v8876
        %v8879 = vperm.slane %v8146, %v8780
        %v8880 = vsel %vm8782, %v8879, %v8878
        %v8881 = vperm.slane %v8149, %v8784
        %v8882 = vsel %vm8786, %v8881, %v8880
        %v8883 = vperm.slane %v8152, %v8788
        %v8884 = vsel %vm8790, %v8883, %v8882
        %v8885 = vperm.slane %v8155, %v8730
        %v8886 = vperm.slane %v8158, %v8732
        %v8887 = vsel %vm8734, %v8886, %v8885
        %v8888 = vperm.slane %v8161, %v8736
        %v8889 = vsel %vm8738, %v8888, %v8887
        %v8890 = vperm.slane %v8164, %v8740
        %v8891 = vsel %vm8742, %v8890, %v8889
        %v8892 = vperm.slane %v8167, %v8744
        %v8893 = vsel %vm8746, %v8892, %v8891
        %v8894 = vperm.slane %v8170, %v8748
        %v8895 = vsel %vm8750, %v8894, %v8893
        %v8896 = vperm.slane %v8173, %v8752
        %v8897 = vsel %vm8754, %v8896, %v8895
        %v8898 = vperm.slane %v8176, %v8756
        %v8899 = vsel %vm8758, %v8898, %v8897
        %v8900 = vperm.slane %v8179, %v8760
        %v8901 = vsel %vm8762, %v8900, %v8899
        %v8902 = vperm.slane %v8182, %v8764
        %v8903 = vsel %vm8766, %v8902, %v8901
        %v8904 = vperm.slane %v8185, %v8768
        %v8905 = vsel %vm8770, %v8904, %v8903
        %v8906 = vperm.slane %v8188, %v8772
        %v8907 = vsel %vm8774, %v8906, %v8905
        %v8908 = vperm.slane %v8191, %v8776
        %v8909 = vsel %vm8778, %v8908, %v8907
        %v8910 = vperm.slane %v8194, %v8780
        %v8911 = vsel %vm8782, %v8910, %v8909
        %v8912 = vperm.slane %v8197, %v8784
        %v8913 = vsel %vm8786, %v8912, %v8911
        %v8914 = vperm.slane %v8200, %v8788
        %v8915 = vsel %vm8790, %v8914, %v8913
        %v8916 = vperm.slane %v8203, %v8730
        %v8917 = vperm.slane %v8206, %v8732
        %v8918 = vsel %vm8734, %v8917, %v8916
        %v8919 = vperm.slane %v8209, %v8736
        %v8920 = vsel %vm8738, %v8919, %v8918
        %v8921 = vperm.slane %v8212, %v8740
        %v8922 = vsel %vm8742, %v8921, %v8920
        %v8923 = vperm.slane %v8215, %v8744
        %v8924 = vsel %vm8746, %v8923, %v8922
        %v8925 = vperm.slane %v8218, %v8748
        %v8926 = vsel %vm8750, %v8925, %v8924
        %v8927 = vperm.slane %v8221, %v8752
        %v8928 = vsel %vm8754, %v8927, %v8926
        %v8929 = vperm.slane %v8224, %v8756
        %v8930 = vsel %vm8758, %v8929, %v8928
        %v8931 = vperm.slane %v8227, %v8760
        %v8932 = vsel %vm8762, %v8931, %v8930
        %v8933 = vperm.slane %v8230, %v8764
        %v8934 = vsel %vm8766, %v8933, %v8932
        %v8935 = vperm.slane %v8233, %v8768
        %v8936 = vsel %vm8770, %v8935, %v8934
        %v8937 = vperm.slane %v8236, %v8772
        %v8938 = vsel %vm8774, %v8937, %v8936
        %v8939 = vperm.slane %v8239, %v8776
        %v8940 = vsel %vm8778, %v8939, %v8938
        %v8941 = vperm.slane %v8242, %v8780
        %v8942 = vsel %vm8782, %v8941, %v8940
        %v8943 = vperm.slane %v8245, %v8784
        %v8944 = vsel %vm8786, %v8943, %v8942
        %v8945 = vperm.slane %v8248, %v8788
        %v8946 = vsel %vm8790, %v8945, %v8944
        %v8947 = vperm.slane %v8251, %v8730
        %v8948 = vperm.slane %v8254, %v8732
        %v8949 = vsel %vm8734, %v8948, %v8947
        %v8950 = vperm.slane %v8257, %v8736
        %v8951 = vsel %vm8738, %v8950, %v8949
        %v8952 = vperm.slane %v8260, %v8740
        %v8953 = vsel %vm8742, %v8952, %v8951
        %v8954 = vperm.slane %v8263, %v8744
        %v8955 = vsel %vm8746, %v8954, %v8953
        %v8956 = vperm.slane %v8266, %v8748
        %v8957 = vsel %vm8750, %v8956, %v8955
        %v8958 = vperm.slane %v8269, %v8752
        %v8959 = vsel %vm8754, %v8958, %v8957
        %v8960 = vperm.slane %v8272, %v8756
        %v8961 = vsel %vm8758, %v8960, %v8959
        %v8962 = vperm.slane %v8275, %v8760
        %v8963 = vsel %vm8762, %v8962, %v8961
        %v8964 = vperm.slane %v8278, %v8764
        %v8965 = vsel %vm8766, %v8964, %v8963
        %v8966 = vperm.slane %v8281, %v8768
        %v8967 = vsel %vm8770, %v8966, %v8965
        %v8968 = vperm.slane %v8284, %v8772
        %v8969 = vsel %vm8774, %v8968, %v8967
        %v8970 = vperm.slane %v8287, %v8776
        %v8971 = vsel %vm8778, %v8970, %v8969
        %v8972 = vperm.slane %v8290, %v8780
        %v8973 = vsel %vm8782, %v8972, %v8971
        %v8974 = vperm.slane %v8293, %v8784
        %v8975 = vsel %vm8786, %v8974, %v8973
        %v8976 = vperm.slane %v8296, %v8788
        %v8977 = vsel %vm8790, %v8976, %v8975
        %v8978 = vperm.slane %v8299, %v8730
        %v8979 = vperm.slane %v8302, %v8732
        %v8980 = vsel %vm8734, %v8979, %v8978
        %v8981 = vperm.slane %v8305, %v8736
        %v8982 = vsel %vm8738, %v8981, %v8980
        %v8983 = vperm.slane %v8308, %v8740
        %v8984 = vsel %vm8742, %v8983, %v8982
        %v8985 = vperm.slane %v8311, %v8744
        %v8986 = vsel %vm8746, %v8985, %v8984
        %v8987 = vperm.slane %v8314, %v8748
        %v8988 = vsel %vm8750, %v8987, %v8986
        %v8989 = vperm.slane %v8317, %v8752
        %v8990 = vsel %vm8754, %v8989, %v8988
        %v8991 = vperm.slane %v8320, %v8756
        %v8992 = vsel %vm8758, %v8991, %v8990
        %v8993 = vperm.slane %v8323, %v8760
        %v8994 = vsel %vm8762, %v8993, %v8992
        %v8995 = vperm.slane %v8326, %v8764
        %v8996 = vsel %vm8766, %v8995, %v8994
        %v8997 = vperm.slane %v8329, %v8768
        %v8998 = vsel %vm8770, %v8997, %v8996
        %v8999 = vperm.slane %v8332, %v8772
        %v9000 = vsel %vm8774, %v8999, %v8998
        %v9001 = vperm.slane %v8335, %v8776
        %v9002 = vsel %vm8778, %v9001, %v9000
        %v9003 = vperm.slane %v8338, %v8780
        %v9004 = vsel %vm8782, %v9003, %v9002
        %v9005 = vperm.slane %v8341, %v8784
        %v9006 = vsel %vm8786, %v9005, %v9004
        %v9007 = vperm.slane %v8344, %v8788
        %v9008 = vsel %vm8790, %v9007, %v9006
        %v9009 = vperm.slane %v8347, %v8730
        %v9010 = vperm.slane %v8350, %v8732
        %v9011 = vsel %vm8734, %v9010, %v9009
        %v9012 = vperm.slane %v8353, %v8736
        %v9013 = vsel %vm8738, %v9012, %v9011
        %v9014 = vperm.slane %v8356, %v8740
        %v9015 = vsel %vm8742, %v9014, %v9013
        %v9016 = vperm.slane %v8359, %v8744
        %v9017 = vsel %vm8746, %v9016, %v9015
        %v9018 = vperm.slane %v8362, %v8748
        %v9019 = vsel %vm8750, %v9018, %v9017
        %v9020 = vperm.slane %v8365, %v8752
        %v9021 = vsel %vm8754, %v9020, %v9019
        %v9022 = vperm.slane %v8368, %v8756
        %v9023 = vsel %vm8758, %v9022, %v9021
        %v9024 = vperm.slane %v8371, %v8760
        %v9025 = vsel %vm8762, %v9024, %v9023
        %v9026 = vperm.slane %v8374, %v8764
        %v9027 = vsel %vm8766, %v9026, %v9025
        %v9028 = vperm.slane %v8377, %v8768
        %v9029 = vsel %vm8770, %v9028, %v9027
        %v9030 = vperm.slane %v8380, %v8772
        %v9031 = vsel %vm8774, %v9030, %v9029
        %v9032 = vperm.slane %v8383, %v8776
        %v9033 = vsel %vm8778, %v9032, %v9031
        %v9034 = vperm.slane %v8386, %v8780
        %v9035 = vsel %vm8782, %v9034, %v9033
        %v9036 = vperm.slane %v8389, %v8784
        %v9037 = vsel %vm8786, %v9036, %v9035
        %v9038 = vperm.slane %v8392, %v8788
        %v9039 = vsel %vm8790, %v9038, %v9037
        %v9040 = vperm.slane %v8395, %v8730
        %v9041 = vperm.slane %v8398, %v8732
        %v9042 = vsel %vm8734, %v9041, %v9040
        %v9043 = vperm.slane %v8401, %v8736
        %v9044 = vsel %vm8738, %v9043, %v9042
        %v9045 = vperm.slane %v8404, %v8740
        %v9046 = vsel %vm8742, %v9045, %v9044
        %v9047 = vperm.slane %v8407, %v8744
        %v9048 = vsel %vm8746, %v9047, %v9046
        %v9049 = vperm.slane %v8410, %v8748
        %v9050 = vsel %vm8750, %v9049, %v9048
        %v9051 = vperm.slane %v8413, %v8752
        %v9052 = vsel %vm8754, %v9051, %v9050
        %v9053 = vperm.slane %v8416, %v8756
        %v9054 = vsel %vm8758, %v9053, %v9052
        %v9055 = vperm.slane %v8419, %v8760
        %v9056 = vsel %vm8762, %v9055, %v9054
        %v9057 = vperm.slane %v8422, %v8764
        %v9058 = vsel %vm8766, %v9057, %v9056
        %v9059 = vperm.slane %v8425, %v8768
        %v9060 = vsel %vm8770, %v9059, %v9058
        %v9061 = vperm.slane %v8428, %v8772
        %v9062 = vsel %vm8774, %v9061, %v9060
        %v9063 = vperm.slane %v8431, %v8776
        %v9064 = vsel %vm8778, %v9063, %v9062
        %v9065 = vperm.slane %v8434, %v8780
        %v9066 = vsel %vm8782, %v9065, %v9064
        %v9067 = vperm.slane %v8437, %v8784
        %v9068 = vsel %vm8786, %v9067, %v9066
        %v9069 = vperm.slane %v8440, %v8788
        %v9070 = vsel %vm8790, %v9069, %v9068
        %v9071 = vperm.slane %v8443, %v8730
        %v9072 = vperm.slane %v8446, %v8732
        %v9073 = vsel %vm8734, %v9072, %v9071
        %v9074 = vperm.slane %v8449, %v8736
        %v9075 = vsel %vm8738, %v9074, %v9073
        %v9076 = vperm.slane %v8452, %v8740
        %v9077 = vsel %vm8742, %v9076, %v9075
        %v9078 = vperm.slane %v8455, %v8744
        %v9079 = vsel %vm8746, %v9078, %v9077
        %v9080 = vperm.slane %v8458, %v8748
        %v9081 = vsel %vm8750, %v9080, %v9079
        %v9082 = vperm.slane %v8461, %v8752
        %v9083 = vsel %vm8754, %v9082, %v9081
        %v9084 = vperm.slane %v8464, %v8756
        %v9085 = vsel %vm8758, %v9084, %v9083
        %v9086 = vperm.slane %v8467, %v8760
        %v9087 = vsel %vm8762, %v9086, %v9085
        %v9088 = vperm.slane %v8470, %v8764
        %v9089 = vsel %vm8766, %v9088, %v9087
        %v9090 = vperm.slane %v8473, %v8768
        %v9091 = vsel %vm8770, %v9090, %v9089
        %v9092 = vperm.slane %v8476, %v8772
        %v9093 = vsel %vm8774, %v9092, %v9091
        %v9094 = vperm.slane %v8479, %v8776
        %v9095 = vsel %vm8778, %v9094, %v9093
        %v9096 = vperm.slane %v8482, %v8780
        %v9097 = vsel %vm8782, %v9096, %v9095
        %v9098 = vperm.slane %v8485, %v8784
        %v9099 = vsel %vm8786, %v9098, %v9097
        %v9100 = vperm.slane %v8488, %v8788
        %v9101 = vsel %vm8790, %v9100, %v9099
        %v9102 = vperm.slane %v8491, %v8730
        %v9103 = vperm.slane %v8494, %v8732
        %v9104 = vsel %vm8734, %v9103, %v9102
        %v9105 = vperm.slane %v8497, %v8736
        %v9106 = vsel %vm8738, %v9105, %v9104
        %v9107 = vperm.slane %v8500, %v8740
        %v9108 = vsel %vm8742, %v9107, %v9106
        %v9109 = vperm.slane %v8503, %v8744
        %v9110 = vsel %vm8746, %v9109, %v9108
        %v9111 = vperm.slane %v8506, %v8748
        %v9112 = vsel %vm8750, %v9111, %v9110
        %v9113 = vperm.slane %v8509, %v8752
        %v9114 = vsel %vm8754, %v9113, %v9112
        %v9115 = vperm.slane %v8512, %v8756
        %v9116 = vsel %vm8758, %v9115, %v9114
        %v9117 = vperm.slane %v8515, %v8760
        %v9118 = vsel %vm8762, %v9117, %v9116
        %v9119 = vperm.slane %v8518, %v8764
        %v9120 = vsel %vm8766, %v9119, %v9118
        %v9121 = vperm.slane %v8521, %v8768
        %v9122 = vsel %vm8770, %v9121, %v9120
        %v9123 = vperm.slane %v8524, %v8772
        %v9124 = vsel %vm8774, %v9123, %v9122
        %v9125 = vperm.slane %v8527, %v8776
        %v9126 = vsel %vm8778, %v9125, %v9124
        %v9127 = vperm.slane %v8530, %v8780
        %v9128 = vsel %vm8782, %v9127, %v9126
        %v9129 = vperm.slane %v8533, %v8784
        %v9130 = vsel %vm8786, %v9129, %v9128
        %v9131 = vperm.slane %v8536, %v8788
        %v9132 = vsel %vm8790, %v9131, %v9130
        %v9133 = vperm.slane %v8539, %v8730
        %v9134 = vperm.slane %v8542, %v8732
        %v9135 = vsel %vm8734, %v9134, %v9133
        %v9136 = vperm.slane %v8545, %v8736
        %v9137 = vsel %vm8738, %v9136, %v9135
        %v9138 = vperm.slane %v8548, %v8740
        %v9139 = vsel %vm8742, %v9138, %v9137
        %v9140 = vperm.slane %v8551, %v8744
        %v9141 = vsel %vm8746, %v9140, %v9139
        %v9142 = vperm.slane %v8554, %v8748
        %v9143 = vsel %vm8750, %v9142, %v9141
        %v9144 = vperm.slane %v8557, %v8752
        %v9145 = vsel %vm8754, %v9144, %v9143
        %v9146 = vperm.slane %v8560, %v8756
        %v9147 = vsel %vm8758, %v9146, %v9145
        %v9148 = vperm.slane %v8563, %v8760
        %v9149 = vsel %vm8762, %v9148, %v9147
        %v9150 = vperm.slane %v8566, %v8764
        %v9151 = vsel %vm8766, %v9150, %v9149
        %v9152 = vperm.slane %v8569, %v8768
        %v9153 = vsel %vm8770, %v9152, %v9151
        %v9154 = vperm.slane %v8572, %v8772
        %v9155 = vsel %vm8774, %v9154, %v9153
        %v9156 = vperm.slane %v8575, %v8776
        %v9157 = vsel %vm8778, %v9156, %v9155
        %v9158 = vperm.slane %v8578, %v8780
        %v9159 = vsel %vm8782, %v9158, %v9157
        %v9160 = vperm.slane %v8581, %v8784
        %v9161 = vsel %vm8786, %v9160, %v9159
        %v9162 = vperm.slane %v8584, %v8788
        %v9163 = vsel %vm8790, %v9162, %v9161
        %v9164 = vperm.slane %v8587, %v8730
        %v9165 = vperm.slane %v8590, %v8732
        %v9166 = vsel %vm8734, %v9165, %v9164
        %v9167 = vperm.slane %v8593, %v8736
        %v9168 = vsel %vm8738, %v9167, %v9166
        %v9169 = vperm.slane %v8596, %v8740
        %v9170 = vsel %vm8742, %v9169, %v9168
        %v9171 = vperm.slane %v8599, %v8744
        %v9172 = vsel %vm8746, %v9171, %v9170
        %v9173 = vperm.slane %v8602, %v8748
        %v9174 = vsel %vm8750, %v9173, %v9172
        %v9175 = vperm.slane %v8605, %v8752
        %v9176 = vsel %vm8754, %v9175, %v9174
        %v9177 = vperm.slane %v8608, %v8756
        %v9178 = vsel %vm8758, %v9177, %v9176
        %v9179 = vperm.slane %v8611, %v8760
        %v9180 = vsel %vm8762, %v9179, %v9178
        %v9181 = vperm.slane %v8614, %v8764
        %v9182 = vsel %vm8766, %v9181, %v9180
        %v9183 = vperm.slane %v8617, %v8768
        %v9184 = vsel %vm8770, %v9183, %v9182
        %v9185 = vperm.slane %v8620, %v8772
        %v9186 = vsel %vm8774, %v9185, %v9184
        %v9187 = vperm.slane %v8623, %v8776
        %v9188 = vsel %vm8778, %v9187, %v9186
        %v9189 = vperm.slane %v8626, %v8780
        %v9190 = vsel %vm8782, %v9189, %v9188
        %v9191 = vperm.slane %v8629, %v8784
        %v9192 = vsel %vm8786, %v9191, %v9190
        %v9193 = vperm.slane %v8632, %v8788
        %v9194 = vsel %vm8790, %v9193, %v9192
        %v9195 = vperm.slane %v8635, %v8730
        %v9196 = vperm.slane %v8638, %v8732
        %v9197 = vsel %vm8734, %v9196, %v9195
        %v9198 = vperm.slane %v8641, %v8736
        %v9199 = vsel %vm8738, %v9198, %v9197
        %v9200 = vperm.slane %v8644, %v8740
        %v9201 = vsel %vm8742, %v9200, %v9199
        %v9202 = vperm.slane %v8647, %v8744
        %v9203 = vsel %vm8746, %v9202, %v9201
        %v9204 = vperm.slane %v8650, %v8748
        %v9205 = vsel %vm8750, %v9204, %v9203
        %v9206 = vperm.slane %v8653, %v8752
        %v9207 = vsel %vm8754, %v9206, %v9205
        %v9208 = vperm.slane %v8656, %v8756
        %v9209 = vsel %vm8758, %v9208, %v9207
        %v9210 = vperm.slane %v8659, %v8760
        %v9211 = vsel %vm8762, %v9210, %v9209
        %v9212 = vperm.slane %v8662, %v8764
        %v9213 = vsel %vm8766, %v9212, %v9211
        %v9214 = vperm.slane %v8665, %v8768
        %v9215 = vsel %vm8770, %v9214, %v9213
        %v9216 = vperm.slane %v8668, %v8772
        %v9217 = vsel %vm8774, %v9216, %v9215
        %v9218 = vperm.slane %v8671, %v8776
        %v9219 = vsel %vm8778, %v9218, %v9217
        %v9220 = vperm.slane %v8674, %v8780
        %v9221 = vsel %vm8782, %v9220, %v9219
        %v9222 = vperm.slane %v8677, %v8784
        %v9223 = vsel %vm8786, %v9222, %v9221
        %v9224 = vperm.slane %v8680, %v8788
        %v9225 = vsel %vm8790, %v9224, %v9223
        %v9226 = vperm.slane %v8683, %v8730
        %v9227 = vperm.slane %v8686, %v8732
        %v9228 = vsel %vm8734, %v9227, %v9226
        %v9229 = vperm.slane %v8689, %v8736
        %v9230 = vsel %vm8738, %v9229, %v9228
        %v9231 = vperm.slane %v8692, %v8740
        %v9232 = vsel %vm8742, %v9231, %v9230
        %v9233 = vperm.slane %v8695, %v8744
        %v9234 = vsel %vm8746, %v9233, %v9232
        %v9235 = vperm.slane %v8698, %v8748
        %v9236 = vsel %vm8750, %v9235, %v9234
        %v9237 = vperm.slane %v8701, %v8752
        %v9238 = vsel %vm8754, %v9237, %v9236
        %v9239 = vperm.slane %v8704, %v8756
        %v9240 = vsel %vm8758, %v9239, %v9238
        %v9241 = vperm.slane %v8707, %v8760
        %v9242 = vsel %vm8762, %v9241, %v9240
        %v9243 = vperm.slane %v8710, %v8764
        %v9244 = vsel %vm8766, %v9243, %v9242
        %v9245 = vperm.slane %v8713, %v8768
        %v9246 = vsel %vm8770, %v9245, %v9244
        %v9247 = vperm.slane %v8716, %v8772
        %v9248 = vsel %vm8774, %v9247, %v9246
        %v9249 = vperm.slane %v8719, %v8776
        %v9250 = vsel %vm8778, %v9249, %v9248
        %v9251 = vperm.slane %v8722, %v8780
        %v9252 = vsel %vm8782, %v9251, %v9250
        %v9253 = vperm.slane %v8725, %v8784
        %v9254 = vsel %vm8786, %v9253, %v9252
        %v9255 = vperm.slane %v8728, %v8788
        %v9256 = vsel %vm8790, %v9255, %v9254
        %v9257 = vrot.slane %v8822, 7
        %v9258 = vrot.slane %v8853, 6
        %v9259 = vrot.slane %v8884, 5
        %v9260 = vrot.slane %v8915, 4
        %v9261 = vrot.slane %v8946, 3
        %v9262 = vrot.slane %v8977, 2
        %v9263 = vrot.slane %v9008, 1
        %v9264 = vrot.slane %v9070, 7
        %v9265 = vrot.slane %v9101, 6
        %v9266 = vrot.slane %v9132, 5
        %v9267 = vrot.slane %v9163, 4
        %v9268 = vrot.slane %v9194, 3
        %v9269 = vrot.slane %v9225, 2
        %v9270 = vrot.slane %v9256, 1
        %vm9271 = vcmask 1040384
        %v9272 = vsel %vm9271, %v8791, %v9257
        %vm9273 = vcmask 1042434
        %v9274 = vsel %vm9273, %v9258, %v9259
        %vm9275 = vcmask 1041408
        %v9276 = vsel %vm9275, %v9272, %v9274
        %vm9277 = vcmask 1044484
        %v9278 = vsel %vm9277, %v9260, %v9261
        %vm9279 = vcmask 1046534
        %v9280 = vsel %vm9279, %v9262, %v9263
        %vm9281 = vcmask 1045508
        %v9282 = vsel %vm9281, %v9278, %v9280
        %vm9283 = vcmask 1043456
        %v9284 = vsel %vm9283, %v9276, %v9282
        %v9285 = vsel %vm9271, %v9039, %v9264
        %v9286 = vsel %vm9273, %v9265, %v9266
        %v9287 = vsel %vm9275, %v9285, %v9286
        %v9288 = vsel %vm9277, %v9267, %v9268
        %v9289 = vsel %vm9279, %v9269, %v9270
        %v9290 = vsel %vm9281, %v9288, %v9289
        %v9291 = vsel %vm9283, %v9287, %v9290
        %9294 = vst [vmem:[%s219] sm:$0xff] %v9284
        %9295 = vst [vmem:[%s219 + $0x8] sm:$0xff] %v9291
        %v9296 = vld [vmem:[%s2] sm:$0xff]
        %v9297 = vld [vmem:[%s2 + $0x8] sm:$0xff]
        %v9298 = vld [vmem:[%s2 + $0x10] sm:$0xff]
        %v9299 = vld [vmem:[%s2 + $0x18] sm:$0xff]
        %v9300 = vld [vmem:[%s2 + $0x20] sm:$0xff]
        %v9301 = vld [vmem:[%s2 + $0x28] sm:$0xff]
        %v9302 = vld [vmem:[%s2 + $0x30] sm:$0xff]
        %v9303 = vld [vmem:[%s2 + $0x38] sm:$0xff]
        %v9304 = vld [vmem:[%s2 + $0x40] sm:$0xff]
        %v9305 = vld [vmem:[%s2 + $0x48] sm:$0xff]
        %v9306 = vld [vmem:[%s2 + $0x50] sm:$0xff]
        %v9307 = vld [vmem:[%s2 + $0x58] sm:$0xff]
        %v9308 = vld [vmem:[%s2 + $0x60] sm:$0xff]
        %v9309 = vld [vmem:[%s2 + $0x68] sm:$0xff]
        %v9310 = vld [vmem:[%s2 + $0x70] sm:$0xff]
        %v9311 = vld [vmem:[%s2 + $0x78] sm:$0xff]
        %v9312 = vperm.slane %v3090, %v8730
        %v9313 = vperm.slane %v3091, %v8732
        %v9314 = vsel %vm8734, %v9313, %v9312
        %v9315 = vperm.slane %v3092, %v8736
        %v9316 = vsel %vm8738, %v9315, %v9314
        %v9317 = vperm.slane %v3093, %v8740
        %v9318 = vsel %vm8742, %v9317, %v9316
        %v9319 = vperm.slane %v3094, %v8744
        %v9320 = vsel %vm8746, %v9319, %v9318
        %v9321 = vperm.slane %v3095, %v8748
        %v9322 = vsel %vm8750, %v9321, %v9320
        %v9323 = vperm.slane %v3096, %v8752
        %v9324 = vsel %vm8754, %v9323, %v9322
        %v9325 = vperm.slane %v3097, %v8756
        %v9326 = vsel %vm8758, %v9325, %v9324
        %v9327 = vperm.slane %v3098, %v8760
        %v9328 = vsel %vm8762, %v9327, %v9326
        %v9329 = vperm.slane %v3099, %v8764
        %v9330 = vsel %vm8766, %v9329, %v9328
        %v9331 = vperm.slane %v3100, %v8768
        %v9332 = vsel %vm8770, %v9331, %v9330
        %v9333 = vperm.slane %v3101, %v8772
        %v9334 = vsel %vm8774, %v9333, %v9332
        %v9335 = vperm.slane %v3102, %v8776
        %v9336 = vsel %vm8778, %v9335, %v9334
        %v9337 = vperm.slane %v3103, %v8780
        %v9338 = vsel %vm8782, %v9337, %v9336
        %v9339 = vperm.slane %v3104, %v8784
        %v9340 = vsel %vm8786, %v9339, %v9338
        %v9341 = vperm.slane %v3105, %v8788
        %v9342 = vsel %vm8790, %v9341, %v9340
        %v9343 = vperm.slane %v3106, %v8730
        %v9344 = vperm.slane %v3107, %v8732
        %v9345 = vsel %vm8734, %v9344, %v9343
        %v9346 = vperm.slane %v3108, %v8736
        %v9347 = vsel %vm8738, %v9346, %v9345
        %v9348 = vperm.slane %v3109, %v8740
        %v9349 = vsel %vm8742, %v9348, %v9347
        %v9350 = vperm.slane %v3110, %v8744
        %v9351 = vsel %vm8746, %v9350, %v9349
        %v9352 = vperm.slane %v3111, %v8748
        %v9353 = vsel %vm8750, %v9352, %v9351
        %v9354 = vperm.slane %v3112, %v8752
        %v9355 = vsel %vm8754, %v9354, %v9353
        %v9356 = vperm.slane %v3113, %v8756
        %v9357 = vsel %vm8758, %v9356, %v9355
        %v9358 = vperm.slane %v3114, %v8760
        %v9359 = vsel %vm8762, %v9358, %v9357
        %v9360 = vperm.slane %v3115, %v8764
        %v9361 = vsel %vm8766, %v9360, %v9359
        %v9362 = vperm.slane %v3116, %v8768
        %v9363 = vsel %vm8770, %v9362, %v9361
        %v9364 = vperm.slane %v3117, %v8772
        %v9365 = vsel %vm8774, %v9364, %v9363
        %v9366 = vperm.slane %v3118, %v8776
        %v9367 = vsel %vm8778, %v9366, %v9365
        %v9368 = vperm.slane %v3119, %v8780
        %v9369 = vsel %vm8782, %v9368, %v9367
        %v9370 = vperm.slane %v3120, %v8784
        %v9371 = vsel %vm8786, %v9370, %v9369
        %v9372 = vperm.slane %v3121, %v8788
        %v9373 = vsel %vm8790, %v9372, %v9371
        %v9374 = vperm.slane %v3122, %v8730
        %v9375 = vperm.slane %v3123, %v8732
        %v9376 = vsel %vm8734, %v9375, %v9374
        %v9377 = vperm.slane %v3124, %v8736
        %v9378 = vsel %vm8738, %v9377, %v9376
        %v9379 = vperm.slane %v3125, %v8740
        %v9380 = vsel %vm8742, %v9379, %v9378
        %v9381 = vperm.slane %v3126, %v8744
        %v9382 = vsel %vm8746, %v9381, %v9380
        %v9383 = vperm.slane %v3127, %v8748
        %v9384 = vsel %vm8750, %v9383, %v9382
        %v9385 = vperm.slane %v3128, %v8752
        %v9386 = vsel %vm8754, %v9385, %v9384
        %v9387 = vperm.slane %v3129, %v8756
        %v9388 = vsel %vm8758, %v9387, %v9386
        %v9389 = vperm.slane %v3130, %v8760
        %v9390 = vsel %vm8762, %v9389, %v9388
        %v9391 = vperm.slane %v3131, %v8764
        %v9392 = vsel %vm8766, %v9391, %v9390
        %v9393 = vperm.slane %v3132, %v8768
        %v9394 = vsel %vm8770, %v9393, %v9392
        %v9395 = vperm.slane %v3133, %v8772
        %v9396 = vsel %vm8774, %v9395, %v9394
        %v9397 = vperm.slane %v3134, %v8776
        %v9398 = vsel %vm8778, %v9397, %v9396
        %v9399 = vperm.slane %v3135, %v8780
        %v9400 = vsel %vm8782, %v9399, %v9398
        %v9401 = vperm.slane %v3136, %v8784
        %v9402 = vsel %vm8786, %v9401, %v9400
        %v9403 = vperm.slane %v3137, %v8788
        %v9404 = vsel %vm8790, %v9403, %v9402
        %v9405 = vperm.slane %v3138, %v8730
        %v9406 = vperm.slane %v3139, %v8732
        %v9407 = vsel %vm8734, %v9406, %v9405
        %v9408 = vperm.slane %v3140, %v8736
        %v9409 = vsel %vm8738, %v9408, %v9407
        %v9410 = vperm.slane %v3141, %v8740
        %v9411 = vsel %vm8742, %v9410, %v9409
        %v9412 = vperm.slane %v3142, %v8744
        %v9413 = vsel %vm8746, %v9412, %v9411
        %v9414 = vperm.slane %v3143, %v8748
        %v9415 = vsel %vm8750, %v9414, %v9413
        %v9416 = vperm.slane %v3144, %v8752
        %v9417 = vsel %vm8754, %v9416, %v9415
        %v9418 = vperm.slane %v3145, %v8756
        %v9419 = vsel %vm8758, %v9418, %v9417
        %v9420 = vperm.slane %v3146, %v8760
        %v9421 = vsel %vm8762, %v9420, %v9419
        %v9422 = vperm.slane %v3147, %v8764
        %v9423 = vsel %vm8766, %v9422, %v9421
        %v9424 = vperm.slane %v3148, %v8768
        %v9425 = vsel %vm8770, %v9424, %v9423
        %v9426 = vperm.slane %v3149, %v8772
        %v9427 = vsel %vm8774, %v9426, %v9425
        %v9428 = vperm.slane %v3150, %v8776
        %v9429 = vsel %vm8778, %v9428, %v9427
        %v9430 = vperm.slane %v3151, %v8780
        %v9431 = vsel %vm8782, %v9430, %v9429
        %v9432 = vperm.slane %v3152, %v8784
        %v9433 = vsel %vm8786, %v9432, %v9431
        %v9434 = vperm.slane %v3153, %v8788
        %v9435 = vsel %vm8790, %v9434, %v9433
        %v9436 = vperm.slane %v3154, %v8730
        %v9437 = vperm.slane %v3155, %v8732
        %v9438 = vsel %vm8734, %v9437, %v9436
        %v9439 = vperm.slane %v3156, %v8736
        %v9440 = vsel %vm8738, %v9439, %v9438
        %v9441 = vperm.slane %v3157, %v8740
        %v9442 = vsel %vm8742, %v9441, %v9440
        %v9443 = vperm.slane %v3158, %v8744
        %v9444 = vsel %vm8746, %v9443, %v9442
        %v9445 = vperm.slane %v3159, %v8748
        %v9446 = vsel %vm8750, %v9445, %v9444
        %v9447 = vperm.slane %v3160, %v8752
        %v9448 = vsel %vm8754, %v9447, %v9446
        %v9449 = vperm.slane %v3161, %v8756
        %v9450 = vsel %vm8758, %v9449, %v9448
        %v9451 = vperm.slane %v3162, %v8760
        %v9452 = vsel %vm8762, %v9451, %v9450
        %v9453 = vperm.slane %v3163, %v8764
        %v9454 = vsel %vm8766, %v9453, %v9452
        %v9455 = vperm.slane %v3164, %v8768
        %v9456 = vsel %vm8770, %v9455, %v9454
        %v9457 = vperm.slane %v3165, %v8772
        %v9458 = vsel %vm8774, %v9457, %v9456
        %v9459 = vperm.slane %v3166, %v8776
        %v9460 = vsel %vm8778, %v9459, %v9458
        %v9461 = vperm.slane %v3167, %v8780
        %v9462 = vsel %vm8782, %v9461, %v9460
        %v9463 = vperm.slane %v3168, %v8784
        %v9464 = vsel %vm8786, %v9463, %v9462
        %v9465 = vperm.slane %v3169, %v8788
        %v9466 = vsel %vm8790, %v9465, %v9464
        %v9467 = vperm.slane %v3170, %v8730
        %v9468 = vperm.slane %v3171, %v8732
        %v9469 = vsel %vm8734, %v9468, %v9467
        %v9470 = vperm.slane %v3172, %v8736
        %v9471 = vsel %vm8738, %v9470, %v9469
        %v9472 = vperm.slane %v3173, %v8740
        %v9473 = vsel %vm8742, %v9472, %v9471
        %v9474 = vperm.slane %v3174, %v8744
        %v9475 = vsel %vm8746, %v9474, %v9473
        %v9476 = vperm.slane %v3175, %v8748
        %v9477 = vsel %vm8750, %v9476, %v9475
        %v9478 = vperm.slane %v3176, %v8752
        %v9479 = vsel %vm8754, %v9478, %v9477
        %v9480 = vperm.slane %v3177, %v8756
        %v9481 = vsel %vm8758, %v9480, %v9479
        %v9482 = vperm.slane %v3178, %v8760
        %v9483 = vsel %vm8762, %v9482, %v9481
        %v9484 = vperm.slane %v3179, %v8764
        %v9485 = vsel %vm8766, %v9484, %v9483
        %v9486 = vperm.slane %v3180, %v8768
        %v9487 = vsel %vm8770, %v9486, %v9485
        %v9488 = vperm.slane %v3181, %v8772
        %v9489 = vsel %vm8774, %v9488, %v9487
        %v9490 = vperm.slane %v3182, %v8776
        %v9491 = vsel %vm8778, %v9490, %v9489
        %v9492 = vperm.slane %v3183, %v8780
        %v9493 = vsel %vm8782, %v9492, %v9491
        %v9494 = vperm.slane %v3184, %v8784
        %v9495 = vsel %vm8786, %v9494, %v9493
        %v9496 = vperm.slane %v3185, %v8788
        %v9497 = vsel %vm8790, %v9496, %v9495
        %v9498 = vperm.slane %v3186, %v8730
        %v9499 = vperm.slane %v3187, %v8732
        %v9500 = vsel %vm8734, %v9499, %v9498
        %v9501 = vperm.slane %v3188, %v8736
        %v9502 = vsel %vm8738, %v9501, %v9500
        %v9503 = vperm.slane %v3189, %v8740
        %v9504 = vsel %vm8742, %v9503, %v9502
        %v9505 = vperm.slane %v3190, %v8744
        %v9506 = vsel %vm8746, %v9505, %v9504
        %v9507 = vperm.slane %v3191, %v8748
        %v9508 = vsel %vm8750, %v9507, %v9506
        %v9509 = vperm.slane %v3192, %v8752
        %v9510 = vsel %vm8754, %v9509, %v9508
        %v9511 = vperm.slane %v3193, %v8756
        %v9512 = vsel %vm8758, %v9511, %v9510
        %v9513 = vperm.slane %v3194, %v8760
        %v9514 = vsel %vm8762, %v9513, %v9512
        %v9515 = vperm.slane %v3195, %v8764
        %v9516 = vsel %vm8766, %v9515, %v9514
        %v9517 = vperm.slane %v3196, %v8768
        %v9518 = vsel %vm8770, %v9517, %v9516
        %v9519 = vperm.slane %v3197, %v8772
        %v9520 = vsel %vm8774, %v9519, %v9518
        %v9521 = vperm.slane %v3198, %v8776
        %v9522 = vsel %vm8778, %v9521, %v9520
        %v9523 = vperm.slane %v3199, %v8780
        %v9524 = vsel %vm8782, %v9523, %v9522
        %v9525 = vperm.slane %v3200, %v8784
        %v9526 = vsel %vm8786, %v9525, %v9524
        %v9527 = vperm.slane %v3201, %v8788
        %v9528 = vsel %vm8790, %v9527, %v9526
        %v9529 = vperm.slane %v3202, %v8730
        %v9530 = vperm.slane %v3203, %v8732
        %v9531 = vsel %vm8734, %v9530, %v9529
        %v9532 = vperm.slane %v3204, %v8736
        %v9533 = vsel %vm8738, %v9532, %v9531
        %v9534 = vperm.slane %v3205, %v8740
        %v9535 = vsel %vm8742, %v9534, %v9533
        %v9536 = vperm.slane %v3206, %v8744
        %v9537 = vsel %vm8746, %v9536, %v9535
        %v9538 = vperm.slane %v3207, %v8748
        %v9539 = vsel %vm8750, %v9538, %v9537
        %v9540 = vperm.slane %v3208, %v8752
        %v9541 = vsel %vm8754, %v9540, %v9539
        %v9542 = vperm.slane %v3209, %v8756
        %v9543 = vsel %vm8758, %v9542, %v9541
        %v9544 = vperm.slane %v3210, %v8760
        %v9545 = vsel %vm8762, %v9544, %v9543
        %v9546 = vperm.slane %v3211, %v8764
        %v9547 = vsel %vm8766, %v9546, %v9545
        %v9548 = vperm.slane %v3212, %v8768
        %v9549 = vsel %vm8770, %v9548, %v9547
        %v9550 = vperm.slane %v3213, %v8772
        %v9551 = vsel %vm8774, %v9550, %v9549
        %v9552 = vperm.slane %v3214, %v8776
        %v9553 = vsel %vm8778, %v9552, %v9551
        %v9554 = vperm.slane %v3215, %v8780
        %v9555 = vsel %vm8782, %v9554, %v9553
        %v9556 = vperm.slane %v3216, %v8784
        %v9557 = vsel %vm8786, %v9556, %v9555
        %v9558 = vperm.slane %v3217, %v8788
        %v9559 = vsel %vm8790, %v9558, %v9557
        %v9560 = vperm.slane %v3218, %v8730
        %v9561 = vperm.slane %v3219, %v8732
        %v9562 = vsel %vm8734, %v9561, %v9560
        %v9563 = vperm.slane %v3220, %v8736
        %v9564 = vsel %vm8738, %v9563, %v9562
        %v9565 = vperm.slane %v3221, %v8740
        %v9566 = vsel %vm8742, %v9565, %v9564
        %v9567 = vperm.slane %v3222, %v8744
        %v9568 = vsel %vm8746, %v9567, %v9566
        %v9569 = vperm.slane %v3223, %v8748
        %v9570 = vsel %vm8750, %v9569, %v9568
        %v9571 = vperm.slane %v3224, %v8752
        %v9572 = vsel %vm8754, %v9571, %v9570
        %v9573 = vperm.slane %v3225, %v8756
        %v9574 = vsel %vm8758, %v9573, %v9572
        %v9575 = vperm.slane %v3226, %v8760
        %v9576 = vsel %vm8762, %v9575, %v9574
        %v9577 = vperm.slane %v3227, %v8764
        %v9578 = vsel %vm8766, %v9577, %v9576
        %v9579 = vperm.slane %v3228, %v8768
        %v9580 = vsel %vm8770, %v9579, %v9578
        %v9581 = vperm.slane %v3229, %v8772
        %v9582 = vsel %vm8774, %v9581, %v9580
        %v9583 = vperm.slane %v3230, %v8776
        %v9584 = vsel %vm8778, %v9583, %v9582
        %v9585 = vperm.slane %v3231, %v8780
        %v9586 = vsel %vm8782, %v9585, %v9584
        %v9587 = vperm.slane %v3232, %v8784
        %v9588 = vsel %vm8786, %v9587, %v9586
        %v9589 = vperm.slane %v3233, %v8788
        %v9590 = vsel %vm8790, %v9589, %v9588
        %v9591 = vperm.slane %v3234, %v8730
        %v9592 = vperm.slane %v3235, %v8732
        %v9593 = vsel %vm8734, %v9592, %v9591
        %v9594 = vperm.slane %v3236, %v8736
        %v9595 = vsel %vm8738, %v9594, %v9593
        %v9596 = vperm.slane %v3237, %v8740
        %v9597 = vsel %vm8742, %v9596, %v9595
        %v9598 = vperm.slane %v3238, %v8744
        %v9599 = vsel %vm8746, %v9598, %v9597
        %v9600 = vperm.slane %v3239, %v8748
        %v9601 = vsel %vm8750, %v9600, %v9599
        %v9602 = vperm.slane %v3240, %v8752
        %v9603 = vsel %vm8754, %v9602, %v9601
        %v9604 = vperm.slane %v3241, %v8756
        %v9605 = vsel %vm8758, %v9604, %v9603
        %v9606 = vperm.slane %v3242, %v8760
        %v9607 = vsel %vm8762, %v9606, %v9605
        %v9608 = vperm.slane %v3243, %v8764
        %v9609 = vsel %vm8766, %v9608, %v9607
        %v9610 = vperm.slane %v3244, %v8768
        %v9611 = vsel %vm8770, %v9610, %v9609
        %v9612 = vperm.slane %v3245, %v8772
        %v9613 = vsel %vm8774, %v9612, %v9611
        %v9614 = vperm.slane %v3246, %v8776
        %v9615 = vsel %vm8778, %v9614, %v9613
        %v9616 = vperm.slane %v3247, %v8780
        %v9617 = vsel %vm8782, %v9616, %v9615
        %v9618 = vperm.slane %v3248, %v8784
        %v9619 = vsel %vm8786, %v9618, %v9617
        %v9620 = vperm.slane %v3249, %v8788
        %v9621 = vsel %vm8790, %v9620, %v9619
        %v9622 = vperm.slane %v3250, %v8730
        %v9623 = vperm.slane %v3251, %v8732
        %v9624 = vsel %vm8734, %v9623, %v9622
        %v9625 = vperm.slane %v3252, %v8736
        %v9626 = vsel %vm8738, %v9625, %v9624
        %v9627 = vperm.slane %v3253, %v8740
        %v9628 = vsel %vm8742, %v9627, %v9626
        %v9629 = vperm.slane %v3254, %v8744
        %v9630 = vsel %vm8746, %v9629, %v9628
        %v9631 = vperm.slane %v3255, %v8748
        %v9632 = vsel %vm8750, %v9631, %v9630
        %v9633 = vperm.slane %v3256, %v8752
        %v9634 = vsel %vm8754, %v9633, %v9632
        %v9635 = vperm.slane %v3257, %v8756
        %v9636 = vsel %vm8758, %v9635, %v9634
        %v9637 = vperm.slane %v3258, %v8760
        %v9638 = vsel %vm8762, %v9637, %v9636
        %v9639 = vperm.slane %v3259, %v8764
        %v9640 = vsel %vm8766, %v9639, %v9638
        %v9641 = vperm.slane %v3260, %v8768
        %v9642 = vsel %vm8770, %v9641, %v9640
        %v9643 = vperm.slane %v3261, %v8772
        %v9644 = vsel %vm8774, %v9643, %v9642
        %v9645 = vperm.slane %v3262, %v8776
        %v9646 = vsel %vm8778, %v9645, %v9644
        %v9647 = vperm.slane %v3263, %v8780
        %v9648 = vsel %vm8782, %v9647, %v9646
        %v9649 = vperm.slane %v3264, %v8784
        %v9650 = vsel %vm8786, %v9649, %v9648
        %v9651 = vperm.slane %v3265, %v8788
        %v9652 = vsel %vm8790, %v9651, %v9650
        %v9653 = vperm.slane %v3266, %v8730
        %v9654 = vperm.slane %v3267, %v8732
        %v9655 = vsel %vm8734, %v9654, %v9653
        %v9656 = vperm.slane %v3268, %v8736
        %v9657 = vsel %vm8738, %v9656, %v9655
        %v9658 = vperm.slane %v3269, %v8740
        %v9659 = vsel %vm8742, %v9658, %v9657
        %v9660 = vperm.slane %v3270, %v8744
        %v9661 = vsel %vm8746, %v9660, %v9659
        %v9662 = vperm.slane %v3271, %v8748
        %v9663 = vsel %vm8750, %v9662, %v9661
        %v9664 = vperm.slane %v3272, %v8752
        %v9665 = vsel %vm8754, %v9664, %v9663
        %v9666 = vperm.slane %v3273, %v8756
        %v9667 = vsel %vm8758, %v9666, %v9665
        %v9668 = vperm.slane %v3274, %v8760
        %v9669 = vsel %vm8762, %v9668, %v9667
        %v9670 = vperm.slane %v3275, %v8764
        %v9671 = vsel %vm8766, %v9670, %v9669
        %v9672 = vperm.slane %v3276, %v8768
        %v9673 = vsel %vm8770, %v9672, %v9671
        %v9674 = vperm.slane %v3277, %v8772
        %v9675 = vsel %vm8774, %v9674, %v9673
        %v9676 = vperm.slane %v3278, %v8776
        %v9677 = vsel %vm8778, %v9676, %v9675
        %v9678 = vperm.slane %v3279, %v8780
        %v9679 = vsel %vm8782, %v9678, %v9677
        %v9680 = vperm.slane %v3280, %v8784
        %v9681 = vsel %vm8786, %v9680, %v9679
        %v9682 = vperm.slane %v3281, %v8788
        %v9683 = vsel %vm8790, %v9682, %v9681
        %v9684 = vperm.slane %v3282, %v8730
        %v9685 = vperm.slane %v3283, %v8732
        %v9686 = vsel %vm8734, %v9685, %v9684
        %v9687 = vperm.slane %v3284, %v8736
        %v9688 = vsel %vm8738, %v9687, %v9686
        %v9689 = vperm.slane %v3285, %v8740
        %v9690 = vsel %vm8742, %v9689, %v9688
        %v9691 = vperm.slane %v3286, %v8744
        %v9692 = vsel %vm8746, %v9691, %v9690
        %v9693 = vperm.slane %v3287, %v8748
        %v9694 = vsel %vm8750, %v9693, %v9692
        %v9695 = vperm.slane %v3288, %v8752
        %v9696 = vsel %vm8754, %v9695, %v9694
        %v9697 = vperm.slane %v3289, %v8756
        %v9698 = vsel %vm8758, %v9697, %v9696
        %v9699 = vperm.slane %v3290, %v8760
        %v9700 = vsel %vm8762, %v9699, %v9698
        %v9701 = vperm.slane %v3291, %v8764
        %v9702 = vsel %vm8766, %v9701, %v9700
        %v9703 = vperm.slane %v3292, %v8768
        %v9704 = vsel %vm8770, %v9703, %v9702
        %v9705 = vperm.slane %v3293, %v8772
        %v9706 = vsel %vm8774, %v9705, %v9704
        %v9707 = vperm.slane %v3294, %v8776
        %v9708 = vsel %vm8778, %v9707, %v9706
        %v9709 = vperm.slane %v3295, %v8780
        %v9710 = vsel %vm8782, %v9709, %v9708
        %v9711 = vperm.slane %v3296, %v8784
        %v9712 = vsel %vm8786, %v9711, %v9710
        %v9713 = vperm.slane %v3297, %v8788
        %v9714 = vsel %vm8790, %v9713, %v9712
        %v9715 = vperm.slane %v3298, %v8730
        %v9716 = vperm.slane %v3299, %v8732
        %v9717 = vsel %vm8734, %v9716, %v9715
        %v9718 = vperm.slane %v3300, %v8736
        %v9719 = vsel %vm8738, %v9718, %v9717
        %v9720 = vperm.slane %v3301, %v8740
        %v9721 = vsel %vm8742, %v9720, %v9719
        %v9722 = vperm.slane %v3302, %v8744
        %v9723 = vsel %vm8746, %v9722, %v9721
        %v9724 = vperm.slane %v3303, %v8748
        %v9725 = vsel %vm8750, %v9724, %v9723
        %v9726 = vperm.slane %v3304, %v8752
        %v9727 = vsel %vm8754, %v9726, %v9725
        %v9728 = vperm.slane %v3305, %v8756
        %v9729 = vsel %vm8758, %v9728, %v9727
        %v9730 = vperm.slane %v3306, %v8760
        %v9731 = vsel %vm8762, %v9730, %v9729
        %v9732 = vperm.slane %v3307, %v8764
        %v9733 = vsel %vm8766, %v9732, %v9731
        %v9734 = vperm.slane %v3308, %v8768
        %v9735 = vsel %vm8770, %v9734, %v9733
        %v9736 = vperm.slane %v3309, %v8772
        %v9737 = vsel %vm8774, %v9736, %v9735
        %v9738 = vperm.slane %v3310, %v8776
        %v9739 = vsel %vm8778, %v9738, %v9737
        %v9740 = vperm.slane %v3311, %v8780
        %v9741 = vsel %vm8782, %v9740, %v9739
        %v9742 = vperm.slane %v3312, %v8784
        %v9743 = vsel %vm8786, %v9742, %v9741
        %v9744 = vperm.slane %v3313, %v8788
        %v9745 = vsel %vm8790, %v9744, %v9743
        %v9746 = vperm.slane %v3314, %v8730
        %v9747 = vperm.slane %v3315, %v8732
        %v9748 = vsel %vm8734, %v9747, %v9746
        %v9749 = vperm.slane %v3316, %v8736
        %v9750 = vsel %vm8738, %v9749, %v9748
        %v9751 = vperm.slane %v3317, %v8740
        %v9752 = vsel %vm8742, %v9751, %v9750
        %v9753 = vperm.slane %v3318, %v8744
        %v9754 = vsel %vm8746, %v9753, %v9752
        %v9755 = vperm.slane %v3319, %v8748
        %v9756 = vsel %vm8750, %v9755, %v9754
        %v9757 = vperm.slane %v3320, %v8752
        %v9758 = vsel %vm8754, %v9757, %v9756
        %v9759 = vperm.slane %v3321, %v8756
        %v9760 = vsel %vm8758, %v9759, %v9758
        %v9761 = vperm.slane %v3322, %v8760
        %v9762 = vsel %vm8762, %v9761, %v9760
        %v9763 = vperm.slane %v3323, %v8764
        %v9764 = vsel %vm8766, %v9763, %v9762
        %v9765 = vperm.slane %v3324, %v8768
        %v9766 = vsel %vm8770, %v9765, %v9764
        %v9767 = vperm.slane %v3325, %v8772
        %v9768 = vsel %vm8774, %v9767, %v9766
        %v9769 = vperm.slane %v3326, %v8776
        %v9770 = vsel %vm8778, %v9769, %v9768
        %v9771 = vperm.slane %v3327, %v8780
        %v9772 = vsel %vm8782, %v9771, %v9770
        %v9773 = vperm.slane %v3328, %v8784
        %v9774 = vsel %vm8786, %v9773, %v9772
        %v9775 = vperm.slane %v3329, %v8788
        %v9776 = vsel %vm8790, %v9775, %v9774
        %v9777 = vperm.slane %v3330, %v8730
        %v9778 = vperm.slane %v3331, %v8732
        %v9779 = vsel %vm8734, %v9778, %v9777
        %v9780 = vperm.slane %v3332, %v8736
        %v9781 = vsel %vm8738, %v9780, %v9779
        %v9782 = vperm.slane %v3333, %v8740
        %v9783 = vsel %vm8742, %v9782, %v9781
        %v9784 = vperm.slane %v3334, %v8744
        %v9785 = vsel %vm8746, %v9784, %v9783
        %v9786 = vperm.slane %v3335, %v8748
        %v9787 = vsel %vm8750, %v9786, %v9785
        %v9788 = vperm.slane %v3336, %v8752
        %v9789 = vsel %vm8754, %v9788, %v9787
        %v9790 = vperm.slane %v3337, %v8756
        %v9791 = vsel %vm8758, %v9790, %v9789
        %v9792 = vperm.slane %v3338, %v8760
        %v9793 = vsel %vm8762, %v9792, %v9791
        %v9794 = vperm.slane %v3339, %v8764
        %v9795 = vsel %vm8766, %v9794, %v9793
        %v9796 = vperm.slane %v3340, %v8768
        %v9797 = vsel %vm8770, %v9796, %v9795
        %v9798 = vperm.slane %v3341, %v8772
        %v9799 = vsel %vm8774, %v9798, %v9797
        %v9800 = vperm.slane %v3342, %v8776
        %v9801 = vsel %vm8778, %v9800, %v9799
        %v9802 = vperm.slane %v3343, %v8780
        %v9803 = vsel %vm8782, %v9802, %v9801
        %v9804 = vperm.slane %v3344, %v8784
        %v9805 = vsel %vm8786, %v9804, %v9803
        %v9806 = vperm.slane %v3345, %v8788
        %v9807 = vsel %vm8790, %v9806, %v9805
        %9824 = vmatpush.xpose.msra.mxu0 0.0
        %9825 = vmatpush.xpose.msra.mxu0 0.0
        %9826 = vmatpush.xpose.msra.mxu0 0.0
        %9827 = vmatpush.xpose.msra.mxu0 0.0
        %9828 = vmatpush.xpose.msra.mxu0 0.0
        %9829 = vmatpush.xpose.msra.mxu0 0.0
        %9830 = vmatpush.xpose.msra.mxu0 0.0
        %9831 = vmatpush.xpose.msra.mxu0 0.0
        %9832 = vmatpush.xpose.msra.mxu0 0.0
        %9833 = vmatpush.xpose.msra.mxu0 0.0
        %9834 = vmatpush.xpose.msra.mxu0 0.0
        %9835 = vmatpush.xpose.msra.mxu0 0.0
        %9836 = vmatpush.xpose.msra.mxu0 0.0
        %9837 = vmatpush.xpose.msra.mxu0 0.0
        %9838 = vmatpush.xpose.msra.mxu0 0.0
        %9839 = vmatpush.xpose.msra.mxu0 %v9296
        %9840 = vmatmul.f32.gmra.mxu0 %v9342
        %v9841 = vpop.f32.mrf.mxu0
        %v9842 = vadd.f32 0.0, %v9841
        %9843 = vdwg.mxu0
        %9844 = vmatpush.xpose.msra.mxu0 0.0
        %9845 = vmatpush.xpose.msra.mxu0 0.0
        %9846 = vmatpush.xpose.msra.mxu0 0.0
        %9847 = vmatpush.xpose.msra.mxu0 0.0
        %9848 = vmatpush.xpose.msra.mxu0 0.0
        %9849 = vmatpush.xpose.msra.mxu0 0.0
        %9850 = vmatpush.xpose.msra.mxu0 0.0
        %9851 = vmatpush.xpose.msra.mxu0 0.0
        %9852 = vmatpush.xpose.msra.mxu0 0.0
        %9853 = vmatpush.xpose.msra.mxu0 0.0
        %9854 = vmatpush.xpose.msra.mxu0 0.0
        %9855 = vmatpush.xpose.msra.mxu0 0.0
        %9856 = vmatpush.xpose.msra.mxu0 0.0
        %9857 = vmatpush.xpose.msra.mxu0 0.0
        %9858 = vmatpush.xpose.msra.mxu0 0.0
        %9859 = vmatpush.xpose.msra.mxu0 %v9297
        %9860 = vmatmul.f32.gmra.mxu0 %v9373
        %v9861 = vpop.f32.mrf.mxu0
        %v9862 = vadd.f32 %v9842, %v9861
        %9863 = vdwg.mxu0
        %9864 = vmatpush.xpose.msra.mxu0 0.0
        %9865 = vmatpush.xpose.msra.mxu0 0.0
        %9866 = vmatpush.xpose.msra.mxu0 0.0
        %9867 = vmatpush.xpose.msra.mxu0 0.0
        %9868 = vmatpush.xpose.msra.mxu0 0.0
        %9869 = vmatpush.xpose.msra.mxu0 0.0
        %9870 = vmatpush.xpose.msra.mxu0 0.0
        %9871 = vmatpush.xpose.msra.mxu0 0.0
        %9872 = vmatpush.xpose.msra.mxu0 0.0
        %9873 = vmatpush.xpose.msra.mxu0 0.0
        %9874 = vmatpush.xpose.msra.mxu0 0.0
        %9875 = vmatpush.xpose.msra.mxu0 0.0
        %9876 = vmatpush.xpose.msra.mxu0 0.0
        %9877 = vmatpush.xpose.msra.mxu0 0.0
        %9878 = vmatpush.xpose.msra.mxu0 0.0
        %9879 = vmatpush.xpose.msra.mxu0 %v9298
        %9880 = vmatmul.f32.gmra.mxu0 %v9404
        %v9881 = vpop.f32.mrf.mxu0
        %v9882 = vadd.f32 %v9862, %v9881
        %9883 = vdwg.mxu0
        %9884 = vmatpush.xpose.msra.mxu0 0.0
        %9885 = vmatpush.xpose.msra.mxu0 0.0
        %9886 = vmatpush.xpose.msra.mxu0 0.0
        %9887 = vmatpush.xpose.msra.mxu0 0.0
        %9888 = vmatpush.xpose.msra.mxu0 0.0
        %9889 = vmatpush.xpose.msra.mxu0 0.0
        %9890 = vmatpush.xpose.msra.mxu0 0.0
        %9891 = vmatpush.xpose.msra.mxu0 0.0
        %9892 = vmatpush.xpose.msra.mxu0 0.0
        %9893 = vmatpush.xpose.msra.mxu0 0.0
        %9894 = vmatpush.xpose.msra.mxu0 0.0
        %9895 = vmatpush.xpose.msra.mxu0 0.0
        %9896 = vmatpush.xpose.msra.mxu0 0.0
        %9897 = vmatpush.xpose.msra.mxu0 0.0
        %9898 = vmatpush.xpose.msra.mxu0 0.0
        %9899 = vmatpush.xpose.msra.mxu0 %v9299
        %9900 = vmatmul.f32.gmra.mxu0 %v9435
        %v9901 = vpop.f32.mrf.mxu0
        %v9902 = vadd.f32 %v9882, %v9901
        %9903 = vdwg.mxu0
        %9904 = vmatpush.xpose.msra.mxu0 0.0
        %9905 = vmatpush.xpose.msra.mxu0 0.0
        %9906 = vmatpush.xpose.msra.mxu0 0.0
        %9907 = vmatpush.xpose.msra.mxu0 0.0
        %9908 = vmatpush.xpose.msra.mxu0 0.0
        %9909 = vmatpush.xpose.msra.mxu0 0.0
        %9910 = vmatpush.xpose.msra.mxu0 0.0
        %9911 = vmatpush.xpose.msra.mxu0 0.0
        %9912 = vmatpush.xpose.msra.mxu0 0.0
        %9913 = vmatpush.xpose.msra.mxu0 0.0
        %9914 = vmatpush.xpose.msra.mxu0 0.0
        %9915 = vmatpush.xpose.msra.mxu0 0.0
        %9916 = vmatpush.xpose.msra.mxu0 0.0
        %9917 = vmatpush.xpose.msra.mxu0 0.0
        %9918 = vmatpush.xpose.msra.mxu0 0.0
        %9919 = vmatpush.xpose.msra.mxu0 %v9300
        %9920 = vmatmul.f32.gmra.mxu0 %v9466
        %v9921 = vpop.f32.mrf.mxu0
        %v9922 = vadd.f32 %v9902, %v9921
        %9923 = vdwg.mxu0
        %9924 = vmatpush.xpose.msra.mxu0 0.0
        %9925 = vmatpush.xpose.msra.mxu0 0.0
        %9926 = vmatpush.xpose.msra.mxu0 0.0
        %9927 = vmatpush.xpose.msra.mxu0 0.0
        %9928 = vmatpush.xpose.msra.mxu0 0.0
        %9929 = vmatpush.xpose.msra.mxu0 0.0
        %9930 = vmatpush.xpose.msra.mxu0 0.0
        %9931 = vmatpush.xpose.msra.mxu0 0.0
        %9932 = vmatpush.xpose.msra.mxu0 0.0
        %9933 = vmatpush.xpose.msra.mxu0 0.0
        %9934 = vmatpush.xpose.msra.mxu0 0.0
        %9935 = vmatpush.xpose.msra.mxu0 0.0
        %9936 = vmatpush.xpose.msra.mxu0 0.0
        %9937 = vmatpush.xpose.msra.mxu0 0.0
        %9938 = vmatpush.xpose.msra.mxu0 0.0
        %9939 = vmatpush.xpose.msra.mxu0 %v9301
        %9940 = vmatmul.f32.gmra.mxu0 %v9497
        %v9941 = vpop.f32.mrf.mxu0
        %v9942 = vadd.f32 %v9922, %v9941
        %9943 = vdwg.mxu0
        %9944 = vmatpush.xpose.msra.mxu0 0.0
        %9945 = vmatpush.xpose.msra.mxu0 0.0
        %9946 = vmatpush.xpose.msra.mxu0 0.0
        %9947 = vmatpush.xpose.msra.mxu0 0.0
        %9948 = vmatpush.xpose.msra.mxu0 0.0
        %9949 = vmatpush.xpose.msra.mxu0 0.0
        %9950 = vmatpush.xpose.msra.mxu0 0.0
        %9951 = vmatpush.xpose.msra.mxu0 0.0
        %9952 = vmatpush.xpose.msra.mxu0 0.0
        %9953 = vmatpush.xpose.msra.mxu0 0.0
        %9954 = vmatpush.xpose.msra.mxu0 0.0
        %9955 = vmatpush.xpose.msra.mxu0 0.0
        %9956 = vmatpush.xpose.msra.mxu0 0.0
        %9957 = vmatpush.xpose.msra.mxu0 0.0
        %9958 = vmatpush.xpose.msra.mxu0 0.0
        %9959 = vmatpush.xpose.msra.mxu0 %v9302
        %9960 = vmatmul.f32.gmra.mxu0 %v9528
        %v9961 = vpop.f32.mrf.mxu0
        %v9962 = vadd.f32 %v9942, %v9961
        %9963 = vdwg.mxu0
        %9964 = vmatpush.xpose.msra.mxu0 0.0
        %9965 = vmatpush.xpose.msra.mxu0 0.0
        %9966 = vmatpush.xpose.msra.mxu0 0.0
        %9967 = vmatpush.xpose.msra.mxu0 0.0
        %9968 = vmatpush.xpose.msra.mxu0 0.0
        %9969 = vmatpush.xpose.msra.mxu0 0.0
        %9970 = vmatpush.xpose.msra.mxu0 0.0
        %9971 = vmatpush.xpose.msra.mxu0 0.0
        %9972 = vmatpush.xpose.msra.mxu0 0.0
        %9973 = vmatpush.xpose.msra.mxu0 0.0
        %9974 = vmatpush.xpose.msra.mxu0 0.0
        %9975 = vmatpush.xpose.msra.mxu0 0.0
        %9976 = vmatpush.xpose.msra.mxu0 0.0
        %9977 = vmatpush.xpose.msra.mxu0 0.0
        %9978 = vmatpush.xpose.msra.mxu0 0.0
        %9979 = vmatpush.xpose.msra.mxu0 %v9303
        %9980 = vmatmul.f32.gmra.mxu0 %v9559
        %v9981 = vpop.f32.mrf.mxu0
        %v9982 = vadd.f32 %v9962, %v9981
        %9983 = vdwg.mxu0
        %9984 = vmatpush.xpose.msra.mxu0 0.0
        %9985 = vmatpush.xpose.msra.mxu0 0.0
        %9986 = vmatpush.xpose.msra.mxu0 0.0
        %9987 = vmatpush.xpose.msra.mxu0 0.0
        %9988 = vmatpush.xpose.msra.mxu0 0.0
        %9989 = vmatpush.xpose.msra.mxu0 0.0
        %9990 = vmatpush.xpose.msra.mxu0 0.0
        %9991 = vmatpush.xpose.msra.mxu0 0.0
        %9992 = vmatpush.xpose.msra.mxu0 0.0
        %9993 = vmatpush.xpose.msra.mxu0 0.0
        %9994 = vmatpush.xpose.msra.mxu0 0.0
        %9995 = vmatpush.xpose.msra.mxu0 0.0
        %9996 = vmatpush.xpose.msra.mxu0 0.0
        %9997 = vmatpush.xpose.msra.mxu0 0.0
        %9998 = vmatpush.xpose.msra.mxu0 0.0
        %9999 = vmatpush.xpose.msra.mxu0 %v9304
        %10000 = vmatmul.f32.gmra.mxu0 %v9590
        %v10001 = vpop.f32.mrf.mxu0
        %v10002 = vadd.f32 %v9982, %v10001
        %10003 = vdwg.mxu0
        %10004 = vmatpush.xpose.msra.mxu0 0.0
        %10005 = vmatpush.xpose.msra.mxu0 0.0
        %10006 = vmatpush.xpose.msra.mxu0 0.0
        %10007 = vmatpush.xpose.msra.mxu0 0.0
        %10008 = vmatpush.xpose.msra.mxu0 0.0
        %10009 = vmatpush.xpose.msra.mxu0 0.0
        %10010 = vmatpush.xpose.msra.mxu0 0.0
        %10011 = vmatpush.xpose.msra.mxu0 0.0
        %10012 = vmatpush.xpose.msra.mxu0 0.0
        %10013 = vmatpush.xpose.msra.mxu0 0.0
        %10014 = vmatpush.xpose.msra.mxu0 0.0
        %10015 = vmatpush.xpose.msra.mxu0 0.0
        %10016 = vmatpush.xpose.msra.mxu0 0.0
        %10017 = vmatpush.xpose.msra.mxu0 0.0
        %10018 = vmatpush.xpose.msra.mxu0 0.0
        %10019 = vmatpush.xpose.msra.mxu0 %v9305
        %10020 = vmatmul.f32.gmra.mxu0 %v9621
        %v10021 = vpop.f32.mrf.mxu0
        %v10022 = vadd.f32 %v10002, %v10021
        %10023 = vdwg.mxu0
        %10024 = vmatpush.xpose.msra.mxu0 0.0
        %10025 = vmatpush.xpose.msra.mxu0 0.0
        %10026 = vmatpush.xpose.msra.mxu0 0.0
        %10027 = vmatpush.xpose.msra.mxu0 0.0
        %10028 = vmatpush.xpose.msra.mxu0 0.0
        %10029 = vmatpush.xpose.msra.mxu0 0.0
        %10030 = vmatpush.xpose.msra.mxu0 0.0
        %10031 = vmatpush.xpose.msra.mxu0 0.0
        %10032 = vmatpush.xpose.msra.mxu0 0.0
        %10033 = vmatpush.xpose.msra.mxu0 0.0
        %10034 = vmatpush.xpose.msra.mxu0 0.0
        %10035 = vmatpush.xpose.msra.mxu0 0.0
        %10036 = vmatpush.xpose.msra.mxu0 0.0
        %10037 = vmatpush.xpose.msra.mxu0 0.0
        %10038 = vmatpush.xpose.msra.mxu0 0.0
        %10039 = vmatpush.xpose.msra.mxu0 %v9306
        %10040 = vmatmul.f32.gmra.mxu0 %v9652
        %v10041 = vpop.f32.mrf.mxu0
        %v10042 = vadd.f32 %v10022, %v10041
        %10043 = vdwg.mxu0
        %10044 = vmatpush.xpose.msra.mxu0 0.0
        %10045 = vmatpush.xpose.msra.mxu0 0.0
        %10046 = vmatpush.xpose.msra.mxu0 0.0
        %10047 = vmatpush.xpose.msra.mxu0 0.0
        %10048 = vmatpush.xpose.msra.mxu0 0.0
        %10049 = vmatpush.xpose.msra.mxu0 0.0
        %10050 = vmatpush.xpose.msra.mxu0 0.0
        %10051 = vmatpush.xpose.msra.mxu0 0.0
        %10052 = vmatpush.xpose.msra.mxu0 0.0
        %10053 = vmatpush.xpose.msra.mxu0 0.0
        %10054 = vmatpush.xpose.msra.mxu0 0.0
        %10055 = vmatpush.xpose.msra.mxu0 0.0
        %10056 = vmatpush.xpose.msra.mxu0 0.0
        %10057 = vmatpush.xpose.msra.mxu0 0.0
        %10058 = vmatpush.xpose.msra.mxu0 0.0
        %10059 = vmatpush.xpose.msra.mxu0 %v9307
        %10060 = vmatmul.f32.gmra.mxu0 %v9683
        %v10061 = vpop.f32.mrf.mxu0
        %v10062 = vadd.f32 %v10042, %v10061
        %10063 = vdwg.mxu0
        %10064 = vmatpush.xpose.msra.mxu0 0.0
        %10065 = vmatpush.xpose.msra.mxu0 0.0
        %10066 = vmatpush.xpose.msra.mxu0 0.0
        %10067 = vmatpush.xpose.msra.mxu0 0.0
        %10068 = vmatpush.xpose.msra.mxu0 0.0
        %10069 = vmatpush.xpose.msra.mxu0 0.0
        %10070 = vmatpush.xpose.msra.mxu0 0.0
        %10071 = vmatpush.xpose.msra.mxu0 0.0
        %10072 = vmatpush.xpose.msra.mxu0 0.0
        %10073 = vmatpush.xpose.msra.mxu0 0.0
        %10074 = vmatpush.xpose.msra.mxu0 0.0
        %10075 = vmatpush.xpose.msra.mxu0 0.0
        %10076 = vmatpush.xpose.msra.mxu0 0.0
        %10077 = vmatpush.xpose.msra.mxu0 0.0
        %10078 = vmatpush.xpose.msra.mxu0 0.0
        %10079 = vmatpush.xpose.msra.mxu0 %v9308
        %10080 = vmatmul.f32.gmra.mxu0 %v9714
        %v10081 = vpop.f32.mrf.mxu0
        %v10082 = vadd.f32 %v10062, %v10081
        %10083 = vdwg.mxu0
        %10084 = vmatpush.xpose.msra.mxu0 0.0
        %10085 = vmatpush.xpose.msra.mxu0 0.0
        %10086 = vmatpush.xpose.msra.mxu0 0.0
        %10087 = vmatpush.xpose.msra.mxu0 0.0
        %10088 = vmatpush.xpose.msra.mxu0 0.0
        %10089 = vmatpush.xpose.msra.mxu0 0.0
        %10090 = vmatpush.xpose.msra.mxu0 0.0
        %10091 = vmatpush.xpose.msra.mxu0 0.0
        %10092 = vmatpush.xpose.msra.mxu0 0.0
        %10093 = vmatpush.xpose.msra.mxu0 0.0
        %10094 = vmatpush.xpose.msra.mxu0 0.0
        %10095 = vmatpush.xpose.msra.mxu0 0.0
        %10096 = vmatpush.xpose.msra.mxu0 0.0
        %10097 = vmatpush.xpose.msra.mxu0 0.0
        %10098 = vmatpush.xpose.msra.mxu0 0.0
        %10099 = vmatpush.xpose.msra.mxu0 %v9309
        %10100 = vmatmul.f32.gmra.mxu0 %v9745
        %v10101 = vpop.f32.mrf.mxu0
        %v10102 = vadd.f32 %v10082, %v10101
        %10103 = vdwg.mxu0
        %10104 = vmatpush.xpose.msra.mxu0 0.0
        %10105 = vmatpush.xpose.msra.mxu0 0.0
        %10106 = vmatpush.xpose.msra.mxu0 0.0
        %10107 = vmatpush.xpose.msra.mxu0 0.0
        %10108 = vmatpush.xpose.msra.mxu0 0.0
        %10109 = vmatpush.xpose.msra.mxu0 0.0
        %10110 = vmatpush.xpose.msra.mxu0 0.0
        %10111 = vmatpush.xpose.msra.mxu0 0.0
        %10112 = vmatpush.xpose.msra.mxu0 0.0
        %10113 = vmatpush.xpose.msra.mxu0 0.0
        %10114 = vmatpush.xpose.msra.mxu0 0.0
        %10115 = vmatpush.xpose.msra.mxu0 0.0
        %10116 = vmatpush.xpose.msra.mxu0 0.0
        %10117 = vmatpush.xpose.msra.mxu0 0.0
        %10118 = vmatpush.xpose.msra.mxu0 0.0
        %10119 = vmatpush.xpose.msra.mxu0 %v9310
        %10120 = vmatmul.f32.gmra.mxu0 %v9776
        %v10121 = vpop.f32.mrf.mxu0
        %v10122 = vadd.f32 %v10102, %v10121
        %10123 = vdwg.mxu0
        %10124 = vmatpush.xpose.msra.mxu0 0.0
        %10125 = vmatpush.xpose.msra.mxu0 0.0
        %10126 = vmatpush.xpose.msra.mxu0 0.0
        %10127 = vmatpush.xpose.msra.mxu0 0.0
        %10128 = vmatpush.xpose.msra.mxu0 0.0
        %10129 = vmatpush.xpose.msra.mxu0 0.0
        %10130 = vmatpush.xpose.msra.mxu0 0.0
        %10131 = vmatpush.xpose.msra.mxu0 0.0
        %10132 = vmatpush.xpose.msra.mxu0 0.0
        %10133 = vmatpush.xpose.msra.mxu0 0.0
        %10134 = vmatpush.xpose.msra.mxu0 0.0
        %10135 = vmatpush.xpose.msra.mxu0 0.0
        %10136 = vmatpush.xpose.msra.mxu0 0.0
        %10137 = vmatpush.xpose.msra.mxu0 0.0
        %10138 = vmatpush.xpose.msra.mxu0 0.0
        %10139 = vmatpush.xpose.msra.mxu0 %v9311
        %10140 = vmatmul.f32.gmra.mxu0 %v9807
        %v10141 = vpop.f32.mrf.mxu0
        %v10142 = vadd.f32 %v10122, %v10141
        %10143 = vdwg.mxu0
        %vm10144 = vcmask 57344
        %10145 = vst.msk [vmem:[%s204] sm:$0x1] %vm10144, %v10142
        %s10146 = sand.u32 %s96, 1
        %s10147 = scalar_lea.sflag [#allocation3], %s10146
        %s10148 = sand.u32 %s96, 1
        %s10149 = scalar_lea.vmem [#allocation5], %s10148
        %p10150 = scmp.lt.s32.totalorder %s20, 1
        %s10151 = scalar_select %p10150, %s20, 1
        %s10152 = smul.addr %s10151, 16
        %s10153 = scalar_lea.vmem %s4, %s10152
        // Predicated region
        $region37: #{mainmodel_forward.1} parent=31 // pred_check
          %p10154 = pneg %p106
        $region38: #{mainmodel_forward.1} parent=31 // pred_check_branch
          %10156 = sbr.rel (%p10154) target = $region40
        $region39: #{mainmodel_forward.1} parent=31 // pred_region
          %10158 = vsyncadd %s10147, 0
          %s10159 = scalar_lea.hbm %s3, %s20
          %s10161 = sshll.u32 %s10149, 4
          %s10162 = int_to_ptr.vmem [resolvable:$true] %s10161
          %s10163 = sshll.u32 %s10159, 4
          %s10164 = int_to_ptr.hbm [resolvable:$true] %s10163
          %10166 = dma.vmem_to_hbm [thread:$0]  %s10162, 16, %s10164, %s10147
        $region40: #{mainmodel_forward.1} parent=31 // pred_fallthru
          _
        // Predicated region
        $region41: #{mainmodel_forward.1} parent=31 // pred_check
          %p10167 = pneg %p132
        $region42: #{mainmodel_forward.1} parent=31 // pred_check_branch
          %10169 = sbr.rel (%p10167) target = $region44
        $region43: #{mainmodel_forward.1} parent=31 // pred_region
          _
        $region44: #{mainmodel_forward.1} parent=31 // pred_fallthru
          _
      $region32: #{mainmodel_forward.1} parent=5 // pred_fallthru
        _
      %p10170 = scmp.le.s32.totalorder 2, %s15
      // Predicated region
      $region45: #{mainmodel_forward.1} parent=5 // pred_check
        %p10171 = pneg %p10170
      $region46: #{mainmodel_forward.1} parent=5 // pred_check_branch
        %10173 = sbr.rel (%p10171) target = $region48
      $region47: #{mainmodel_forward.1} parent=5 // pred_region
        %s10174 = ssub.s32 %s15, 2
        // Predicated region
        $region49: #{mainmodel_forward.1} parent=47 // pred_check
          %p10175 = pneg %p112
        $region50: #{mainmodel_forward.1} parent=47 // pred_check_branch
          %10177 = sbr.rel (%p10175) target = $region52
        $region51: #{mainmodel_forward.1} parent=47 // pred_region
          %s10178 = sand.u32 %s97, 1
          %s10179 = scalar_lea.sflag [#allocation3], %s10178
          %s10180 = sand.u32 %s97, 1
          %s10181 = scalar_lea.vmem [#allocation5], %s10180
          %10183 = dma.done %s10179, 16
        $region52: #{mainmodel_forward.1} parent=47 // pred_fallthru
          _
        // Predicated region
        $region53: #{mainmodel_forward.1} parent=47 // pred_check
          %p10184 = pneg %p138
        $region54: #{mainmodel_forward.1} parent=47 // pred_check_branch
          %10186 = sbr.rel (%p10184) target = $region56
        $region55: #{mainmodel_forward.1} parent=47 // pred_region
          %p10187 = scmp.lt.s32.totalorder %s21, 1
          %s10188 = scalar_select %p10187, %s21, 1
          %s10189 = smul.addr %s10188, 16
          %s10190 = scalar_lea.vmem %s4, %s10189
        $region56: #{mainmodel_forward.1} parent=47 // pred_fallthru
          _
      $region48: #{mainmodel_forward.1} parent=5 // pred_fallthru
        _
    $region6: #{mainmodel_forward.1} parent=1 // loop_footer
      %s19 = sadd.s32 1, %s15
    $region7: #{mainmodel_forward.1} parent=1 // loop_footer_branch
      %14 = sbr.rel target = $region3
    $region8: #{mainmodel_forward.1} parent=1 // loop_exit
      _
    %10191 = vsyncpa [#allocation3], 1
    %s10192 = scalar_lea.sflag [#allocation3], 1
    %10193 = vsyncpa %s10192, 1
    %10194 = vsyncpa [#allocation4], 1
    %s10195 = scalar_lea.sflag [#allocation4], 1
    %10196 = vsyncpa %s10195, 1

</llo_original>
